<compile_context>
chip_gen: v6e
topology: v6e:2x2x1
jax: 0.10.0
libtpu: 0.0.40
codegen_flags: <defaults>
</compile_context>

<pallas_src>
import functools
import math

import jax
import jax.numpy as jnp
from jax.experimental import pallas as pl
from jax.experimental.pallas import tpu as pltpu


# ----------------------------------------------------------------------------
# Kernel helpers
# ----------------------------------------------------------------------------
def _layernorm(x, gamma, beta, eps=1e-5):
    mu = jnp.mean(x, axis=-1, keepdims=True)
    var = jnp.mean((x - mu) ** 2, axis=-1, keepdims=True)
    return (x - mu) * jax.lax.rsqrt(var + eps) * gamma + beta


def _vmem_limit_bytes(frac=0.75, fallback=48 << 20):
    """Per-generation scoped-VMEM limit (v5e/v6e 128 MiB, v7x 64 MiB)."""
    try:
        info = pltpu.get_tpu_info()
        cap = getattr(info, "vmem_capacity_bytes", None)
        if cap is None:
            return fallback
        return int(cap * frac)
    except Exception:  # pragma: no cover - conservative fallback
        return fallback


# ----------------------------------------------------------------------------
# Fused STL stack kernel (all layers, WBLK windows per grid step)
# ----------------------------------------------------------------------------
def stl_stack_kernel(x_ref,
                     g1_ref, b1_ref, wq_ref, bq_ref, wk_ref, bk_ref,
                     wv_ref, bv_ref, wproj_ref, bproj_ref,
                     g2_ref, b2_ref, w1_ref, bm1_ref, w2_ref, bm2_ref,
                     o_ref, xres_ref, *, num_heads):
    """Applies every STL layer to a block of WBLK windows of L tokens each.

    Weights are stacked with a leading n_layers dim and stay VMEM-resident.
    wq/bq are expected pre-scaled by 1/sqrt(head_dim).
    The f32 residual stream lives in the VMEM scratch `xres_ref`.
    """
    wblk, L, C = x_ref.shape
    M = wblk * L
    n_layers = len(num_heads)

    xres_ref[...] = x_ref[...].astype(jnp.float32).reshape(M, C)

    def run_layer(li, nh):
        hd = C // nh
        x = xres_ref[...]                                   # (M, C) f32

        # ---- LN1 + windowed multi-head self-attention ----
        h = _layernorm(x, g1_ref[li], b1_ref[li]).astype(jnp.bfloat16)
        q = jnp.dot(h, wq_ref[li], preferred_element_type=jnp.float32) + bq_ref[li]
        k = jnp.dot(h, wk_ref[li], preferred_element_type=jnp.float32) + bk_ref[li]
        v = jnp.dot(h, wv_ref[li], preferred_element_type=jnp.float32) + bv_ref[li]
        q3 = q.reshape(wblk, L, C)
        k3 = k.reshape(wblk, L, C)
        v3 = v.reshape(wblk, L, C)

        # Fold heads into the batch axis (proven-lowering concat path).
        # TODO(synk): replace with a single 4-D einsum once multi-batch-dim
        #             dot_general lowering is verified on this toolchain.
        qh = jnp.concatenate(
            [q3[..., hi * hd:(hi + 1) * hd] for hi in range(nh)],
            axis=0).astype(jnp.bfloat16)
        kh = jnp.concatenate(
            [k3[..., hi * hd:(hi + 1) * hd] for hi in range(nh)],
            axis=0).astype(jnp.bfloat16)
        vh = jnp.concatenate(
            [v3[..., hi * hd:(hi + 1) * hd] for hi in range(nh)],
            axis=0).astype(jnp.bfloat16)

        # Scale already folded into wq/bq.
        s = jnp.einsum('bqd,bkd->bqk', qh, kh,
                       preferred_element_type=jnp.float32)
        s = s - jnp.max(s, axis=-1, keepdims=True)
        p = jnp.exp(s)
        p = p * pl.reciprocal(jnp.sum(p, axis=-1, keepdims=True), approx=True)
        oh = jnp.einsum('bqk,bkd->bqd', p.astype(jnp.bfloat16), vh,
                        preferred_element_type=jnp.float32)  # (nh*wblk, L, hd)

        o = jnp.concatenate(
            [oh[hi * wblk:(hi + 1) * wblk] for hi in range(nh)], axis=-1)
        o = o.reshape(M, C)
        o = jnp.dot(o.astype(jnp.bfloat16), wproj_ref[li],
                    preferred_element_type=jnp.float32) + bproj_ref[li]
        x = x + o

        # ---- LN2 + MLP ----
        h2 = _layernorm(x, g2_ref[li], b2_ref[li]).astype(jnp.bfloat16)
        m = jnp.dot(h2, w1_ref[li], preferred_element_type=jnp.float32) + bm1_ref[li]
        m = jax.nn.gelu(m, approximate=True)
        m = jnp.dot(m.astype(jnp.bfloat16), w2_ref[li],
                    preferred_element_type=jnp.float32) + bm2_ref[li]
        xres_ref[...] = x + m

    if len(set(num_heads)) == 1:
        nh0 = int(num_heads[0])

        @pl.loop(0, n_layers)
        def _(li):
            run_layer(li, nh0)
    else:
        # TODO(synk): per-layer head counts force a static unroll (head count
        #             is a shape parameter of the attention reshapes).
        for li in range(n_layers):
            run_layer(li, int(num_heads[li]))

    o_ref[...] = xres_ref[...].reshape(wblk, L, C).astype(o_ref.dtype)


# ----------------------------------------------------------------------------
# 3x3 'same' conv + residual kernel (one NHWC image per grid step)
# ----------------------------------------------------------------------------
_PADL = 8  # left column pad so the interior store is sublane-tile aligned


def conv3x3_kernel(x_ref, w_ref, b_ref, res_ref, o_ref, xp_ref):
    H, W, Cin = x_ref.shape
    Cout = o_ref.shape[-1]
    Wp = xp_ref.shape[1]

    # Zero only the 1-px halo (not the full scratch); the interior is
    # overwritten every step.  Per-step (not program_id==0-guarded) so it is
    # correct when the parallel grid axis is sharded across TensorCores.
    zrow = jnp.zeros((1, Wp, Cin), xp_ref.dtype)
    xp_ref[0:1, :, :] = zrow
    xp_ref[H + 1:H + 2, :, :] = zrow
    zcol = jnp.zeros((H + 2, 1, Cin), xp_ref.dtype)
    xp_ref[:, _PADL - 1:_PADL, :] = zcol
    xp_ref[:, _PADL + W:_PADL + W + 1, :] = zcol

    # Interior (bf16, no padded HBM copy of the input).
    xp_ref[1:H + 1, _PADL:_PADL + W, :] = x_ref[...]

    # im2col over the 3 column taps -> 3 deep-K (K = 3*Cin) matmuls.
    acc = jnp.zeros((H * W, Cout), jnp.float32)
    for di in range(3):
        row = jnp.concatenate(
            [xp_ref[di:di + H, _PADL - 1 + dj:_PADL - 1 + dj + W, :]
             for dj in range(3)],
            axis=-1)                                   # (H, W, 3*Cin) bf16
        acc = acc + jnp.dot(row.reshape(H * W, 3 * Cin), w_ref[di],
                            preferred_element_type=jnp.float32)
    acc = acc + b_ref[...]
    out = acc.reshape(H, W, Cout) + res_ref[...].astype(jnp.float32)
    o_ref[...] = out.astype(o_ref.dtype)


# ----------------------------------------------------------------------------
# Pallas wrappers
# ----------------------------------------------------------------------------
def _full_spec(shape):
    ndim = len(shape)
    # TODO(synk): pl.Buffered(1) on these (same block every step) would halve
    #             the resident weight footprint; kept default-buffered for
    #             lowering safety.
    return pl.BlockSpec(shape, lambda *_: (0,) * ndim)


_STL_WEIGHT_ORDER = ("g1", "b1", "wq", "bq", "wk", "bk", "wv", "bv",
                     "wproj", "bproj", "g2", "b2", "w1", "bm1", "w2", "bm2")


def swin_layers(x_windows, p, heads, wblk, vmem_limit):
    NW, L, C = x_windows.shape
    assert NW % wblk == 0
    assert p["wq"].shape[0] == len(heads)
    kernel = functools.partial(
        stl_stack_kernel, num_heads=tuple(int(h) for h in heads))
    win_spec = pl.BlockSpec((wblk, L, C), lambda i: (i, 0, 0))
    return pl.pallas_call(
        kernel,
        out_shape=jax.ShapeDtypeStruct((NW, L, C), x_windows.dtype),
        grid=(NW // wblk,),
        in_specs=[win_spec] + [_full_spec(p[k].shape) for k in _STL_WEIGHT_ORDER],
        out_specs=win_spec,
        scratch_shapes=[pltpu.VMEM((wblk * L, C), jnp.float32)],
        compiler_params=pltpu.CompilerParams(
            dimension_semantics=("parallel",),
            vmem_limit_bytes=vmem_limit),
    )(x_windows, *[p[k] for k in _STL_WEIGHT_ORDER])


def conv3x3_residual(x_nhwc, w, b, residual_nhwc, out_dtype, vmem_limit):
    N, H, W, Cin = x_nhwc.shape
    Cout = w.shape[-1]
    # RSTB uses in_channels == out_channels; the residual add requires it.
    assert Cin == Cout
    img_in = pl.BlockSpec((None, H, W, Cin), lambda n: (n, 0, 0, 0))
    img_out = pl.BlockSpec((None, H, W, Cout), lambda n: (n, 0, 0, 0))
    # TODO(synk): for large SwinIR images tile over rows with a 1-row halo
    #             (grid=(N, H//TH)) to respect v7x's 64 MiB VMEM; whole-image
    #             blocks are fine at these shapes.
    return pl.pallas_call(
        conv3x3_kernel,
        out_shape=jax.ShapeDtypeStruct((N, H, W, Cout), out_dtype),
        grid=(N,),
        in_specs=[img_in, _full_spec(w.shape), _full_spec(b.shape), img_in],
        out_specs=img_out,
        scratch_shapes=[pltpu.VMEM((H + 2, _PADL + W + 1, Cin), jnp.bfloat16)],
        compiler_params=pltpu.CompilerParams(
            dimension_semantics=("parallel",),
            vmem_limit_bytes=vmem_limit),
    )(x_nhwc, w, b, residual_nhwc)


# ----------------------------------------------------------------------------
# RSTB forward (glue in plain JAX)
# ----------------------------------------------------------------------------
def window_partition(x, ws):
    N, H, W, C = x.shape
    x = x.reshape(N, H // ws, ws, W // ws, ws, C)
    x = jnp.transpose(x, (0, 1, 3, 2, 4, 5))
    return x.reshape(N * (H // ws) * (W // ws), ws * ws, C)


def window_reverse(xw, ws, N, H, W, C):
    x = xw.reshape(N, H // ws, W // ws, ws, ws, C)
    x = jnp.transpose(x, (0, 1, 3, 2, 4, 5))
    return x.reshape(N, H, W, C)


def _pick_window_block(nw, L, target_rows=512):
    wblk = max(1, min(nw, max(1, target_rows // L)))
    if nw >= 2:
        wblk = min(wblk, nw // 2)   # keep >= 2 grid steps (2 TCs on v7x)
    wblk = max(wblk, 1)
    while nw % wblk:
        wblk -= 1
    return wblk


def rstb_forward(x_nchw, params, window_size, heads):
    N, C, H, W = x_nchw.shape
    feat32 = jnp.transpose(x_nchw, (0, 2, 3, 1))              # NHWC, f32
    feat = feat32.astype(jnp.bfloat16)                        # bf16 kernel I/O
    # Single partition/reverse pair: layers are fused and non-shifted, so
    # tokens never mix across windows between layers.
    xw = window_partition(feat, window_size)                  # (NW, L, C) bf16
    NW, L, _ = xw.shape
    wblk = _pick_window_block(NW, L)
    vlim = _vmem_limit_bytes()
    yw = swin_layers(xw, params["stl"], heads, wblk, vlim)
    y = window_reverse(yw, window_size, N, H, W, C)
    out = conv3x3_residual(y, params["conv_w"], params["conv_b"], feat,
                           out_dtype=x_nchw.dtype, vmem_limit=vlim)
    return jnp.transpose(out, (0, 3, 1, 2))                   # back to NCHW


# ----------------------------------------------------------------------------
# Deterministic parameter init
#  - per-layer weights stacked on a leading n_layers dim, matmul weights bf16
#  - wq/bq pre-scaled by 1/sqrt(head_dim) (attention scale folded in)
#  - conv weight layout (3, 3*Cin, Cout): w[di, dj*Cin + ci, co] corresponds
#    to torch weight[co, ci, di, dj]
# ----------------------------------------------------------------------------
def init_params(key, C, n_layers, heads, mlp_ratio=4):
    assert len(heads) == n_layers
    hidden = C * mlp_ratio
    k = jax.random.split(key, 7)

    def w(ki, shape):
        return (0.05 * jax.random.normal(ki, shape, jnp.float32)).astype(
            jnp.bfloat16)

    scale = jnp.asarray(
        [1.0 / math.sqrt(C // int(h)) for h in heads],
        jnp.float32).reshape(n_layers, 1, 1)
    wq = (w(k[0], (n_layers, C, C)).astype(jnp.float32) * scale).astype(
        jnp.bfloat16)

    stl = dict(
        g1=jnp.ones((n_layers, 1, C), jnp.float32),
        b1=jnp.zeros((n_layers, 1, C), jnp.float32),
        wq=wq,
        bq=jnp.zeros((n_layers, 1, C), jnp.float32),   # pre-scale real bq too
        wk=w(k[1], (n_layers, C, C)),
        bk=jnp.zeros((n_layers, 1, C), jnp.float32),
        wv=w(k[2], (n_layers, C, C)),
        bv=jnp.zeros((n_layers, 1, C), jnp.float32),
        wproj=w(k[3], (n_layers, C, C)),
        bproj=jnp.zeros((n_layers, 1, C), jnp.float32),
        g2=jnp.ones((n_layers, 1, C), jnp.float32),
        b2=jnp.zeros((n_layers, 1, C), jnp.float32),
        w1=w(k[4], (n_layers, C, hidden)),
        bm1=jnp.zeros((n_layers, 1, hidden), jnp.float32),
        w2=w(k[5], (n_layers, hidden, C)),
        bm2=jnp.zeros((n_layers, 1, C), jnp.float32),
    )
    conv_w = w(k[6], (3, 3 * C, C))
    conv_b = jnp.zeros((1, C), jnp.float32)
    return dict(stl=stl, conv_w=conv_w, conv_b=conv_b)


if __name__ == "__main__":
    key = jax.random.PRNGKey(0)
    N, C, H, W = 2, 4, 16, 16            # small shapes consistent with the module
    n_layers = 2
    heads = (2, 2)
    window_size = 4

    key, kx, kp = jax.random.split(key, 3)
    x = jax.random.normal(kx, (N, C, H, W), jnp.float32)
    params = init_params(kp, C, n_layers, heads)

    fwd = jax.jit(functools.partial(
        rstb_forward, window_size=window_size, heads=heads))
    out = jax.block_until_ready(fwd(x, params))
    assert out.shape == (N, C, H, W), out.shape
    assert bool(jnp.all(jnp.isfinite(out)))
    print("KERNEL_OK")
</pallas_src>

<mosaic_0001>
module attributes {stable_mosaic.version = 11 : i64} {
  func.func @conv3x3_kernel(%arg0: i32, %arg1: memref<1x16x16x4xbf16, #tpu.memory_space<vmem>>, %arg2: memref<3x12x4xbf16, #tpu.memory_space<vmem>>, %arg3: memref<1x4xf32, #tpu.memory_space<vmem>>, %arg4: memref<1x16x16x4xbf16, #tpu.memory_space<vmem>>, %arg5: memref<1x16x16x4xf32, #tpu.memory_space<vmem>>, %arg6: memref<18x25x4xbf16, #tpu.memory_space<vmem>>) attributes {dimension_semantics = [#tpu.dimension_semantics<parallel>], iteration_bounds = array<i64: 2>, scalar_prefetch = 0 : i64, scratch_operands = 1 : i64, tpu.core_type = #tpu.core_type<tc>, window_params = [{transform_indices = @transform_0, window_bounds = array<i64: 1, 16, 16, 4>}, {pipeline_mode = #tpu.pipeline_mode<synchronous>, transform_indices = @transform_1, window_bounds = array<i64: 3, 12, 4>}, {pipeline_mode = #tpu.pipeline_mode<synchronous>, transform_indices = @transform_2, window_bounds = array<i64: 1, 4>}, {transform_indices = @transform_3, window_bounds = array<i64: 1, 16, 16, 4>}, {transform_indices = @transform_4, window_bounds = array<i64: 1, 16, 16, 4>}]} {
    %cst = arith.constant 0.000000e+00 : bf16
    %0 = vector.broadcast %cst : bf16 to vector<1x25x4xbf16>
    %c0 = arith.constant 0 : index
    %c0_0 = arith.constant 0 : index
    %c0_1 = arith.constant 0 : index
    %1 = vector.load %arg6[%c0, %c0_0, %c0_1] : memref<18x25x4xbf16, #tpu.memory_space<vmem>>, vector<1x25x4xbf16>
    tpu.vector_store %arg6[%c0, %c0_0, %c0_1], %0 {strides = array<i32>} : memref<18x25x4xbf16, #tpu.memory_space<vmem>>, vector<1x25x4xbf16>,
    %c17 = arith.constant 17 : index
    %c0_2 = arith.constant 0 : index
    %c0_3 = arith.constant 0 : index
    %2 = vector.load %arg6[%c17, %c0_2, %c0_3] : memref<18x25x4xbf16, #tpu.memory_space<vmem>>, vector<1x25x4xbf16>
    tpu.vector_store %arg6[%c17, %c0_2, %c0_3], %0 {strides = array<i32>} : memref<18x25x4xbf16, #tpu.memory_space<vmem>>, vector<1x25x4xbf16>,
    %cst_4 = arith.constant 0.000000e+00 : bf16
    %3 = vector.broadcast %cst_4 : bf16 to vector<18x1x4xbf16>
    %c0_5 = arith.constant 0 : index
    %c7 = arith.constant 7 : index
    %c0_6 = arith.constant 0 : index
    %4 = vector.load %arg6[%c0_5, %c7, %c0_6] : memref<18x25x4xbf16, #tpu.memory_space<vmem>>, vector<18x1x4xbf16>
    tpu.vector_store %arg6[%c0_5, %c7, %c0_6], %3 {strides = array<i32>} : memref<18x25x4xbf16, #tpu.memory_space<vmem>>, vector<18x1x4xbf16>,
    %c0_7 = arith.constant 0 : index
    %c24 = arith.constant 24 : index
    %c0_8 = arith.constant 0 : index
    %5 = vector.load %arg6[%c0_7, %c24, %c0_8] : memref<18x25x4xbf16, #tpu.memory_space<vmem>>, vector<18x1x4xbf16>
    tpu.vector_store %arg6[%c0_7, %c24, %c0_8], %3 {strides = array<i32>} : memref<18x25x4xbf16, #tpu.memory_space<vmem>>, vector<18x1x4xbf16>,
    %c0_9 = arith.constant 0 : index
    %c0_10 = arith.constant 0 : index
    %c0_11 = arith.constant 0 : index
    %c0_12 = arith.constant 0 : index
    %6 = vector.load %arg1[%c0_9, %c0_10, %c0_11, %c0_12] : memref<1x16x16x4xbf16, #tpu.memory_space<vmem>>, vector<1x16x16x4xbf16>
    %7 = vector.shape_cast %6 : vector<1x16x16x4xbf16> to vector<16x16x4xbf16>
    %c1 = arith.constant 1 : index
    %c8 = arith.constant 8 : index
    %c0_13 = arith.constant 0 : index
    %8 = vector.load %arg6[%c1, %c8, %c0_13] : memref<18x25x4xbf16, #tpu.memory_space<vmem>>, vector<16x16x4xbf16>
    tpu.vector_store %arg6[%c1, %c8, %c0_13], %7 {strides = array<i32>} : memref<18x25x4xbf16, #tpu.memory_space<vmem>>, vector<16x16x4xbf16>,
    %cst_14 = arith.constant 0.000000e+00 : f32
    %9 = vector.broadcast %cst_14 : f32 to vector<256x4xf32>
    %c0_15 = arith.constant 0 : index
    %c7_16 = arith.constant 7 : index
    %c0_17 = arith.constant 0 : index
    %10 = vector.load %arg6[%c0_15, %c7_16, %c0_17] : memref<18x25x4xbf16, #tpu.memory_space<vmem>>, vector<16x16x4xbf16>
    %c0_18 = arith.constant 0 : index
    %c8_19 = arith.constant 8 : index
    %c0_20 = arith.constant 0 : index
    %11 = vector.load %arg6[%c0_18, %c8_19, %c0_20] : memref<18x25x4xbf16, #tpu.memory_space<vmem>>, vector<16x16x4xbf16>
    %c0_21 = arith.constant 0 : index
    %c9 = arith.constant 9 : index
    %c0_22 = arith.constant 0 : index
    %12 = vector.load %arg6[%c0_21, %c9, %c0_22] : memref<18x25x4xbf16, #tpu.memory_space<vmem>>, vector<16x16x4xbf16>
    %13 = tpu.concatenate %10, %11, %12 in 2 : vector<16x16x4xbf16>, vector<16x16x4xbf16>, vector<16x16x4xbf16> -> vector<16x16x12xbf16>
    %14 = vector.shape_cast %13 : vector<16x16x12xbf16> to vector<256x12xbf16>
    %c0_23 = arith.constant 0 : index
    %c0_24 = arith.constant 0 : index
    %c0_25 = arith.constant 0 : index
    %15 = vector.load %arg2[%c0_23, %c0_24, %c0_25] : memref<3x12x4xbf16, #tpu.memory_space<vmem>>, vector<1x12x4xbf16>
    %16 = vector.shape_cast %15 : vector<1x12x4xbf16> to vector<12x4xbf16>
    %cst_26 = arith.constant dense<0.000000e+00> : vector<256x4xf32>
    %17 = tpu.matmul %14, %16, %cst_26 {dimension_numbers = #tpu.dot_dimension_numbers<[1], [0], [0], [1], [0, 0, 1, 1], [], []>} : vector<256x12xbf16>, vector<12x4xbf16>, vector<256x4xf32> -> vector<256x4xf32>
    %18 = arith.addf %9, %17 : vector<256x4xf32>
    %c1_27 = arith.constant 1 : index
    %c7_28 = arith.constant 7 : index
    %c0_29 = arith.constant 0 : index
    %19 = vector.load %arg6[%c1_27, %c7_28, %c0_29] : memref<18x25x4xbf16, #tpu.memory_space<vmem>>, vector<16x16x4xbf16>
    %c1_30 = arith.constant 1 : index
    %c8_31 = arith.constant 8 : index
    %c0_32 = arith.constant 0 : index
    %20 = vector.load %arg6[%c1_30, %c8_31, %c0_32] : memref<18x25x4xbf16, #tpu.memory_space<vmem>>, vector<16x16x4xbf16>
    %c1_33 = arith.constant 1 : index
    %c9_34 = arith.constant 9 : index
    %c0_35 = arith.constant 0 : index
    %21 = vector.load %arg6[%c1_33, %c9_34, %c0_35] : memref<18x25x4xbf16, #tpu.memory_space<vmem>>, vector<16x16x4xbf16>
    %22 = tpu.concatenate %19, %20, %21 in 2 : vector<16x16x4xbf16>, vector<16x16x4xbf16>, vector<16x16x4xbf16> -> vector<16x16x12xbf16>
    %23 = vector.shape_cast %22 : vector<16x16x12xbf16> to vector<256x12xbf16>
    %c1_36 = arith.constant 1 : index
    %c0_37 = arith.constant 0 : index
    %c0_38 = arith.constant 0 : index
    %24 = vector.load %arg2[%c1_36, %c0_37, %c0_38] : memref<3x12x4xbf16, #tpu.memory_space<vmem>>, vector<1x12x4xbf16>
    %25 = vector.shape_cast %24 : vector<1x12x4xbf16> to vector<12x4xbf16>
    %cst_39 = arith.constant dense<0.000000e+00> : vector<256x4xf32>
    %26 = tpu.matmul %23, %25, %cst_39 {dimension_numbers = #tpu.dot_dimension_numbers<[1], [0], [0], [1], [0, 0, 1, 1], [], []>} : vector<256x12xbf16>, vector<12x4xbf16>, vector<256x4xf32> -> vector<256x4xf32>
    %27 = arith.addf %18, %26 : vector<256x4xf32>
    %c2 = arith.constant 2 : index
    %c7_40 = arith.constant 7 : index
    %c0_41 = arith.constant 0 : index
    %28 = vector.load %arg6[%c2, %c7_40, %c0_41] : memref<18x25x4xbf16, #tpu.memory_space<vmem>>, vector<16x16x4xbf16>
    %c2_42 = arith.constant 2 : index
    %c8_43 = arith.constant 8 : index
    %c0_44 = arith.constant 0 : index
    %29 = vector.load %arg6[%c2_42, %c8_43, %c0_44] : memref<18x25x4xbf16, #tpu.memory_space<vmem>>, vector<16x16x4xbf16>
    %c2_45 = arith.constant 2 : index
    %c9_46 = arith.constant 9 : index
    %c0_47 = arith.constant 0 : index
    %30 = vector.load %arg6[%c2_45, %c9_46, %c0_47] : memref<18x25x4xbf16, #tpu.memory_space<vmem>>, vector<16x16x4xbf16>
    %31 = tpu.concatenate %28, %29, %30 in 2 : vector<16x16x4xbf16>, vector<16x16x4xbf16>, vector<16x16x4xbf16> -> vector<16x16x12xbf16>
    %32 = vector.shape_cast %31 : vector<16x16x12xbf16> to vector<256x12xbf16>
    %c2_48 = arith.constant 2 : index
    %c0_49 = arith.constant 0 : index
    %c0_50 = arith.constant 0 : index
    %33 = vector.load %arg2[%c2_48, %c0_49, %c0_50] : memref<3x12x4xbf16, #tpu.memory_space<vmem>>, vector<1x12x4xbf16>
    %34 = vector.shape_cast %33 : vector<1x12x4xbf16> to vector<12x4xbf16>
    %cst_51 = arith.constant dense<0.000000e+00> : vector<256x4xf32>
    %35 = tpu.matmul %32, %34, %cst_51 {dimension_numbers = #tpu.dot_dimension_numbers<[1], [0], [0], [1], [0, 0, 1, 1], [], []>} : vector<256x12xbf16>, vector<12x4xbf16>, vector<256x4xf32> -> vector<256x4xf32>
    %36 = arith.addf %27, %35 : vector<256x4xf32>
    %c0_52 = arith.constant 0 : index
    %c0_53 = arith.constant 0 : index
    %37 = vector.load %arg3[%c0_52, %c0_53] : memref<1x4xf32, #tpu.memory_space<vmem>>, vector<1x4xf32>
    %38 = vector.broadcast %37 : vector<1x4xf32> to vector<256x4xf32>
    %39 = arith.addf %36, %38 : vector<256x4xf32>
    %40 = vector.shape_cast %39 : vector<256x4xf32> to vector<16x16x4xf32>
    %c0_54 = arith.constant 0 : index
    %c0_55 = arith.constant 0 : index
    %c0_56 = arith.constant 0 : index
    %c0_57 = arith.constant 0 : index
    %41 = vector.load %arg4[%c0_54, %c0_55, %c0_56, %c0_57] : memref<1x16x16x4xbf16, #tpu.memory_space<vmem>>, vector<1x16x16x4xbf16>
    %42 = vector.shape_cast %41 : vector<1x16x16x4xbf16> to vector<16x16x4xbf16>
    %43 = arith.extf %42 : vector<16x16x4xbf16> to vector<16x16x4xf32>
    %44 = arith.addf %40, %43 : vector<16x16x4xf32>
    %c0_58 = arith.constant 0 : index
    %c0_59 = arith.constant 0 : index
    %c0_60 = arith.constant 0 : index
    %c0_61 = arith.constant 0 : index
    %45 = vector.load %arg5[%c0_58, %c0_59, %c0_60, %c0_61] : memref<1x16x16x4xf32, #tpu.memory_space<vmem>>, vector<1x16x16x4xf32>
    %46 = vector.shape_cast %45 : vector<1x16x16x4xf32> to vector<16x16x4xf32>
    %47 = vector.shape_cast %44 : vector<16x16x4xf32> to vector<1x16x16x4xf32>
    tpu.vector_store %arg5[%c0_58, %c0_59, %c0_60, %c0_61], %47 {strides = array<i32>} : memref<1x16x16x4xf32, #tpu.memory_space<vmem>>, vector<1x16x16x4xf32>,
    return
  }
  func.func @transform_0(%arg0: i32) -> (i32, i32, i32, i32) {
    %c0_i32 = arith.constant 0 : i32
    %c0_i32_0 = arith.constant 0 : i32
    %c0_i32_1 = arith.constant 0 : i32
    %c0_i32_2 = arith.constant 0 : i32
    return %arg0, %c0_i32, %c0_i32_0, %c0_i32_1 : i32, i32, i32, i32
  }
  func.func @transform_1(%arg0: i32) -> (i32, i32, i32) {
    %c0_i32 = arith.constant 0 : i32
    %c0_i32_0 = arith.constant 0 : i32
    %c0_i32_1 = arith.constant 0 : i32
    %c0_i32_2 = arith.constant 0 : i32
    return %c0_i32, %c0_i32_0, %c0_i32_1 : i32, i32, i32
  }
  func.func @transform_2(%arg0: i32) -> (i32, i32) {
    %c0_i32 = arith.constant 0 : i32
    %c0_i32_0 = arith.constant 0 : i32
    %c0_i32_1 = arith.constant 0 : i32
    return %c0_i32, %c0_i32_0 : i32, i32
  }
  func.func @transform_3(%arg0: i32) -> (i32, i32, i32, i32) {
    %c0_i32 = arith.constant 0 : i32
    %c0_i32_0 = arith.constant 0 : i32
    %c0_i32_1 = arith.constant 0 : i32
    %c0_i32_2 = arith.constant 0 : i32
    return %arg0, %c0_i32, %c0_i32_0, %c0_i32_1 : i32, i32, i32, i32
  }
  func.func @transform_4(%arg0: i32) -> (i32, i32, i32, i32) {
    %c0_i32 = arith.constant 0 : i32
    %c0_i32_0 = arith.constant 0 : i32
    %c0_i32_1 = arith.constant 0 : i32
    %c0_i32_2 = arith.constant 0 : i32
    return %arg0, %c0_i32, %c0_i32_0, %c0_i32_1 : i32, i32, i32, i32
  }
}

module attributes {stable_mosaic.version = 11 : i64} {
  func.func @stl_stack_kernel(%arg0: i32, %arg1: memref<16x16x4xbf16, #tpu.memory_space<vmem>>, %arg2: memref<2x1x4xf32, #tpu.memory_space<vmem>>, %arg3: memref<2x1x4xf32, #tpu.memory_space<vmem>>, %arg4: memref<2x4x4xbf16, #tpu.memory_space<vmem>>, %arg5: memref<2x1x4xf32, #tpu.memory_space<vmem>>, %arg6: memref<2x4x4xbf16, #tpu.memory_space<vmem>>, %arg7: memref<2x1x4xf32, #tpu.memory_space<vmem>>, %arg8: memref<2x4x4xbf16, #tpu.memory_space<vmem>>, %arg9: memref<2x1x4xf32, #tpu.memory_space<vmem>>, %arg10: memref<2x4x4xbf16, #tpu.memory_space<vmem>>, %arg11: memref<2x1x4xf32, #tpu.memory_space<vmem>>, %arg12: memref<2x1x4xf32, #tpu.memory_space<vmem>>, %arg13: memref<2x1x4xf32, #tpu.memory_space<vmem>>, %arg14: memref<2x4x16xbf16, #tpu.memory_space<vmem>>, %arg15: memref<2x1x16xf32, #tpu.memory_space<vmem>>, %arg16: memref<2x16x4xbf16, #tpu.memory_space<vmem>>, %arg17: memref<2x1x4xf32, #tpu.memory_space<vmem>>, %arg18: memref<16x16x4xbf16, #tpu.memory_space<vmem>>, %arg19: memref<256x4xf32, #tpu.memory_space<vmem>>) attributes {dimension_semantics = [#tpu.dimension_semantics<parallel>], iteration_bounds = array<i64: 2>, scalar_prefetch = 0 : i64, scratch_operands = 1 : i64, tpu.core_type = #tpu.core_type<tc>, window_params = [{transform_indices = @transform_0, window_bounds = array<i64: 16, 16, 4>}, {pipeline_mode = #tpu.pipeline_mode<synchronous>, transform_indices = @transform_1, window_bounds = array<i64: 2, 1, 4>}, {pipeline_mode = #tpu.pipeline_mode<synchronous>, transform_indices = @transform_2, window_bounds = array<i64: 2, 1, 4>}, {pipeline_mode = #tpu.pipeline_mode<synchronous>, transform_indices = @transform_3, window_bounds = array<i64: 2, 4, 4>}, {pipeline_mode = #tpu.pipeline_mode<synchronous>, transform_indices = @transform_4, window_bounds = array<i64: 2, 1, 4>}, {pipeline_mode = #tpu.pipeline_mode<synchronous>, transform_indices = @transform_5, window_bounds = array<i64: 2, 4, 4>}, {pipeline_mode = #tpu.pipeline_mode<synchronous>, transform_indices = @transform_6, window_bounds = array<i64: 2, 1, 4>}, {pipeline_mode = #tpu.pipeline_mode<synchronous>, transform_indices = @transform_7, window_bounds = array<i64: 2, 4, 4>}, {pipeline_mode = #tpu.pipeline_mode<synchronous>, transform_indices = @transform_8, window_bounds = array<i64: 2, 1, 4>}, {pipeline_mode = #tpu.pipeline_mode<synchronous>, transform_indices = @transform_9, window_bounds = array<i64: 2, 4, 4>}, {pipeline_mode = #tpu.pipeline_mode<synchronous>, transform_indices = @transform_10, window_bounds = array<i64: 2, 1, 4>}, {pipeline_mode = #tpu.pipeline_mode<synchronous>, transform_indices = @transform_11, window_bounds = array<i64: 2, 1, 4>}, {pipeline_mode = #tpu.pipeline_mode<synchronous>, transform_indices = @transform_12, window_bounds = array<i64: 2, 1, 4>}, {pipeline_mode = #tpu.pipeline_mode<synchronous>, transform_indices = @transform_13, window_bounds = array<i64: 2, 4, 16>}, {pipeline_mode = #tpu.pipeline_mode<synchronous>, transform_indices = @transform_14, window_bounds = array<i64: 2, 1, 16>}, {pipeline_mode = #tpu.pipeline_mode<synchronous>, transform_indices = @transform_15, window_bounds = array<i64: 2, 16, 4>}, {pipeline_mode = #tpu.pipeline_mode<synchronous>, transform_indices = @transform_16, window_bounds = array<i64: 2, 1, 4>}, {transform_indices = @transform_17, window_bounds = array<i64: 16, 16, 4>}]} {
    %c0 = arith.constant 0 : index
    %c0_0 = arith.constant 0 : index
    %c0_1 = arith.constant 0 : index
    %0 = vector.load %arg1[%c0, %c0_0, %c0_1] : memref<16x16x4xbf16, #tpu.memory_space<vmem>>, vector<16x16x4xbf16>
    %1 = arith.extf %0 : vector<16x16x4xbf16> to vector<16x16x4xf32>
    %2 = vector.shape_cast %1 : vector<16x16x4xf32> to vector<256x4xf32>
    %c0_2 = arith.constant 0 : index
    %c0_3 = arith.constant 0 : index
    %3 = vector.load %arg19[%c0_2, %c0_3] : memref<256x4xf32, #tpu.memory_space<vmem>>, vector<256x4xf32>
    tpu.vector_store %arg19[%c0_2, %c0_3], %2 {strides = array<i32>} : memref<256x4xf32, #tpu.memory_space<vmem>>, vector<256x4xf32>,
    %c0_i32 = arith.constant 0 : i32
    %c2_i32 = arith.constant 2 : i32
    %4 = arith.addi %c0_i32, %c2_i32 : i32
    %c1_i32 = arith.constant 1 : i32
    scf.for %arg20 = %c0_i32 to %4 step %c1_i32  : i32 {
      %c1_i32_10 = arith.constant 1 : i32
      %9 = arith.muli %arg20, %c1_i32_10 : i32
      %c0_i32_11 = arith.constant 0 : i32
      %10 = arith.addi %c0_i32_11, %9 : i32
      %c0_12 = arith.constant 0 : index
      %c0_13 = arith.constant 0 : index
      %11 = vector.load %arg19[%c0_12, %c0_13] : memref<256x4xf32, #tpu.memory_space<vmem>>, vector<256x4xf32>
      %12 = arith.index_cast %10 : i32 to index
      %c0_14 = arith.constant 0 : index
      %c0_15 = arith.constant 0 : index
      %13 = vector.load %arg2[%12, %c0_14, %c0_15] : memref<2x1x4xf32, #tpu.memory_space<vmem>>, vector<1x1x4xf32>
      %14 = vector.shape_cast %13 : vector<1x1x4xf32> to vector<1x4xf32>
      %15 = arith.index_cast %10 : i32 to index
      %c0_16 = arith.constant 0 : index
      %c0_17 = arith.constant 0 : index
      %16 = vector.load %arg3[%15, %c0_16, %c0_17] : memref<2x1x4xf32, #tpu.memory_space<vmem>>, vector<1x1x4xf32>
      %17 = vector.shape_cast %16 : vector<1x1x4xf32> to vector<1x4xf32>
      %cst = arith.constant dense<0.000000e+00> : vector<256xf32>
      %18 = vector.multi_reduction <add>, %11, %cst [1] : vector<256x4xf32> to vector<256xf32>
      %19 = vector.shape_cast %18 : vector<256xf32> to vector<256x1xf32>
      %cst_18 = arith.constant 4.000000e+00 : f32
      %20 = vector.broadcast %cst_18 : f32 to vector<256x1xf32>
      %21 = arith.divf %19, %20 : vector<256x1xf32>
      %22 = vector.broadcast %21 : vector<256x1xf32> to vector<256x4xf32>
      %23 = arith.subf %11, %22 : vector<256x4xf32>
      %24 = arith.mulf %23, %23 : vector<256x4xf32>
      %cst_19 = arith.constant dense<0.000000e+00> : vector<256xf32>
      %25 = vector.multi_reduction <add>, %24, %cst_19 [1] : vector<256x4xf32> to vector<256xf32>
      %26 = vector.shape_cast %25 : vector<256xf32> to vector<256x1xf32>
      %cst_20 = arith.constant 4.000000e+00 : f32
      %27 = vector.broadcast %cst_20 : f32 to vector<256x1xf32>
      %28 = arith.divf %26, %27 : vector<256x1xf32>
      %29 = vector.broadcast %21 : vector<256x1xf32> to vector<256x4xf32>
      %30 = arith.subf %11, %29 : vector<256x4xf32>
      %cst_21 = arith.constant 9.99999974E-6 : f32
      %31 = vector.broadcast %cst_21 : f32 to vector<256x1xf32>
      %32 = arith.addf %28, %31 : vector<256x1xf32>
      %33 = math.rsqrt %32 : vector<256x1xf32>
      %34 = vector.broadcast %33 : vector<256x1xf32> to vector<256x4xf32>
      %35 = arith.mulf %30, %34 : vector<256x4xf32>
      %36 = vector.broadcast %14 : vector<1x4xf32> to vector<256x4xf32>
      %37 = arith.mulf %35, %36 : vector<256x4xf32>
      %38 = vector.broadcast %17 : vector<1x4xf32> to vector<256x4xf32>
      %39 = arith.addf %37, %38 : vector<256x4xf32>
      %40 = arith.truncf %39 : vector<256x4xf32> to vector<256x4xbf16>
      %41 = arith.index_cast %10 : i32 to index
      %c0_22 = arith.constant 0 : index
      %c0_23 = arith.constant 0 : index
      %42 = vector.load %arg4[%41, %c0_22, %c0_23] : memref<2x4x4xbf16, #tpu.memory_space<vmem>>, vector<1x4x4xbf16>
      %43 = vector.shape_cast %42 : vector<1x4x4xbf16> to vector<4x4xbf16>
      %cst_24 = arith.constant dense<0.000000e+00> : vector<256x4xf32>
      %44 = tpu.matmul %40, %43, %cst_24 {dimension_numbers = #tpu.dot_dimension_numbers<[1], [0], [0], [1], [0, 0, 1, 1], [], []>} : vector<256x4xbf16>, vector<4x4xbf16>, vector<256x4xf32> -> vector<256x4xf32>
      %45 = arith.index_cast %10 : i32 to index
      %c0_25 = arith.constant 0 : index
      %c0_26 = arith.constant 0 : index
      %46 = vector.load %arg5[%45, %c0_25, %c0_26] : memref<2x1x4xf32, #tpu.memory_space<vmem>>, vector<1x1x4xf32>
      %47 = vector.shape_cast %46 : vector<1x1x4xf32> to vector<1x4xf32>
      %48 = vector.broadcast %47 : vector<1x4xf32> to vector<256x4xf32>
      %49 = arith.addf %44, %48 : vector<256x4xf32>
      %50 = arith.index_cast %10 : i32 to index
      %c0_27 = arith.constant 0 : index
      %c0_28 = arith.constant 0 : index
      %51 = vector.load %arg6[%50, %c0_27, %c0_28] : memref<2x4x4xbf16, #tpu.memory_space<vmem>>, vector<1x4x4xbf16>
      %52 = vector.shape_cast %51 : vector<1x4x4xbf16> to vector<4x4xbf16>
      %cst_29 = arith.constant dense<0.000000e+00> : vector<256x4xf32>
      %53 = tpu.matmul %40, %52, %cst_29 {dimension_numbers = #tpu.dot_dimension_numbers<[1], [0], [0], [1], [0, 0, 1, 1], [], []>} : vector<256x4xbf16>, vector<4x4xbf16>, vector<256x4xf32> -> vector<256x4xf32>
      %54 = arith.index_cast %10 : i32 to index
      %c0_30 = arith.constant 0 : index
      %c0_31 = arith.constant 0 : index
      %55 = vector.load %arg7[%54, %c0_30, %c0_31] : memref<2x1x4xf32, #tpu.memory_space<vmem>>, vector<1x1x4xf32>
      %56 = vector.shape_cast %55 : vector<1x1x4xf32> to vector<1x4xf32>
      %57 = vector.broadcast %56 : vector<1x4xf32> to vector<256x4xf32>
      %58 = arith.addf %53, %57 : vector<256x4xf32>
      %59 = arith.index_cast %10 : i32 to index
      %c0_32 = arith.constant 0 : index
      %c0_33 = arith.constant 0 : index
      %60 = vector.load %arg8[%59, %c0_32, %c0_33] : memref<2x4x4xbf16, #tpu.memory_space<vmem>>, vector<1x4x4xbf16>
      %61 = vector.shape_cast %60 : vector<1x4x4xbf16> to vector<4x4xbf16>
      %cst_34 = arith.constant dense<0.000000e+00> : vector<256x4xf32>
      %62 = tpu.matmul %40, %61, %cst_34 {dimension_numbers = #tpu.dot_dimension_numbers<[1], [0], [0], [1], [0, 0, 1, 1], [], []>} : vector<256x4xbf16>, vector<4x4xbf16>, vector<256x4xf32> -> vector<256x4xf32>
      %63 = arith.index_cast %10 : i32 to index
      %c0_35 = arith.constant 0 : index
      %c0_36 = arith.constant 0 : index
      %64 = vector.load %arg9[%63, %c0_35, %c0_36] : memref<2x1x4xf32, #tpu.memory_space<vmem>>, vector<1x1x4xf32>
      %65 = vector.shape_cast %64 : vector<1x1x4xf32> to vector<1x4xf32>
      %66 = vector.broadcast %65 : vector<1x4xf32> to vector<256x4xf32>
      %67 = arith.addf %62, %66 : vector<256x4xf32>
      %68 = vector.shape_cast %49 : vector<256x4xf32> to vector<16x16x4xf32>
      %69 = vector.shape_cast %58 : vector<256x4xf32> to vector<16x16x4xf32>
      %70 = vector.shape_cast %67 : vector<256x4xf32> to vector<16x16x4xf32>
      %71 = vector.extract_strided_slice %68 {offsets = [0, 0, 0], sizes = [16, 16, 2], strides = [1, 1, 1]} : vector<16x16x4xf32> to vector<16x16x2xf32>
      %72 = vector.extract_strided_slice %68 {offsets = [0, 0, 2], sizes = [16, 16, 2], strides = [1, 1, 1]} : vector<16x16x4xf32> to vector<16x16x2xf32>
      %73 = tpu.concatenate %71, %72 in 0 : vector<16x16x2xf32>, vector<16x16x2xf32> -> vector<32x16x2xf32>
      %74 = arith.truncf %73 : vector<32x16x2xf32> to vector<32x16x2xbf16>
      %75 = vector.extract_strided_slice %69 {offsets = [0, 0, 0], sizes = [16, 16, 2], strides = [1, 1, 1]} : vector<16x16x4xf32> to vector<16x16x2xf32>
      %76 = vector.extract_strided_slice %69 {offsets = [0, 0, 2], sizes = [16, 16, 2], strides = [1, 1, 1]} : vector<16x16x4xf32> to vector<16x16x2xf32>
      %77 = tpu.concatenate %75, %76 in 0 : vector<16x16x2xf32>, vector<16x16x2xf32> -> vector<32x16x2xf32>
      %78 = arith.truncf %77 : vector<32x16x2xf32> to vector<32x16x2xbf16>
      %79 = vector.extract_strided_slice %70 {offsets = [0, 0, 0], sizes = [16, 16, 2], strides = [1, 1, 1]} : vector<16x16x4xf32> to vector<16x16x2xf32>
      %80 = vector.extract_strided_slice %70 {offsets = [0, 0, 2], sizes = [16, 16, 2], strides = [1, 1, 1]} : vector<16x16x4xf32> to vector<16x16x2xf32>
      %81 = tpu.concatenate %79, %80 in 0 : vector<16x16x2xf32>, vector<16x16x2xf32> -> vector<32x16x2xf32>
      %82 = arith.truncf %81 : vector<32x16x2xf32> to vector<32x16x2xbf16>
      "tpu.trace_start"() <{level = 10 : i32, message = "bqd,bkd->bqk"}> : () -> ()
      %cst_37 = arith.constant dense<0.000000e+00> : vector<32x16x16xf32>
      %83 = tpu.matmul %74, %78, %cst_37 {dimension_numbers = #tpu.dot_dimension_numbers<[2], [2], [1], [1], [0, 0, 0, 1, 1, 1], [0], [0]>} : vector<32x16x2xbf16>, vector<32x16x2xbf16>, vector<32x16x16xf32> -> vector<32x16x16xf32>
      "tpu.trace_stop"() : () -> ()
      %cst_38 = arith.constant dense<0xFF800000> : vector<32x16xf32>
      %84 = vector.multi_reduction <maximumf>, %83, %cst_38 [2] : vector<32x16x16xf32> to vector<32x16xf32>
      %85 = vector.shape_cast %84 : vector<32x16xf32> to vector<32x16x1xf32>
      %86 = vector.broadcast %85 : vector<32x16x1xf32> to vector<32x16x16xf32>
      %87 = arith.subf %83, %86 : vector<32x16x16xf32>
      %88 = math.exp %87 : vector<32x16x16xf32>
      %cst_39 = arith.constant dense<0.000000e+00> : vector<32x16xf32>
      %89 = vector.multi_reduction <add>, %88, %cst_39 [2] : vector<32x16x16xf32> to vector<32x16xf32>
      %90 = vector.shape_cast %89 : vector<32x16xf32> to vector<32x16x1xf32>
      %91 = tpu.reciprocal %90 {approx = true} : vector<32x16x1xf32> -> vector<32x16x1xf32>
      %92 = vector.broadcast %91 : vector<32x16x1xf32> to vector<32x16x16xf32>
      %93 = arith.mulf %88, %92 : vector<32x16x16xf32>
      %94 = arith.truncf %93 : vector<32x16x16xf32> to vector<32x16x16xbf16>
      "tpu.trace_start"() <{level = 10 : i32, message = "bqk,bkd->bqd"}> : () -> ()
      %cst_40 = arith.constant dense<0.000000e+00> : vector<32x16x2xf32>
      %95 = tpu.matmul %94, %82, %cst_40 {dimension_numbers = #tpu.dot_dimension_numbers<[2], [1], [1], [2], [0, 0, 0, 1, 1, 2], [0], [0]>} : vector<32x16x16xbf16>, vector<32x16x2xbf16>, vector<32x16x2xf32> -> vector<32x16x2xf32>
      "tpu.trace_stop"() : () -> ()
      %96 = vector.extract_strided_slice %95 {offsets = [0, 0, 0], sizes = [16, 16, 2], strides = [1, 1, 1]} : vector<32x16x2xf32> to vector<16x16x2xf32>
      %97 = vector.extract_strided_slice %95 {offsets = [16, 0, 0], sizes = [16, 16, 2], strides = [1, 1, 1]} : vector<32x16x2xf32> to vector<16x16x2xf32>
      %98 = tpu.concatenate %96, %97 in 2 : vector<16x16x2xf32>, vector<16x16x2xf32> -> vector<16x16x4xf32>
      %99 = vector.shape_cast %98 : vector<16x16x4xf32> to vector<256x4xf32>
      %100 = arith.truncf %99 : vector<256x4xf32> to vector<256x4xbf16>
      %101 = arith.index_cast %10 : i32 to index
      %c0_41 = arith.constant 0 : index
      %c0_42 = arith.constant 0 : index
      %102 = vector.load %arg10[%101, %c0_41, %c0_42] : memref<2x4x4xbf16, #tpu.memory_space<vmem>>, vector<1x4x4xbf16>
      %103 = vector.shape_cast %102 : vector<1x4x4xbf16> to vector<4x4xbf16>
      %cst_43 = arith.constant dense<0.000000e+00> : vector<256x4xf32>
      %104 = tpu.matmul %100, %103, %cst_43 {dimension_numbers = #tpu.dot_dimension_numbers<[1], [0], [0], [1], [0, 0, 1, 1], [], []>} : vector<256x4xbf16>, vector<4x4xbf16>, vector<256x4xf32> -> vector<256x4xf32>
      %105 = arith.index_cast %10 : i32 to index
      %c0_44 = arith.constant 0 : index
      %c0_45 = arith.constant 0 : index
      %106 = vector.load %arg11[%105, %c0_44, %c0_45] : memref<2x1x4xf32, #tpu.memory_space<vmem>>, vector<1x1x4xf32>
      %107 = vector.shape_cast %106 : vector<1x1x4xf32> to vector<1x4xf32>
      %108 = vector.broadcast %107 : vector<1x4xf32> to vector<256x4xf32>
      %109 = arith.addf %104, %108 : vector<256x4xf32>
      %110 = arith.addf %11, %109 : vector<256x4xf32>
      %111 = arith.index_cast %10 : i32 to index
      %c0_46 = arith.constant 0 : index
      %c0_47 = arith.constant 0 : index
      %112 = vector.load %arg12[%111, %c0_46, %c0_47] : memref<2x1x4xf32, #tpu.memory_space<vmem>>, vector<1x1x4xf32>
      %113 = vector.shape_cast %112 : vector<1x1x4xf32> to vector<1x4xf32>
      %114 = arith.index_cast %10 : i32 to index
      %c0_48 = arith.constant 0 : index
      %c0_49 = arith.constant 0 : index
      %115 = vector.load %arg13[%114, %c0_48, %c0_49] : memref<2x1x4xf32, #tpu.memory_space<vmem>>, vector<1x1x4xf32>
      %116 = vector.shape_cast %115 : vector<1x1x4xf32> to vector<1x4xf32>
      %cst_50 = arith.constant dense<0.000000e+00> : vector<256xf32>
      %117 = vector.multi_reduction <add>, %110, %cst_50 [1] : vector<256x4xf32> to vector<256xf32>
      %118 = vector.shape_cast %117 : vector<256xf32> to vector<256x1xf32>
      %cst_51 = arith.constant 4.000000e+00 : f32
      %119 = vector.broadcast %cst_51 : f32 to vector<256x1xf32>
      %120 = arith.divf %118, %119 : vector<256x1xf32>
      %121 = vector.broadcast %120 : vector<256x1xf32> to vector<256x4xf32>
      %122 = arith.subf %110, %121 : vector<256x4xf32>
      %123 = arith.mulf %122, %122 : vector<256x4xf32>
      %cst_52 = arith.constant dense<0.000000e+00> : vector<256xf32>
      %124 = vector.multi_reduction <add>, %123, %cst_52 [1] : vector<256x4xf32> to vector<256xf32>
      %125 = vector.shape_cast %124 : vector<256xf32> to vector<256x1xf32>
      %cst_53 = arith.constant 4.000000e+00 : f32
      %126 = vector.broadcast %cst_53 : f32 to vector<256x1xf32>
      %127 = arith.divf %125, %126 : vector<256x1xf32>
      %128 = vector.broadcast %120 : vector<256x1xf32> to vector<256x4xf32>
      %129 = arith.subf %110, %128 : vector<256x4xf32>
      %cst_54 = arith.constant 9.99999974E-6 : f32
      %130 = vector.broadcast %cst_54 : f32 to vector<256x1xf32>
      %131 = arith.addf %127, %130 : vector<256x1xf32>
      %132 = math.rsqrt %131 : vector<256x1xf32>
      %133 = vector.broadcast %132 : vector<256x1xf32> to vector<256x4xf32>
      %134 = arith.mulf %129, %133 : vector<256x4xf32>
      %135 = vector.broadcast %113 : vector<1x4xf32> to vector<256x4xf32>
      %136 = arith.mulf %134, %135 : vector<256x4xf32>
      %137 = vector.broadcast %116 : vector<1x4xf32> to vector<256x4xf32>
      %138 = arith.addf %136, %137 : vector<256x4xf32>
      %139 = arith.truncf %138 : vector<256x4xf32> to vector<256x4xbf16>
      %140 = arith.index_cast %10 : i32 to index
      %c0_55 = arith.constant 0 : index
      %c0_56 = arith.constant 0 : index
      %141 = vector.load %arg14[%140, %c0_55, %c0_56] : memref<2x4x16xbf16, #tpu.memory_space<vmem>>, vector<1x4x16xbf16>
      %142 = vector.shape_cast %141 : vector<1x4x16xbf16> to vector<4x16xbf16>
      %cst_57 = arith.constant dense<0.000000e+00> : vector<256x16xf32>
      %143 = tpu.matmul %139, %142, %cst_57 {dimension_numbers = #tpu.dot_dimension_numbers<[1], [0], [0], [1], [0, 0, 1, 1], [], []>} : vector<256x4xbf16>, vector<4x16xbf16>, vector<256x16xf32> -> vector<256x16xf32>
      %144 = arith.index_cast %10 : i32 to index
      %c0_58 = arith.constant 0 : index
      %c0_59 = arith.constant 0 : index
      %145 = vector.load %arg15[%144, %c0_58, %c0_59] : memref<2x1x16xf32, #tpu.memory_space<vmem>>, vector<1x1x16xf32>
      %146 = vector.shape_cast %145 : vector<1x1x16xf32> to vector<1x16xf32>
      %147 = vector.broadcast %146 : vector<1x16xf32> to vector<256x16xf32>
      %148 = arith.addf %143, %147 : vector<256x16xf32>
      %149 = arith.mulf %148, %148 : vector<256x16xf32>
      %150 = arith.mulf %148, %149 : vector<256x16xf32>
      %cst_60 = arith.constant 4.471500e-02 : f32
      %151 = vector.broadcast %cst_60 : f32 to vector<256x16xf32>
      %152 = arith.mulf %151, %150 : vector<256x16xf32>
      %153 = arith.addf %148, %152 : vector<256x16xf32>
      %cst_61 = arith.constant 0.797884583 : f32
      %154 = vector.broadcast %cst_61 : f32 to vector<256x16xf32>
      %155 = arith.mulf %154, %153 : vector<256x16xf32>
      %156 = math.tanh %155 : vector<256x16xf32>
      %cst_62 = arith.constant 1.000000e+00 : f32
      %157 = vector.broadcast %cst_62 : f32 to vector<256x16xf32>
      %158 = arith.addf %157, %156 : vector<256x16xf32>
      %cst_63 = arith.constant 5.000000e-01 : f32
      %159 = vector.broadcast %cst_63 : f32 to vector<256x16xf32>
      %160 = arith.mulf %159, %158 : vector<256x16xf32>
      %161 = arith.mulf %148, %160 : vector<256x16xf32>
      %162 = arith.truncf %161 : vector<256x16xf32> to vector<256x16xbf16>
      %163 = arith.index_cast %10 : i32 to index
      %c0_64 = arith.constant 0 : index
      %c0_65 = arith.constant 0 : index
      %164 = vector.load %arg16[%163, %c0_64, %c0_65] : memref<2x16x4xbf16, #tpu.memory_space<vmem>>, vector<1x16x4xbf16>
      %165 = vector.shape_cast %164 : vector<1x16x4xbf16> to vector<16x4xbf16>
      %cst_66 = arith.constant dense<0.000000e+00> : vector<256x4xf32>
      %166 = tpu.matmul %162, %165, %cst_66 {dimension_numbers = #tpu.dot_dimension_numbers<[1], [0], [0], [1], [0, 0, 1, 1], [], []>} : vector<256x16xbf16>, vector<16x4xbf16>, vector<256x4xf32> -> vector<256x4xf32>
      %167 = arith.index_cast %10 : i32 to index
      %c0_67 = arith.constant 0 : index
      %c0_68 = arith.constant 0 : index
      %168 = vector.load %arg17[%167, %c0_67, %c0_68] : memref<2x1x4xf32, #tpu.memory_space<vmem>>, vector<1x1x4xf32>
      %169 = vector.shape_cast %168 : vector<1x1x4xf32> to vector<1x4xf32>
      %170 = vector.broadcast %169 : vector<1x4xf32> to vector<256x4xf32>
      %171 = arith.addf %166, %170 : vector<256x4xf32>
      %172 = arith.addf %110, %171 : vector<256x4xf32>
      %c0_69 = arith.constant 0 : index
      %c0_70 = arith.constant 0 : index
      %173 = vector.load %arg19[%c0_69, %c0_70] : memref<256x4xf32, #tpu.memory_space<vmem>>, vector<256x4xf32>
      tpu.vector_store %arg19[%c0_69, %c0_70], %172 {strides = array<i32>} : memref<256x4xf32, #tpu.memory_space<vmem>>, vector<256x4xf32>,
    }
    %c2_i32_4 = arith.constant 2 : i32
    %c0_5 = arith.constant 0 : index
    %c0_6 = arith.constant 0 : index
    %5 = vector.load %arg19[%c0_5, %c0_6] : memref<256x4xf32, #tpu.memory_space<vmem>>, vector<256x4xf32>
    %6 = vector.shape_cast %5 : vector<256x4xf32> to vector<16x16x4xf32>
    %7 = arith.truncf %6 : vector<16x16x4xf32> to vector<16x16x4xbf16>
    %c0_7 = arith.constant 0 : index
    %c0_8 = arith.constant 0 : index
    %c0_9 = arith.constant 0 : index
    %8 = vector.load %arg18[%c0_7, %c0_8, %c0_9] : memref<16x16x4xbf16, #tpu.memory_space<vmem>>, vector<16x16x4xbf16>
    tpu.vector_store %arg18[%c0_7, %c0_8, %c0_9], %7 {strides = array<i32>} : memref<16x16x4xbf16, #tpu.memory_space<vmem>>, vector<16x16x4xbf16>,
    return
  }
  func.func @transform_0(%arg0: i32) -> (i32, i32, i32) {
    %c0_i32 = arith.constant 0 : i32
    %c0_i32_0 = arith.constant 0 : i32
    %c0_i32_1 = arith.constant 0 : i32
    return %arg0, %c0_i32, %c0_i32_0 : i32, i32, i32
  }
  func.func @transform_1(%arg0: i32) -> (i32, i32, i32) {
    %c0_i32 = arith.constant 0 : i32
    %c0_i32_0 = arith.constant 0 : i32
    %c0_i32_1 = arith.constant 0 : i32
    %c0_i32_2 = arith.constant 0 : i32
    return %c0_i32, %c0_i32_0, %c0_i32_1 : i32, i32, i32
  }
  func.func @transform_2(%arg0: i32) -> (i32, i32, i32) {
    %c0_i32 = arith.constant 0 : i32
    %c0_i32_0 = arith.constant 0 : i32
    %c0_i32_1 = arith.constant 0 : i32
    %c0_i32_2 = arith.constant 0 : i32
    return %c0_i32, %c0_i32_0, %c0_i32_1 : i32, i32, i32
  }
  func.func @transform_3(%arg0: i32) -> (i32, i32, i32) {
    %c0_i32 = arith.constant 0 : i32
    %c0_i32_0 = arith.constant 0 : i32
    %c0_i32_1 = arith.constant 0 : i32
    %c0_i32_2 = arith.constant 0 : i32
    return %c0_i32, %c0_i32_0, %c0_i32_1 : i32, i32, i32
  }
  func.func @transform_4(%arg0: i32) -> (i32, i32, i32) {
    %c0_i32 = arith.constant 0 : i32
    %c0_i32_0 = arith.constant 0 : i32
    %c0_i32_1 = arith.constant 0 : i32
    %c0_i32_2 = arith.constant 0 : i32
    return %c0_i32, %c0_i32_0, %c0_i32_1 : i32, i32, i32
  }
  func.func @transform_5(%arg0: i32) -> (i32, i32, i32) {
    %c0_i32 = arith.constant 0 : i32
    %c0_i32_0 = arith.constant 0 : i32
    %c0_i32_1 = arith.constant 0 : i32
    %c0_i32_2 = arith.constant 0 : i32
    return %c0_i32, %c0_i32_0, %c0_i32_1 : i32, i32, i32
  }
  func.func @transform_6(%arg0: i32) -> (i32, i32, i32) {
    %c0_i32 = arith.constant 0 : i32
    %c0_i32_0 = arith.constant 0 : i32
    %c0_i32_1 = arith.constant 0 : i32
    %c0_i32_2 = arith.constant 0 : i32
    return %c0_i32, %c0_i32_0, %c0_i32_1 : i32, i32, i32
  }
  func.func @transform_7(%arg0: i32) -> (i32, i32, i32) {
    %c0_i32 = arith.constant 0 : i32
    %c0_i32_0 = arith.constant 0 : i32
    %c0_i32_1 = arith.constant 0 : i32
    %c0_i32_2 = arith.constant 0 : i32
    return %c0_i32, %c0_i32_0, %c0_i32_1 : i32, i32, i32
  }
  func.func @transform_8(%arg0: i32) -> (i32, i32, i32) {
    %c0_i32 = arith.constant 0 : i32
    %c0_i32_0 = arith.constant 0 : i32
    %c0_i32_1 = arith.constant 0 : i32
    %c0_i32_2 = arith.constant 0 : i32
    return %c0_i32, %c0_i32_0, %c0_i32_1 : i32, i32, i32
  }
  func.func @transform_9(%arg0: i32) -> (i32, i32, i32) {
    %c0_i32 = arith.constant 0 : i32
    %c0_i32_0 = arith.constant 0 : i32
    %c0_i32_1 = arith.constant 0 : i32
    %c0_i32_2 = arith.constant 0 : i32
    return %c0_i32, %c0_i32_0, %c0_i32_1 : i32, i32, i32
  }
  func.func @transform_10(%arg0: i32) -> (i32, i32, i32) {
    %c0_i32 = arith.constant 0 : i32
    %c0_i32_0 = arith.constant 0 : i32
    %c0_i32_1 = arith.constant 0 : i32
    %c0_i32_2 = arith.constant 0 : i32
    return %c0_i32, %c0_i32_0, %c0_i32_1 : i32, i32, i32
  }
  func.func @transform_11(%arg0: i32) -> (i32, i32, i32) {
    %c0_i32 = arith.constant 0 : i32
    %c0_i32_0 = arith.constant 0 : i32
    %c0_i32_1 = arith.constant 0 : i32
    %c0_i32_2 = arith.constant 0 : i32
    return %c0_i32, %c0_i32_0, %c0_i32_1 : i32, i32, i32
  }
  func.func @transform_12(%arg0: i32) -> (i32, i32, i32) {
    %c0_i32 = arith.constant 0 : i32
    %c0_i32_0 = arith.constant 0 : i32
    %c0_i32_1 = arith.constant 0 : i32
    %c0_i32_2 = arith.constant 0 : i32
    return %c0_i32, %c0_i32_0, %c0_i32_1 : i32, i32, i32
  }
  func.func @transform_13(%arg0: i32) -> (i32, i32, i32) {
    %c0_i32 = arith.constant 0 : i32
    %c0_i32_0 = arith.constant 0 : i32
    %c0_i32_1 = arith.constant 0 : i32
    %c0_i32_2 = arith.constant 0 : i32
    return %c0_i32, %c0_i32_0, %c0_i32_1 : i32, i32, i32
  }
  func.func @transform_14(%arg0: i32) -> (i32, i32, i32) {
    %c0_i32 = arith.constant 0 : i32
    %c0_i32_0 = arith.constant 0 : i32
    %c0_i32_1 = arith.constant 0 : i32
    %c0_i32_2 = arith.constant 0 : i32
    return %c0_i32, %c0_i32_0, %c0_i32_1 : i32, i32, i32
  }
  func.func @transform_15(%arg0: i32) -> (i32, i32, i32) {
    %c0_i32 = arith.constant 0 : i32
    %c0_i32_0 = arith.constant 0 : i32
    %c0_i32_1 = arith.constant 0 : i32
    %c0_i32_2 = arith.constant 0 : i32
    return %c0_i32, %c0_i32_0, %c0_i32_1 : i32, i32, i32
  }
  func.func @transform_16(%arg0: i32) -> (i32, i32, i32) {
    %c0_i32 = arith.constant 0 : i32
    %c0_i32_0 = arith.constant 0 : i32
    %c0_i32_1 = arith.constant 0 : i32
    %c0_i32_2 = arith.constant 0 : i32
    return %c0_i32, %c0_i32_0, %c0_i32_1 : i32, i32, i32
  }
  func.func @transform_17(%arg0: i32) -> (i32, i32, i32) {
    %c0_i32 = arith.constant 0 : i32
    %c0_i32_0 = arith.constant 0 : i32
    %c0_i32_1 = arith.constant 0 : i32
    return %arg0, %c0_i32, %c0_i32_0 : i32, i32, i32
  }
}

</mosaic_0001>

<llo_original>
// kernel: rstb_forward.3
$region0: #{rstb_forward.3}
  #allocation0 [shape = 'u32[]', space=smem, size = 0x4, offset = 0x4, fixed_abs, tag = 'smem constant byte address 0x4 - core index']
  #allocation1 [shape = 'u32[144,128]{1,0:T(1,128)}', space=vmem, size = 0x12000, scoped, tag = 'internal scratch']
  #allocation2 [shape = 'bf16[18,25,4]{2,1,0:T(8,128)(2,1)}', space=vmem, size = 0x24000, scoped, tag = 'scratch operand']
  %s0 = inlined_call_operand.vmem [shape: bf16[2,16,16,4], index: 0, kind: input, shape index: {}]
  %s1 = inlined_call_operand.vmem [shape: bf16[3,12,4], index: 1, kind: input, shape index: {}]
  %s2 = inlined_call_operand.vmem [shape: f32[1,4], index: 2, kind: input, shape index: {}]
  %s3 = inlined_call_operand.vmem [shape: bf16[2,16,16,4], index: 3, kind: input, shape index: {}]
  %s4 = inlined_call_operand.vmem [shape: f32[2,16,16,4], index: 4, kind: output, shape index: {}]
  %s5 = sld [smem:[#allocation0]]
  $region49: #{rstb_forward.3} parent=0
    _
  %s7 = ssub.s32 1, %s5
  %s8 = scalar_select 0, %s7, %s5
  loop: start=0, step=1, limit=4
  $region2: #{rstb_forward.3} parent=0 // loop_pre_header
    _
  $region3: #{rstb_forward.3} parent=0 // loop_header
    %s10 = sphi 0, %s14
    %p11 = scmp.ge.s32.totalorder %s10, 4
    %s20 = sphi 0, %s22
    %s23 = sphi 0, %s20
    %s24 = sphi 0, %s23
    %s40 = sphi 0, %s24
    %s44 = sphi 0, %s44
    %s46 = sphi 0, %s44
    %s47 = sphi 0, %s46
    %s61 = sphi 0, %s47
    %s65 = sphi 0, %s65
    %s67 = sphi 0, %s65
    %s68 = sphi 0, %s67
    %s82 = sphi 0, %s68
    %s88 = sphi 0, %s90
    %s91 = sphi 0, %s88
    %s92 = sphi 0, %s91
    %s108 = sphi 0, %s92
    %s114 = sphi 0, %s116
    %s117 = sphi 0, %s114
    %s118 = sphi 0, %s117
    %s134 = sphi 0, %s118
  $region4: #{rstb_forward.3} parent=0 // loop_header_branch
    %13 = sbr.rel (%p11) target = $region8
  $region5: #{rstb_forward.3} parent=0 // loop_body
    %s15 = ssub.s32 %s10, 1
    %s16 = ssub.s32 %s10, 2
    %s17 = sadd.s32 %s10, 1
    %s18 = ssub.s32 %s10, %s17
    %p19 = scmp.eq.s32.totalorder %s18, 0
    %s21 = sadd.s32 %s20, 1
    %s22 = scalar_select %p19, %s20, %s21
    %p25 = pneg %p19
    %p26 = scmp.eq.s32.totalorder %s10, 1
    %p27 = por %p25, %p26
    %p28 = scmp.ne.s32.totalorder %s20, %s23
    %p29 = scmp.eq.s32.totalorder %s10, 0
    %p30 = por %p28, %p29
    %p31 = scmp.ne.s32.totalorder %s20, %s23
    %p32 = scmp.eq.s32.totalorder %s15, 1
    %p33 = por %p31, %p32
    %p34 = scmp.ne.s32.totalorder %s23, %s24
    %p35 = scmp.eq.s32.totalorder %s15, 0
    %p36 = por %p34, %p35
    %p37 = scmp.ne.s32.totalorder %s23, %s24
    %p38 = scmp.eq.s32.totalorder %s16, 1
    %p39 = por %p37, %p38
    %p41 = scmp.ne.s32.totalorder %s24, %s40
    %p42 = scmp.eq.s32.totalorder %s16, 0
    %p43 = por %p41, %p42
    %s45 = sadd.s32 %s44, 1
    %p48 = scmp.eq.s32.totalorder %s10, 1
    %p49 = scmp.ne.s32.totalorder %s44, %s46
    %p50 = scmp.eq.s32.totalorder %s10, 0
    %p51 = por %p49, %p50
    %p52 = scmp.ne.s32.totalorder %s44, %s46
    %p53 = scmp.eq.s32.totalorder %s15, 1
    %p54 = por %p52, %p53
    %p55 = scmp.ne.s32.totalorder %s46, %s47
    %p56 = scmp.eq.s32.totalorder %s15, 0
    %p57 = por %p55, %p56
    %p58 = scmp.ne.s32.totalorder %s46, %s47
    %p59 = scmp.eq.s32.totalorder %s16, 1
    %p60 = por %p58, %p59
    %p62 = scmp.ne.s32.totalorder %s47, %s61
    %p63 = scmp.eq.s32.totalorder %s16, 0
    %p64 = por %p62, %p63
    %s66 = sadd.s32 %s65, 1
    %p69 = scmp.eq.s32.totalorder %s10, 1
    %p70 = scmp.ne.s32.totalorder %s65, %s67
    %p71 = scmp.eq.s32.totalorder %s10, 0
    %p72 = por %p70, %p71
    %p73 = scmp.ne.s32.totalorder %s65, %s67
    %p74 = scmp.eq.s32.totalorder %s15, 1
    %p75 = por %p73, %p74
    %p76 = scmp.ne.s32.totalorder %s67, %s68
    %p77 = scmp.eq.s32.totalorder %s15, 0
    %p78 = por %p76, %p77
    %p79 = scmp.ne.s32.totalorder %s67, %s68
    %p80 = scmp.eq.s32.totalorder %s16, 1
    %p81 = por %p79, %p80
    %p83 = scmp.ne.s32.totalorder %s68, %s82
    %p84 = scmp.eq.s32.totalorder %s16, 0
    %p85 = por %p83, %p84
    %s86 = ssub.s32 %s10, %s17
    %p87 = scmp.eq.s32.totalorder %s86, 0
    %s89 = sadd.s32 %s88, 1
    %s90 = scalar_select %p87, %s88, %s89
    %p93 = pneg %p87
    %p94 = scmp.eq.s32.totalorder %s10, 1
    %p95 = por %p93, %p94
    %p96 = scmp.ne.s32.totalorder %s88, %s91
    %p97 = scmp.eq.s32.totalorder %s10, 0
    %p98 = por %p96, %p97
    %p99 = scmp.ne.s32.totalorder %s88, %s91
    %p100 = scmp.eq.s32.totalorder %s15, 1
    %p101 = por %p99, %p100
    %p102 = scmp.ne.s32.totalorder %s91, %s92
    %p103 = scmp.eq.s32.totalorder %s15, 0
    %p104 = por %p102, %p103
    %p105 = scmp.ne.s32.totalorder %s91, %s92
    %p106 = scmp.eq.s32.totalorder %s16, 1
    %p107 = por %p105, %p106
    %p109 = scmp.ne.s32.totalorder %s92, %s108
    %p110 = scmp.eq.s32.totalorder %s16, 0
    %p111 = por %p109, %p110
    %s112 = ssub.s32 %s10, %s17
    %p113 = scmp.eq.s32.totalorder %s112, 0
    %s115 = sadd.s32 %s114, 1
    %s116 = scalar_select %p113, %s114, %s115
    %p119 = pneg %p113
    %p120 = scmp.eq.s32.totalorder %s10, 1
    %p121 = por %p119, %p120
    %p122 = scmp.ne.s32.totalorder %s114, %s117
    %p123 = scmp.eq.s32.totalorder %s10, 0
    %p124 = por %p122, %p123
    %p125 = scmp.ne.s32.totalorder %s114, %s117
    %p126 = scmp.eq.s32.totalorder %s15, 1
    %p127 = por %p125, %p126
    %p128 = scmp.ne.s32.totalorder %s117, %s118
    %p129 = scmp.eq.s32.totalorder %s15, 0
    %p130 = por %p128, %p129
    %p131 = scmp.ne.s32.totalorder %s117, %s118
    %p132 = scmp.eq.s32.totalorder %s16, 1
    %p133 = por %p131, %p132
    %p135 = scmp.ne.s32.totalorder %s118, %s134
    %p136 = scmp.eq.s32.totalorder %s16, 0
    %p137 = por %p135, %p136
    %p138 = scmp.le.s32.totalorder 1, %s10
    %p139 = scmp.lt.s32.totalorder %s10, 3
    %p140 = pnand %p138, %p139
    %p141 = pneg %p140
    // Predicated region
    $region9: #{rstb_forward.3} parent=5 // pred_check
      _
    $region10: #{rstb_forward.3} parent=5 // pred_check_branch
      %143 = sbr.rel (%p140) target = $region12
    $region11: #{rstb_forward.3} parent=5 // pred_region
      %s144 = ssub.s32 %s10, 1
      // Predicated region
      $region13: #{rstb_forward.3} parent=11 // pred_check
        %p145 = pneg %p57
      $region14: #{rstb_forward.3} parent=11 // pred_check_branch
        %147 = sbr.rel (%p145) target = $region16
      $region15: #{rstb_forward.3} parent=11 // pred_region
        _
      $region16: #{rstb_forward.3} parent=11 // pred_fallthru
        _
      // Predicated region
      $region17: #{rstb_forward.3} parent=11 // pred_check
        %p148 = pneg %p78
      $region18: #{rstb_forward.3} parent=11 // pred_check_branch
        %150 = sbr.rel (%p148) target = $region20
      $region19: #{rstb_forward.3} parent=11 // pred_region
        _
      $region20: #{rstb_forward.3} parent=11 // pred_fallthru
        _
    $region12: #{rstb_forward.3} parent=5 // pred_fallthru
      _
    %p151 = scmp.lt.s32.totalorder %s10, 2
    // Predicated region
    $region21: #{rstb_forward.3} parent=5 // pred_check
      %p152 = pneg %p151
    $region22: #{rstb_forward.3} parent=5 // pred_check_branch
      %154 = sbr.rel (%p152) target = $region24
    $region23: #{rstb_forward.3} parent=5 // pred_region
      // Predicated region
      $region25: #{rstb_forward.3} parent=23 // pred_check
        %p155 = pneg %p30
      $region26: #{rstb_forward.3} parent=23 // pred_check_branch
        %157 = sbr.rel (%p155) target = $region28
      $region27: #{rstb_forward.3} parent=23 // pred_region
        %p158 = scmp.lt.s32.totalorder %s10, 1
        %s159 = scalar_select %p158, %s10, 1
        %s160 = smul.addr %s159, 32
        %s161 = smul.addr %s160, 4
        %s162 = scalar_lea.vmem %s0, %s161
      $region28: #{rstb_forward.3} parent=23 // pred_fallthru
        _
      // Predicated region
      $region29: #{rstb_forward.3} parent=23 // pred_check
        %p163 = pneg %p98
      $region30: #{rstb_forward.3} parent=23 // pred_check_branch
        %165 = sbr.rel (%p163) target = $region32
      $region31: #{rstb_forward.3} parent=23 // pred_region
        %p166 = scmp.lt.s32.totalorder %s10, 1
        %s167 = scalar_select %p166, %s10, 1
        %s168 = smul.addr %s167, 32
        %s169 = smul.addr %s168, 4
        %s170 = scalar_lea.vmem %s3, %s169
      $region32: #{rstb_forward.3} parent=23 // pred_fallthru
        _
    $region24: #{rstb_forward.3} parent=5 // pred_fallthru
      _
    %p171 = scmp.le.s32.totalorder 1, %s10
    %p172 = scmp.lt.s32.totalorder %s10, 3
    %p173 = pnand %p171, %p172
    %p174 = pneg %p173
    // Predicated region
    $region33: #{rstb_forward.3} parent=5 // pred_check
      _
    $region34: #{rstb_forward.3} parent=5 // pred_check_branch
      %176 = sbr.rel (%p173) target = $region36
    $region35: #{rstb_forward.3} parent=5 // pred_region
      %s177 = ssub.s32 %s10, 1
      %p178 = scmp.lt.s32.totalorder %s15, 1
      %s179 = scalar_select %p178, %s15, 1
      %s180 = smul.addr %s179, 32
      %s181 = smul.addr %s180, 4
      %s182 = scalar_lea.vmem %s0, %s181
      %p183 = pneg %p36
      %p184 = pneg %p33
      %p185 = pneg %p57
      %p186 = pneg %p54
      %p187 = pneg %p78
      %p188 = pneg %p75
      %p189 = scmp.lt.s32.totalorder %s15, 1
      %s190 = scalar_select %p189, %s15, 1
      %s191 = smul.addr %s190, 32
      %s192 = smul.addr %s191, 4
      %s193 = scalar_lea.vmem %s3, %s192
      %p194 = pneg %p104
      %p195 = pneg %p101
      %p196 = pneg %p130
      %p197 = pneg %p127
      %p198 = scmp.lt.s32.totalorder %s15, 1
      %s199 = scalar_select %p198, %s15, 1
      %s200 = smul.addr %s199, 32
      %s201 = smul.addr %s200, 8
      %s202 = scalar_lea.vmem %s4, %s201
      %p203 = scmp.lt.s32.totalorder %s15, 1
      %s204 = scalar_select %p203, %s15, 1
      %s205 = smul.addr %s204, 32
      %s206 = smul.addr %s205, 4
      %s207 = scalar_lea.vmem %s0, %s206
      %p208 = scmp.lt.s32.totalorder %s15, 1
      %s209 = scalar_select %p208, %s15, 1
      %s210 = smul.addr %s209, 32
      %s211 = smul.addr %s210, 4
      %s212 = scalar_lea.vmem %s3, %s211
      %p213 = scmp.lt.s32.totalorder %s15, 1
      %s214 = scalar_select %p213, %s15, 1
      %s215 = smul.addr %s214, 32
      %s216 = smul.addr %s215, 8
      %s217 = scalar_lea.vmem %s4, %s216
      %vm219 = vcmask 27648
      %220 = vst.msk [vmem:[#allocation2] sm:$0xf] %vm219, 0
      %221 = vst.msk [vmem:[#allocation2 + $0x4] sm:$0xf] %vm219, 0
      %222 = vst.msk [vmem:[#allocation2 + $0x8] sm:$0xf] %vm219, 0
      %vm223 = vcmask 24576
      %vm224 = vsmask.f32 256
      %vm225 = vmand %vm223, %vm224
      %v226 = vld [vmem:[#allocation2 + $0xc] sm:$0x1]
      %v227 = vsel %vm225, 0, %v226
      %228 = vst [vmem:[#allocation2 + $0xc] sm:$0x1] %v227
      %s229 = scalar_lea.vmem [#allocation2], 272
      %230 = vst.msk [vmem:[%s229] sm:$0xf] %vm219, 0
      %231 = vst.msk [vmem:[%s229 + $0x4] sm:$0xf] %vm219, 0
      %232 = vst.msk [vmem:[%s229 + $0x8] sm:$0xf] %vm219, 0
      %v233 = vld [vmem:[%s229 + $0xc] sm:$0x1]
      %v234 = vsel %vm225, 0, %v233
      %235 = vst [vmem:[%s229 + $0xc] sm:$0x1] %v234
      %vm236 = vcmask 27651
      %vm237 = vsmask.f32 7950
      %vm238 = vmand %vm236, %vm237
      %v239 = vld [vmem:[#allocation2] sm:$0x8]
      %v240 = vsel %vm238, 0, %v239
      %241 = vst [vmem:[#allocation2] sm:$0x8] %v240
      %v242 = vld [vmem:[#allocation2 + $0x10] sm:$0x8]
      %v243 = vsel %vm238, 0, %v242
      %244 = vst [vmem:[#allocation2 + $0x10] sm:$0x8] %v243
      %v245 = vld [vmem:[#allocation2 + $0x20] sm:$0x8]
      %v246 = vsel %vm238, 0, %v245
      %247 = vst [vmem:[#allocation2 + $0x20] sm:$0x8] %v246
      %v248 = vld [vmem:[#allocation2 + $0x30] sm:$0x8]
      %v249 = vsel %vm238, 0, %v248
      %250 = vst [vmem:[#allocation2 + $0x30] sm:$0x8] %v249
      %v251 = vld [vmem:[#allocation2 + $0x40] sm:$0x8]
      %v252 = vsel %vm238, 0, %v251
      %253 = vst [vmem:[#allocation2 + $0x40] sm:$0x8] %v252
      %v254 = vld [vmem:[#allocation2 + $0x50] sm:$0x8]
      %v255 = vsel %vm238, 0, %v254
      %256 = vst [vmem:[#allocation2 + $0x50] sm:$0x8] %v255
      %v257 = vld [vmem:[#allocation2 + $0x60] sm:$0x8]
      %v258 = vsel %vm238, 0, %v257
      %259 = vst [vmem:[#allocation2 + $0x60] sm:$0x8] %v258
      %v260 = vld [vmem:[#allocation2 + $0x70] sm:$0x8]
      %v261 = vsel %vm238, 0, %v260
      %262 = vst [vmem:[#allocation2 + $0x70] sm:$0x8] %v261
      %v263 = vld [vmem:[#allocation2 + $0x80] sm:$0x8]
      %v264 = vsel %vm238, 0, %v263
      %265 = vst [vmem:[#allocation2 + $0x80] sm:$0x8] %v264
      %v266 = vld [vmem:[#allocation2 + $0x90] sm:$0x8]
      %v267 = vsel %vm238, 0, %v266
      %268 = vst [vmem:[#allocation2 + $0x90] sm:$0x8] %v267
      %v269 = vld [vmem:[#allocation2 + $0xa0] sm:$0x8]
      %v270 = vsel %vm238, 0, %v269
      %271 = vst [vmem:[#allocation2 + $0xa0] sm:$0x8] %v270
      %v272 = vld [vmem:[#allocation2 + $0xb0] sm:$0x8]
      %v273 = vsel %vm238, 0, %v272
      %274 = vst [vmem:[#allocation2 + $0xb0] sm:$0x8] %v273
      %v275 = vld [vmem:[#allocation2 + $0xc0] sm:$0x8]
      %v276 = vsel %vm238, 0, %v275
      %277 = vst [vmem:[#allocation2 + $0xc0] sm:$0x8] %v276
      %v278 = vld [vmem:[#allocation2 + $0xd0] sm:$0x8]
      %v279 = vsel %vm238, 0, %v278
      %280 = vst [vmem:[#allocation2 + $0xd0] sm:$0x8] %v279
      %v281 = vld [vmem:[#allocation2 + $0xe0] sm:$0x8]
      %v282 = vsel %vm238, 0, %v281
      %283 = vst [vmem:[#allocation2 + $0xe0] sm:$0x8] %v282
      %v284 = vld [vmem:[#allocation2 + $0xf0] sm:$0x8]
      %v285 = vsel %vm238, 0, %v284
      %286 = vst [vmem:[#allocation2 + $0xf0] sm:$0x8] %v285
      %v287 = vld [vmem:[#allocation2 + $0x100] sm:$0x8]
      %v288 = vsel %vm238, 0, %v287
      %289 = vst [vmem:[#allocation2 + $0x100] sm:$0x8] %v288
      %v290 = vld [vmem:[#allocation2 + $0x110] sm:$0x8]
      %v291 = vsel %vm238, 0, %v290
      %292 = vst [vmem:[#allocation2 + $0x110] sm:$0x8] %v291
      %v293 = vld [vmem:[#allocation2 + $0xc] sm:$0x1]
      %v294 = vsel %vm225, 0, %v293
      %295 = vst [vmem:[#allocation2 + $0xc] sm:$0x1] %v294
      %v296 = vld [vmem:[#allocation2 + $0x1c] sm:$0x1]
      %v297 = vsel %vm225, 0, %v296
      %298 = vst [vmem:[#allocation2 + $0x1c] sm:$0x1] %v297
      %v299 = vld [vmem:[#allocation2 + $0x2c] sm:$0x1]
      %v300 = vsel %vm225, 0, %v299
      %301 = vst [vmem:[#allocation2 + $0x2c] sm:$0x1] %v300
      %v302 = vld [vmem:[#allocation2 + $0x3c] sm:$0x1]
      %v303 = vsel %vm225, 0, %v302
      %304 = vst [vmem:[#allocation2 + $0x3c] sm:$0x1] %v303
      %v305 = vld [vmem:[#allocation2 + $0x4c] sm:$0x1]
      %v306 = vsel %vm225, 0, %v305
      %307 = vst [vmem:[#allocation2 + $0x4c] sm:$0x1] %v306
      %v308 = vld [vmem:[#allocation2 + $0x5c] sm:$0x1]
      %v309 = vsel %vm225, 0, %v308
      %310 = vst [vmem:[#allocation2 + $0x5c] sm:$0x1] %v309
      %v311 = vld [vmem:[#allocation2 + $0x6c] sm:$0x1]
      %v312 = vsel %vm225, 0, %v311
      %313 = vst [vmem:[#allocation2 + $0x6c] sm:$0x1] %v312
      %v314 = vld [vmem:[#allocation2 + $0x7c] sm:$0x1]
      %v315 = vsel %vm225, 0, %v314
      %316 = vst [vmem:[#allocation2 + $0x7c] sm:$0x1] %v315
      %v317 = vld [vmem:[#allocation2 + $0x8c] sm:$0x1]
      %v318 = vsel %vm225, 0, %v317
      %319 = vst [vmem:[#allocation2 + $0x8c] sm:$0x1] %v318
      %v320 = vld [vmem:[#allocation2 + $0x9c] sm:$0x1]
      %v321 = vsel %vm225, 0, %v320
      %322 = vst [vmem:[#allocation2 + $0x9c] sm:$0x1] %v321
      %v323 = vld [vmem:[#allocation2 + $0xac] sm:$0x1]
      %v324 = vsel %vm225, 0, %v323
      %325 = vst [vmem:[#allocation2 + $0xac] sm:$0x1] %v324
      %v326 = vld [vmem:[#allocation2 + $0xbc] sm:$0x1]
      %v327 = vsel %vm225, 0, %v326
      %328 = vst [vmem:[#allocation2 + $0xbc] sm:$0x1] %v327
      %v329 = vld [vmem:[#allocation2 + $0xcc] sm:$0x1]
      %v330 = vsel %vm225, 0, %v329
      %331 = vst [vmem:[#allocation2 + $0xcc] sm:$0x1] %v330
      %v332 = vld [vmem:[#allocation2 + $0xdc] sm:$0x1]
      %v333 = vsel %vm225, 0, %v332
      %334 = vst [vmem:[#allocation2 + $0xdc] sm:$0x1] %v333
      %v335 = vld [vmem:[#allocation2 + $0xec] sm:$0x1]
      %v336 = vsel %vm225, 0, %v335
      %337 = vst [vmem:[#allocation2 + $0xec] sm:$0x1] %v336
      %v338 = vld [vmem:[#allocation2 + $0xfc] sm:$0x1]
      %v339 = vsel %vm225, 0, %v338
      %340 = vst [vmem:[#allocation2 + $0xfc] sm:$0x1] %v339
      %v341 = vld [vmem:[#allocation2 + $0x10c] sm:$0x1]
      %v342 = vsel %vm225, 0, %v341
      %343 = vst [vmem:[#allocation2 + $0x10c] sm:$0x1] %v342
      %v344 = vld [vmem:[#allocation2 + $0x11c] sm:$0x1]
      %v345 = vsel %vm225, 0, %v344
      %346 = vst [vmem:[#allocation2 + $0x11c] sm:$0x1] %v345
      %v347 = vld [vmem:[%s207] sm:$0xf]
      %v348 = vld [vmem:[%s207 + $0x4] sm:$0xf]
      %v349 = vld [vmem:[%s207 + $0x8] sm:$0xf]
      %v350 = vld [vmem:[%s207 + $0xc] sm:$0xf]
      %v351 = vld [vmem:[%s207 + $0x10] sm:$0xf]
      %v352 = vld [vmem:[%s207 + $0x14] sm:$0xf]
      %v353 = vld [vmem:[%s207 + $0x18] sm:$0xf]
      %v354 = vld [vmem:[%s207 + $0x1c] sm:$0xf]
      %v355 = vld [vmem:[%s207 + $0x20] sm:$0xf]
      %v356 = vld [vmem:[%s207 + $0x24] sm:$0xf]
      %v357 = vld [vmem:[%s207 + $0x28] sm:$0xf]
      %v358 = vld [vmem:[%s207 + $0x2c] sm:$0xf]
      %v359 = vld [vmem:[%s207 + $0x30] sm:$0xf]
      %v360 = vld [vmem:[%s207 + $0x34] sm:$0xf]
      %v361 = vld [vmem:[%s207 + $0x38] sm:$0xf]
      %v362 = vld [vmem:[%s207 + $0x3c] sm:$0xf]
      %v363 = vld [vmem:[%s207 + $0x40] sm:$0xf]
      %v364 = vld [vmem:[%s207 + $0x44] sm:$0xf]
      %v365 = vld [vmem:[%s207 + $0x48] sm:$0xf]
      %v366 = vld [vmem:[%s207 + $0x4c] sm:$0xf]
      %v367 = vld [vmem:[%s207 + $0x50] sm:$0xf]
      %v368 = vld [vmem:[%s207 + $0x54] sm:$0xf]
      %v369 = vld [vmem:[%s207 + $0x58] sm:$0xf]
      %v370 = vld [vmem:[%s207 + $0x5c] sm:$0xf]
      %v371 = vld [vmem:[%s207 + $0x60] sm:$0xf]
      %v372 = vld [vmem:[%s207 + $0x64] sm:$0xf]
      %v373 = vld [vmem:[%s207 + $0x68] sm:$0xf]
      %v374 = vld [vmem:[%s207 + $0x6c] sm:$0xf]
      %v375 = vld [vmem:[%s207 + $0x70] sm:$0xf]
      %v376 = vld [vmem:[%s207 + $0x74] sm:$0xf]
      %v377 = vld [vmem:[%s207 + $0x78] sm:$0xf]
      %v378 = vld [vmem:[%s207 + $0x7c] sm:$0xf]
      %s379 = scalar_lea.vmem [#allocation2], 16
      %380 = vst.msk [vmem:[%s379 + $0x4] sm:$0xf] %vm219, %v347
      %381 = vst.msk [vmem:[%s379 + $0x8] sm:$0xf] %vm219, %v348
      %382 = vst.msk [vmem:[%s379 + $0x14] sm:$0xf] %vm219, %v349
      %383 = vst.msk [vmem:[%s379 + $0x18] sm:$0xf] %vm219, %v350
      %384 = vst.msk [vmem:[%s379 + $0x24] sm:$0xf] %vm219, %v351
      %385 = vst.msk [vmem:[%s379 + $0x28] sm:$0xf] %vm219, %v352
      %386 = vst.msk [vmem:[%s379 + $0x34] sm:$0xf] %vm219, %v353
      %387 = vst.msk [vmem:[%s379 + $0x38] sm:$0xf] %vm219, %v354
      %388 = vst.msk [vmem:[%s379 + $0x44] sm:$0xf] %vm219, %v355
      %389 = vst.msk [vmem:[%s379 + $0x48] sm:$0xf] %vm219, %v356
      %390 = vst.msk [vmem:[%s379 + $0x54] sm:$0xf] %vm219, %v357
      %391 = vst.msk [vmem:[%s379 + $0x58] sm:$0xf] %vm219, %v358
      %392 = vst.msk [vmem:[%s379 + $0x64] sm:$0xf] %vm219, %v359
      %393 = vst.msk [vmem:[%s379 + $0x68] sm:$0xf] %vm219, %v360
      %394 = vst.msk [vmem:[%s379 + $0x74] sm:$0xf] %vm219, %v361
      %395 = vst.msk [vmem:[%s379 + $0x78] sm:$0xf] %vm219, %v362
      %396 = vst.msk [vmem:[%s379 + $0x84] sm:$0xf] %vm219, %v363
      %397 = vst.msk [vmem:[%s379 + $0x88] sm:$0xf] %vm219, %v364
      %398 = vst.msk [vmem:[%s379 + $0x94] sm:$0xf] %vm219, %v365
      %399 = vst.msk [vmem:[%s379 + $0x98] sm:$0xf] %vm219, %v366
      %400 = vst.msk [vmem:[%s379 + $0xa4] sm:$0xf] %vm219, %v367
      %401 = vst.msk [vmem:[%s379 + $0xa8] sm:$0xf] %vm219, %v368
      %402 = vst.msk [vmem:[%s379 + $0xb4] sm:$0xf] %vm219, %v369
      %403 = vst.msk [vmem:[%s379 + $0xb8] sm:$0xf] %vm219, %v370
      %404 = vst.msk [vmem:[%s379 + $0xc4] sm:$0xf] %vm219, %v371
      %405 = vst.msk [vmem:[%s379 + $0xc8] sm:$0xf] %vm219, %v372
      %406 = vst.msk [vmem:[%s379 + $0xd4] sm:$0xf] %vm219, %v373
      %407 = vst.msk [vmem:[%s379 + $0xd8] sm:$0xf] %vm219, %v374
      %408 = vst.msk [vmem:[%s379 + $0xe4] sm:$0xf] %vm219, %v375
      %409 = vst.msk [vmem:[%s379 + $0xe8] sm:$0xf] %vm219, %v376
      %410 = vst.msk [vmem:[%s379 + $0xf4] sm:$0xf] %vm219, %v377
      %411 = vst.msk [vmem:[%s379 + $0xf8] sm:$0xf] %vm219, %v378
      %v412 = vld [vmem:[#allocation2] sm:$0x8]
      %v413 = vld [vmem:[#allocation2 + $0x4] sm:$0xf]
      %v414 = vld [vmem:[#allocation2 + $0x8] sm:$0xf]
      %v415 = vld [vmem:[#allocation2 + $0x10] sm:$0x8]
      %v416 = vld [vmem:[#allocation2 + $0x14] sm:$0xf]
      %v417 = vld [vmem:[#allocation2 + $0x18] sm:$0xf]
      %v418 = vld [vmem:[#allocation2 + $0x20] sm:$0x8]
      %v419 = vld [vmem:[#allocation2 + $0x24] sm:$0xf]
      %v420 = vld [vmem:[#allocation2 + $0x28] sm:$0xf]
      %v421 = vld [vmem:[#allocation2 + $0x30] sm:$0x8]
      %v422 = vld [vmem:[#allocation2 + $0x34] sm:$0xf]
      %v423 = vld [vmem:[#allocation2 + $0x38] sm:$0xf]
      %v424 = vld [vmem:[#allocation2 + $0x40] sm:$0x8]
      %v425 = vld [vmem:[#allocation2 + $0x44] sm:$0xf]
      %v426 = vld [vmem:[#allocation2 + $0x48] sm:$0xf]
      %v427 = vld [vmem:[#allocation2 + $0x50] sm:$0x8]
      %v428 = vld [vmem:[#allocation2 + $0x54] sm:$0xf]
      %v429 = vld [vmem:[#allocation2 + $0x58] sm:$0xf]
      %v430 = vld [vmem:[#allocation2 + $0x60] sm:$0x8]
      %v431 = vld [vmem:[#allocation2 + $0x64] sm:$0xf]
      %v432 = vld [vmem:[#allocation2 + $0x68] sm:$0xf]
      %v433 = vld [vmem:[#allocation2 + $0x70] sm:$0x8]
      %v434 = vld [vmem:[#allocation2 + $0x74] sm:$0xf]
      %v435 = vld [vmem:[#allocation2 + $0x78] sm:$0xf]
      %v436 = vld [vmem:[#allocation2 + $0x80] sm:$0x8]
      %v437 = vld [vmem:[#allocation2 + $0x84] sm:$0xf]
      %v438 = vld [vmem:[#allocation2 + $0x88] sm:$0xf]
      %v439 = vld [vmem:[#allocation2 + $0x90] sm:$0x8]
      %v440 = vld [vmem:[#allocation2 + $0x94] sm:$0xf]
      %v441 = vld [vmem:[#allocation2 + $0x98] sm:$0xf]
      %v442 = vld [vmem:[#allocation2 + $0xa0] sm:$0x8]
      %v443 = vld [vmem:[#allocation2 + $0xa4] sm:$0xf]
      %v444 = vld [vmem:[#allocation2 + $0xa8] sm:$0xf]
      %v445 = vld [vmem:[#allocation2 + $0xb0] sm:$0x8]
      %v446 = vld [vmem:[#allocation2 + $0xb4] sm:$0xf]
      %v447 = vld [vmem:[#allocation2 + $0xb8] sm:$0xf]
      %v448 = vld [vmem:[#allocation2 + $0xc0] sm:$0x8]
      %v449 = vld [vmem:[#allocation2 + $0xc4] sm:$0xf]
      %v450 = vld [vmem:[#allocation2 + $0xc8] sm:$0xf]
      %v451 = vld [vmem:[#allocation2 + $0xd0] sm:$0x8]
      %v452 = vld [vmem:[#allocation2 + $0xd4] sm:$0xf]
      %v453 = vld [vmem:[#allocation2 + $0xd8] sm:$0xf]
      %v454 = vld [vmem:[#allocation2 + $0xe0] sm:$0x8]
      %v455 = vld [vmem:[#allocation2 + $0xe4] sm:$0xf]
      %v456 = vld [vmem:[#allocation2 + $0xe8] sm:$0xf]
      %v457 = vld [vmem:[#allocation2 + $0xf0] sm:$0x8]
      %v458 = vld [vmem:[#allocation2 + $0xf4] sm:$0xf]
      %v459 = vld [vmem:[#allocation2 + $0xf8] sm:$0xf]
      %v460 = vld [vmem:[#allocation2 + $0xc] sm:$0x1]
      %v461 = vld [vmem:[#allocation2 + $0x1c] sm:$0x1]
      %v462 = vld [vmem:[#allocation2 + $0x2c] sm:$0x1]
      %v463 = vld [vmem:[#allocation2 + $0x3c] sm:$0x1]
      %v464 = vld [vmem:[#allocation2 + $0x4c] sm:$0x1]
      %v465 = vld [vmem:[#allocation2 + $0x5c] sm:$0x1]
      %v466 = vld [vmem:[#allocation2 + $0x6c] sm:$0x1]
      %v467 = vld [vmem:[#allocation2 + $0x7c] sm:$0x1]
      %v468 = vld [vmem:[#allocation2 + $0x8c] sm:$0x1]
      %v469 = vld [vmem:[#allocation2 + $0x9c] sm:$0x1]
      %v470 = vld [vmem:[#allocation2 + $0xac] sm:$0x1]
      %v471 = vld [vmem:[#allocation2 + $0xbc] sm:$0x1]
      %v472 = vld [vmem:[#allocation2 + $0xcc] sm:$0x1]
      %v473 = vld [vmem:[#allocation2 + $0xdc] sm:$0x1]
      %v474 = vld [vmem:[#allocation2 + $0xec] sm:$0x1]
      %v475 = vld [vmem:[#allocation2 + $0xfc] sm:$0x1]
      %v524 = vunpack.c.l.b16 %v412
      %v525 = vunpack.c.l.b16 %v413
      %v526 = vunpack.c.l.b16 %v414
      %v527 = vunpack.c.l.b16 %v415
      %v528 = vunpack.c.l.b16 %v416
      %v529 = vunpack.c.l.b16 %v417
      %v530 = vunpack.c.l.b16 %v418
      %v531 = vunpack.c.l.b16 %v419
      %v532 = vunpack.c.l.b16 %v420
      %v533 = vunpack.c.l.b16 %v421
      %v534 = vunpack.c.l.b16 %v422
      %v535 = vunpack.c.l.b16 %v423
      %v536 = vunpack.c.l.b16 %v424
      %v537 = vunpack.c.l.b16 %v425
      %v538 = vunpack.c.l.b16 %v426
      %v539 = vunpack.c.l.b16 %v427
      %v540 = vunpack.c.l.b16 %v428
      %v541 = vunpack.c.l.b16 %v429
      %v542 = vunpack.c.l.b16 %v430
      %v543 = vunpack.c.l.b16 %v431
      %v544 = vunpack.c.l.b16 %v432
      %v545 = vunpack.c.l.b16 %v433
      %v546 = vunpack.c.l.b16 %v434
      %v547 = vunpack.c.l.b16 %v435
      %v548 = vunpack.c.l.b16 %v436
      %v549 = vunpack.c.l.b16 %v437
      %v550 = vunpack.c.l.b16 %v438
      %v551 = vunpack.c.l.b16 %v439
      %v552 = vunpack.c.l.b16 %v440
      %v553 = vunpack.c.l.b16 %v441
      %v554 = vunpack.c.l.b16 %v442
      %v555 = vunpack.c.l.b16 %v443
      %v556 = vunpack.c.l.b16 %v444
      %v557 = vunpack.c.l.b16 %v445
      %v558 = vunpack.c.l.b16 %v446
      %v559 = vunpack.c.l.b16 %v447
      %v560 = vunpack.c.l.b16 %v448
      %v561 = vunpack.c.l.b16 %v449
      %v562 = vunpack.c.l.b16 %v450
      %v563 = vunpack.c.l.b16 %v451
      %v564 = vunpack.c.l.b16 %v452
      %v565 = vunpack.c.l.b16 %v453
      %v566 = vunpack.c.l.b16 %v454
      %v567 = vunpack.c.l.b16 %v455
      %v568 = vunpack.c.l.b16 %v456
      %v569 = vunpack.c.l.b16 %v457
      %v570 = vunpack.c.l.b16 %v458
      %v571 = vunpack.c.l.b16 %v459
      %v572 = vpack.c.b16 %v525, %v524
      %v573 = vpack.c.b16 %v526, %v526
      %v574 = vpack.c.b16 %v528, %v527
      %v575 = vpack.c.b16 %v529, %v529
      %v576 = vpack.c.b16 %v531, %v530
      %v577 = vpack.c.b16 %v532, %v532
      %v578 = vpack.c.b16 %v534, %v533
      %v579 = vpack.c.b16 %v535, %v535
      %v580 = vpack.c.b16 %v537, %v536
      %v581 = vpack.c.b16 %v538, %v538
      %v582 = vpack.c.b16 %v540, %v539
      %v583 = vpack.c.b16 %v541, %v541
      %v584 = vpack.c.b16 %v543, %v542
      %v585 = vpack.c.b16 %v544, %v544
      %v586 = vpack.c.b16 %v546, %v545
      %v587 = vpack.c.b16 %v547, %v547
      %v588 = vpack.c.b16 %v549, %v548
      %v589 = vpack.c.b16 %v550, %v550
      %v590 = vpack.c.b16 %v552, %v551
      %v591 = vpack.c.b16 %v553, %v553
      %v592 = vpack.c.b16 %v555, %v554
      %v593 = vpack.c.b16 %v556, %v556
      %v594 = vpack.c.b16 %v558, %v557
      %v595 = vpack.c.b16 %v559, %v559
      %v596 = vpack.c.b16 %v561, %v560
      %v597 = vpack.c.b16 %v562, %v562
      %v598 = vpack.c.b16 %v564, %v563
      %v599 = vpack.c.b16 %v565, %v565
      %v600 = vpack.c.b16 %v567, %v566
      %v601 = vpack.c.b16 %v568, %v568
      %v602 = vpack.c.b16 %v570, %v569
      %v603 = vpack.c.b16 %v571, %v571
      %v604 = vpack.c.b16 %v526, %v525
      %v605 = vpack.c.b16 %v529, %v528
      %v606 = vpack.c.b16 %v532, %v531
      %v607 = vpack.c.b16 %v535, %v534
      %v608 = vpack.c.b16 %v538, %v537
      %v609 = vpack.c.b16 %v541, %v540
      %v610 = vpack.c.b16 %v544, %v543
      %v611 = vpack.c.b16 %v547, %v546
      %v612 = vpack.c.b16 %v550, %v549
      %v613 = vpack.c.b16 %v553, %v552
      %v614 = vpack.c.b16 %v556, %v555
      %v615 = vpack.c.b16 %v559, %v558
      %v616 = vpack.c.b16 %v562, %v561
      %v617 = vpack.c.b16 %v565, %v564
      %v618 = vpack.c.b16 %v568, %v567
      %v619 = vpack.c.b16 %v571, %v570
      %v621 = vshrl.u32 %v604, 16
      %v623 = vrot.slane %v621, 4
      %v624 = vshll.u32 %v604, 16
      %v626 = vrot.slane %v624, 5
      %v627 = vor.u32 %v623, %v626
      %v629 = vshrl.u32 %v605, 16
      %v631 = vrot.slane %v629, 4
      %v632 = vshll.u32 %v605, 16
      %v634 = vrot.slane %v632, 5
      %v635 = vor.u32 %v631, %v634
      %v637 = vshrl.u32 %v606, 16
      %v639 = vrot.slane %v637, 4
      %v640 = vshll.u32 %v606, 16
      %v642 = vrot.slane %v640, 5
      %v643 = vor.u32 %v639, %v642
      %v645 = vshrl.u32 %v607, 16
      %v647 = vrot.slane %v645, 4
      %v648 = vshll.u32 %v607, 16
      %v650 = vrot.slane %v648, 5
      %v651 = vor.u32 %v647, %v650
      %v653 = vshrl.u32 %v608, 16
      %v655 = vrot.slane %v653, 4
      %v656 = vshll.u32 %v608, 16
      %v658 = vrot.slane %v656, 5
      %v659 = vor.u32 %v655, %v658
      %v661 = vshrl.u32 %v609, 16
      %v663 = vrot.slane %v661, 4
      %v664 = vshll.u32 %v609, 16
      %v666 = vrot.slane %v664, 5
      %v667 = vor.u32 %v663, %v666
      %v669 = vshrl.u32 %v610, 16
      %v671 = vrot.slane %v669, 4
      %v672 = vshll.u32 %v610, 16
      %v674 = vrot.slane %v672, 5
      %v675 = vor.u32 %v671, %v674
      %v677 = vshrl.u32 %v611, 16
      %v679 = vrot.slane %v677, 4
      %v680 = vshll.u32 %v611, 16
      %v682 = vrot.slane %v680, 5
      %v683 = vor.u32 %v679, %v682
      %v685 = vshrl.u32 %v612, 16
      %v687 = vrot.slane %v685, 4
      %v688 = vshll.u32 %v612, 16
      %v690 = vrot.slane %v688, 5
      %v691 = vor.u32 %v687, %v690
      %v693 = vshrl.u32 %v613, 16
      %v695 = vrot.slane %v693, 4
      %v696 = vshll.u32 %v613, 16
      %v698 = vrot.slane %v696, 5
      %v699 = vor.u32 %v695, %v698
      %v701 = vshrl.u32 %v614, 16
      %v703 = vrot.slane %v701, 4
      %v704 = vshll.u32 %v614, 16
      %v706 = vrot.slane %v704, 5
      %v707 = vor.u32 %v703, %v706
      %v709 = vshrl.u32 %v615, 16
      %v711 = vrot.slane %v709, 4
      %v712 = vshll.u32 %v615, 16
      %v714 = vrot.slane %v712, 5
      %v715 = vor.u32 %v711, %v714
      %v717 = vshrl.u32 %v616, 16
      %v719 = vrot.slane %v717, 4
      %v720 = vshll.u32 %v616, 16
      %v722 = vrot.slane %v720, 5
      %v723 = vor.u32 %v719, %v722
      %v725 = vshrl.u32 %v617, 16
      %v727 = vrot.slane %v725, 4
      %v728 = vshll.u32 %v617, 16
      %v730 = vrot.slane %v728, 5
      %v731 = vor.u32 %v727, %v730
      %v733 = vshrl.u32 %v618, 16
      %v735 = vrot.slane %v733, 4
      %v736 = vshll.u32 %v618, 16
      %v738 = vrot.slane %v736, 5
      %v739 = vor.u32 %v735, %v738
      %v741 = vshrl.u32 %v619, 16
      %v743 = vrot.slane %v741, 4
      %v744 = vshll.u32 %v619, 16
      %v746 = vrot.slane %v744, 5
      %v747 = vor.u32 %v743, %v746
      %748 = vrot.lane.b32.xlu0 %v627, 4
      %v749 = vpop.permute.xlu0 %748
      %750 = vrot.lane.b32.xlu0 %v635, 4
      %v751 = vpop.permute.xlu0 %750
      %752 = vrot.lane.b32.xlu0 %v643, 4
      %v753 = vpop.permute.xlu0 %752
      %754 = vrot.lane.b32.xlu0 %v651, 4
      %v755 = vpop.permute.xlu0 %754
      %756 = vrot.lane.b32.xlu0 %v659, 4
      %v757 = vpop.permute.xlu0 %756
      %758 = vrot.lane.b32.xlu0 %v667, 4
      %v759 = vpop.permute.xlu0 %758
      %760 = vrot.lane.b32.xlu0 %v675, 4
      %v761 = vpop.permute.xlu0 %760
      %762 = vrot.lane.b32.xlu0 %v683, 4
      %v763 = vpop.permute.xlu0 %762
      %764 = vrot.lane.b32.xlu0 %v691, 4
      %v765 = vpop.permute.xlu0 %764
      %766 = vrot.lane.b32.xlu0 %v699, 4
      %v767 = vpop.permute.xlu0 %766
      %768 = vrot.lane.b32.xlu0 %v707, 4
      %v769 = vpop.permute.xlu0 %768
      %770 = vrot.lane.b32.xlu0 %v715, 4
      %v771 = vpop.permute.xlu0 %770
      %772 = vrot.lane.b32.xlu0 %v723, 4
      %v773 = vpop.permute.xlu0 %772
      %774 = vrot.lane.b32.xlu0 %v731, 4
      %v775 = vpop.permute.xlu0 %774
      %776 = vrot.lane.b32.xlu0 %v739, 4
      %v777 = vpop.permute.xlu0 %776
      %778 = vrot.lane.b32.xlu0 %v747, 4
      %v779 = vpop.permute.xlu0 %778
      %v796 = vunpack.c.l.b16 %v460
      %v797 = vunpack.c.l.b16 %v461
      %v798 = vunpack.c.l.b16 %v462
      %v799 = vunpack.c.l.b16 %v463
      %v800 = vunpack.c.l.b16 %v464
      %v801 = vunpack.c.l.b16 %v465
      %v802 = vunpack.c.l.b16 %v466
      %v803 = vunpack.c.l.b16 %v467
      %v804 = vunpack.c.l.b16 %v468
      %v805 = vunpack.c.l.b16 %v469
      %v806 = vunpack.c.l.b16 %v470
      %v807 = vunpack.c.l.b16 %v471
      %v808 = vunpack.c.l.b16 %v472
      %v809 = vunpack.c.l.b16 %v473
      %v810 = vunpack.c.l.b16 %v474
      %v811 = vunpack.c.l.b16 %v475
      %v812 = vpack.c.b16 %v796, %v796
      %v813 = vpack.c.b16 %v797, %v797
      %v814 = vpack.c.b16 %v798, %v798
      %v815 = vpack.c.b16 %v799, %v799
      %v816 = vpack.c.b16 %v800, %v800
      %v817 = vpack.c.b16 %v801, %v801
      %v818 = vpack.c.b16 %v802, %v802
      %v819 = vpack.c.b16 %v803, %v803
      %v820 = vpack.c.b16 %v804, %v804
      %v821 = vpack.c.b16 %v805, %v805
      %v822 = vpack.c.b16 %v806, %v806
      %v823 = vpack.c.b16 %v807, %v807
      %v824 = vpack.c.b16 %v808, %v808
      %v825 = vpack.c.b16 %v809, %v809
      %v826 = vpack.c.b16 %v810, %v810
      %v827 = vpack.c.b16 %v811, %v811
      %vm828 = vcmask 1042432
      %v829 = vrot.slane %v604, 5
      %v830 = vrot.slane %v812, 5
      %v831 = vsel %vm828, %v829, %v830
      %v832 = vrot.slane %v605, 5
      %v833 = vrot.slane %v813, 5
      %v834 = vsel %vm828, %v832, %v833
      %v835 = vrot.slane %v606, 5
      %v836 = vrot.slane %v814, 5
      %v837 = vsel %vm828, %v835, %v836
      %v838 = vrot.slane %v607, 5
      %v839 = vrot.slane %v815, 5
      %v840 = vsel %vm828, %v838, %v839
      %v841 = vrot.slane %v608, 5
      %v842 = vrot.slane %v816, 5
      %v843 = vsel %vm828, %v841, %v842
      %v844 = vrot.slane %v609, 5
      %v845 = vrot.slane %v817, 5
      %v846 = vsel %vm828, %v844, %v845
      %v847 = vrot.slane %v610, 5
      %v848 = vrot.slane %v818, 5
      %v849 = vsel %vm828, %v847, %v848
      %v850 = vrot.slane %v611, 5
      %v851 = vrot.slane %v819, 5
      %v852 = vsel %vm828, %v850, %v851
      %v853 = vrot.slane %v612, 5
      %v854 = vrot.slane %v820, 5
      %v855 = vsel %vm828, %v853, %v854
      %v856 = vrot.slane %v613, 5
      %v857 = vrot.slane %v821, 5
      %v858 = vsel %vm828, %v856, %v857
      %v859 = vrot.slane %v614, 5
      %v860 = vrot.slane %v822, 5
      %v861 = vsel %vm828, %v859, %v860
      %v862 = vrot.slane %v615, 5
      %v863 = vrot.slane %v823, 5
      %v864 = vsel %vm828, %v862, %v863
      %v865 = vrot.slane %v616, 5
      %v866 = vrot.slane %v824, 5
      %v867 = vsel %vm828, %v865, %v866
      %v868 = vrot.slane %v617, 5
      %v869 = vrot.slane %v825, 5
      %v870 = vsel %vm828, %v868, %v869
      %v871 = vrot.slane %v618, 5
      %v872 = vrot.slane %v826, 5
      %v873 = vsel %vm828, %v871, %v872
      %v874 = vrot.slane %v619, 5
      %v875 = vrot.slane %v827, 5
      %v876 = vsel %vm828, %v874, %v875
      %877 = vrot.lane.b32.xlu0 %v829, 8
      %v878 = vpop.permute.xlu0 %877
      %879 = vrot.lane.b32.xlu0 %v831, 8
      %v880 = vpop.permute.xlu0 %879
      %881 = vrot.lane.b32.xlu0 %v832, 8
      %v882 = vpop.permute.xlu0 %881
      %883 = vrot.lane.b32.xlu0 %v834, 8
      %v884 = vpop.permute.xlu0 %883
      %885 = vrot.lane.b32.xlu0 %v835, 8
      %v886 = vpop.permute.xlu0 %885
      %887 = vrot.lane.b32.xlu0 %v837, 8
      %v888 = vpop.permute.xlu0 %887
      %889 = vrot.lane.b32.xlu0 %v838, 8
      %v890 = vpop.permute.xlu0 %889
      %891 = vrot.lane.b32.xlu0 %v840, 8
      %v892 = vpop.permute.xlu0 %891
      %893 = vrot.lane.b32.xlu0 %v841, 8
      %v894 = vpop.permute.xlu0 %893
      %895 = vrot.lane.b32.xlu0 %v843, 8
      %v896 = vpop.permute.xlu0 %895
      %897 = vrot.lane.b32.xlu0 %v844, 8
      %v898 = vpop.permute.xlu0 %897
      %899 = vrot.lane.b32.xlu0 %v846, 8
      %v900 = vpop.permute.xlu0 %899
      %901 = vrot.lane.b32.xlu0 %v847, 8
      %v902 = vpop.permute.xlu0 %901
      %903 = vrot.lane.b32.xlu0 %v849, 8
      %v904 = vpop.permute.xlu0 %903
      %905 = vrot.lane.b32.xlu0 %v850, 8
      %v906 = vpop.permute.xlu0 %905
      %907 = vrot.lane.b32.xlu0 %v852, 8
      %v908 = vpop.permute.xlu0 %907
      %909 = vrot.lane.b32.xlu0 %v853, 8
      %v910 = vpop.permute.xlu0 %909
      %911 = vrot.lane.b32.xlu0 %v855, 8
      %v912 = vpop.permute.xlu0 %911
      %913 = vrot.lane.b32.xlu0 %v856, 8
      %v914 = vpop.permute.xlu0 %913
      %915 = vrot.lane.b32.xlu0 %v858, 8
      %v916 = vpop.permute.xlu0 %915
      %917 = vrot.lane.b32.xlu0 %v859, 8
      %v918 = vpop.permute.xlu0 %917
      %919 = vrot.lane.b32.xlu0 %v861, 8
      %v920 = vpop.permute.xlu0 %919
      %921 = vrot.lane.b32.xlu0 %v862, 8
      %v922 = vpop.permute.xlu0 %921
      %923 = vrot.lane.b32.xlu0 %v864, 8
      %v924 = vpop.permute.xlu0 %923
      %925 = vrot.lane.b32.xlu0 %v865, 8
      %v926 = vpop.permute.xlu0 %925
      %927 = vrot.lane.b32.xlu0 %v867, 8
      %v928 = vpop.permute.xlu0 %927
      %929 = vrot.lane.b32.xlu0 %v868, 8
      %v930 = vpop.permute.xlu0 %929
      %931 = vrot.lane.b32.xlu0 %v870, 8
      %v932 = vpop.permute.xlu0 %931
      %933 = vrot.lane.b32.xlu0 %v871, 8
      %v934 = vpop.permute.xlu0 %933
      %935 = vrot.lane.b32.xlu0 %v873, 8
      %v936 = vpop.permute.xlu0 %935
      %937 = vrot.lane.b32.xlu0 %v874, 8
      %v938 = vpop.permute.xlu0 %937
      %939 = vrot.lane.b32.xlu0 %v876, 8
      %v940 = vpop.permute.xlu0 %939
      %vm941 = vcmask 31744
      %v944 = vsel %vm941, %v572, %v749
      %v946 = vsel %vm941, %v573, %v749
      %v949 = vsel %vm941, %v574, %v751
      %v951 = vsel %vm941, %v575, %v751
      %v954 = vsel %vm941, %v576, %v753
      %v956 = vsel %vm941, %v577, %v753
      %v959 = vsel %vm941, %v578, %v755
      %v961 = vsel %vm941, %v579, %v755
      %v964 = vsel %vm941, %v580, %v757
      %v966 = vsel %vm941, %v581, %v757
      %v969 = vsel %vm941, %v582, %v759
      %v971 = vsel %vm941, %v583, %v759
      %v974 = vsel %vm941, %v584, %v761
      %v976 = vsel %vm941, %v585, %v761
      %v979 = vsel %vm941, %v586, %v763
      %v981 = vsel %vm941, %v587, %v763
      %v984 = vsel %vm941, %v588, %v765
      %v986 = vsel %vm941, %v589, %v765
      %v989 = vsel %vm941, %v590, %v767
      %v991 = vsel %vm941, %v591, %v767
      %v994 = vsel %vm941, %v592, %v769
      %v996 = vsel %vm941, %v593, %v769
      %v999 = vsel %vm941, %v594, %v771
      %v1001 = vsel %vm941, %v595, %v771
      %v1004 = vsel %vm941, %v596, %v773
      %v1006 = vsel %vm941, %v597, %v773
      %v1009 = vsel %vm941, %v598, %v775
      %v1011 = vsel %vm941, %v599, %v775
      %v1014 = vsel %vm941, %v600, %v777
      %v1016 = vsel %vm941, %v601, %v777
      %v1019 = vsel %vm941, %v602, %v779
      %v1021 = vsel %vm941, %v603, %v779
      %vm1022 = vcmask 64512
      %v1024 = vsel %vm1022, %v944, %v878
      %v1026 = vsel %vm1022, %v946, %v880
      %v1028 = vsel %vm1022, %v949, %v882
      %v1030 = vsel %vm1022, %v951, %v884
      %v1032 = vsel %vm1022, %v954, %v886
      %v1034 = vsel %vm1022, %v956, %v888
      %v1036 = vsel %vm1022, %v959, %v890
      %v1038 = vsel %vm1022, %v961, %v892
      %v1040 = vsel %vm1022, %v964, %v894
      %v1042 = vsel %vm1022, %v966, %v896
      %v1044 = vsel %vm1022, %v969, %v898
      %v1046 = vsel %vm1022, %v971, %v900
      %v1048 = vsel %vm1022, %v974, %v902
      %v1050 = vsel %vm1022, %v976, %v904
      %v1052 = vsel %vm1022, %v979, %v906
      %v1054 = vsel %vm1022, %v981, %v908
      %v1056 = vsel %vm1022, %v984, %v910
      %v1058 = vsel %vm1022, %v986, %v912
      %v1060 = vsel %vm1022, %v989, %v914
      %v1062 = vsel %vm1022, %v991, %v916
      %v1064 = vsel %vm1022, %v994, %v918
      %v1066 = vsel %vm1022, %v996, %v920
      %v1068 = vsel %vm1022, %v999, %v922
      %v1070 = vsel %vm1022, %v1001, %v924
      %v1072 = vsel %vm1022, %v1004, %v926
      %v1074 = vsel %vm1022, %v1006, %v928
      %v1076 = vsel %vm1022, %v1009, %v930
      %v1078 = vsel %vm1022, %v1011, %v932
      %v1080 = vsel %vm1022, %v1014, %v934
      %v1082 = vsel %vm1022, %v1016, %v936
      %v1084 = vsel %vm1022, %v1019, %v938
      %v1086 = vsel %vm1022, %v1021, %v940
      %vm1087 = vsmask.f32 4352
      %v1088 = vshrl.u32 %v1024, 16
      %v1090 = vrot.slane %v1088, 3
      %v1091 = vshll.u32 %v1024, 16
      %v1093 = vrot.slane %v1091, 4
      %v1094 = vor.u32 %v1090, %v1093
      %v1095 = vshrl.u32 %v1026, 16
      %v1097 = vrot.slane %v1095, 3
      %v1098 = vshll.u32 %v1026, 16
      %v1100 = vrot.slane %v1098, 4
      %v1101 = vor.u32 %v1097, %v1100
      %v1102 = vsel %vm1087, %v1094, %v1101
      %v1103 = vshrl.u32 %v1028, 16
      %v1105 = vrot.slane %v1103, 3
      %v1106 = vshll.u32 %v1028, 16
      %v1108 = vrot.slane %v1106, 4
      %v1109 = vor.u32 %v1105, %v1108
      %v1110 = vshrl.u32 %v1030, 16
      %v1112 = vrot.slane %v1110, 3
      %v1113 = vshll.u32 %v1030, 16
      %v1115 = vrot.slane %v1113, 4
      %v1116 = vor.u32 %v1112, %v1115
      %v1117 = vsel %vm1087, %v1109, %v1116
      %v1118 = vshrl.u32 %v1032, 16
      %v1120 = vrot.slane %v1118, 3
      %v1121 = vshll.u32 %v1032, 16
      %v1123 = vrot.slane %v1121, 4
      %v1124 = vor.u32 %v1120, %v1123
      %v1125 = vshrl.u32 %v1034, 16
      %v1127 = vrot.slane %v1125, 3
      %v1128 = vshll.u32 %v1034, 16
      %v1130 = vrot.slane %v1128, 4
      %v1131 = vor.u32 %v1127, %v1130
      %v1132 = vsel %vm1087, %v1124, %v1131
      %v1133 = vshrl.u32 %v1036, 16
      %v1135 = vrot.slane %v1133, 3
      %v1136 = vshll.u32 %v1036, 16
      %v1138 = vrot.slane %v1136, 4
      %v1139 = vor.u32 %v1135, %v1138
      %v1140 = vshrl.u32 %v1038, 16
      %v1142 = vrot.slane %v1140, 3
      %v1143 = vshll.u32 %v1038, 16
      %v1145 = vrot.slane %v1143, 4
      %v1146 = vor.u32 %v1142, %v1145
      %v1147 = vsel %vm1087, %v1139, %v1146
      %v1148 = vshrl.u32 %v1040, 16
      %v1150 = vrot.slane %v1148, 3
      %v1151 = vshll.u32 %v1040, 16
      %v1153 = vrot.slane %v1151, 4
      %v1154 = vor.u32 %v1150, %v1153
      %v1155 = vshrl.u32 %v1042, 16
      %v1157 = vrot.slane %v1155, 3
      %v1158 = vshll.u32 %v1042, 16
      %v1160 = vrot.slane %v1158, 4
      %v1161 = vor.u32 %v1157, %v1160
      %v1162 = vsel %vm1087, %v1154, %v1161
      %v1163 = vshrl.u32 %v1044, 16
      %v1165 = vrot.slane %v1163, 3
      %v1166 = vshll.u32 %v1044, 16
      %v1168 = vrot.slane %v1166, 4
      %v1169 = vor.u32 %v1165, %v1168
      %v1170 = vshrl.u32 %v1046, 16
      %v1172 = vrot.slane %v1170, 3
      %v1173 = vshll.u32 %v1046, 16
      %v1175 = vrot.slane %v1173, 4
      %v1176 = vor.u32 %v1172, %v1175
      %v1177 = vsel %vm1087, %v1169, %v1176
      %v1178 = vshrl.u32 %v1048, 16
      %v1180 = vrot.slane %v1178, 3
      %v1181 = vshll.u32 %v1048, 16
      %v1183 = vrot.slane %v1181, 4
      %v1184 = vor.u32 %v1180, %v1183
      %v1185 = vshrl.u32 %v1050, 16
      %v1187 = vrot.slane %v1185, 3
      %v1188 = vshll.u32 %v1050, 16
      %v1190 = vrot.slane %v1188, 4
      %v1191 = vor.u32 %v1187, %v1190
      %v1192 = vsel %vm1087, %v1184, %v1191
      %v1193 = vshrl.u32 %v1052, 16
      %v1195 = vrot.slane %v1193, 3
      %v1196 = vshll.u32 %v1052, 16
      %v1198 = vrot.slane %v1196, 4
      %v1199 = vor.u32 %v1195, %v1198
      %v1200 = vshrl.u32 %v1054, 16
      %v1202 = vrot.slane %v1200, 3
      %v1203 = vshll.u32 %v1054, 16
      %v1205 = vrot.slane %v1203, 4
      %v1206 = vor.u32 %v1202, %v1205
      %v1207 = vsel %vm1087, %v1199, %v1206
      %v1208 = vshrl.u32 %v1056, 16
      %v1210 = vrot.slane %v1208, 3
      %v1211 = vshll.u32 %v1056, 16
      %v1213 = vrot.slane %v1211, 4
      %v1214 = vor.u32 %v1210, %v1213
      %v1215 = vshrl.u32 %v1058, 16
      %v1217 = vrot.slane %v1215, 3
      %v1218 = vshll.u32 %v1058, 16
      %v1220 = vrot.slane %v1218, 4
      %v1221 = vor.u32 %v1217, %v1220
      %v1222 = vsel %vm1087, %v1214, %v1221
      %v1223 = vshrl.u32 %v1060, 16
      %v1225 = vrot.slane %v1223, 3
      %v1226 = vshll.u32 %v1060, 16
      %v1228 = vrot.slane %v1226, 4
      %v1229 = vor.u32 %v1225, %v1228
      %v1230 = vshrl.u32 %v1062, 16
      %v1232 = vrot.slane %v1230, 3
      %v1233 = vshll.u32 %v1062, 16
      %v1235 = vrot.slane %v1233, 4
      %v1236 = vor.u32 %v1232, %v1235
      %v1237 = vsel %vm1087, %v1229, %v1236
      %v1238 = vshrl.u32 %v1064, 16
      %v1240 = vrot.slane %v1238, 3
      %v1241 = vshll.u32 %v1064, 16
      %v1243 = vrot.slane %v1241, 4
      %v1244 = vor.u32 %v1240, %v1243
      %v1245 = vshrl.u32 %v1066, 16
      %v1247 = vrot.slane %v1245, 3
      %v1248 = vshll.u32 %v1066, 16
      %v1250 = vrot.slane %v1248, 4
      %v1251 = vor.u32 %v1247, %v1250
      %v1252 = vsel %vm1087, %v1244, %v1251
      %v1253 = vshrl.u32 %v1068, 16
      %v1255 = vrot.slane %v1253, 3
      %v1256 = vshll.u32 %v1068, 16
      %v1258 = vrot.slane %v1256, 4
      %v1259 = vor.u32 %v1255, %v1258
      %v1260 = vshrl.u32 %v1070, 16
      %v1262 = vrot.slane %v1260, 3
      %v1263 = vshll.u32 %v1070, 16
      %v1265 = vrot.slane %v1263, 4
      %v1266 = vor.u32 %v1262, %v1265
      %v1267 = vsel %vm1087, %v1259, %v1266
      %v1268 = vshrl.u32 %v1072, 16
      %v1270 = vrot.slane %v1268, 3
      %v1271 = vshll.u32 %v1072, 16
      %v1273 = vrot.slane %v1271, 4
      %v1274 = vor.u32 %v1270, %v1273
      %v1275 = vshrl.u32 %v1074, 16
      %v1277 = vrot.slane %v1275, 3
      %v1278 = vshll.u32 %v1074, 16
      %v1280 = vrot.slane %v1278, 4
      %v1281 = vor.u32 %v1277, %v1280
      %v1282 = vsel %vm1087, %v1274, %v1281
      %v1283 = vshrl.u32 %v1076, 16
      %v1285 = vrot.slane %v1283, 3
      %v1286 = vshll.u32 %v1076, 16
      %v1288 = vrot.slane %v1286, 4
      %v1289 = vor.u32 %v1285, %v1288
      %v1290 = vshrl.u32 %v1078, 16
      %v1292 = vrot.slane %v1290, 3
      %v1293 = vshll.u32 %v1078, 16
      %v1295 = vrot.slane %v1293, 4
      %v1296 = vor.u32 %v1292, %v1295
      %v1297 = vsel %vm1087, %v1289, %v1296
      %v1298 = vshrl.u32 %v1080, 16
      %v1300 = vrot.slane %v1298, 3
      %v1301 = vshll.u32 %v1080, 16
      %v1303 = vrot.slane %v1301, 4
      %v1304 = vor.u32 %v1300, %v1303
      %v1305 = vshrl.u32 %v1082, 16
      %v1307 = vrot.slane %v1305, 3
      %v1308 = vshll.u32 %v1082, 16
      %v1310 = vrot.slane %v1308, 4
      %v1311 = vor.u32 %v1307, %v1310
      %v1312 = vsel %vm1087, %v1304, %v1311
      %v1313 = vshrl.u32 %v1084, 16
      %v1315 = vrot.slane %v1313, 3
      %v1316 = vshll.u32 %v1084, 16
      %v1318 = vrot.slane %v1316, 4
      %v1319 = vor.u32 %v1315, %v1318
      %v1320 = vshrl.u32 %v1086, 16
      %v1322 = vrot.slane %v1320, 3
      %v1323 = vshll.u32 %v1086, 16
      %v1325 = vrot.slane %v1323, 4
      %v1326 = vor.u32 %v1322, %v1325
      %v1327 = vsel %vm1087, %v1319, %v1326
      %v1328 = vld [vmem:[%s1] sm:$0xf]
      %v1329 = vld [vmem:[%s1 + $0x4] sm:$0x3]
      %v1330 = vld [vmem:[%s379] sm:$0x8]
      %v1331 = vld [vmem:[%s379 + $0x4] sm:$0xf]
      %v1332 = vld [vmem:[%s379 + $0x8] sm:$0xf]
      %v1333 = vld [vmem:[%s379 + $0x10] sm:$0x8]
      %v1334 = vld [vmem:[%s379 + $0x14] sm:$0xf]
      %v1335 = vld [vmem:[%s379 + $0x18] sm:$0xf]
      %v1336 = vld [vmem:[%s379 + $0x20] sm:$0x8]
      %v1337 = vld [vmem:[%s379 + $0x24] sm:$0xf]
      %v1338 = vld [vmem:[%s379 + $0x28] sm:$0xf]
      %v1339 = vld [vmem:[%s379 + $0x30] sm:$0x8]
      %v1340 = vld [vmem:[%s379 + $0x34] sm:$0xf]
      %v1341 = vld [vmem:[%s379 + $0x38] sm:$0xf]
      %v1342 = vld [vmem:[%s379 + $0x40] sm:$0x8]
      %v1343 = vld [vmem:[%s379 + $0x44] sm:$0xf]
      %v1344 = vld [vmem:[%s379 + $0x48] sm:$0xf]
      %v1345 = vld [vmem:[%s379 + $0x50] sm:$0x8]
      %v1346 = vld [vmem:[%s379 + $0x54] sm:$0xf]
      %v1347 = vld [vmem:[%s379 + $0x58] sm:$0xf]
      %v1348 = vld [vmem:[%s379 + $0x60] sm:$0x8]
      %v1349 = vld [vmem:[%s379 + $0x64] sm:$0xf]
      %v1350 = vld [vmem:[%s379 + $0x68] sm:$0xf]
      %v1351 = vld [vmem:[%s379 + $0x70] sm:$0x8]
      %v1352 = vld [vmem:[%s379 + $0x74] sm:$0xf]
      %v1353 = vld [vmem:[%s379 + $0x78] sm:$0xf]
      %v1354 = vld [vmem:[%s379 + $0x80] sm:$0x8]
      %v1355 = vld [vmem:[%s379 + $0x84] sm:$0xf]
      %v1356 = vld [vmem:[%s379 + $0x88] sm:$0xf]
      %v1357 = vld [vmem:[%s379 + $0x90] sm:$0x8]
      %v1358 = vld [vmem:[%s379 + $0x94] sm:$0xf]
      %v1359 = vld [vmem:[%s379 + $0x98] sm:$0xf]
      %v1360 = vld [vmem:[%s379 + $0xa0] sm:$0x8]
      %v1361 = vld [vmem:[%s379 + $0xa4] sm:$0xf]
      %v1362 = vld [vmem:[%s379 + $0xa8] sm:$0xf]
      %v1363 = vld [vmem:[%s379 + $0xb0] sm:$0x8]
      %v1364 = vld [vmem:[%s379 + $0xb4] sm:$0xf]
      %v1365 = vld [vmem:[%s379 + $0xb8] sm:$0xf]
      %v1366 = vld [vmem:[%s379 + $0xc0] sm:$0x8]
      %v1367 = vld [vmem:[%s379 + $0xc4] sm:$0xf]
      %v1368 = vld [vmem:[%s379 + $0xc8] sm:$0xf]
      %v1369 = vld [vmem:[%s379 + $0xd0] sm:$0x8]
      %v1370 = vld [vmem:[%s379 + $0xd4] sm:$0xf]
      %v1371 = vld [vmem:[%s379 + $0xd8] sm:$0xf]
      %v1372 = vld [vmem:[%s379 + $0xe0] sm:$0x8]
      %v1373 = vld [vmem:[%s379 + $0xe4] sm:$0xf]
      %v1374 = vld [vmem:[%s379 + $0xe8] sm:$0xf]
      %v1375 = vld [vmem:[%s379 + $0xf0] sm:$0x8]
      %v1376 = vld [vmem:[%s379 + $0xf4] sm:$0xf]
      %v1377 = vld [vmem:[%s379 + $0xf8] sm:$0xf]
      %v1378 = vld [vmem:[%s379 + $0xc] sm:$0x1]
      %v1379 = vld [vmem:[%s379 + $0x1c] sm:$0x1]
      %v1380 = vld [vmem:[%s379 + $0x2c] sm:$0x1]
      %v1381 = vld [vmem:[%s379 + $0x3c] sm:$0x1]
      %v1382 = vld [vmem:[%s379 + $0x4c] sm:$0x1]
      %v1383 = vld [vmem:[%s379 + $0x5c] sm:$0x1]
      %v1384 = vld [vmem:[%s379 + $0x6c] sm:$0x1]
      %v1385 = vld [vmem:[%s379 + $0x7c] sm:$0x1]
      %v1386 = vld [vmem:[%s379 + $0x8c] sm:$0x1]
      %v1387 = vld [vmem:[%s379 + $0x9c] sm:$0x1]
      %v1388 = vld [vmem:[%s379 + $0xac] sm:$0x1]
      %v1389 = vld [vmem:[%s379 + $0xbc] sm:$0x1]
      %v1390 = vld [vmem:[%s379 + $0xcc] sm:$0x1]
      %v1391 = vld [vmem:[%s379 + $0xdc] sm:$0x1]
      %v1392 = vld [vmem:[%s379 + $0xec] sm:$0x1]
      %v1393 = vld [vmem:[%s379 + $0xfc] sm:$0x1]
      %v1442 = vunpack.c.l.b16 %v1330
      %v1443 = vunpack.c.l.b16 %v1331
      %v1444 = vunpack.c.l.b16 %v1332
      %v1445 = vunpack.c.l.b16 %v1333
      %v1446 = vunpack.c.l.b16 %v1334
      %v1447 = vunpack.c.l.b16 %v1335
      %v1448 = vunpack.c.l.b16 %v1336
      %v1449 = vunpack.c.l.b16 %v1337
      %v1450 = vunpack.c.l.b16 %v1338
      %v1451 = vunpack.c.l.b16 %v1339
      %v1452 = vunpack.c.l.b16 %v1340
      %v1453 = vunpack.c.l.b16 %v1341
      %v1454 = vunpack.c.l.b16 %v1342
      %v1455 = vunpack.c.l.b16 %v1343
      %v1456 = vunpack.c.l.b16 %v1344
      %v1457 = vunpack.c.l.b16 %v1345
      %v1458 = vunpack.c.l.b16 %v1346
      %v1459 = vunpack.c.l.b16 %v1347
      %v1460 = vunpack.c.l.b16 %v1348
      %v1461 = vunpack.c.l.b16 %v1349
      %v1462 = vunpack.c.l.b16 %v1350
      %v1463 = vunpack.c.l.b16 %v1351
      %v1464 = vunpack.c.l.b16 %v1352
      %v1465 = vunpack.c.l.b16 %v1353
      %v1466 = vunpack.c.l.b16 %v1354
      %v1467 = vunpack.c.l.b16 %v1355
      %v1468 = vunpack.c.l.b16 %v1356
      %v1469 = vunpack.c.l.b16 %v1357
      %v1470 = vunpack.c.l.b16 %v1358
      %v1471 = vunpack.c.l.b16 %v1359
      %v1472 = vunpack.c.l.b16 %v1360
      %v1473 = vunpack.c.l.b16 %v1361
      %v1474 = vunpack.c.l.b16 %v1362
      %v1475 = vunpack.c.l.b16 %v1363
      %v1476 = vunpack.c.l.b16 %v1364
      %v1477 = vunpack.c.l.b16 %v1365
      %v1478 = vunpack.c.l.b16 %v1366
      %v1479 = vunpack.c.l.b16 %v1367
      %v1480 = vunpack.c.l.b16 %v1368
      %v1481 = vunpack.c.l.b16 %v1369
      %v1482 = vunpack.c.l.b16 %v1370
      %v1483 = vunpack.c.l.b16 %v1371
      %v1484 = vunpack.c.l.b16 %v1372
      %v1485 = vunpack.c.l.b16 %v1373
      %v1486 = vunpack.c.l.b16 %v1374
      %v1487 = vunpack.c.l.b16 %v1375
      %v1488 = vunpack.c.l.b16 %v1376
      %v1489 = vunpack.c.l.b16 %v1377
      %v1490 = vpack.c.b16 %v1443, %v1442
      %v1491 = vpack.c.b16 %v1444, %v1444
      %v1492 = vpack.c.b16 %v1446, %v1445
      %v1493 = vpack.c.b16 %v1447, %v1447
      %v1494 = vpack.c.b16 %v1449, %v1448
      %v1495 = vpack.c.b16 %v1450, %v1450
      %v1496 = vpack.c.b16 %v1452, %v1451
      %v1497 = vpack.c.b16 %v1453, %v1453
      %v1498 = vpack.c.b16 %v1455, %v1454
      %v1499 = vpack.c.b16 %v1456, %v1456
      %v1500 = vpack.c.b16 %v1458, %v1457
      %v1501 = vpack.c.b16 %v1459, %v1459
      %v1502 = vpack.c.b16 %v1461, %v1460
      %v1503 = vpack.c.b16 %v1462, %v1462
      %v1504 = vpack.c.b16 %v1464, %v1463
      %v1505 = vpack.c.b16 %v1465, %v1465
      %v1506 = vpack.c.b16 %v1467, %v1466
      %v1507 = vpack.c.b16 %v1468, %v1468
      %v1508 = vpack.c.b16 %v1470, %v1469
      %v1509 = vpack.c.b16 %v1471, %v1471
      %v1510 = vpack.c.b16 %v1473, %v1472
      %v1511 = vpack.c.b16 %v1474, %v1474
      %v1512 = vpack.c.b16 %v1476, %v1475
      %v1513 = vpack.c.b16 %v1477, %v1477
      %v1514 = vpack.c.b16 %v1479, %v1478
      %v1515 = vpack.c.b16 %v1480, %v1480
      %v1516 = vpack.c.b16 %v1482, %v1481
      %v1517 = vpack.c.b16 %v1483, %v1483
      %v1518 = vpack.c.b16 %v1485, %v1484
      %v1519 = vpack.c.b16 %v1486, %v1486
      %v1520 = vpack.c.b16 %v1488, %v1487
      %v1521 = vpack.c.b16 %v1489, %v1489
      %v1522 = vpack.c.b16 %v1444, %v1443
      %v1523 = vpack.c.b16 %v1447, %v1446
      %v1524 = vpack.c.b16 %v1450, %v1449
      %v1525 = vpack.c.b16 %v1453, %v1452
      %v1526 = vpack.c.b16 %v1456, %v1455
      %v1527 = vpack.c.b16 %v1459, %v1458
      %v1528 = vpack.c.b16 %v1462, %v1461
      %v1529 = vpack.c.b16 %v1465, %v1464
      %v1530 = vpack.c.b16 %v1468, %v1467
      %v1531 = vpack.c.b16 %v1471, %v1470
      %v1532 = vpack.c.b16 %v1474, %v1473
      %v1533 = vpack.c.b16 %v1477, %v1476
      %v1534 = vpack.c.b16 %v1480, %v1479
      %v1535 = vpack.c.b16 %v1483, %v1482
      %v1536 = vpack.c.b16 %v1486, %v1485
      %v1537 = vpack.c.b16 %v1489, %v1488
      %v1539 = vshrl.u32 %v1522, 16
      %v1541 = vrot.slane %v1539, 4
      %v1542 = vshll.u32 %v1522, 16
      %v1544 = vrot.slane %v1542, 5
      %v1545 = vor.u32 %v1541, %v1544
      %v1547 = vshrl.u32 %v1523, 16
      %v1549 = vrot.slane %v1547, 4
      %v1550 = vshll.u32 %v1523, 16
      %v1552 = vrot.slane %v1550, 5
      %v1553 = vor.u32 %v1549, %v1552
      %v1555 = vshrl.u32 %v1524, 16
      %v1557 = vrot.slane %v1555, 4
      %v1558 = vshll.u32 %v1524, 16
      %v1560 = vrot.slane %v1558, 5
      %v1561 = vor.u32 %v1557, %v1560
      %v1563 = vshrl.u32 %v1525, 16
      %v1565 = vrot.slane %v1563, 4
      %v1566 = vshll.u32 %v1525, 16
      %v1568 = vrot.slane %v1566, 5
      %v1569 = vor.u32 %v1565, %v1568
      %v1571 = vshrl.u32 %v1526, 16
      %v1573 = vrot.slane %v1571, 4
      %v1574 = vshll.u32 %v1526, 16
      %v1576 = vrot.slane %v1574, 5
      %v1577 = vor.u32 %v1573, %v1576
      %v1579 = vshrl.u32 %v1527, 16
      %v1581 = vrot.slane %v1579, 4
      %v1582 = vshll.u32 %v1527, 16
      %v1584 = vrot.slane %v1582, 5
      %v1585 = vor.u32 %v1581, %v1584
      %v1587 = vshrl.u32 %v1528, 16
      %v1589 = vrot.slane %v1587, 4
      %v1590 = vshll.u32 %v1528, 16
      %v1592 = vrot.slane %v1590, 5
      %v1593 = vor.u32 %v1589, %v1592
      %v1595 = vshrl.u32 %v1529, 16
      %v1597 = vrot.slane %v1595, 4
      %v1598 = vshll.u32 %v1529, 16
      %v1600 = vrot.slane %v1598, 5
      %v1601 = vor.u32 %v1597, %v1600
      %v1603 = vshrl.u32 %v1530, 16
      %v1605 = vrot.slane %v1603, 4
      %v1606 = vshll.u32 %v1530, 16
      %v1608 = vrot.slane %v1606, 5
      %v1609 = vor.u32 %v1605, %v1608
      %v1611 = vshrl.u32 %v1531, 16
      %v1613 = vrot.slane %v1611, 4
      %v1614 = vshll.u32 %v1531, 16
      %v1616 = vrot.slane %v1614, 5
      %v1617 = vor.u32 %v1613, %v1616
      %v1619 = vshrl.u32 %v1532, 16
      %v1621 = vrot.slane %v1619, 4
      %v1622 = vshll.u32 %v1532, 16
      %v1624 = vrot.slane %v1622, 5
      %v1625 = vor.u32 %v1621, %v1624
      %v1627 = vshrl.u32 %v1533, 16
      %v1629 = vrot.slane %v1627, 4
      %v1630 = vshll.u32 %v1533, 16
      %v1632 = vrot.slane %v1630, 5
      %v1633 = vor.u32 %v1629, %v1632
      %v1635 = vshrl.u32 %v1534, 16
      %v1637 = vrot.slane %v1635, 4
      %v1638 = vshll.u32 %v1534, 16
      %v1640 = vrot.slane %v1638, 5
      %v1641 = vor.u32 %v1637, %v1640
      %v1643 = vshrl.u32 %v1535, 16
      %v1645 = vrot.slane %v1643, 4
      %v1646 = vshll.u32 %v1535, 16
      %v1648 = vrot.slane %v1646, 5
      %v1649 = vor.u32 %v1645, %v1648
      %v1651 = vshrl.u32 %v1536, 16
      %v1653 = vrot.slane %v1651, 4
      %v1654 = vshll.u32 %v1536, 16
      %v1656 = vrot.slane %v1654, 5
      %v1657 = vor.u32 %v1653, %v1656
      %v1659 = vshrl.u32 %v1537, 16
      %v1661 = vrot.slane %v1659, 4
      %v1662 = vshll.u32 %v1537, 16
      %v1664 = vrot.slane %v1662, 5
      %v1665 = vor.u32 %v1661, %v1664
      %1666 = vrot.lane.b32.xlu0 %v1545, 4
      %v1667 = vpop.permute.xlu0 %1666
      %1668 = vrot.lane.b32.xlu0 %v1553, 4
      %v1669 = vpop.permute.xlu0 %1668
      %1670 = vrot.lane.b32.xlu0 %v1561, 4
      %v1671 = vpop.permute.xlu0 %1670
      %1672 = vrot.lane.b32.xlu0 %v1569, 4
      %v1673 = vpop.permute.xlu0 %1672
      %1674 = vrot.lane.b32.xlu0 %v1577, 4
      %v1675 = vpop.permute.xlu0 %1674
      %1676 = vrot.lane.b32.xlu0 %v1585, 4
      %v1677 = vpop.permute.xlu0 %1676
      %1678 = vrot.lane.b32.xlu0 %v1593, 4
      %v1679 = vpop.permute.xlu0 %1678
      %1680 = vrot.lane.b32.xlu0 %v1601, 4
      %v1681 = vpop.permute.xlu0 %1680
      %1682 = vrot.lane.b32.xlu0 %v1609, 4
      %v1683 = vpop.permute.xlu0 %1682
      %1684 = vrot.lane.b32.xlu0 %v1617, 4
      %v1685 = vpop.permute.xlu0 %1684
      %1686 = vrot.lane.b32.xlu0 %v1625, 4
      %v1687 = vpop.permute.xlu0 %1686
      %1688 = vrot.lane.b32.xlu0 %v1633, 4
      %v1689 = vpop.permute.xlu0 %1688
      %1690 = vrot.lane.b32.xlu0 %v1641, 4
      %v1691 = vpop.permute.xlu0 %1690
      %1692 = vrot.lane.b32.xlu0 %v1649, 4
      %v1693 = vpop.permute.xlu0 %1692
      %1694 = vrot.lane.b32.xlu0 %v1657, 4
      %v1695 = vpop.permute.xlu0 %1694
      %1696 = vrot.lane.b32.xlu0 %v1665, 4
      %v1697 = vpop.permute.xlu0 %1696
      %v1714 = vunpack.c.l.b16 %v1378
      %v1715 = vunpack.c.l.b16 %v1379
      %v1716 = vunpack.c.l.b16 %v1380
      %v1717 = vunpack.c.l.b16 %v1381
      %v1718 = vunpack.c.l.b16 %v1382
      %v1719 = vunpack.c.l.b16 %v1383
      %v1720 = vunpack.c.l.b16 %v1384
      %v1721 = vunpack.c.l.b16 %v1385
      %v1722 = vunpack.c.l.b16 %v1386
      %v1723 = vunpack.c.l.b16 %v1387
      %v1724 = vunpack.c.l.b16 %v1388
      %v1725 = vunpack.c.l.b16 %v1389
      %v1726 = vunpack.c.l.b16 %v1390
      %v1727 = vunpack.c.l.b16 %v1391
      %v1728 = vunpack.c.l.b16 %v1392
      %v1729 = vunpack.c.l.b16 %v1393
      %v1730 = vpack.c.b16 %v1714, %v1714
      %v1731 = vpack.c.b16 %v1715, %v1715
      %v1732 = vpack.c.b16 %v1716, %v1716
      %v1733 = vpack.c.b16 %v1717, %v1717
      %v1734 = vpack.c.b16 %v1718, %v1718
      %v1735 = vpack.c.b16 %v1719, %v1719
      %v1736 = vpack.c.b16 %v1720, %v1720
      %v1737 = vpack.c.b16 %v1721, %v1721
      %v1738 = vpack.c.b16 %v1722, %v1722
      %v1739 = vpack.c.b16 %v1723, %v1723
      %v1740 = vpack.c.b16 %v1724, %v1724
      %v1741 = vpack.c.b16 %v1725, %v1725
      %v1742 = vpack.c.b16 %v1726, %v1726
      %v1743 = vpack.c.b16 %v1727, %v1727
      %v1744 = vpack.c.b16 %v1728, %v1728
      %v1745 = vpack.c.b16 %v1729, %v1729
      %v1746 = vrot.slane %v1522, 5
      %v1747 = vrot.slane %v1730, 5
      %v1748 = vsel %vm828, %v1746, %v1747
      %v1749 = vrot.slane %v1523, 5
      %v1750 = vrot.slane %v1731, 5
      %v1751 = vsel %vm828, %v1749, %v1750
      %v1752 = vrot.slane %v1524, 5
      %v1753 = vrot.slane %v1732, 5
      %v1754 = vsel %vm828, %v1752, %v1753
      %v1755 = vrot.slane %v1525, 5
      %v1756 = vrot.slane %v1733, 5
      %v1757 = vsel %vm828, %v1755, %v1756
      %v1758 = vrot.slane %v1526, 5
      %v1759 = vrot.slane %v1734, 5
      %v1760 = vsel %vm828, %v1758, %v1759
      %v1761 = vrot.slane %v1527, 5
      %v1762 = vrot.slane %v1735, 5
      %v1763 = vsel %vm828, %v1761, %v1762
      %v1764 = vrot.slane %v1528, 5
      %v1765 = vrot.slane %v1736, 5
      %v1766 = vsel %vm828, %v1764, %v1765
      %v1767 = vrot.slane %v1529, 5
      %v1768 = vrot.slane %v1737, 5
      %v1769 = vsel %vm828, %v1767, %v1768
      %v1770 = vrot.slane %v1530, 5
      %v1771 = vrot.slane %v1738, 5
      %v1772 = vsel %vm828, %v1770, %v1771
      %v1773 = vrot.slane %v1531, 5
      %v1774 = vrot.slane %v1739, 5
      %v1775 = vsel %vm828, %v1773, %v1774
      %v1776 = vrot.slane %v1532, 5
      %v1777 = vrot.slane %v1740, 5
      %v1778 = vsel %vm828, %v1776, %v1777
      %v1779 = vrot.slane %v1533, 5
      %v1780 = vrot.slane %v1741, 5
      %v1781 = vsel %vm828, %v1779, %v1780
      %v1782 = vrot.slane %v1534, 5
      %v1783 = vrot.slane %v1742, 5
      %v1784 = vsel %vm828, %v1782, %v1783
      %v1785 = vrot.slane %v1535, 5
      %v1786 = vrot.slane %v1743, 5
      %v1787 = vsel %vm828, %v1785, %v1786
      %v1788 = vrot.slane %v1536, 5
      %v1789 = vrot.slane %v1744, 5
      %v1790 = vsel %vm828, %v1788, %v1789
      %v1791 = vrot.slane %v1537, 5
      %v1792 = vrot.slane %v1745, 5
      %v1793 = vsel %vm828, %v1791, %v1792
      %1794 = vrot.lane.b32.xlu0 %v1746, 8
      %v1795 = vpop.permute.xlu0 %1794
      %1796 = vrot.lane.b32.xlu0 %v1748, 8
      %v1797 = vpop.permute.xlu0 %1796
      %1798 = vrot.lane.b32.xlu0 %v1749, 8
      %v1799 = vpop.permute.xlu0 %1798
      %1800 = vrot.lane.b32.xlu0 %v1751, 8
      %v1801 = vpop.permute.xlu0 %1800
      %1802 = vrot.lane.b32.xlu0 %v1752, 8
      %v1803 = vpop.permute.xlu0 %1802
      %1804 = vrot.lane.b32.xlu0 %v1754, 8
      %v1805 = vpop.permute.xlu0 %1804
      %1806 = vrot.lane.b32.xlu0 %v1755, 8
      %v1807 = vpop.permute.xlu0 %1806
      %1808 = vrot.lane.b32.xlu0 %v1757, 8
      %v1809 = vpop.permute.xlu0 %1808
      %1810 = vrot.lane.b32.xlu0 %v1758, 8
      %v1811 = vpop.permute.xlu0 %1810
      %1812 = vrot.lane.b32.xlu0 %v1760, 8
      %v1813 = vpop.permute.xlu0 %1812
      %1814 = vrot.lane.b32.xlu0 %v1761, 8
      %v1815 = vpop.permute.xlu0 %1814
      %1816 = vrot.lane.b32.xlu0 %v1763, 8
      %v1817 = vpop.permute.xlu0 %1816
      %1818 = vrot.lane.b32.xlu0 %v1764, 8
      %v1819 = vpop.permute.xlu0 %1818
      %1820 = vrot.lane.b32.xlu0 %v1766, 8
      %v1821 = vpop.permute.xlu0 %1820
      %1822 = vrot.lane.b32.xlu0 %v1767, 8
      %v1823 = vpop.permute.xlu0 %1822
      %1824 = vrot.lane.b32.xlu0 %v1769, 8
      %v1825 = vpop.permute.xlu0 %1824
      %1826 = vrot.lane.b32.xlu0 %v1770, 8
      %v1827 = vpop.permute.xlu0 %1826
      %1828 = vrot.lane.b32.xlu0 %v1772, 8
      %v1829 = vpop.permute.xlu0 %1828
      %1830 = vrot.lane.b32.xlu0 %v1773, 8
      %v1831 = vpop.permute.xlu0 %1830
      %1832 = vrot.lane.b32.xlu0 %v1775, 8
      %v1833 = vpop.permute.xlu0 %1832
      %1834 = vrot.lane.b32.xlu0 %v1776, 8
      %v1835 = vpop.permute.xlu0 %1834
      %1836 = vrot.lane.b32.xlu0 %v1778, 8
      %v1837 = vpop.permute.xlu0 %1836
      %1838 = vrot.lane.b32.xlu0 %v1779, 8
      %v1839 = vpop.permute.xlu0 %1838
      %1840 = vrot.lane.b32.xlu0 %v1781, 8
      %v1841 = vpop.permute.xlu0 %1840
      %1842 = vrot.lane.b32.xlu0 %v1782, 8
      %v1843 = vpop.permute.xlu0 %1842
      %1844 = vrot.lane.b32.xlu0 %v1784, 8
      %v1845 = vpop.permute.xlu0 %1844
      %1846 = vrot.lane.b32.xlu0 %v1785, 8
      %v1847 = vpop.permute.xlu0 %1846
      %1848 = vrot.lane.b32.xlu0 %v1787, 8
      %v1849 = vpop.permute.xlu0 %1848
      %1850 = vrot.lane.b32.xlu0 %v1788, 8
      %v1851 = vpop.permute.xlu0 %1850
      %1852 = vrot.lane.b32.xlu0 %v1790, 8
      %v1853 = vpop.permute.xlu0 %1852
      %1854 = vrot.lane.b32.xlu0 %v1791, 8
      %v1855 = vpop.permute.xlu0 %1854
      %1856 = vrot.lane.b32.xlu0 %v1793, 8
      %v1857 = vpop.permute.xlu0 %1856
      %v1860 = vsel %vm941, %v1490, %v1667
      %v1862 = vsel %vm941, %v1491, %v1667
      %v1865 = vsel %vm941, %v1492, %v1669
      %v1867 = vsel %vm941, %v1493, %v1669
      %v1870 = vsel %vm941, %v1494, %v1671
      %v1872 = vsel %vm941, %v1495, %v1671
      %v1875 = vsel %vm941, %v1496, %v1673
      %v1877 = vsel %vm941, %v1497, %v1673
      %v1880 = vsel %vm941, %v1498, %v1675
      %v1882 = vsel %vm941, %v1499, %v1675
      %v1885 = vsel %vm941, %v1500, %v1677
      %v1887 = vsel %vm941, %v1501, %v1677
      %v1890 = vsel %vm941, %v1502, %v1679
      %v1892 = vsel %vm941, %v1503, %v1679
      %v1895 = vsel %vm941, %v1504, %v1681
      %v1897 = vsel %vm941, %v1505, %v1681
      %v1900 = vsel %vm941, %v1506, %v1683
      %v1902 = vsel %vm941, %v1507, %v1683
      %v1905 = vsel %vm941, %v1508, %v1685
      %v1907 = vsel %vm941, %v1509, %v1685
      %v1910 = vsel %vm941, %v1510, %v1687
      %v1912 = vsel %vm941, %v1511, %v1687
      %v1915 = vsel %vm941, %v1512, %v1689
      %v1917 = vsel %vm941, %v1513, %v1689
      %v1920 = vsel %vm941, %v1514, %v1691
      %v1922 = vsel %vm941, %v1515, %v1691
      %v1925 = vsel %vm941, %v1516, %v1693
      %v1927 = vsel %vm941, %v1517, %v1693
      %v1930 = vsel %vm941, %v1518, %v1695
      %v1932 = vsel %vm941, %v1519, %v1695
      %v1935 = vsel %vm941, %v1520, %v1697
      %v1937 = vsel %vm941, %v1521, %v1697
      %v1939 = vsel %vm1022, %v1860, %v1795
      %v1941 = vsel %vm1022, %v1862, %v1797
      %v1943 = vsel %vm1022, %v1865, %v1799
      %v1945 = vsel %vm1022, %v1867, %v1801
      %v1947 = vsel %vm1022, %v1870, %v1803
      %v1949 = vsel %vm1022, %v1872, %v1805
      %v1951 = vsel %vm1022, %v1875, %v1807
      %v1953 = vsel %vm1022, %v1877, %v1809
      %v1955 = vsel %vm1022, %v1880, %v1811
      %v1957 = vsel %vm1022, %v1882, %v1813
      %v1959 = vsel %vm1022, %v1885, %v1815
      %v1961 = vsel %vm1022, %v1887, %v1817
      %v1963 = vsel %vm1022, %v1890, %v1819
      %v1965 = vsel %vm1022, %v1892, %v1821
      %v1967 = vsel %vm1022, %v1895, %v1823
      %v1969 = vsel %vm1022, %v1897, %v1825
      %v1971 = vsel %vm1022, %v1900, %v1827
      %v1973 = vsel %vm1022, %v1902, %v1829
      %v1975 = vsel %vm1022, %v1905, %v1831
      %v1977 = vsel %vm1022, %v1907, %v1833
      %v1979 = vsel %vm1022, %v1910, %v1835
      %v1981 = vsel %vm1022, %v1912, %v1837
      %v1983 = vsel %vm1022, %v1915, %v1839
      %v1985 = vsel %vm1022, %v1917, %v1841
      %v1987 = vsel %vm1022, %v1920, %v1843
      %v1989 = vsel %vm1022, %v1922, %v1845
      %v1991 = vsel %vm1022, %v1925, %v1847
      %v1993 = vsel %vm1022, %v1927, %v1849
      %v1995 = vsel %vm1022, %v1930, %v1851
      %v1997 = vsel %vm1022, %v1932, %v1853
      %v1999 = vsel %vm1022, %v1935, %v1855
      %v2001 = vsel %vm1022, %v1937, %v1857
      %v2002 = vshrl.u32 %v1939, 16
      %v2004 = vrot.slane %v2002, 3
      %v2005 = vshll.u32 %v1939, 16
      %v2007 = vrot.slane %v2005, 4
      %v2008 = vor.u32 %v2004, %v2007
      %v2009 = vshrl.u32 %v1941, 16
      %v2011 = vrot.slane %v2009, 3
      %v2012 = vshll.u32 %v1941, 16
      %v2014 = vrot.slane %v2012, 4
      %v2015 = vor.u32 %v2011, %v2014
      %v2016 = vsel %vm1087, %v2008, %v2015
      %v2017 = vshrl.u32 %v1943, 16
      %v2019 = vrot.slane %v2017, 3
      %v2020 = vshll.u32 %v1943, 16
      %v2022 = vrot.slane %v2020, 4
      %v2023 = vor.u32 %v2019, %v2022
      %v2024 = vshrl.u32 %v1945, 16
      %v2026 = vrot.slane %v2024, 3
      %v2027 = vshll.u32 %v1945, 16
      %v2029 = vrot.slane %v2027, 4
      %v2030 = vor.u32 %v2026, %v2029
      %v2031 = vsel %vm1087, %v2023, %v2030
      %v2032 = vshrl.u32 %v1947, 16
      %v2034 = vrot.slane %v2032, 3
      %v2035 = vshll.u32 %v1947, 16
      %v2037 = vrot.slane %v2035, 4
      %v2038 = vor.u32 %v2034, %v2037
      %v2039 = vshrl.u32 %v1949, 16
      %v2041 = vrot.slane %v2039, 3
      %v2042 = vshll.u32 %v1949, 16
      %v2044 = vrot.slane %v2042, 4
      %v2045 = vor.u32 %v2041, %v2044
      %v2046 = vsel %vm1087, %v2038, %v2045
      %v2047 = vshrl.u32 %v1951, 16
      %v2049 = vrot.slane %v2047, 3
      %v2050 = vshll.u32 %v1951, 16
      %v2052 = vrot.slane %v2050, 4
      %v2053 = vor.u32 %v2049, %v2052
      %v2054 = vshrl.u32 %v1953, 16
      %v2056 = vrot.slane %v2054, 3
      %v2057 = vshll.u32 %v1953, 16
      %v2059 = vrot.slane %v2057, 4
      %v2060 = vor.u32 %v2056, %v2059
      %v2061 = vsel %vm1087, %v2053, %v2060
      %v2062 = vshrl.u32 %v1955, 16
      %v2064 = vrot.slane %v2062, 3
      %v2065 = vshll.u32 %v1955, 16
      %v2067 = vrot.slane %v2065, 4
      %v2068 = vor.u32 %v2064, %v2067
      %v2069 = vshrl.u32 %v1957, 16
      %v2071 = vrot.slane %v2069, 3
      %v2072 = vshll.u32 %v1957, 16
      %v2074 = vrot.slane %v2072, 4
      %v2075 = vor.u32 %v2071, %v2074
      %v2076 = vsel %vm1087, %v2068, %v2075
      %v2077 = vshrl.u32 %v1959, 16
      %v2079 = vrot.slane %v2077, 3
      %v2080 = vshll.u32 %v1959, 16
      %v2082 = vrot.slane %v2080, 4
      %v2083 = vor.u32 %v2079, %v2082
      %v2084 = vshrl.u32 %v1961, 16
      %v2086 = vrot.slane %v2084, 3
      %v2087 = vshll.u32 %v1961, 16
      %v2089 = vrot.slane %v2087, 4
      %v2090 = vor.u32 %v2086, %v2089
      %v2091 = vsel %vm1087, %v2083, %v2090
      %v2092 = vshrl.u32 %v1963, 16
      %v2094 = vrot.slane %v2092, 3
      %v2095 = vshll.u32 %v1963, 16
      %v2097 = vrot.slane %v2095, 4
      %v2098 = vor.u32 %v2094, %v2097
      %v2099 = vshrl.u32 %v1965, 16
      %v2101 = vrot.slane %v2099, 3
      %v2102 = vshll.u32 %v1965, 16
      %v2104 = vrot.slane %v2102, 4
      %v2105 = vor.u32 %v2101, %v2104
      %v2106 = vsel %vm1087, %v2098, %v2105
      %v2107 = vshrl.u32 %v1967, 16
      %v2109 = vrot.slane %v2107, 3
      %v2110 = vshll.u32 %v1967, 16
      %v2112 = vrot.slane %v2110, 4
      %v2113 = vor.u32 %v2109, %v2112
      %v2114 = vshrl.u32 %v1969, 16
      %v2116 = vrot.slane %v2114, 3
      %v2117 = vshll.u32 %v1969, 16
      %v2119 = vrot.slane %v2117, 4
      %v2120 = vor.u32 %v2116, %v2119
      %v2121 = vsel %vm1087, %v2113, %v2120
      %v2122 = vshrl.u32 %v1971, 16
      %v2124 = vrot.slane %v2122, 3
      %v2125 = vshll.u32 %v1971, 16
      %v2127 = vrot.slane %v2125, 4
      %v2128 = vor.u32 %v2124, %v2127
      %v2129 = vshrl.u32 %v1973, 16
      %v2131 = vrot.slane %v2129, 3
      %v2132 = vshll.u32 %v1973, 16
      %v2134 = vrot.slane %v2132, 4
      %v2135 = vor.u32 %v2131, %v2134
      %v2136 = vsel %vm1087, %v2128, %v2135
      %v2137 = vshrl.u32 %v1975, 16
      %v2139 = vrot.slane %v2137, 3
      %v2140 = vshll.u32 %v1975, 16
      %v2142 = vrot.slane %v2140, 4
      %v2143 = vor.u32 %v2139, %v2142
      %v2144 = vshrl.u32 %v1977, 16
      %v2146 = vrot.slane %v2144, 3
      %v2147 = vshll.u32 %v1977, 16
      %v2149 = vrot.slane %v2147, 4
      %v2150 = vor.u32 %v2146, %v2149
      %v2151 = vsel %vm1087, %v2143, %v2150
      %v2152 = vshrl.u32 %v1979, 16
      %v2154 = vrot.slane %v2152, 3
      %v2155 = vshll.u32 %v1979, 16
      %v2157 = vrot.slane %v2155, 4
      %v2158 = vor.u32 %v2154, %v2157
      %v2159 = vshrl.u32 %v1981, 16
      %v2161 = vrot.slane %v2159, 3
      %v2162 = vshll.u32 %v1981, 16
      %v2164 = vrot.slane %v2162, 4
      %v2165 = vor.u32 %v2161, %v2164
      %v2166 = vsel %vm1087, %v2158, %v2165
      %v2167 = vshrl.u32 %v1983, 16
      %v2169 = vrot.slane %v2167, 3
      %v2170 = vshll.u32 %v1983, 16
      %v2172 = vrot.slane %v2170, 4
      %v2173 = vor.u32 %v2169, %v2172
      %v2174 = vshrl.u32 %v1985, 16
      %v2176 = vrot.slane %v2174, 3
      %v2177 = vshll.u32 %v1985, 16
      %v2179 = vrot.slane %v2177, 4
      %v2180 = vor.u32 %v2176, %v2179
      %v2181 = vsel %vm1087, %v2173, %v2180
      %v2182 = vshrl.u32 %v1987, 16
      %v2184 = vrot.slane %v2182, 3
      %v2185 = vshll.u32 %v1987, 16
      %v2187 = vrot.slane %v2185, 4
      %v2188 = vor.u32 %v2184, %v2187
      %v2189 = vshrl.u32 %v1989, 16
      %v2191 = vrot.slane %v2189, 3
      %v2192 = vshll.u32 %v1989, 16
      %v2194 = vrot.slane %v2192, 4
      %v2195 = vor.u32 %v2191, %v2194
      %v2196 = vsel %vm1087, %v2188, %v2195
      %v2197 = vshrl.u32 %v1991, 16
      %v2199 = vrot.slane %v2197, 3
      %v2200 = vshll.u32 %v1991, 16
      %v2202 = vrot.slane %v2200, 4
      %v2203 = vor.u32 %v2199, %v2202
      %v2204 = vshrl.u32 %v1993, 16
      %v2206 = vrot.slane %v2204, 3
      %v2207 = vshll.u32 %v1993, 16
      %v2209 = vrot.slane %v2207, 4
      %v2210 = vor.u32 %v2206, %v2209
      %v2211 = vsel %vm1087, %v2203, %v2210
      %v2212 = vshrl.u32 %v1995, 16
      %v2214 = vrot.slane %v2212, 3
      %v2215 = vshll.u32 %v1995, 16
      %v2217 = vrot.slane %v2215, 4
      %v2218 = vor.u32 %v2214, %v2217
      %v2219 = vshrl.u32 %v1997, 16
      %v2221 = vrot.slane %v2219, 3
      %v2222 = vshll.u32 %v1997, 16
      %v2224 = vrot.slane %v2222, 4
      %v2225 = vor.u32 %v2221, %v2224
      %v2226 = vsel %vm1087, %v2218, %v2225
      %v2227 = vshrl.u32 %v1999, 16
      %v2229 = vrot.slane %v2227, 3
      %v2230 = vshll.u32 %v1999, 16
      %v2232 = vrot.slane %v2230, 4
      %v2233 = vor.u32 %v2229, %v2232
      %v2234 = vshrl.u32 %v2001, 16
      %v2236 = vrot.slane %v2234, 3
      %v2237 = vshll.u32 %v2001, 16
      %v2239 = vrot.slane %v2237, 4
      %v2240 = vor.u32 %v2236, %v2239
      %v2241 = vsel %vm1087, %v2233, %v2240
      %s2242 = scalar_lea.vmem %s1, 8
      %v2243 = vld [vmem:[%s2242] sm:$0xf]
      %v2244 = vld [vmem:[%s2242 + $0x4] sm:$0x3]
      %v2247 = vunpack.c.l.b16 %v2243
      %v2248 = vunpack.c.l.b16 %v2244
      %v2249 = vpack.c.b16 %v2248, %v2247
      %vm2250 = vcmask 97280
      %v2252 = vsel %vm2250, %v2016, 0
      %v2255 = vsel %vm2250, %v2031, 0
      %v2258 = vsel %vm2250, %v2046, 0
      %v2261 = vsel %vm2250, %v2061, 0
      %v2264 = vsel %vm2250, %v2076, 0
      %v2267 = vsel %vm2250, %v2091, 0
      %v2270 = vsel %vm2250, %v2106, 0
      %v2273 = vsel %vm2250, %v2121, 0
      %v2276 = vsel %vm2250, %v2136, 0
      %v2279 = vsel %vm2250, %v2151, 0
      %v2282 = vsel %vm2250, %v2166, 0
      %v2285 = vsel %vm2250, %v2181, 0
      %v2288 = vsel %vm2250, %v2196, 0
      %v2291 = vsel %vm2250, %v2211, 0
      %v2294 = vsel %vm2250, %v2226, 0
      %v2297 = vsel %vm2250, %v2241, 0
      %vm2299 = vcmask 1045504
      %v2301 = vsel %vm2299, %v2249, 0
      %2303 = vmatprep.subr.bf16.mxu0 0
      %2304 = vmatpush1.bf16.msra.mxu0 0
      %2305 = vmatprep.subr.bf16.mxu0 0
      %2306 = vmatpush1.bf16.msra.mxu0 0
      %2307 = vmatprep.subr.bf16.mxu0 0
      %2308 = vmatpush1.bf16.msra.mxu0 0
      %2309 = vmatprep.subr.bf16.mxu0 0
      %2310 = vmatpush1.bf16.msra.mxu0 0
      %2311 = vmatprep.subr.bf16.mxu0 0
      %2312 = vmatpush1.bf16.msra.mxu0 0
      %2313 = vmatprep.subr.bf16.mxu0 0
      %2314 = vmatpush1.bf16.msra.mxu0 0
      %2315 = vmatprep.subr.bf16.mxu0 0
      %2316 = vmatpush1.bf16.msra.mxu0 0
      %2317 = vmatprep.subr.bf16.mxu0 0
      %2318 = vmatpush1.bf16.msra.mxu0 %v2301
      %2319 = vmatprep.subr.bf16.mxu0 0
      %2320 = vmatpush2.bf16.msra.mxu0 0
      %2321 = vmatprep.subr.bf16.mxu0 0
      %2322 = vmatpush2.bf16.msra.mxu0 0
      %2323 = vmatprep.subr.bf16.mxu0 0
      %2324 = vmatpush2.bf16.msra.mxu0 0
      %2325 = vmatprep.subr.bf16.mxu0 0
      %2326 = vmatpush2.bf16.msra.mxu0 0
      %2327 = vmatprep.subr.bf16.mxu0 0
      %2328 = vmatpush2.bf16.msra.mxu0 0
      %2329 = vmatprep.subr.bf16.mxu0 0
      %2330 = vmatpush2.bf16.msra.mxu0 0
      %2331 = vmatprep.subr.bf16.mxu0 0
      %2332 = vmatpush2.bf16.msra.mxu0 0
      %2333 = vmatprep.subr.bf16.mxu0 0
      %2334 = vmatpush2.bf16.msra.mxu0 0
      %2335 = vmatprep.mubr.bf16.mxu0 0
      %2336 = vmatmul.mubr.bf16.gmra.mxu0 %v2252
      %v2337 = vpop.f32.mrf.mxu0
      %v2338 = vadd.f32 0.0, %v2337
      %v2339 = vpop.f32.mrf.mxu0
      %v2340 = vpop.f32.mrf.mxu0
      %v2341 = vadd.f32 0.0, %v2340
      %v2342 = vpop.f32.mrf.mxu0
      %2343 = vmatprep.mubr.bf16.mxu0 0
      %2344 = vmatmul.mubr.bf16.gmra.mxu0 %v2255
      %v2345 = vpop.f32.mrf.mxu0
      %v2346 = vadd.f32 0.0, %v2345
      %v2347 = vpop.f32.mrf.mxu0
      %v2348 = vpop.f32.mrf.mxu0
      %v2349 = vadd.f32 0.0, %v2348
      %v2350 = vpop.f32.mrf.mxu0
      %2351 = vmatprep.mubr.bf16.mxu0 0
      %2352 = vmatmul.mubr.bf16.gmra.mxu0 %v2258
      %v2353 = vpop.f32.mrf.mxu0
      %v2354 = vadd.f32 0.0, %v2353
      %v2355 = vpop.f32.mrf.mxu0
      %v2356 = vpop.f32.mrf.mxu0
      %v2357 = vadd.f32 0.0, %v2356
      %v2358 = vpop.f32.mrf.mxu0
      %2359 = vmatprep.mubr.bf16.mxu0 0
      %2360 = vmatmul.mubr.bf16.gmra.mxu0 %v2261
      %v2361 = vpop.f32.mrf.mxu0
      %v2362 = vadd.f32 0.0, %v2361
      %v2363 = vpop.f32.mrf.mxu0
      %v2364 = vpop.f32.mrf.mxu0
      %v2365 = vadd.f32 0.0, %v2364
      %v2366 = vpop.f32.mrf.mxu0
      %2367 = vmatprep.mubr.bf16.mxu0 0
      %2368 = vmatmul.mubr.bf16.gmra.mxu0 %v2264
      %v2369 = vpop.f32.mrf.mxu0
      %v2370 = vadd.f32 0.0, %v2369
      %v2371 = vpop.f32.mrf.mxu0
      %v2372 = vpop.f32.mrf.mxu0
      %v2373 = vadd.f32 0.0, %v2372
      %v2374 = vpop.f32.mrf.mxu0
      %2375 = vmatprep.mubr.bf16.mxu0 0
      %2376 = vmatmul.mubr.bf16.gmra.mxu0 %v2267
      %v2377 = vpop.f32.mrf.mxu0
      %v2378 = vadd.f32 0.0, %v2377
      %v2379 = vpop.f32.mrf.mxu0
      %v2380 = vpop.f32.mrf.mxu0
      %v2381 = vadd.f32 0.0, %v2380
      %v2382 = vpop.f32.mrf.mxu0
      %2383 = vmatprep.mubr.bf16.mxu0 0
      %2384 = vmatmul.mubr.bf16.gmra.mxu0 %v2270
      %v2385 = vpop.f32.mrf.mxu0
      %v2386 = vadd.f32 0.0, %v2385
      %v2387 = vpop.f32.mrf.mxu0
      %v2388 = vpop.f32.mrf.mxu0
      %v2389 = vadd.f32 0.0, %v2388
      %v2390 = vpop.f32.mrf.mxu0
      %2391 = vmatprep.mubr.bf16.mxu0 0
      %2392 = vmatmul.mubr.bf16.gmra.mxu0 %v2273
      %v2393 = vpop.f32.mrf.mxu0
      %v2394 = vadd.f32 0.0, %v2393
      %v2395 = vpop.f32.mrf.mxu0
      %v2396 = vpop.f32.mrf.mxu0
      %v2397 = vadd.f32 0.0, %v2396
      %v2398 = vpop.f32.mrf.mxu0
      %2399 = vmatprep.mubr.bf16.mxu0 0
      %2400 = vmatmul.mubr.bf16.gmra.mxu0 %v2276
      %v2401 = vpop.f32.mrf.mxu0
      %v2402 = vadd.f32 0.0, %v2401
      %v2403 = vpop.f32.mrf.mxu0
      %v2404 = vpop.f32.mrf.mxu0
      %v2405 = vadd.f32 0.0, %v2404
      %v2406 = vpop.f32.mrf.mxu0
      %2407 = vmatprep.mubr.bf16.mxu0 0
      %2408 = vmatmul.mubr.bf16.gmra.mxu0 %v2279
      %v2409 = vpop.f32.mrf.mxu0
      %v2410 = vadd.f32 0.0, %v2409
      %v2411 = vpop.f32.mrf.mxu0
      %v2412 = vpop.f32.mrf.mxu0
      %v2413 = vadd.f32 0.0, %v2412
      %v2414 = vpop.f32.mrf.mxu0
      %2415 = vmatprep.mubr.bf16.mxu0 0
      %2416 = vmatmul.mubr.bf16.gmra.mxu0 %v2282
      %v2417 = vpop.f32.mrf.mxu0
      %v2418 = vadd.f32 0.0, %v2417
      %v2419 = vpop.f32.mrf.mxu0
      %v2420 = vpop.f32.mrf.mxu0
      %v2421 = vadd.f32 0.0, %v2420
      %v2422 = vpop.f32.mrf.mxu0
      %2423 = vmatprep.mubr.bf16.mxu0 0
      %2424 = vmatmul.mubr.bf16.gmra.mxu0 %v2285
      %v2425 = vpop.f32.mrf.mxu0
      %v2426 = vadd.f32 0.0, %v2425
      %v2427 = vpop.f32.mrf.mxu0
      %v2428 = vpop.f32.mrf.mxu0
      %v2429 = vadd.f32 0.0, %v2428
      %v2430 = vpop.f32.mrf.mxu0
      %2431 = vmatprep.mubr.bf16.mxu0 0
      %2432 = vmatmul.mubr.bf16.gmra.mxu0 %v2288
      %v2433 = vpop.f32.mrf.mxu0
      %v2434 = vadd.f32 0.0, %v2433
      %v2435 = vpop.f32.mrf.mxu0
      %v2436 = vpop.f32.mrf.mxu0
      %v2437 = vadd.f32 0.0, %v2436
      %v2438 = vpop.f32.mrf.mxu0
      %2439 = vmatprep.mubr.bf16.mxu0 0
      %2440 = vmatmul.mubr.bf16.gmra.mxu0 %v2291
      %v2441 = vpop.f32.mrf.mxu0
      %v2442 = vadd.f32 0.0, %v2441
      %v2443 = vpop.f32.mrf.mxu0
      %v2444 = vpop.f32.mrf.mxu0
      %v2445 = vadd.f32 0.0, %v2444
      %v2446 = vpop.f32.mrf.mxu0
      %2447 = vmatprep.mubr.bf16.mxu0 0
      %2448 = vmatmul.mubr.bf16.gmra.mxu0 %v2294
      %v2449 = vpop.f32.mrf.mxu0
      %v2450 = vadd.f32 0.0, %v2449
      %v2451 = vpop.f32.mrf.mxu0
      %v2452 = vpop.f32.mrf.mxu0
      %v2453 = vadd.f32 0.0, %v2452
      %v2454 = vpop.f32.mrf.mxu0
      %2455 = vmatprep.mubr.bf16.mxu0 0
      %2456 = vmatmul.mubr.bf16.gmra.mxu0 %v2297
      %v2457 = vpop.f32.mrf.mxu0
      %v2458 = vadd.f32 0.0, %v2457
      %v2459 = vpop.f32.mrf.mxu0
      %v2460 = vpop.f32.mrf.mxu0
      %v2461 = vadd.f32 0.0, %v2460
      %v2462 = vpop.f32.mrf.mxu0
      %2463 = vdwg.mxu0
      %v2466 = vunpack.c.l.b16 %v1328
      %v2467 = vunpack.c.l.b16 %v1329
      %v2468 = vpack.c.b16 %v2467, %v2466
      %v2470 = vsel %vm2250, %v1102, 0
      %v2473 = vsel %vm2250, %v1117, 0
      %v2476 = vsel %vm2250, %v1132, 0
      %v2479 = vsel %vm2250, %v1147, 0
      %v2482 = vsel %vm2250, %v1162, 0
      %v2485 = vsel %vm2250, %v1177, 0
      %v2488 = vsel %vm2250, %v1192, 0
      %v2491 = vsel %vm2250, %v1207, 0
      %v2494 = vsel %vm2250, %v1222, 0
      %v2497 = vsel %vm2250, %v1237, 0
      %v2500 = vsel %vm2250, %v1252, 0
      %v2503 = vsel %vm2250, %v1267, 0
      %v2506 = vsel %vm2250, %v1282, 0
      %v2509 = vsel %vm2250, %v1297, 0
      %v2512 = vsel %vm2250, %v1312, 0
      %v2515 = vsel %vm2250, %v1327, 0
      %v2518 = vsel %vm2299, %v2468, 0
      %2520 = vmatprep.subr.bf16.mxu0 0
      %2521 = vmatpush1.bf16.msra.mxu0 0
      %2522 = vmatprep.subr.bf16.mxu0 0
      %2523 = vmatpush1.bf16.msra.mxu0 0
      %2524 = vmatprep.subr.bf16.mxu0 0
      %2525 = vmatpush1.bf16.msra.mxu0 0
      %2526 = vmatprep.subr.bf16.mxu0 0
      %2527 = vmatpush1.bf16.msra.mxu0 0
      %2528 = vmatprep.subr.bf16.mxu0 0
      %2529 = vmatpush1.bf16.msra.mxu0 0
      %2530 = vmatprep.subr.bf16.mxu0 0
      %2531 = vmatpush1.bf16.msra.mxu0 0
      %2532 = vmatprep.subr.bf16.mxu0 0
      %2533 = vmatpush1.bf16.msra.mxu0 0
      %2534 = vmatprep.subr.bf16.mxu0 0
      %2535 = vmatpush1.bf16.msra.mxu0 %v2518
      %2536 = vmatprep.subr.bf16.mxu0 0
      %2537 = vmatpush2.bf16.msra.mxu0 0
      %2538 = vmatprep.subr.bf16.mxu0 0
      %2539 = vmatpush2.bf16.msra.mxu0 0
      %2540 = vmatprep.subr.bf16.mxu0 0
      %2541 = vmatpush2.bf16.msra.mxu0 0
      %2542 = vmatprep.subr.bf16.mxu0 0
      %2543 = vmatpush2.bf16.msra.mxu0 0
      %2544 = vmatprep.subr.bf16.mxu0 0
      %2545 = vmatpush2.bf16.msra.mxu0 0
      %2546 = vmatprep.subr.bf16.mxu0 0
      %2547 = vmatpush2.bf16.msra.mxu0 0
      %2548 = vmatprep.subr.bf16.mxu0 0
      %2549 = vmatpush2.bf16.msra.mxu0 0
      %2550 = vmatprep.subr.bf16.mxu0 0
      %2551 = vmatpush2.bf16.msra.mxu0 0
      %2552 = vmatprep.mubr.bf16.mxu0 0
      %2553 = vmatmul.mubr.bf16.gmra.mxu0 %v2470
      %v2554 = vpop.f32.mrf.mxu0
      %v2555 = vadd.f32 %v2338, %v2554
      %v2556 = vpop.f32.mrf.mxu0
      %v2557 = vpop.f32.mrf.mxu0
      %v2558 = vadd.f32 %v2341, %v2557
      %v2559 = vpop.f32.mrf.mxu0
      %2560 = vmatprep.mubr.bf16.mxu0 0
      %2561 = vmatmul.mubr.bf16.gmra.mxu0 %v2473
      %v2562 = vpop.f32.mrf.mxu0
      %v2563 = vadd.f32 %v2346, %v2562
      %v2564 = vpop.f32.mrf.mxu0
      %v2565 = vpop.f32.mrf.mxu0
      %v2566 = vadd.f32 %v2349, %v2565
      %v2567 = vpop.f32.mrf.mxu0
      %2568 = vmatprep.mubr.bf16.mxu0 0
      %2569 = vmatmul.mubr.bf16.gmra.mxu0 %v2476
      %v2570 = vpop.f32.mrf.mxu0
      %v2571 = vadd.f32 %v2354, %v2570
      %v2572 = vpop.f32.mrf.mxu0
      %v2573 = vpop.f32.mrf.mxu0
      %v2574 = vadd.f32 %v2357, %v2573
      %v2575 = vpop.f32.mrf.mxu0
      %2576 = vmatprep.mubr.bf16.mxu0 0
      %2577 = vmatmul.mubr.bf16.gmra.mxu0 %v2479
      %v2578 = vpop.f32.mrf.mxu0
      %v2579 = vadd.f32 %v2362, %v2578
      %v2580 = vpop.f32.mrf.mxu0
      %v2581 = vpop.f32.mrf.mxu0
      %v2582 = vadd.f32 %v2365, %v2581
      %v2583 = vpop.f32.mrf.mxu0
      %2584 = vmatprep.mubr.bf16.mxu0 0
      %2585 = vmatmul.mubr.bf16.gmra.mxu0 %v2482
      %v2586 = vpop.f32.mrf.mxu0
      %v2587 = vadd.f32 %v2370, %v2586
      %v2588 = vpop.f32.mrf.mxu0
      %v2589 = vpop.f32.mrf.mxu0
      %v2590 = vadd.f32 %v2373, %v2589
      %v2591 = vpop.f32.mrf.mxu0
      %2592 = vmatprep.mubr.bf16.mxu0 0
      %2593 = vmatmul.mubr.bf16.gmra.mxu0 %v2485
      %v2594 = vpop.f32.mrf.mxu0
      %v2595 = vadd.f32 %v2378, %v2594
      %v2596 = vpop.f32.mrf.mxu0
      %v2597 = vpop.f32.mrf.mxu0
      %v2598 = vadd.f32 %v2381, %v2597
      %v2599 = vpop.f32.mrf.mxu0
      %2600 = vmatprep.mubr.bf16.mxu0 0
      %2601 = vmatmul.mubr.bf16.gmra.mxu0 %v2488
      %v2602 = vpop.f32.mrf.mxu0
      %v2603 = vadd.f32 %v2386, %v2602
      %v2604 = vpop.f32.mrf.mxu0
      %v2605 = vpop.f32.mrf.mxu0
      %v2606 = vadd.f32 %v2389, %v2605
      %v2607 = vpop.f32.mrf.mxu0
      %2608 = vmatprep.mubr.bf16.mxu0 0
      %2609 = vmatmul.mubr.bf16.gmra.mxu0 %v2491
      %v2610 = vpop.f32.mrf.mxu0
      %v2611 = vadd.f32 %v2394, %v2610
      %v2612 = vpop.f32.mrf.mxu0
      %v2613 = vpop.f32.mrf.mxu0
      %v2614 = vadd.f32 %v2397, %v2613
      %v2615 = vpop.f32.mrf.mxu0
      %2616 = vmatprep.mubr.bf16.mxu0 0
      %2617 = vmatmul.mubr.bf16.gmra.mxu0 %v2494
      %v2618 = vpop.f32.mrf.mxu0
      %v2619 = vadd.f32 %v2402, %v2618
      %v2620 = vpop.f32.mrf.mxu0
      %v2621 = vpop.f32.mrf.mxu0
      %v2622 = vadd.f32 %v2405, %v2621
      %v2623 = vpop.f32.mrf.mxu0
      %2624 = vmatprep.mubr.bf16.mxu0 0
      %2625 = vmatmul.mubr.bf16.gmra.mxu0 %v2497
      %v2626 = vpop.f32.mrf.mxu0
      %v2627 = vadd.f32 %v2410, %v2626
      %v2628 = vpop.f32.mrf.mxu0
      %v2629 = vpop.f32.mrf.mxu0
      %v2630 = vadd.f32 %v2413, %v2629
      %v2631 = vpop.f32.mrf.mxu0
      %2632 = vmatprep.mubr.bf16.mxu0 0
      %2633 = vmatmul.mubr.bf16.gmra.mxu0 %v2500
      %v2634 = vpop.f32.mrf.mxu0
      %v2635 = vadd.f32 %v2418, %v2634
      %v2636 = vpop.f32.mrf.mxu0
      %v2637 = vpop.f32.mrf.mxu0
      %v2638 = vadd.f32 %v2421, %v2637
      %v2639 = vpop.f32.mrf.mxu0
      %2640 = vmatprep.mubr.bf16.mxu0 0
      %2641 = vmatmul.mubr.bf16.gmra.mxu0 %v2503
      %v2642 = vpop.f32.mrf.mxu0
      %v2643 = vadd.f32 %v2426, %v2642
      %v2644 = vpop.f32.mrf.mxu0
      %v2645 = vpop.f32.mrf.mxu0
      %v2646 = vadd.f32 %v2429, %v2645
      %v2647 = vpop.f32.mrf.mxu0
      %2648 = vmatprep.mubr.bf16.mxu0 0
      %2649 = vmatmul.mubr.bf16.gmra.mxu0 %v2506
      %v2650 = vpop.f32.mrf.mxu0
      %v2651 = vadd.f32 %v2434, %v2650
      %v2652 = vpop.f32.mrf.mxu0
      %v2653 = vpop.f32.mrf.mxu0
      %v2654 = vadd.f32 %v2437, %v2653
      %v2655 = vpop.f32.mrf.mxu0
      %2656 = vmatprep.mubr.bf16.mxu0 0
      %2657 = vmatmul.mubr.bf16.gmra.mxu0 %v2509
      %v2658 = vpop.f32.mrf.mxu0
      %v2659 = vadd.f32 %v2442, %v2658
      %v2660 = vpop.f32.mrf.mxu0
      %v2661 = vpop.f32.mrf.mxu0
      %v2662 = vadd.f32 %v2445, %v2661
      %v2663 = vpop.f32.mrf.mxu0
      %2664 = vmatprep.mubr.bf16.mxu0 0
      %2665 = vmatmul.mubr.bf16.gmra.mxu0 %v2512
      %v2666 = vpop.f32.mrf.mxu0
      %v2667 = vadd.f32 %v2450, %v2666
      %v2668 = vpop.f32.mrf.mxu0
      %v2669 = vpop.f32.mrf.mxu0
      %v2670 = vadd.f32 %v2453, %v2669
      %v2671 = vpop.f32.mrf.mxu0
      %2672 = vmatprep.mubr.bf16.mxu0 0
      %2673 = vmatmul.mubr.bf16.gmra.mxu0 %v2515
      %v2674 = vpop.f32.mrf.mxu0
      %v2675 = vadd.f32 %v2458, %v2674
      %v2676 = vpop.f32.mrf.mxu0
      %v2677 = vpop.f32.mrf.mxu0
      %v2678 = vadd.f32 %v2461, %v2677
      %v2679 = vpop.f32.mrf.mxu0
      %2680 = vdwg.mxu0
      %s2681 = scalar_lea.vmem [#allocation2], 32
      %v2682 = vld [vmem:[%s2681] sm:$0x8]
      %v2683 = vld [vmem:[%s2681 + $0x4] sm:$0xf]
      %v2684 = vld [vmem:[%s2681 + $0x8] sm:$0xf]
      %v2685 = vld [vmem:[%s2681 + $0x10] sm:$0x8]
      %v2686 = vld [vmem:[%s2681 + $0x14] sm:$0xf]
      %v2687 = vld [vmem:[%s2681 + $0x18] sm:$0xf]
      %v2688 = vld [vmem:[%s2681 + $0x20] sm:$0x8]
      %v2689 = vld [vmem:[%s2681 + $0x24] sm:$0xf]
      %v2690 = vld [vmem:[%s2681 + $0x28] sm:$0xf]
      %v2691 = vld [vmem:[%s2681 + $0x30] sm:$0x8]
      %v2692 = vld [vmem:[%s2681 + $0x34] sm:$0xf]
      %v2693 = vld [vmem:[%s2681 + $0x38] sm:$0xf]
      %v2694 = vld [vmem:[%s2681 + $0x40] sm:$0x8]
      %v2695 = vld [vmem:[%s2681 + $0x44] sm:$0xf]
      %v2696 = vld [vmem:[%s2681 + $0x48] sm:$0xf]
      %v2697 = vld [vmem:[%s2681 + $0x50] sm:$0x8]
      %v2698 = vld [vmem:[%s2681 + $0x54] sm:$0xf]
      %v2699 = vld [vmem:[%s2681 + $0x58] sm:$0xf]
      %v2700 = vld [vmem:[%s2681 + $0x60] sm:$0x8]
      %v2701 = vld [vmem:[%s2681 + $0x64] sm:$0xf]
      %v2702 = vld [vmem:[%s2681 + $0x68] sm:$0xf]
      %v2703 = vld [vmem:[%s2681 + $0x70] sm:$0x8]
      %v2704 = vld [vmem:[%s2681 + $0x74] sm:$0xf]
      %v2705 = vld [vmem:[%s2681 + $0x78] sm:$0xf]
      %v2706 = vld [vmem:[%s2681 + $0x80] sm:$0x8]
      %v2707 = vld [vmem:[%s2681 + $0x84] sm:$0xf]
      %v2708 = vld [vmem:[%s2681 + $0x88] sm:$0xf]
      %v2709 = vld [vmem:[%s2681 + $0x90] sm:$0x8]
      %v2710 = vld [vmem:[%s2681 + $0x94] sm:$0xf]
      %v2711 = vld [vmem:[%s2681 + $0x98] sm:$0xf]
      %v2712 = vld [vmem:[%s2681 + $0xa0] sm:$0x8]
      %v2713 = vld [vmem:[%s2681 + $0xa4] sm:$0xf]
      %v2714 = vld [vmem:[%s2681 + $0xa8] sm:$0xf]
      %v2715 = vld [vmem:[%s2681 + $0xb0] sm:$0x8]
      %v2716 = vld [vmem:[%s2681 + $0xb4] sm:$0xf]
      %v2717 = vld [vmem:[%s2681 + $0xb8] sm:$0xf]
      %v2718 = vld [vmem:[%s2681 + $0xc0] sm:$0x8]
      %v2719 = vld [vmem:[%s2681 + $0xc4] sm:$0xf]
      %v2720 = vld [vmem:[%s2681 + $0xc8] sm:$0xf]
      %v2721 = vld [vmem:[%s2681 + $0xd0] sm:$0x8]
      %v2722 = vld [vmem:[%s2681 + $0xd4] sm:$0xf]
      %v2723 = vld [vmem:[%s2681 + $0xd8] sm:$0xf]
      %v2724 = vld [vmem:[%s2681 + $0xe0] sm:$0x8]
      %v2725 = vld [vmem:[%s2681 + $0xe4] sm:$0xf]
      %v2726 = vld [vmem:[%s2681 + $0xe8] sm:$0xf]
      %v2727 = vld [vmem:[%s2681 + $0xf0] sm:$0x8]
      %v2728 = vld [vmem:[%s2681 + $0xf4] sm:$0xf]
      %v2729 = vld [vmem:[%s2681 + $0xf8] sm:$0xf]
      %v2730 = vld [vmem:[%s2681 + $0xc] sm:$0x1]
      %v2731 = vld [vmem:[%s2681 + $0x1c] sm:$0x1]
      %v2732 = vld [vmem:[%s2681 + $0x2c] sm:$0x1]
      %v2733 = vld [vmem:[%s2681 + $0x3c] sm:$0x1]
      %v2734 = vld [vmem:[%s2681 + $0x4c] sm:$0x1]
      %v2735 = vld [vmem:[%s2681 + $0x5c] sm:$0x1]
      %v2736 = vld [vmem:[%s2681 + $0x6c] sm:$0x1]
      %v2737 = vld [vmem:[%s2681 + $0x7c] sm:$0x1]
      %v2738 = vld [vmem:[%s2681 + $0x8c] sm:$0x1]
      %v2739 = vld [vmem:[%s2681 + $0x9c] sm:$0x1]
      %v2740 = vld [vmem:[%s2681 + $0xac] sm:$0x1]
      %v2741 = vld [vmem:[%s2681 + $0xbc] sm:$0x1]
      %v2742 = vld [vmem:[%s2681 + $0xcc] sm:$0x1]
      %v2743 = vld [vmem:[%s2681 + $0xdc] sm:$0x1]
      %v2744 = vld [vmem:[%s2681 + $0xec] sm:$0x1]
      %v2745 = vld [vmem:[%s2681 + $0xfc] sm:$0x1]
      %v2794 = vunpack.c.l.b16 %v2682
      %v2795 = vunpack.c.l.b16 %v2683
      %v2796 = vunpack.c.l.b16 %v2684
      %v2797 = vunpack.c.l.b16 %v2685
      %v2798 = vunpack.c.l.b16 %v2686
      %v2799 = vunpack.c.l.b16 %v2687
      %v2800 = vunpack.c.l.b16 %v2688
      %v2801 = vunpack.c.l.b16 %v2689
      %v2802 = vunpack.c.l.b16 %v2690
      %v2803 = vunpack.c.l.b16 %v2691
      %v2804 = vunpack.c.l.b16 %v2692
      %v2805 = vunpack.c.l.b16 %v2693
      %v2806 = vunpack.c.l.b16 %v2694
      %v2807 = vunpack.c.l.b16 %v2695
      %v2808 = vunpack.c.l.b16 %v2696
      %v2809 = vunpack.c.l.b16 %v2697
      %v2810 = vunpack.c.l.b16 %v2698
      %v2811 = vunpack.c.l.b16 %v2699
      %v2812 = vunpack.c.l.b16 %v2700
      %v2813 = vunpack.c.l.b16 %v2701
      %v2814 = vunpack.c.l.b16 %v2702
      %v2815 = vunpack.c.l.b16 %v2703
      %v2816 = vunpack.c.l.b16 %v2704
      %v2817 = vunpack.c.l.b16 %v2705
      %v2818 = vunpack.c.l.b16 %v2706
      %v2819 = vunpack.c.l.b16 %v2707
      %v2820 = vunpack.c.l.b16 %v2708
      %v2821 = vunpack.c.l.b16 %v2709
      %v2822 = vunpack.c.l.b16 %v2710
      %v2823 = vunpack.c.l.b16 %v2711
      %v2824 = vunpack.c.l.b16 %v2712
      %v2825 = vunpack.c.l.b16 %v2713
      %v2826 = vunpack.c.l.b16 %v2714
      %v2827 = vunpack.c.l.b16 %v2715
      %v2828 = vunpack.c.l.b16 %v2716
      %v2829 = vunpack.c.l.b16 %v2717
      %v2830 = vunpack.c.l.b16 %v2718
      %v2831 = vunpack.c.l.b16 %v2719
      %v2832 = vunpack.c.l.b16 %v2720
      %v2833 = vunpack.c.l.b16 %v2721
      %v2834 = vunpack.c.l.b16 %v2722
      %v2835 = vunpack.c.l.b16 %v2723
      %v2836 = vunpack.c.l.b16 %v2724
      %v2837 = vunpack.c.l.b16 %v2725
      %v2838 = vunpack.c.l.b16 %v2726
      %v2839 = vunpack.c.l.b16 %v2727
      %v2840 = vunpack.c.l.b16 %v2728
      %v2841 = vunpack.c.l.b16 %v2729
      %v2842 = vpack.c.b16 %v2795, %v2794
      %v2843 = vpack.c.b16 %v2796, %v2796
      %v2844 = vpack.c.b16 %v2798, %v2797
      %v2845 = vpack.c.b16 %v2799, %v2799
      %v2846 = vpack.c.b16 %v2801, %v2800
      %v2847 = vpack.c.b16 %v2802, %v2802
      %v2848 = vpack.c.b16 %v2804, %v2803
      %v2849 = vpack.c.b16 %v2805, %v2805
      %v2850 = vpack.c.b16 %v2807, %v2806
      %v2851 = vpack.c.b16 %v2808, %v2808
      %v2852 = vpack.c.b16 %v2810, %v2809
      %v2853 = vpack.c.b16 %v2811, %v2811
      %v2854 = vpack.c.b16 %v2813, %v2812
      %v2855 = vpack.c.b16 %v2814, %v2814
      %v2856 = vpack.c.b16 %v2816, %v2815
      %v2857 = vpack.c.b16 %v2817, %v2817
      %v2858 = vpack.c.b16 %v2819, %v2818
      %v2859 = vpack.c.b16 %v2820, %v2820
      %v2860 = vpack.c.b16 %v2822, %v2821
      %v2861 = vpack.c.b16 %v2823, %v2823
      %v2862 = vpack.c.b16 %v2825, %v2824
      %v2863 = vpack.c.b16 %v2826, %v2826
      %v2864 = vpack.c.b16 %v2828, %v2827
      %v2865 = vpack.c.b16 %v2829, %v2829
      %v2866 = vpack.c.b16 %v2831, %v2830
      %v2867 = vpack.c.b16 %v2832, %v2832
      %v2868 = vpack.c.b16 %v2834, %v2833
      %v2869 = vpack.c.b16 %v2835, %v2835
      %v2870 = vpack.c.b16 %v2837, %v2836
      %v2871 = vpack.c.b16 %v2838, %v2838
      %v2872 = vpack.c.b16 %v2840, %v2839
      %v2873 = vpack.c.b16 %v2841, %v2841
      %v2874 = vpack.c.b16 %v2796, %v2795
      %v2875 = vpack.c.b16 %v2799, %v2798
      %v2876 = vpack.c.b16 %v2802, %v2801
      %v2877 = vpack.c.b16 %v2805, %v2804
      %v2878 = vpack.c.b16 %v2808, %v2807
      %v2879 = vpack.c.b16 %v2811, %v2810
      %v2880 = vpack.c.b16 %v2814, %v2813
      %v2881 = vpack.c.b16 %v2817, %v2816
      %v2882 = vpack.c.b16 %v2820, %v2819
      %v2883 = vpack.c.b16 %v2823, %v2822
      %v2884 = vpack.c.b16 %v2826, %v2825
      %v2885 = vpack.c.b16 %v2829, %v2828
      %v2886 = vpack.c.b16 %v2832, %v2831
      %v2887 = vpack.c.b16 %v2835, %v2834
      %v2888 = vpack.c.b16 %v2838, %v2837
      %v2889 = vpack.c.b16 %v2841, %v2840
      %v2891 = vshrl.u32 %v2874, 16
      %v2893 = vrot.slane %v2891, 4
      %v2894 = vshll.u32 %v2874, 16
      %v2896 = vrot.slane %v2894, 5
      %v2897 = vor.u32 %v2893, %v2896
      %v2899 = vshrl.u32 %v2875, 16
      %v2901 = vrot.slane %v2899, 4
      %v2902 = vshll.u32 %v2875, 16
      %v2904 = vrot.slane %v2902, 5
      %v2905 = vor.u32 %v2901, %v2904
      %v2907 = vshrl.u32 %v2876, 16
      %v2909 = vrot.slane %v2907, 4
      %v2910 = vshll.u32 %v2876, 16
      %v2912 = vrot.slane %v2910, 5
      %v2913 = vor.u32 %v2909, %v2912
      %v2915 = vshrl.u32 %v2877, 16
      %v2917 = vrot.slane %v2915, 4
      %v2918 = vshll.u32 %v2877, 16
      %v2920 = vrot.slane %v2918, 5
      %v2921 = vor.u32 %v2917, %v2920
      %v2923 = vshrl.u32 %v2878, 16
      %v2925 = vrot.slane %v2923, 4
      %v2926 = vshll.u32 %v2878, 16
      %v2928 = vrot.slane %v2926, 5
      %v2929 = vor.u32 %v2925, %v2928
      %v2931 = vshrl.u32 %v2879, 16
      %v2933 = vrot.slane %v2931, 4
      %v2934 = vshll.u32 %v2879, 16
      %v2936 = vrot.slane %v2934, 5
      %v2937 = vor.u32 %v2933, %v2936
      %v2939 = vshrl.u32 %v2880, 16
      %v2941 = vrot.slane %v2939, 4
      %v2942 = vshll.u32 %v2880, 16
      %v2944 = vrot.slane %v2942, 5
      %v2945 = vor.u32 %v2941, %v2944
      %v2947 = vshrl.u32 %v2881, 16
      %v2949 = vrot.slane %v2947, 4
      %v2950 = vshll.u32 %v2881, 16
      %v2952 = vrot.slane %v2950, 5
      %v2953 = vor.u32 %v2949, %v2952
      %v2955 = vshrl.u32 %v2882, 16
      %v2957 = vrot.slane %v2955, 4
      %v2958 = vshll.u32 %v2882, 16
      %v2960 = vrot.slane %v2958, 5
      %v2961 = vor.u32 %v2957, %v2960
      %v2963 = vshrl.u32 %v2883, 16
      %v2965 = vrot.slane %v2963, 4
      %v2966 = vshll.u32 %v2883, 16
      %v2968 = vrot.slane %v2966, 5
      %v2969 = vor.u32 %v2965, %v2968
      %v2971 = vshrl.u32 %v2884, 16
      %v2973 = vrot.slane %v2971, 4
      %v2974 = vshll.u32 %v2884, 16
      %v2976 = vrot.slane %v2974, 5
      %v2977 = vor.u32 %v2973, %v2976
      %v2979 = vshrl.u32 %v2885, 16
      %v2981 = vrot.slane %v2979, 4
      %v2982 = vshll.u32 %v2885, 16
      %v2984 = vrot.slane %v2982, 5
      %v2985 = vor.u32 %v2981, %v2984
      %v2987 = vshrl.u32 %v2886, 16
      %v2989 = vrot.slane %v2987, 4
      %v2990 = vshll.u32 %v2886, 16
      %v2992 = vrot.slane %v2990, 5
      %v2993 = vor.u32 %v2989, %v2992
      %v2995 = vshrl.u32 %v2887, 16
      %v2997 = vrot.slane %v2995, 4
      %v2998 = vshll.u32 %v2887, 16
      %v3000 = vrot.slane %v2998, 5
      %v3001 = vor.u32 %v2997, %v3000
      %v3003 = vshrl.u32 %v2888, 16
      %v3005 = vrot.slane %v3003, 4
      %v3006 = vshll.u32 %v2888, 16
      %v3008 = vrot.slane %v3006, 5
      %v3009 = vor.u32 %v3005, %v3008
      %v3011 = vshrl.u32 %v2889, 16
      %v3013 = vrot.slane %v3011, 4
      %v3014 = vshll.u32 %v2889, 16
      %v3016 = vrot.slane %v3014, 5
      %v3017 = vor.u32 %v3013, %v3016
      %3018 = vrot.lane.b32.xlu0 %v2897, 4
      %v3019 = vpop.permute.xlu0 %3018
      %3020 = vrot.lane.b32.xlu0 %v2905, 4
      %v3021 = vpop.permute.xlu0 %3020
      %3022 = vrot.lane.b32.xlu0 %v2913, 4
      %v3023 = vpop.permute.xlu0 %3022
      %3024 = vrot.lane.b32.xlu0 %v2921, 4
      %v3025 = vpop.permute.xlu0 %3024
      %3026 = vrot.lane.b32.xlu0 %v2929, 4
      %v3027 = vpop.permute.xlu0 %3026
      %3028 = vrot.lane.b32.xlu0 %v2937, 4
      %v3029 = vpop.permute.xlu0 %3028
      %3030 = vrot.lane.b32.xlu0 %v2945, 4
      %v3031 = vpop.permute.xlu0 %3030
      %3032 = vrot.lane.b32.xlu0 %v2953, 4
      %v3033 = vpop.permute.xlu0 %3032
      %3034 = vrot.lane.b32.xlu0 %v2961, 4
      %v3035 = vpop.permute.xlu0 %3034
      %3036 = vrot.lane.b32.xlu0 %v2969, 4
      %v3037 = vpop.permute.xlu0 %3036
      %3038 = vrot.lane.b32.xlu0 %v2977, 4
      %v3039 = vpop.permute.xlu0 %3038
      %3040 = vrot.lane.b32.xlu0 %v2985, 4
      %v3041 = vpop.permute.xlu0 %3040
      %3042 = vrot.lane.b32.xlu0 %v2993, 4
      %v3043 = vpop.permute.xlu0 %3042
      %3044 = vrot.lane.b32.xlu0 %v3001, 4
      %v3045 = vpop.permute.xlu0 %3044
      %3046 = vrot.lane.b32.xlu0 %v3009, 4
      %v3047 = vpop.permute.xlu0 %3046
      %3048 = vrot.lane.b32.xlu0 %v3017, 4
      %v3049 = vpop.permute.xlu0 %3048
      %v3066 = vunpack.c.l.b16 %v2730
      %v3067 = vunpack.c.l.b16 %v2731
      %v3068 = vunpack.c.l.b16 %v2732
      %v3069 = vunpack.c.l.b16 %v2733
      %v3070 = vunpack.c.l.b16 %v2734
      %v3071 = vunpack.c.l.b16 %v2735
      %v3072 = vunpack.c.l.b16 %v2736
      %v3073 = vunpack.c.l.b16 %v2737
      %v3074 = vunpack.c.l.b16 %v2738
      %v3075 = vunpack.c.l.b16 %v2739
      %v3076 = vunpack.c.l.b16 %v2740
      %v3077 = vunpack.c.l.b16 %v2741
      %v3078 = vunpack.c.l.b16 %v2742
      %v3079 = vunpack.c.l.b16 %v2743
      %v3080 = vunpack.c.l.b16 %v2744
      %v3081 = vunpack.c.l.b16 %v2745
      %v3082 = vpack.c.b16 %v3066, %v3066
      %v3083 = vpack.c.b16 %v3067, %v3067
      %v3084 = vpack.c.b16 %v3068, %v3068
      %v3085 = vpack.c.b16 %v3069, %v3069
      %v3086 = vpack.c.b16 %v3070, %v3070
      %v3087 = vpack.c.b16 %v3071, %v3071
      %v3088 = vpack.c.b16 %v3072, %v3072
      %v3089 = vpack.c.b16 %v3073, %v3073
      %v3090 = vpack.c.b16 %v3074, %v3074
      %v3091 = vpack.c.b16 %v3075, %v3075
      %v3092 = vpack.c.b16 %v3076, %v3076
      %v3093 = vpack.c.b16 %v3077, %v3077
      %v3094 = vpack.c.b16 %v3078, %v3078
      %v3095 = vpack.c.b16 %v3079, %v3079
      %v3096 = vpack.c.b16 %v3080, %v3080
      %v3097 = vpack.c.b16 %v3081, %v3081
      %v3098 = vrot.slane %v2874, 5
      %v3099 = vrot.slane %v3082, 5
      %v3100 = vsel %vm828, %v3098, %v3099
      %v3101 = vrot.slane %v2875, 5
      %v3102 = vrot.slane %v3083, 5
      %v3103 = vsel %vm828, %v3101, %v3102
      %v3104 = vrot.slane %v2876, 5
      %v3105 = vrot.slane %v3084, 5
      %v3106 = vsel %vm828, %v3104, %v3105
      %v3107 = vrot.slane %v2877, 5
      %v3108 = vrot.slane %v3085, 5
      %v3109 = vsel %vm828, %v3107, %v3108
      %v3110 = vrot.slane %v2878, 5
      %v3111 = vrot.slane %v3086, 5
      %v3112 = vsel %vm828, %v3110, %v3111
      %v3113 = vrot.slane %v2879, 5
      %v3114 = vrot.slane %v3087, 5
      %v3115 = vsel %vm828, %v3113, %v3114
      %v3116 = vrot.slane %v2880, 5
      %v3117 = vrot.slane %v3088, 5
      %v3118 = vsel %vm828, %v3116, %v3117
      %v3119 = vrot.slane %v2881, 5
      %v3120 = vrot.slane %v3089, 5
      %v3121 = vsel %vm828, %v3119, %v3120
      %v3122 = vrot.slane %v2882, 5
      %v3123 = vrot.slane %v3090, 5
      %v3124 = vsel %vm828, %v3122, %v3123
      %v3125 = vrot.slane %v2883, 5
      %v3126 = vrot.slane %v3091, 5
      %v3127 = vsel %vm828, %v3125, %v3126
      %v3128 = vrot.slane %v2884, 5
      %v3129 = vrot.slane %v3092, 5
      %v3130 = vsel %vm828, %v3128, %v3129
      %v3131 = vrot.slane %v2885, 5
      %v3132 = vrot.slane %v3093, 5
      %v3133 = vsel %vm828, %v3131, %v3132
      %v3134 = vrot.slane %v2886, 5
      %v3135 = vrot.slane %v3094, 5
      %v3136 = vsel %vm828, %v3134, %v3135
      %v3137 = vrot.slane %v2887, 5
      %v3138 = vrot.slane %v3095, 5
      %v3139 = vsel %vm828, %v3137, %v3138
      %v3140 = vrot.slane %v2888, 5
      %v3141 = vrot.slane %v3096, 5
      %v3142 = vsel %vm828, %v3140, %v3141
      %v3143 = vrot.slane %v2889, 5
      %v3144 = vrot.slane %v3097, 5
      %v3145 = vsel %vm828, %v3143, %v3144
      %3146 = vrot.lane.b32.xlu0 %v3098, 8
      %v3147 = vpop.permute.xlu0 %3146
      %3148 = vrot.lane.b32.xlu0 %v3100, 8
      %v3149 = vpop.permute.xlu0 %3148
      %3150 = vrot.lane.b32.xlu0 %v3101, 8
      %v3151 = vpop.permute.xlu0 %3150
      %3152 = vrot.lane.b32.xlu0 %v3103, 8
      %v3153 = vpop.permute.xlu0 %3152
      %3154 = vrot.lane.b32.xlu0 %v3104, 8
      %v3155 = vpop.permute.xlu0 %3154
      %3156 = vrot.lane.b32.xlu0 %v3106, 8
      %v3157 = vpop.permute.xlu0 %3156
      %3158 = vrot.lane.b32.xlu0 %v3107, 8
      %v3159 = vpop.permute.xlu0 %3158
      %3160 = vrot.lane.b32.xlu0 %v3109, 8
      %v3161 = vpop.permute.xlu0 %3160
      %3162 = vrot.lane.b32.xlu0 %v3110, 8
      %v3163 = vpop.permute.xlu0 %3162
      %3164 = vrot.lane.b32.xlu0 %v3112, 8
      %v3165 = vpop.permute.xlu0 %3164
      %3166 = vrot.lane.b32.xlu0 %v3113, 8
      %v3167 = vpop.permute.xlu0 %3166
      %3168 = vrot.lane.b32.xlu0 %v3115, 8
      %v3169 = vpop.permute.xlu0 %3168
      %3170 = vrot.lane.b32.xlu0 %v3116, 8
      %v3171 = vpop.permute.xlu0 %3170
      %3172 = vrot.lane.b32.xlu0 %v3118, 8
      %v3173 = vpop.permute.xlu0 %3172
      %3174 = vrot.lane.b32.xlu0 %v3119, 8
      %v3175 = vpop.permute.xlu0 %3174
      %3176 = vrot.lane.b32.xlu0 %v3121, 8
      %v3177 = vpop.permute.xlu0 %3176
      %3178 = vrot.lane.b32.xlu0 %v3122, 8
      %v3179 = vpop.permute.xlu0 %3178
      %3180 = vrot.lane.b32.xlu0 %v3124, 8
      %v3181 = vpop.permute.xlu0 %3180
      %3182 = vrot.lane.b32.xlu0 %v3125, 8
      %v3183 = vpop.permute.xlu0 %3182
      %3184 = vrot.lane.b32.xlu0 %v3127, 8
      %v3185 = vpop.permute.xlu0 %3184
      %3186 = vrot.lane.b32.xlu0 %v3128, 8
      %v3187 = vpop.permute.xlu0 %3186
      %3188 = vrot.lane.b32.xlu0 %v3130, 8
      %v3189 = vpop.permute.xlu0 %3188
      %3190 = vrot.lane.b32.xlu0 %v3131, 8
      %v3191 = vpop.permute.xlu0 %3190
      %3192 = vrot.lane.b32.xlu0 %v3133, 8
      %v3193 = vpop.permute.xlu0 %3192
      %3194 = vrot.lane.b32.xlu0 %v3134, 8
      %v3195 = vpop.permute.xlu0 %3194
      %3196 = vrot.lane.b32.xlu0 %v3136, 8
      %v3197 = vpop.permute.xlu0 %3196
      %3198 = vrot.lane.b32.xlu0 %v3137, 8
      %v3199 = vpop.permute.xlu0 %3198
      %3200 = vrot.lane.b32.xlu0 %v3139, 8
      %v3201 = vpop.permute.xlu0 %3200
      %3202 = vrot.lane.b32.xlu0 %v3140, 8
      %v3203 = vpop.permute.xlu0 %3202
      %3204 = vrot.lane.b32.xlu0 %v3142, 8
      %v3205 = vpop.permute.xlu0 %3204
      %3206 = vrot.lane.b32.xlu0 %v3143, 8
      %v3207 = vpop.permute.xlu0 %3206
      %3208 = vrot.lane.b32.xlu0 %v3145, 8
      %v3209 = vpop.permute.xlu0 %3208
      %v3212 = vsel %vm941, %v2842, %v3019
      %v3214 = vsel %vm941, %v2843, %v3019
      %v3217 = vsel %vm941, %v2844, %v3021
      %v3219 = vsel %vm941, %v2845, %v3021
      %v3222 = vsel %vm941, %v2846, %v3023
      %v3224 = vsel %vm941, %v2847, %v3023
      %v3227 = vsel %vm941, %v2848, %v3025
      %v3229 = vsel %vm941, %v2849, %v3025
      %v3232 = vsel %vm941, %v2850, %v3027
      %v3234 = vsel %vm941, %v2851, %v3027
      %v3237 = vsel %vm941, %v2852, %v3029
      %v3239 = vsel %vm941, %v2853, %v3029
      %v3242 = vsel %vm941, %v2854, %v3031
      %v3244 = vsel %vm941, %v2855, %v3031
      %v3247 = vsel %vm941, %v2856, %v3033
      %v3249 = vsel %vm941, %v2857, %v3033
      %v3252 = vsel %vm941, %v2858, %v3035
      %v3254 = vsel %vm941, %v2859, %v3035
      %v3257 = vsel %vm941, %v2860, %v3037
      %v3259 = vsel %vm941, %v2861, %v3037
      %v3262 = vsel %vm941, %v2862, %v3039
      %v3264 = vsel %vm941, %v2863, %v3039
      %v3267 = vsel %vm941, %v2864, %v3041
      %v3269 = vsel %vm941, %v2865, %v3041
      %v3272 = vsel %vm941, %v2866, %v3043
      %v3274 = vsel %vm941, %v2867, %v3043
      %v3277 = vsel %vm941, %v2868, %v3045
      %v3279 = vsel %vm941, %v2869, %v3045
      %v3282 = vsel %vm941, %v2870, %v3047
      %v3284 = vsel %vm941, %v2871, %v3047
      %v3287 = vsel %vm941, %v2872, %v3049
      %v3289 = vsel %vm941, %v2873, %v3049
      %v3291 = vsel %vm1022, %v3212, %v3147
      %v3293 = vsel %vm1022, %v3214, %v3149
      %v3295 = vsel %vm1022, %v3217, %v3151
      %v3297 = vsel %vm1022, %v3219, %v3153
      %v3299 = vsel %vm1022, %v3222, %v3155
      %v3301 = vsel %vm1022, %v3224, %v3157
      %v3303 = vsel %vm1022, %v3227, %v3159
      %v3305 = vsel %vm1022, %v3229, %v3161
      %v3307 = vsel %vm1022, %v3232, %v3163
      %v3309 = vsel %vm1022, %v3234, %v3165
      %v3311 = vsel %vm1022, %v3237, %v3167
      %v3313 = vsel %vm1022, %v3239, %v3169
      %v3315 = vsel %vm1022, %v3242, %v3171
      %v3317 = vsel %vm1022, %v3244, %v3173
      %v3319 = vsel %vm1022, %v3247, %v3175
      %v3321 = vsel %vm1022, %v3249, %v3177
      %v3323 = vsel %vm1022, %v3252, %v3179
      %v3325 = vsel %vm1022, %v3254, %v3181
      %v3327 = vsel %vm1022, %v3257, %v3183
      %v3329 = vsel %vm1022, %v3259, %v3185
      %v3331 = vsel %vm1022, %v3262, %v3187
      %v3333 = vsel %vm1022, %v3264, %v3189
      %v3335 = vsel %vm1022, %v3267, %v3191
      %v3337 = vsel %vm1022, %v3269, %v3193
      %v3339 = vsel %vm1022, %v3272, %v3195
      %v3341 = vsel %vm1022, %v3274, %v3197
      %v3343 = vsel %vm1022, %v3277, %v3199
      %v3345 = vsel %vm1022, %v3279, %v3201
      %v3347 = vsel %vm1022, %v3282, %v3203
      %v3349 = vsel %vm1022, %v3284, %v3205
      %v3351 = vsel %vm1022, %v3287, %v3207
      %v3353 = vsel %vm1022, %v3289, %v3209
      %v3354 = vshrl.u32 %v3291, 16
      %v3356 = vrot.slane %v3354, 3
      %v3357 = vshll.u32 %v3291, 16
      %v3359 = vrot.slane %v3357, 4
      %v3360 = vor.u32 %v3356, %v3359
      %v3361 = vshrl.u32 %v3293, 16
      %v3363 = vrot.slane %v3361, 3
      %v3364 = vshll.u32 %v3293, 16
      %v3366 = vrot.slane %v3364, 4
      %v3367 = vor.u32 %v3363, %v3366
      %v3368 = vsel %vm1087, %v3360, %v3367
      %v3369 = vshrl.u32 %v3295, 16
      %v3371 = vrot.slane %v3369, 3
      %v3372 = vshll.u32 %v3295, 16
      %v3374 = vrot.slane %v3372, 4
      %v3375 = vor.u32 %v3371, %v3374
      %v3376 = vshrl.u32 %v3297, 16
      %v3378 = vrot.slane %v3376, 3
      %v3379 = vshll.u32 %v3297, 16
      %v3381 = vrot.slane %v3379, 4
      %v3382 = vor.u32 %v3378, %v3381
      %v3383 = vsel %vm1087, %v3375, %v3382
      %v3384 = vshrl.u32 %v3299, 16
      %v3386 = vrot.slane %v3384, 3
      %v3387 = vshll.u32 %v3299, 16
      %v3389 = vrot.slane %v3387, 4
      %v3390 = vor.u32 %v3386, %v3389
      %v3391 = vshrl.u32 %v3301, 16
      %v3393 = vrot.slane %v3391, 3
      %v3394 = vshll.u32 %v3301, 16
      %v3396 = vrot.slane %v3394, 4
      %v3397 = vor.u32 %v3393, %v3396
      %v3398 = vsel %vm1087, %v3390, %v3397
      %v3399 = vshrl.u32 %v3303, 16
      %v3401 = vrot.slane %v3399, 3
      %v3402 = vshll.u32 %v3303, 16
      %v3404 = vrot.slane %v3402, 4
      %v3405 = vor.u32 %v3401, %v3404
      %v3406 = vshrl.u32 %v3305, 16
      %v3408 = vrot.slane %v3406, 3
      %v3409 = vshll.u32 %v3305, 16
      %v3411 = vrot.slane %v3409, 4
      %v3412 = vor.u32 %v3408, %v3411
      %v3413 = vsel %vm1087, %v3405, %v3412
      %v3414 = vshrl.u32 %v3307, 16
      %v3416 = vrot.slane %v3414, 3
      %v3417 = vshll.u32 %v3307, 16
      %v3419 = vrot.slane %v3417, 4
      %v3420 = vor.u32 %v3416, %v3419
      %v3421 = vshrl.u32 %v3309, 16
      %v3423 = vrot.slane %v3421, 3
      %v3424 = vshll.u32 %v3309, 16
      %v3426 = vrot.slane %v3424, 4
      %v3427 = vor.u32 %v3423, %v3426
      %v3428 = vsel %vm1087, %v3420, %v3427
      %v3429 = vshrl.u32 %v3311, 16
      %v3431 = vrot.slane %v3429, 3
      %v3432 = vshll.u32 %v3311, 16
      %v3434 = vrot.slane %v3432, 4
      %v3435 = vor.u32 %v3431, %v3434
      %v3436 = vshrl.u32 %v3313, 16
      %v3438 = vrot.slane %v3436, 3
      %v3439 = vshll.u32 %v3313, 16
      %v3441 = vrot.slane %v3439, 4
      %v3442 = vor.u32 %v3438, %v3441
      %v3443 = vsel %vm1087, %v3435, %v3442
      %v3444 = vshrl.u32 %v3315, 16
      %v3446 = vrot.slane %v3444, 3
      %v3447 = vshll.u32 %v3315, 16
      %v3449 = vrot.slane %v3447, 4
      %v3450 = vor.u32 %v3446, %v3449
      %v3451 = vshrl.u32 %v3317, 16
      %v3453 = vrot.slane %v3451, 3
      %v3454 = vshll.u32 %v3317, 16
      %v3456 = vrot.slane %v3454, 4
      %v3457 = vor.u32 %v3453, %v3456
      %v3458 = vsel %vm1087, %v3450, %v3457
      %v3459 = vshrl.u32 %v3319, 16
      %v3461 = vrot.slane %v3459, 3
      %v3462 = vshll.u32 %v3319, 16
      %v3464 = vrot.slane %v3462, 4
      %v3465 = vor.u32 %v3461, %v3464
      %v3466 = vshrl.u32 %v3321, 16
      %v3468 = vrot.slane %v3466, 3
      %v3469 = vshll.u32 %v3321, 16
      %v3471 = vrot.slane %v3469, 4
      %v3472 = vor.u32 %v3468, %v3471
      %v3473 = vsel %vm1087, %v3465, %v3472
      %v3474 = vshrl.u32 %v3323, 16
      %v3476 = vrot.slane %v3474, 3
      %v3477 = vshll.u32 %v3323, 16
      %v3479 = vrot.slane %v3477, 4
      %v3480 = vor.u32 %v3476, %v3479
      %v3481 = vshrl.u32 %v3325, 16
      %v3483 = vrot.slane %v3481, 3
      %v3484 = vshll.u32 %v3325, 16
      %v3486 = vrot.slane %v3484, 4
      %v3487 = vor.u32 %v3483, %v3486
      %v3488 = vsel %vm1087, %v3480, %v3487
      %v3489 = vshrl.u32 %v3327, 16
      %v3491 = vrot.slane %v3489, 3
      %v3492 = vshll.u32 %v3327, 16
      %v3494 = vrot.slane %v3492, 4
      %v3495 = vor.u32 %v3491, %v3494
      %v3496 = vshrl.u32 %v3329, 16
      %v3498 = vrot.slane %v3496, 3
      %v3499 = vshll.u32 %v3329, 16
      %v3501 = vrot.slane %v3499, 4
      %v3502 = vor.u32 %v3498, %v3501
      %v3503 = vsel %vm1087, %v3495, %v3502
      %v3504 = vshrl.u32 %v3331, 16
      %v3506 = vrot.slane %v3504, 3
      %v3507 = vshll.u32 %v3331, 16
      %v3509 = vrot.slane %v3507, 4
      %v3510 = vor.u32 %v3506, %v3509
      %v3511 = vshrl.u32 %v3333, 16
      %v3513 = vrot.slane %v3511, 3
      %v3514 = vshll.u32 %v3333, 16
      %v3516 = vrot.slane %v3514, 4
      %v3517 = vor.u32 %v3513, %v3516
      %v3518 = vsel %vm1087, %v3510, %v3517
      %v3519 = vshrl.u32 %v3335, 16
      %v3521 = vrot.slane %v3519, 3
      %v3522 = vshll.u32 %v3335, 16
      %v3524 = vrot.slane %v3522, 4
      %v3525 = vor.u32 %v3521, %v3524
      %v3526 = vshrl.u32 %v3337, 16
      %v3528 = vrot.slane %v3526, 3
      %v3529 = vshll.u32 %v3337, 16
      %v3531 = vrot.slane %v3529, 4
      %v3532 = vor.u32 %v3528, %v3531
      %v3533 = vsel %vm1087, %v3525, %v3532
      %v3534 = vshrl.u32 %v3339, 16
      %v3536 = vrot.slane %v3534, 3
      %v3537 = vshll.u32 %v3339, 16
      %v3539 = vrot.slane %v3537, 4
      %v3540 = vor.u32 %v3536, %v3539
      %v3541 = vshrl.u32 %v3341, 16
      %v3543 = vrot.slane %v3541, 3
      %v3544 = vshll.u32 %v3341, 16
      %v3546 = vrot.slane %v3544, 4
      %v3547 = vor.u32 %v3543, %v3546
      %v3548 = vsel %vm1087, %v3540, %v3547
      %v3549 = vshrl.u32 %v3343, 16
      %v3551 = vrot.slane %v3549, 3
      %v3552 = vshll.u32 %v3343, 16
      %v3554 = vrot.slane %v3552, 4
      %v3555 = vor.u32 %v3551, %v3554
      %v3556 = vshrl.u32 %v3345, 16
      %v3558 = vrot.slane %v3556, 3
      %v3559 = vshll.u32 %v3345, 16
      %v3561 = vrot.slane %v3559, 4
      %v3562 = vor.u32 %v3558, %v3561
      %v3563 = vsel %vm1087, %v3555, %v3562
      %v3564 = vshrl.u32 %v3347, 16
      %v3566 = vrot.slane %v3564, 3
      %v3567 = vshll.u32 %v3347, 16
      %v3569 = vrot.slane %v3567, 4
      %v3570 = vor.u32 %v3566, %v3569
      %v3571 = vshrl.u32 %v3349, 16
      %v3573 = vrot.slane %v3571, 3
      %v3574 = vshll.u32 %v3349, 16
      %v3576 = vrot.slane %v3574, 4
      %v3577 = vor.u32 %v3573, %v3576
      %v3578 = vsel %vm1087, %v3570, %v3577
      %v3579 = vshrl.u32 %v3351, 16
      %v3581 = vrot.slane %v3579, 3
      %v3582 = vshll.u32 %v3351, 16
      %v3584 = vrot.slane %v3582, 4
      %v3585 = vor.u32 %v3581, %v3584
      %v3586 = vshrl.u32 %v3353, 16
      %v3588 = vrot.slane %v3586, 3
      %v3589 = vshll.u32 %v3353, 16
      %v3591 = vrot.slane %v3589, 4
      %v3592 = vor.u32 %v3588, %v3591
      %v3593 = vsel %vm1087, %v3585, %v3592
      %s3594 = scalar_lea.vmem %s1, 16
      %v3595 = vld [vmem:[%s3594] sm:$0xf]
      %v3596 = vld [vmem:[%s3594 + $0x4] sm:$0x3]
      %v3599 = vunpack.c.l.b16 %v3595
      %v3600 = vunpack.c.l.b16 %v3596
      %v3601 = vpack.c.b16 %v3600, %v3599
      %v3603 = vsel %vm2250, %v3368, 0
      %v3606 = vsel %vm2250, %v3383, 0
      %v3609 = vsel %vm2250, %v3398, 0
      %v3612 = vsel %vm2250, %v3413, 0
      %v3615 = vsel %vm2250, %v3428, 0
      %v3618 = vsel %vm2250, %v3443, 0
      %v3621 = vsel %vm2250, %v3458, 0
      %v3624 = vsel %vm2250, %v3473, 0
      %v3627 = vsel %vm2250, %v3488, 0
      %v3630 = vsel %vm2250, %v3503, 0
      %v3633 = vsel %vm2250, %v3518, 0
      %v3636 = vsel %vm2250, %v3533, 0
      %v3639 = vsel %vm2250, %v3548, 0
      %v3642 = vsel %vm2250, %v3563, 0
      %v3645 = vsel %vm2250, %v3578, 0
      %v3648 = vsel %vm2250, %v3593, 0
      %v3651 = vsel %vm2299, %v3601, 0
      %3653 = vmatprep.subr.bf16.mxu0 0
      %3654 = vmatpush1.bf16.msra.mxu0 0
      %3655 = vmatprep.subr.bf16.mxu0 0
      %3656 = vmatpush1.bf16.msra.mxu0 0
      %3657 = vmatprep.subr.bf16.mxu0 0
      %3658 = vmatpush1.bf16.msra.mxu0 0
      %3659 = vmatprep.subr.bf16.mxu0 0
      %3660 = vmatpush1.bf16.msra.mxu0 0
      %3661 = vmatprep.subr.bf16.mxu0 0
      %3662 = vmatpush1.bf16.msra.mxu0 0
      %3663 = vmatprep.subr.bf16.mxu0 0
      %3664 = vmatpush1.bf16.msra.mxu0 0
      %3665 = vmatprep.subr.bf16.mxu0 0
      %3666 = vmatpush1.bf16.msra.mxu0 0
      %3667 = vmatprep.subr.bf16.mxu0 0
      %3668 = vmatpush1.bf16.msra.mxu0 %v3651
      %3669 = vmatprep.subr.bf16.mxu0 0
      %3670 = vmatpush2.bf16.msra.mxu0 0
      %3671 = vmatprep.subr.bf16.mxu0 0
      %3672 = vmatpush2.bf16.msra.mxu0 0
      %3673 = vmatprep.subr.bf16.mxu0 0
      %3674 = vmatpush2.bf16.msra.mxu0 0
      %3675 = vmatprep.subr.bf16.mxu0 0
      %3676 = vmatpush2.bf16.msra.mxu0 0
      %3677 = vmatprep.subr.bf16.mxu0 0
      %3678 = vmatpush2.bf16.msra.mxu0 0
      %3679 = vmatprep.subr.bf16.mxu0 0
      %3680 = vmatpush2.bf16.msra.mxu0 0
      %3681 = vmatprep.subr.bf16.mxu0 0
      %3682 = vmatpush2.bf16.msra.mxu0 0
      %3683 = vmatprep.subr.bf16.mxu0 0
      %3684 = vmatpush2.bf16.msra.mxu0 0
      %3685 = vmatprep.mubr.bf16.mxu0 0
      %3686 = vmatmul.mubr.bf16.gmra.mxu0 %v3603
      %v3687 = vpop.f32.mrf.mxu0
      %v3688 = vadd.f32 0.0, %v3687
      %v3689 = vpop.f32.mrf.mxu0
      %v3690 = vpop.f32.mrf.mxu0
      %v3691 = vadd.f32 0.0, %v3690
      %v3692 = vpop.f32.mrf.mxu0
      %3693 = vmatprep.mubr.bf16.mxu0 0
      %3694 = vmatmul.mubr.bf16.gmra.mxu0 %v3606
      %v3695 = vpop.f32.mrf.mxu0
      %v3696 = vadd.f32 0.0, %v3695
      %v3697 = vpop.f32.mrf.mxu0
      %v3698 = vpop.f32.mrf.mxu0
      %v3699 = vadd.f32 0.0, %v3698
      %v3700 = vpop.f32.mrf.mxu0
      %3701 = vmatprep.mubr.bf16.mxu0 0
      %3702 = vmatmul.mubr.bf16.gmra.mxu0 %v3609
      %v3703 = vpop.f32.mrf.mxu0
      %v3704 = vadd.f32 0.0, %v3703
      %v3705 = vpop.f32.mrf.mxu0
      %v3706 = vpop.f32.mrf.mxu0
      %v3707 = vadd.f32 0.0, %v3706
      %v3708 = vpop.f32.mrf.mxu0
      %3709 = vmatprep.mubr.bf16.mxu0 0
      %3710 = vmatmul.mubr.bf16.gmra.mxu0 %v3612
      %v3711 = vpop.f32.mrf.mxu0
      %v3712 = vadd.f32 0.0, %v3711
      %v3713 = vpop.f32.mrf.mxu0
      %v3714 = vpop.f32.mrf.mxu0
      %v3715 = vadd.f32 0.0, %v3714
      %v3716 = vpop.f32.mrf.mxu0
      %3717 = vmatprep.mubr.bf16.mxu0 0
      %3718 = vmatmul.mubr.bf16.gmra.mxu0 %v3615
      %v3719 = vpop.f32.mrf.mxu0
      %v3720 = vadd.f32 0.0, %v3719
      %v3721 = vpop.f32.mrf.mxu0
      %v3722 = vpop.f32.mrf.mxu0
      %v3723 = vadd.f32 0.0, %v3722
      %v3724 = vpop.f32.mrf.mxu0
      %3725 = vmatprep.mubr.bf16.mxu0 0
      %3726 = vmatmul.mubr.bf16.gmra.mxu0 %v3618
      %v3727 = vpop.f32.mrf.mxu0
      %v3728 = vadd.f32 0.0, %v3727
      %v3729 = vpop.f32.mrf.mxu0
      %v3730 = vpop.f32.mrf.mxu0
      %v3731 = vadd.f32 0.0, %v3730
      %v3732 = vpop.f32.mrf.mxu0
      %3733 = vmatprep.mubr.bf16.mxu0 0
      %3734 = vmatmul.mubr.bf16.gmra.mxu0 %v3621
      %v3735 = vpop.f32.mrf.mxu0
      %v3736 = vadd.f32 0.0, %v3735
      %v3737 = vpop.f32.mrf.mxu0
      %v3738 = vpop.f32.mrf.mxu0
      %v3739 = vadd.f32 0.0, %v3738
      %v3740 = vpop.f32.mrf.mxu0
      %3741 = vmatprep.mubr.bf16.mxu0 0
      %3742 = vmatmul.mubr.bf16.gmra.mxu0 %v3624
      %v3743 = vpop.f32.mrf.mxu0
      %v3744 = vadd.f32 0.0, %v3743
      %v3745 = vpop.f32.mrf.mxu0
      %v3746 = vpop.f32.mrf.mxu0
      %v3747 = vadd.f32 0.0, %v3746
      %v3748 = vpop.f32.mrf.mxu0
      %3749 = vmatprep.mubr.bf16.mxu0 0
      %3750 = vmatmul.mubr.bf16.gmra.mxu0 %v3627
      %v3751 = vpop.f32.mrf.mxu0
      %v3752 = vadd.f32 0.0, %v3751
      %v3753 = vpop.f32.mrf.mxu0
      %v3754 = vpop.f32.mrf.mxu0
      %v3755 = vadd.f32 0.0, %v3754
      %v3756 = vpop.f32.mrf.mxu0
      %3757 = vmatprep.mubr.bf16.mxu0 0
      %3758 = vmatmul.mubr.bf16.gmra.mxu0 %v3630
      %v3759 = vpop.f32.mrf.mxu0
      %v3760 = vadd.f32 0.0, %v3759
      %v3761 = vpop.f32.mrf.mxu0
      %v3762 = vpop.f32.mrf.mxu0
      %v3763 = vadd.f32 0.0, %v3762
      %v3764 = vpop.f32.mrf.mxu0
      %3765 = vmatprep.mubr.bf16.mxu0 0
      %3766 = vmatmul.mubr.bf16.gmra.mxu0 %v3633
      %v3767 = vpop.f32.mrf.mxu0
      %v3768 = vadd.f32 0.0, %v3767
      %v3769 = vpop.f32.mrf.mxu0
      %v3770 = vpop.f32.mrf.mxu0
      %v3771 = vadd.f32 0.0, %v3770
      %v3772 = vpop.f32.mrf.mxu0
      %3773 = vmatprep.mubr.bf16.mxu0 0
      %3774 = vmatmul.mubr.bf16.gmra.mxu0 %v3636
      %v3775 = vpop.f32.mrf.mxu0
      %v3776 = vadd.f32 0.0, %v3775
      %v3777 = vpop.f32.mrf.mxu0
      %v3778 = vpop.f32.mrf.mxu0
      %v3779 = vadd.f32 0.0, %v3778
      %v3780 = vpop.f32.mrf.mxu0
      %3781 = vmatprep.mubr.bf16.mxu0 0
      %3782 = vmatmul.mubr.bf16.gmra.mxu0 %v3639
      %v3783 = vpop.f32.mrf.mxu0
      %v3784 = vadd.f32 0.0, %v3783
      %v3785 = vpop.f32.mrf.mxu0
      %v3786 = vpop.f32.mrf.mxu0
      %v3787 = vadd.f32 0.0, %v3786
      %v3788 = vpop.f32.mrf.mxu0
      %3789 = vmatprep.mubr.bf16.mxu0 0
      %3790 = vmatmul.mubr.bf16.gmra.mxu0 %v3642
      %v3791 = vpop.f32.mrf.mxu0
      %v3792 = vadd.f32 0.0, %v3791
      %v3793 = vpop.f32.mrf.mxu0
      %v3794 = vpop.f32.mrf.mxu0
      %v3795 = vadd.f32 0.0, %v3794
      %v3796 = vpop.f32.mrf.mxu0
      %3797 = vmatprep.mubr.bf16.mxu0 0
      %3798 = vmatmul.mubr.bf16.gmra.mxu0 %v3645
      %v3799 = vpop.f32.mrf.mxu0
      %v3800 = vadd.f32 0.0, %v3799
      %v3801 = vpop.f32.mrf.mxu0
      %v3802 = vpop.f32.mrf.mxu0
      %v3803 = vadd.f32 0.0, %v3802
      %v3804 = vpop.f32.mrf.mxu0
      %3805 = vmatprep.mubr.bf16.mxu0 0
      %3806 = vmatmul.mubr.bf16.gmra.mxu0 %v3648
      %v3807 = vpop.f32.mrf.mxu0
      %v3808 = vadd.f32 0.0, %v3807
      %v3809 = vpop.f32.mrf.mxu0
      %v3810 = vpop.f32.mrf.mxu0
      %v3811 = vadd.f32 0.0, %v3810
      %v3812 = vpop.f32.mrf.mxu0
      %3813 = vdwg.mxu0
      %v3814 = vadd.f32 %v2555, %v3688
      %v3815 = vadd.f32 %v2558, %v3691
      %v3816 = vadd.f32 %v2563, %v3696
      %v3817 = vadd.f32 %v2566, %v3699
      %v3818 = vadd.f32 %v2571, %v3704
      %v3819 = vadd.f32 %v2574, %v3707
      %v3820 = vadd.f32 %v2579, %v3712
      %v3821 = vadd.f32 %v2582, %v3715
      %v3822 = vadd.f32 %v2587, %v3720
      %v3823 = vadd.f32 %v2590, %v3723
      %v3824 = vadd.f32 %v2595, %v3728
      %v3825 = vadd.f32 %v2598, %v3731
      %v3826 = vadd.f32 %v2603, %v3736
      %v3827 = vadd.f32 %v2606, %v3739
      %v3828 = vadd.f32 %v2611, %v3744
      %v3829 = vadd.f32 %v2614, %v3747
      %v3830 = vadd.f32 %v2619, %v3752
      %v3831 = vadd.f32 %v2622, %v3755
      %v3832 = vadd.f32 %v2627, %v3760
      %v3833 = vadd.f32 %v2630, %v3763
      %v3834 = vadd.f32 %v2635, %v3768
      %v3835 = vadd.f32 %v2638, %v3771
      %v3836 = vadd.f32 %v2643, %v3776
      %v3837 = vadd.f32 %v2646, %v3779
      %v3838 = vadd.f32 %v2651, %v3784
      %v3839 = vadd.f32 %v2654, %v3787
      %v3840 = vadd.f32 %v2659, %v3792
      %v3841 = vadd.f32 %v2662, %v3795
      %v3842 = vadd.f32 %v2667, %v3800
      %v3843 = vadd.f32 %v2670, %v3803
      %v3844 = vadd.f32 %v2675, %v3808
      %v3845 = vadd.f32 %v2678, %v3811
      %v3846 = vld [vmem:[%s2] sm:$0x1]
      %v3848 = vlaneseq
      %v3849 = vshrl.u32 %v3848, 7
      %v3850 = vsub.s32 0, %v3849
      %v3851 = vrot.slane %v3846, %v3850
      %v3853 = vadd.f32 %v3814, %v3851
      %v3854 = vadd.f32 %v3815, %v3851
      %v3855 = vadd.f32 %v3816, %v3851
      %v3856 = vadd.f32 %v3817, %v3851
      %v3857 = vadd.f32 %v3818, %v3851
      %v3858 = vadd.f32 %v3819, %v3851
      %v3859 = vadd.f32 %v3820, %v3851
      %v3860 = vadd.f32 %v3821, %v3851
      %v3861 = vadd.f32 %v3822, %v3851
      %v3862 = vadd.f32 %v3823, %v3851
      %v3863 = vadd.f32 %v3824, %v3851
      %v3864 = vadd.f32 %v3825, %v3851
      %v3865 = vadd.f32 %v3826, %v3851
      %v3866 = vadd.f32 %v3827, %v3851
      %v3867 = vadd.f32 %v3828, %v3851
      %v3868 = vadd.f32 %v3829, %v3851
      %v3869 = vadd.f32 %v3830, %v3851
      %v3870 = vadd.f32 %v3831, %v3851
      %v3871 = vadd.f32 %v3832, %v3851
      %v3872 = vadd.f32 %v3833, %v3851
      %v3873 = vadd.f32 %v3834, %v3851
      %v3874 = vadd.f32 %v3835, %v3851
      %v3875 = vadd.f32 %v3836, %v3851
      %v3876 = vadd.f32 %v3837, %v3851
      %v3877 = vadd.f32 %v3838, %v3851
      %v3878 = vadd.f32 %v3839, %v3851
      %v3879 = vadd.f32 %v3840, %v3851
      %v3880 = vadd.f32 %v3841, %v3851
      %v3881 = vadd.f32 %v3842, %v3851
      %v3882 = vadd.f32 %v3843, %v3851
      %v3883 = vadd.f32 %v3844, %v3851
      %v3884 = vadd.f32 %v3845, %v3851
      %v3885 = vld [vmem:[%s212] sm:$0xf]
      %v3886 = vld [vmem:[%s212 + $0x4] sm:$0xf]
      %v3887 = vld [vmem:[%s212 + $0x8] sm:$0xf]
      %v3888 = vld [vmem:[%s212 + $0xc] sm:$0xf]
      %v3889 = vld [vmem:[%s212 + $0x10] sm:$0xf]
      %v3890 = vld [vmem:[%s212 + $0x14] sm:$0xf]
      %v3891 = vld [vmem:[%s212 + $0x18] sm:$0xf]
      %v3892 = vld [vmem:[%s212 + $0x1c] sm:$0xf]
      %v3893 = vld [vmem:[%s212 + $0x20] sm:$0xf]
      %v3894 = vld [vmem:[%s212 + $0x24] sm:$0xf]
      %v3895 = vld [vmem:[%s212 + $0x28] sm:$0xf]
      %v3896 = vld [vmem:[%s212 + $0x2c] sm:$0xf]
      %v3897 = vld [vmem:[%s212 + $0x30] sm:$0xf]
      %v3898 = vld [vmem:[%s212 + $0x34] sm:$0xf]
      %v3899 = vld [vmem:[%s212 + $0x38] sm:$0xf]
      %v3900 = vld [vmem:[%s212 + $0x3c] sm:$0xf]
      %v3901 = vld [vmem:[%s212 + $0x40] sm:$0xf]
      %v3902 = vld [vmem:[%s212 + $0x44] sm:$0xf]
      %v3903 = vld [vmem:[%s212 + $0x48] sm:$0xf]
      %v3904 = vld [vmem:[%s212 + $0x4c] sm:$0xf]
      %v3905 = vld [vmem:[%s212 + $0x50] sm:$0xf]
      %v3906 = vld [vmem:[%s212 + $0x54] sm:$0xf]
      %v3907 = vld [vmem:[%s212 + $0x58] sm:$0xf]
      %v3908 = vld [vmem:[%s212 + $0x5c] sm:$0xf]
      %v3909 = vld [vmem:[%s212 + $0x60] sm:$0xf]
      %v3910 = vld [vmem:[%s212 + $0x64] sm:$0xf]
      %v3911 = vld [vmem:[%s212 + $0x68] sm:$0xf]
      %v3912 = vld [vmem:[%s212 + $0x6c] sm:$0xf]
      %v3913 = vld [vmem:[%s212 + $0x70] sm:$0xf]
      %v3914 = vld [vmem:[%s212 + $0x74] sm:$0xf]
      %v3915 = vld [vmem:[%s212 + $0x78] sm:$0xf]
      %v3916 = vld [vmem:[%s212 + $0x7c] sm:$0xf]
      %v3917 = vunpack.c.l.bf16 %v3885
      %v3918 = vunpack.c.l.bf16 %v3886
      %v3919 = vunpack.c.l.bf16 %v3887
      %v3920 = vunpack.c.l.bf16 %v3888
      %v3921 = vunpack.c.l.bf16 %v3889
      %v3922 = vunpack.c.l.bf16 %v3890
      %v3923 = vunpack.c.l.bf16 %v3891
      %v3924 = vunpack.c.l.bf16 %v3892
      %v3925 = vunpack.c.l.bf16 %v3893
      %v3926 = vunpack.c.l.bf16 %v3894
      %v3927 = vunpack.c.l.bf16 %v3895
      %v3928 = vunpack.c.l.bf16 %v3896
      %v3929 = vunpack.c.l.bf16 %v3897
      %v3930 = vunpack.c.l.bf16 %v3898
      %v3931 = vunpack.c.l.bf16 %v3899
      %v3932 = vunpack.c.l.bf16 %v3900
      %v3933 = vunpack.c.l.bf16 %v3901
      %v3934 = vunpack.c.l.bf16 %v3902
      %v3935 = vunpack.c.l.bf16 %v3903
      %v3936 = vunpack.c.l.bf16 %v3904
      %v3937 = vunpack.c.l.bf16 %v3905
      %v3938 = vunpack.c.l.bf16 %v3906
      %v3939 = vunpack.c.l.bf16 %v3907
      %v3940 = vunpack.c.l.bf16 %v3908
      %v3941 = vunpack.c.l.bf16 %v3909
      %v3942 = vunpack.c.l.bf16 %v3910
      %v3943 = vunpack.c.l.bf16 %v3911
      %v3944 = vunpack.c.l.bf16 %v3912
      %v3945 = vunpack.c.l.bf16 %v3913
      %v3946 = vunpack.c.l.bf16 %v3914
      %v3947 = vunpack.c.l.bf16 %v3915
      %v3948 = vunpack.c.l.bf16 %v3916
      %v3949 = vadd.f32 %v3853, %v3917
      %v3950 = vadd.f32 %v3854, %v3918
      %v3951 = vadd.f32 %v3855, %v3919
      %v3952 = vadd.f32 %v3856, %v3920
      %v3953 = vadd.f32 %v3857, %v3921
      %v3954 = vadd.f32 %v3858, %v3922
      %v3955 = vadd.f32 %v3859, %v3923
      %v3956 = vadd.f32 %v3860, %v3924
      %v3957 = vadd.f32 %v3861, %v3925
      %v3958 = vadd.f32 %v3862, %v3926
      %v3959 = vadd.f32 %v3863, %v3927
      %v3960 = vadd.f32 %v3864, %v3928
      %v3961 = vadd.f32 %v3865, %v3929
      %v3962 = vadd.f32 %v3866, %v3930
      %v3963 = vadd.f32 %v3867, %v3931
      %v3964 = vadd.f32 %v3868, %v3932
      %v3965 = vadd.f32 %v3869, %v3933
      %v3966 = vadd.f32 %v3870, %v3934
      %v3967 = vadd.f32 %v3871, %v3935
      %v3968 = vadd.f32 %v3872, %v3936
      %v3969 = vadd.f32 %v3873, %v3937
      %v3970 = vadd.f32 %v3874, %v3938
      %v3971 = vadd.f32 %v3875, %v3939
      %v3972 = vadd.f32 %v3876, %v3940
      %v3973 = vadd.f32 %v3877, %v3941
      %v3974 = vadd.f32 %v3878, %v3942
      %v3975 = vadd.f32 %v3879, %v3943
      %v3976 = vadd.f32 %v3880, %v3944
      %v3977 = vadd.f32 %v3881, %v3945
      %v3978 = vadd.f32 %v3882, %v3946
      %v3979 = vadd.f32 %v3883, %v3947
      %v3980 = vadd.f32 %v3884, %v3948
      %3981 = vst.msk [vmem:[%s217] sm:$0xff] %vm941, %v3949
      %3982 = vst.msk [vmem:[%s217 + $0x8] sm:$0xff] %vm941, %v3950
      %3983 = vst.msk [vmem:[%s217 + $0x10] sm:$0xff] %vm941, %v3951
      %3984 = vst.msk [vmem:[%s217 + $0x18] sm:$0xff] %vm941, %v3952
      %3985 = vst.msk [vmem:[%s217 + $0x20] sm:$0xff] %vm941, %v3953
      %3986 = vst.msk [vmem:[%s217 + $0x28] sm:$0xff] %vm941, %v3954
      %3987 = vst.msk [vmem:[%s217 + $0x30] sm:$0xff] %vm941, %v3955
      %3988 = vst.msk [vmem:[%s217 + $0x38] sm:$0xff] %vm941, %v3956
      %3989 = vst.msk [vmem:[%s217 + $0x40] sm:$0xff] %vm941, %v3957
      %3990 = vst.msk [vmem:[%s217 + $0x48] sm:$0xff] %vm941, %v3958
      %3991 = vst.msk [vmem:[%s217 + $0x50] sm:$0xff] %vm941, %v3959
      %3992 = vst.msk [vmem:[%s217 + $0x58] sm:$0xff] %vm941, %v3960
      %3993 = vst.msk [vmem:[%s217 + $0x60] sm:$0xff] %vm941, %v3961
      %3994 = vst.msk [vmem:[%s217 + $0x68] sm:$0xff] %vm941, %v3962
      %3995 = vst.msk [vmem:[%s217 + $0x70] sm:$0xff] %vm941, %v3963
      %3996 = vst.msk [vmem:[%s217 + $0x78] sm:$0xff] %vm941, %v3964
      %3997 = vst.msk [vmem:[%s217 + $0x80] sm:$0xff] %vm941, %v3965
      %3998 = vst.msk [vmem:[%s217 + $0x88] sm:$0xff] %vm941, %v3966
      %3999 = vst.msk [vmem:[%s217 + $0x90] sm:$0xff] %vm941, %v3967
      %4000 = vst.msk [vmem:[%s217 + $0x98] sm:$0xff] %vm941, %v3968
      %4001 = vst.msk [vmem:[%s217 + $0xa0] sm:$0xff] %vm941, %v3969
      %4002 = vst.msk [vmem:[%s217 + $0xa8] sm:$0xff] %vm941, %v3970
      %4003 = vst.msk [vmem:[%s217 + $0xb0] sm:$0xff] %vm941, %v3971
      %4004 = vst.msk [vmem:[%s217 + $0xb8] sm:$0xff] %vm941, %v3972
      %4005 = vst.msk [vmem:[%s217 + $0xc0] sm:$0xff] %vm941, %v3973
      %4006 = vst.msk [vmem:[%s217 + $0xc8] sm:$0xff] %vm941, %v3974
      %4007 = vst.msk [vmem:[%s217 + $0xd0] sm:$0xff] %vm941, %v3975
      %4008 = vst.msk [vmem:[%s217 + $0xd8] sm:$0xff] %vm941, %v3976
      %4009 = vst.msk [vmem:[%s217 + $0xe0] sm:$0xff] %vm941, %v3977
      %4010 = vst.msk [vmem:[%s217 + $0xe8] sm:$0xff] %vm941, %v3978
      %4011 = vst.msk [vmem:[%s217 + $0xf0] sm:$0xff] %vm941, %v3979
      %4012 = vst.msk [vmem:[%s217 + $0xf8] sm:$0xff] %vm941, %v3980
      %p4013 = scmp.lt.s32.totalorder %s15, 1
      %s4014 = scalar_select %p4013, %s15, 1
      %s4015 = smul.addr %s4014, 32
      %s4016 = smul.addr %s4015, 8
      %s4017 = scalar_lea.vmem %s4, %s4016
      // Predicated region
      $region37: #{rstb_forward.3} parent=35 // pred_check
        %p4018 = pneg %p127
      $region38: #{rstb_forward.3} parent=35 // pred_check_branch
        %4020 = sbr.rel (%p4018) target = $region40
      $region39: #{rstb_forward.3} parent=35 // pred_region
        _
      $region40: #{rstb_forward.3} parent=35 // pred_fallthru
        _
    $region36: #{rstb_forward.3} parent=5 // pred_fallthru
      _
    %p4021 = scmp.le.s32.totalorder 2, %s10
    // Predicated region
    $region41: #{rstb_forward.3} parent=5 // pred_check
      %p4022 = pneg %p4021
    $region42: #{rstb_forward.3} parent=5 // pred_check_branch
      %4024 = sbr.rel (%p4022) target = $region44
    $region43: #{rstb_forward.3} parent=5 // pred_region
      %s4025 = ssub.s32 %s10, 2
      // Predicated region
      $region45: #{rstb_forward.3} parent=43 // pred_check
        %p4026 = pneg %p133
      $region46: #{rstb_forward.3} parent=43 // pred_check_branch
        %4028 = sbr.rel (%p4026) target = $region48
      $region47: #{rstb_forward.3} parent=43 // pred_region
        %p4029 = scmp.lt.s32.totalorder %s16, 1
        %s4030 = scalar_select %p4029, %s16, 1
        %s4031 = smul.addr %s4030, 32
        %s4032 = smul.addr %s4031, 8
        %s4033 = scalar_lea.vmem %s4, %s4032
      $region48: #{rstb_forward.3} parent=43 // pred_fallthru
        _
    $region44: #{rstb_forward.3} parent=5 // pred_fallthru
      _
  $region6: #{rstb_forward.3} parent=0 // loop_footer
    %s14 = sadd.s32 1, %s10
  $region7: #{rstb_forward.3} parent=0 // loop_footer_branch
    %9 = sbr.rel target = $region3
  $region8: #{rstb_forward.3} parent=0 // loop_exit
    _

// kernel: rstb_forward.2
$region0: #{rstb_forward.2}
  #allocation0 [shape = 'u32[]', space=smem, size = 0x4, offset = 0x4, fixed_abs, tag = 'smem constant byte address 0x4 - core index']
  #allocation1 [shape = 'u32[144,128]{1,0:T(1,128)}', space=vmem, size = 0x12000, scoped, tag = 'internal scratch']
  #allocation2 [shape = 'f32[256,4]{1,0:T(8,128)}', space=vmem, size = 0x20000, scoped, tag = 'scratch operand']
  %s0 = inlined_call_operand.vmem [shape: bf16[32,16,4], index: 0, kind: input, shape index: {}]
  %s1 = inlined_call_operand.vmem [shape: f32[2,1,4], index: 1, kind: input, shape index: {}]
  %s2 = inlined_call_operand.vmem [shape: f32[2,1,4], index: 2, kind: input, shape index: {}]
  %s3 = inlined_call_operand.vmem [shape: bf16[2,4,4], index: 3, kind: input, shape index: {}]
  %s4 = inlined_call_operand.vmem [shape: f32[2,1,4], index: 4, kind: input, shape index: {}]
  %s5 = inlined_call_operand.vmem [shape: bf16[2,4,4], index: 5, kind: input, shape index: {}]
  %s6 = inlined_call_operand.vmem [shape: f32[2,1,4], index: 6, kind: input, shape index: {}]
  %s7 = inlined_call_operand.vmem [shape: bf16[2,4,4], index: 7, kind: input, shape index: {}]
  %s8 = inlined_call_operand.vmem [shape: f32[2,1,4], index: 8, kind: input, shape index: {}]
  %s9 = inlined_call_operand.vmem [shape: bf16[2,4,4], index: 9, kind: input, shape index: {}]
  %s10 = inlined_call_operand.vmem [shape: f32[2,1,4], index: 10, kind: input, shape index: {}]
  %s11 = inlined_call_operand.vmem [shape: f32[2,1,4], index: 11, kind: input, shape index: {}]
  %s12 = inlined_call_operand.vmem [shape: f32[2,1,4], index: 12, kind: input, shape index: {}]
  %s13 = inlined_call_operand.vmem [shape: bf16[2,4,16], index: 13, kind: input, shape index: {}]
  %s14 = inlined_call_operand.vmem [shape: f32[2,1,16], index: 14, kind: input, shape index: {}]
  %s15 = inlined_call_operand.vmem [shape: bf16[2,16,4], index: 15, kind: input, shape index: {}]
  %s16 = inlined_call_operand.vmem [shape: f32[2,1,4], index: 16, kind: input, shape index: {}]
  %s17 = inlined_call_operand.vmem [shape: bf16[32,16,4], index: 17, kind: output, shape index: {}]
  %s18 = sld [smem:[#allocation0]]
  $region108: #{rstb_forward.2} parent=0
    _
  %s20 = ssub.s32 1, %s18
  %s21 = scalar_select 0, %s20, %s18
  loop: start=0, step=1, limit=4
  $region2: #{rstb_forward.2} parent=0 // loop_pre_header
    _
  $region3: #{rstb_forward.2} parent=0 // loop_header
    %s23 = sphi 0, %s27
    %p24 = scmp.ge.s32.totalorder %s23, 4
    %s33 = sphi 0, %s35
    %s36 = sphi 0, %s33
    %s37 = sphi 0, %s36
    %s53 = sphi 0, %s37
    %s57 = sphi 0, %s57
    %s59 = sphi 0, %s57
    %s60 = sphi 0, %s59
    %s74 = sphi 0, %s60
    %s78 = sphi 0, %s78
    %s80 = sphi 0, %s78
    %s81 = sphi 0, %s80
    %s95 = sphi 0, %s81
    %s99 = sphi 0, %s99
    %s101 = sphi 0, %s99
    %s102 = sphi 0, %s101
    %s116 = sphi 0, %s102
    %s120 = sphi 0, %s120
    %s122 = sphi 0, %s120
    %s123 = sphi 0, %s122
    %s137 = sphi 0, %s123
    %s141 = sphi 0, %s141
    %s143 = sphi 0, %s141
    %s144 = sphi 0, %s143
    %s158 = sphi 0, %s144
    %s162 = sphi 0, %s162
    %s164 = sphi 0, %s162
    %s165 = sphi 0, %s164
    %s179 = sphi 0, %s165
    %s183 = sphi 0, %s183
    %s185 = sphi 0, %s183
    %s186 = sphi 0, %s185
    %s200 = sphi 0, %s186
    %s204 = sphi 0, %s204
    %s206 = sphi 0, %s204
    %s207 = sphi 0, %s206
    %s221 = sphi 0, %s207
    %s225 = sphi 0, %s225
    %s227 = sphi 0, %s225
    %s228 = sphi 0, %s227
    %s242 = sphi 0, %s228
    %s246 = sphi 0, %s246
    %s248 = sphi 0, %s246
    %s249 = sphi 0, %s248
    %s263 = sphi 0, %s249
    %s267 = sphi 0, %s267
    %s269 = sphi 0, %s267
    %s270 = sphi 0, %s269
    %s284 = sphi 0, %s270
    %s288 = sphi 0, %s288
    %s290 = sphi 0, %s288
    %s291 = sphi 0, %s290
    %s305 = sphi 0, %s291
    %s309 = sphi 0, %s309
    %s311 = sphi 0, %s309
    %s312 = sphi 0, %s311
    %s326 = sphi 0, %s312
    %s330 = sphi 0, %s330
    %s332 = sphi 0, %s330
    %s333 = sphi 0, %s332
    %s347 = sphi 0, %s333
    %s351 = sphi 0, %s351
    %s353 = sphi 0, %s351
    %s354 = sphi 0, %s353
    %s368 = sphi 0, %s354
    %s372 = sphi 0, %s372
    %s374 = sphi 0, %s372
    %s375 = sphi 0, %s374
    %s389 = sphi 0, %s375
    %s395 = sphi 0, %s397
    %s398 = sphi 0, %s395
    %s399 = sphi 0, %s398
    %s415 = sphi 0, %s399
  $region4: #{rstb_forward.2} parent=0 // loop_header_branch
    %26 = sbr.rel (%p24) target = $region8
  $region5: #{rstb_forward.2} parent=0 // loop_body
    %s28 = ssub.s32 %s23, 1
    %s29 = ssub.s32 %s23, 2
    %s30 = sadd.s32 %s23, 1
    %s31 = ssub.s32 %s23, %s30
    %p32 = scmp.eq.s32.totalorder %s31, 0
    %s34 = sadd.s32 %s33, 1
    %s35 = scalar_select %p32, %s33, %s34
    %p38 = pneg %p32
    %p39 = scmp.eq.s32.totalorder %s23, 1
    %p40 = por %p38, %p39
    %p41 = scmp.ne.s32.totalorder %s33, %s36
    %p42 = scmp.eq.s32.totalorder %s23, 0
    %p43 = por %p41, %p42
    %p44 = scmp.ne.s32.totalorder %s33, %s36
    %p45 = scmp.eq.s32.totalorder %s28, 1
    %p46 = por %p44, %p45
    %p47 = scmp.ne.s32.totalorder %s36, %s37
    %p48 = scmp.eq.s32.totalorder %s28, 0
    %p49 = por %p47, %p48
    %p50 = scmp.ne.s32.totalorder %s36, %s37
    %p51 = scmp.eq.s32.totalorder %s29, 1
    %p52 = por %p50, %p51
    %p54 = scmp.ne.s32.totalorder %s37, %s53
    %p55 = scmp.eq.s32.totalorder %s29, 0
    %p56 = por %p54, %p55
    %s58 = sadd.s32 %s57, 1
    %p61 = scmp.eq.s32.totalorder %s23, 1
    %p62 = scmp.ne.s32.totalorder %s57, %s59
    %p63 = scmp.eq.s32.totalorder %s23, 0
    %p64 = por %p62, %p63
    %p65 = scmp.ne.s32.totalorder %s57, %s59
    %p66 = scmp.eq.s32.totalorder %s28, 1
    %p67 = por %p65, %p66
    %p68 = scmp.ne.s32.totalorder %s59, %s60
    %p69 = scmp.eq.s32.totalorder %s28, 0
    %p70 = por %p68, %p69
    %p71 = scmp.ne.s32.totalorder %s59, %s60
    %p72 = scmp.eq.s32.totalorder %s29, 1
    %p73 = por %p71, %p72
    %p75 = scmp.ne.s32.totalorder %s60, %s74
    %p76 = scmp.eq.s32.totalorder %s29, 0
    %p77 = por %p75, %p76
    %s79 = sadd.s32 %s78, 1
    %p82 = scmp.eq.s32.totalorder %s23, 1
    %p83 = scmp.ne.s32.totalorder %s78, %s80
    %p84 = scmp.eq.s32.totalorder %s23, 0
    %p85 = por %p83, %p84
    %p86 = scmp.ne.s32.totalorder %s78, %s80
    %p87 = scmp.eq.s32.totalorder %s28, 1
    %p88 = por %p86, %p87
    %p89 = scmp.ne.s32.totalorder %s80, %s81
    %p90 = scmp.eq.s32.totalorder %s28, 0
    %p91 = por %p89, %p90
    %p92 = scmp.ne.s32.totalorder %s80, %s81
    %p93 = scmp.eq.s32.totalorder %s29, 1
    %p94 = por %p92, %p93
    %p96 = scmp.ne.s32.totalorder %s81, %s95
    %p97 = scmp.eq.s32.totalorder %s29, 0
    %p98 = por %p96, %p97
    %s100 = sadd.s32 %s99, 1
    %p103 = scmp.eq.s32.totalorder %s23, 1
    %p104 = scmp.ne.s32.totalorder %s99, %s101
    %p105 = scmp.eq.s32.totalorder %s23, 0
    %p106 = por %p104, %p105
    %p107 = scmp.ne.s32.totalorder %s99, %s101
    %p108 = scmp.eq.s32.totalorder %s28, 1
    %p109 = por %p107, %p108
    %p110 = scmp.ne.s32.totalorder %s101, %s102
    %p111 = scmp.eq.s32.totalorder %s28, 0
    %p112 = por %p110, %p111
    %p113 = scmp.ne.s32.totalorder %s101, %s102
    %p114 = scmp.eq.s32.totalorder %s29, 1
    %p115 = por %p113, %p114
    %p117 = scmp.ne.s32.totalorder %s102, %s116
    %p118 = scmp.eq.s32.totalorder %s29, 0
    %p119 = por %p117, %p118
    %s121 = sadd.s32 %s120, 1
    %p124 = scmp.eq.s32.totalorder %s23, 1
    %p125 = scmp.ne.s32.totalorder %s120, %s122
    %p126 = scmp.eq.s32.totalorder %s23, 0
    %p127 = por %p125, %p126
    %p128 = scmp.ne.s32.totalorder %s120, %s122
    %p129 = scmp.eq.s32.totalorder %s28, 1
    %p130 = por %p128, %p129
    %p131 = scmp.ne.s32.totalorder %s122, %s123
    %p132 = scmp.eq.s32.totalorder %s28, 0
    %p133 = por %p131, %p132
    %p134 = scmp.ne.s32.totalorder %s122, %s123
    %p135 = scmp.eq.s32.totalorder %s29, 1
    %p136 = por %p134, %p135
    %p138 = scmp.ne.s32.totalorder %s123, %s137
    %p139 = scmp.eq.s32.totalorder %s29, 0
    %p140 = por %p138, %p139
    %s142 = sadd.s32 %s141, 1
    %p145 = scmp.eq.s32.totalorder %s23, 1
    %p146 = scmp.ne.s32.totalorder %s141, %s143
    %p147 = scmp.eq.s32.totalorder %s23, 0
    %p148 = por %p146, %p147
    %p149 = scmp.ne.s32.totalorder %s141, %s143
    %p150 = scmp.eq.s32.totalorder %s28, 1
    %p151 = por %p149, %p150
    %p152 = scmp.ne.s32.totalorder %s143, %s144
    %p153 = scmp.eq.s32.totalorder %s28, 0
    %p154 = por %p152, %p153
    %p155 = scmp.ne.s32.totalorder %s143, %s144
    %p156 = scmp.eq.s32.totalorder %s29, 1
    %p157 = por %p155, %p156
    %p159 = scmp.ne.s32.totalorder %s144, %s158
    %p160 = scmp.eq.s32.totalorder %s29, 0
    %p161 = por %p159, %p160
    %s163 = sadd.s32 %s162, 1
    %p166 = scmp.eq.s32.totalorder %s23, 1
    %p167 = scmp.ne.s32.totalorder %s162, %s164
    %p168 = scmp.eq.s32.totalorder %s23, 0
    %p169 = por %p167, %p168
    %p170 = scmp.ne.s32.totalorder %s162, %s164
    %p171 = scmp.eq.s32.totalorder %s28, 1
    %p172 = por %p170, %p171
    %p173 = scmp.ne.s32.totalorder %s164, %s165
    %p174 = scmp.eq.s32.totalorder %s28, 0
    %p175 = por %p173, %p174
    %p176 = scmp.ne.s32.totalorder %s164, %s165
    %p177 = scmp.eq.s32.totalorder %s29, 1
    %p178 = por %p176, %p177
    %p180 = scmp.ne.s32.totalorder %s165, %s179
    %p181 = scmp.eq.s32.totalorder %s29, 0
    %p182 = por %p180, %p181
    %s184 = sadd.s32 %s183, 1
    %p187 = scmp.eq.s32.totalorder %s23, 1
    %p188 = scmp.ne.s32.totalorder %s183, %s185
    %p189 = scmp.eq.s32.totalorder %s23, 0
    %p190 = por %p188, %p189
    %p191 = scmp.ne.s32.totalorder %s183, %s185
    %p192 = scmp.eq.s32.totalorder %s28, 1
    %p193 = por %p191, %p192
    %p194 = scmp.ne.s32.totalorder %s185, %s186
    %p195 = scmp.eq.s32.totalorder %s28, 0
    %p196 = por %p194, %p195
    %p197 = scmp.ne.s32.totalorder %s185, %s186
    %p198 = scmp.eq.s32.totalorder %s29, 1
    %p199 = por %p197, %p198
    %p201 = scmp.ne.s32.totalorder %s186, %s200
    %p202 = scmp.eq.s32.totalorder %s29, 0
    %p203 = por %p201, %p202
    %s205 = sadd.s32 %s204, 1
    %p208 = scmp.eq.s32.totalorder %s23, 1
    %p209 = scmp.ne.s32.totalorder %s204, %s206
    %p210 = scmp.eq.s32.totalorder %s23, 0
    %p211 = por %p209, %p210
    %p212 = scmp.ne.s32.totalorder %s204, %s206
    %p213 = scmp.eq.s32.totalorder %s28, 1
    %p214 = por %p212, %p213
    %p215 = scmp.ne.s32.totalorder %s206, %s207
    %p216 = scmp.eq.s32.totalorder %s28, 0
    %p217 = por %p215, %p216
    %p218 = scmp.ne.s32.totalorder %s206, %s207
    %p219 = scmp.eq.s32.totalorder %s29, 1
    %p220 = por %p218, %p219
    %p222 = scmp.ne.s32.totalorder %s207, %s221
    %p223 = scmp.eq.s32.totalorder %s29, 0
    %p224 = por %p222, %p223
    %s226 = sadd.s32 %s225, 1
    %p229 = scmp.eq.s32.totalorder %s23, 1
    %p230 = scmp.ne.s32.totalorder %s225, %s227
    %p231 = scmp.eq.s32.totalorder %s23, 0
    %p232 = por %p230, %p231
    %p233 = scmp.ne.s32.totalorder %s225, %s227
    %p234 = scmp.eq.s32.totalorder %s28, 1
    %p235 = por %p233, %p234
    %p236 = scmp.ne.s32.totalorder %s227, %s228
    %p237 = scmp.eq.s32.totalorder %s28, 0
    %p238 = por %p236, %p237
    %p239 = scmp.ne.s32.totalorder %s227, %s228
    %p240 = scmp.eq.s32.totalorder %s29, 1
    %p241 = por %p239, %p240
    %p243 = scmp.ne.s32.totalorder %s228, %s242
    %p244 = scmp.eq.s32.totalorder %s29, 0
    %p245 = por %p243, %p244
    %s247 = sadd.s32 %s246, 1
    %p250 = scmp.eq.s32.totalorder %s23, 1
    %p251 = scmp.ne.s32.totalorder %s246, %s248
    %p252 = scmp.eq.s32.totalorder %s23, 0
    %p253 = por %p251, %p252
    %p254 = scmp.ne.s32.totalorder %s246, %s248
    %p255 = scmp.eq.s32.totalorder %s28, 1
    %p256 = por %p254, %p255
    %p257 = scmp.ne.s32.totalorder %s248, %s249
    %p258 = scmp.eq.s32.totalorder %s28, 0
    %p259 = por %p257, %p258
    %p260 = scmp.ne.s32.totalorder %s248, %s249
    %p261 = scmp.eq.s32.totalorder %s29, 1
    %p262 = por %p260, %p261
    %p264 = scmp.ne.s32.totalorder %s249, %s263
    %p265 = scmp.eq.s32.totalorder %s29, 0
    %p266 = por %p264, %p265
    %s268 = sadd.s32 %s267, 1
    %p271 = scmp.eq.s32.totalorder %s23, 1
    %p272 = scmp.ne.s32.totalorder %s267, %s269
    %p273 = scmp.eq.s32.totalorder %s23, 0
    %p274 = por %p272, %p273
    %p275 = scmp.ne.s32.totalorder %s267, %s269
    %p276 = scmp.eq.s32.totalorder %s28, 1
    %p277 = por %p275, %p276
    %p278 = scmp.ne.s32.totalorder %s269, %s270
    %p279 = scmp.eq.s32.totalorder %s28, 0
    %p280 = por %p278, %p279
    %p281 = scmp.ne.s32.totalorder %s269, %s270
    %p282 = scmp.eq.s32.totalorder %s29, 1
    %p283 = por %p281, %p282
    %p285 = scmp.ne.s32.totalorder %s270, %s284
    %p286 = scmp.eq.s32.totalorder %s29, 0
    %p287 = por %p285, %p286
    %s289 = sadd.s32 %s288, 1
    %p292 = scmp.eq.s32.totalorder %s23, 1
    %p293 = scmp.ne.s32.totalorder %s288, %s290
    %p294 = scmp.eq.s32.totalorder %s23, 0
    %p295 = por %p293, %p294
    %p296 = scmp.ne.s32.totalorder %s288, %s290
    %p297 = scmp.eq.s32.totalorder %s28, 1
    %p298 = por %p296, %p297
    %p299 = scmp.ne.s32.totalorder %s290, %s291
    %p300 = scmp.eq.s32.totalorder %s28, 0
    %p301 = por %p299, %p300
    %p302 = scmp.ne.s32.totalorder %s290, %s291
    %p303 = scmp.eq.s32.totalorder %s29, 1
    %p304 = por %p302, %p303
    %p306 = scmp.ne.s32.totalorder %s291, %s305
    %p307 = scmp.eq.s32.totalorder %s29, 0
    %p308 = por %p306, %p307
    %s310 = sadd.s32 %s309, 1
    %p313 = scmp.eq.s32.totalorder %s23, 1
    %p314 = scmp.ne.s32.totalorder %s309, %s311
    %p315 = scmp.eq.s32.totalorder %s23, 0
    %p316 = por %p314, %p315
    %p317 = scmp.ne.s32.totalorder %s309, %s311
    %p318 = scmp.eq.s32.totalorder %s28, 1
    %p319 = por %p317, %p318
    %p320 = scmp.ne.s32.totalorder %s311, %s312
    %p321 = scmp.eq.s32.totalorder %s28, 0
    %p322 = por %p320, %p321
    %p323 = scmp.ne.s32.totalorder %s311, %s312
    %p324 = scmp.eq.s32.totalorder %s29, 1
    %p325 = por %p323, %p324
    %p327 = scmp.ne.s32.totalorder %s312, %s326
    %p328 = scmp.eq.s32.totalorder %s29, 0
    %p329 = por %p327, %p328
    %s331 = sadd.s32 %s330, 1
    %p334 = scmp.eq.s32.totalorder %s23, 1
    %p335 = scmp.ne.s32.totalorder %s330, %s332
    %p336 = scmp.eq.s32.totalorder %s23, 0
    %p337 = por %p335, %p336
    %p338 = scmp.ne.s32.totalorder %s330, %s332
    %p339 = scmp.eq.s32.totalorder %s28, 1
    %p340 = por %p338, %p339
    %p341 = scmp.ne.s32.totalorder %s332, %s333
    %p342 = scmp.eq.s32.totalorder %s28, 0
    %p343 = por %p341, %p342
    %p344 = scmp.ne.s32.totalorder %s332, %s333
    %p345 = scmp.eq.s32.totalorder %s29, 1
    %p346 = por %p344, %p345
    %p348 = scmp.ne.s32.totalorder %s333, %s347
    %p349 = scmp.eq.s32.totalorder %s29, 0
    %p350 = por %p348, %p349
    %s352 = sadd.s32 %s351, 1
    %p355 = scmp.eq.s32.totalorder %s23, 1
    %p356 = scmp.ne.s32.totalorder %s351, %s353
    %p357 = scmp.eq.s32.totalorder %s23, 0
    %p358 = por %p356, %p357
    %p359 = scmp.ne.s32.totalorder %s351, %s353
    %p360 = scmp.eq.s32.totalorder %s28, 1
    %p361 = por %p359, %p360
    %p362 = scmp.ne.s32.totalorder %s353, %s354
    %p363 = scmp.eq.s32.totalorder %s28, 0
    %p364 = por %p362, %p363
    %p365 = scmp.ne.s32.totalorder %s353, %s354
    %p366 = scmp.eq.s32.totalorder %s29, 1
    %p367 = por %p365, %p366
    %p369 = scmp.ne.s32.totalorder %s354, %s368
    %p370 = scmp.eq.s32.totalorder %s29, 0
    %p371 = por %p369, %p370
    %s373 = sadd.s32 %s372, 1
    %p376 = scmp.eq.s32.totalorder %s23, 1
    %p377 = scmp.ne.s32.totalorder %s372, %s374
    %p378 = scmp.eq.s32.totalorder %s23, 0
    %p379 = por %p377, %p378
    %p380 = scmp.ne.s32.totalorder %s372, %s374
    %p381 = scmp.eq.s32.totalorder %s28, 1
    %p382 = por %p380, %p381
    %p383 = scmp.ne.s32.totalorder %s374, %s375
    %p384 = scmp.eq.s32.totalorder %s28, 0
    %p385 = por %p383, %p384
    %p386 = scmp.ne.s32.totalorder %s374, %s375
    %p387 = scmp.eq.s32.totalorder %s29, 1
    %p388 = por %p386, %p387
    %p390 = scmp.ne.s32.totalorder %s375, %s389
    %p391 = scmp.eq.s32.totalorder %s29, 0
    %p392 = por %p390, %p391
    %s393 = ssub.s32 %s23, %s30
    %p394 = scmp.eq.s32.totalorder %s393, 0
    %s396 = sadd.s32 %s395, 1
    %s397 = scalar_select %p394, %s395, %s396
    %p400 = pneg %p394
    %p401 = scmp.eq.s32.totalorder %s23, 1
    %p402 = por %p400, %p401
    %p403 = scmp.ne.s32.totalorder %s395, %s398
    %p404 = scmp.eq.s32.totalorder %s23, 0
    %p405 = por %p403, %p404
    %p406 = scmp.ne.s32.totalorder %s395, %s398
    %p407 = scmp.eq.s32.totalorder %s28, 1
    %p408 = por %p406, %p407
    %p409 = scmp.ne.s32.totalorder %s398, %s399
    %p410 = scmp.eq.s32.totalorder %s28, 0
    %p411 = por %p409, %p410
    %p412 = scmp.ne.s32.totalorder %s398, %s399
    %p413 = scmp.eq.s32.totalorder %s29, 1
    %p414 = por %p412, %p413
    %p416 = scmp.ne.s32.totalorder %s399, %s415
    %p417 = scmp.eq.s32.totalorder %s29, 0
    %p418 = por %p416, %p417
    %p419 = scmp.le.s32.totalorder 1, %s23
    %p420 = scmp.lt.s32.totalorder %s23, 3
    %p421 = pnand %p419, %p420
    %p422 = pneg %p421
    // Predicated region
    $region9: #{rstb_forward.2} parent=5 // pred_check
      _
    $region10: #{rstb_forward.2} parent=5 // pred_check_branch
      %424 = sbr.rel (%p421) target = $region12
    $region11: #{rstb_forward.2} parent=5 // pred_region
      %s425 = ssub.s32 %s23, 1
      // Predicated region
      $region13: #{rstb_forward.2} parent=11 // pred_check
        %p426 = pneg %p70
      $region14: #{rstb_forward.2} parent=11 // pred_check_branch
        %428 = sbr.rel (%p426) target = $region16
      $region15: #{rstb_forward.2} parent=11 // pred_region
        _
      $region16: #{rstb_forward.2} parent=11 // pred_fallthru
        _
      // Predicated region
      $region17: #{rstb_forward.2} parent=11 // pred_check
        %p429 = pneg %p91
      $region18: #{rstb_forward.2} parent=11 // pred_check_branch
        %431 = sbr.rel (%p429) target = $region20
      $region19: #{rstb_forward.2} parent=11 // pred_region
        _
      $region20: #{rstb_forward.2} parent=11 // pred_fallthru
        _
      // Predicated region
      $region21: #{rstb_forward.2} parent=11 // pred_check
        %p432 = pneg %p112
      $region22: #{rstb_forward.2} parent=11 // pred_check_branch
        %434 = sbr.rel (%p432) target = $region24
      $region23: #{rstb_forward.2} parent=11 // pred_region
        _
      $region24: #{rstb_forward.2} parent=11 // pred_fallthru
        _
      // Predicated region
      $region25: #{rstb_forward.2} parent=11 // pred_check
        %p435 = pneg %p133
      $region26: #{rstb_forward.2} parent=11 // pred_check_branch
        %437 = sbr.rel (%p435) target = $region28
      $region27: #{rstb_forward.2} parent=11 // pred_region
        _
      $region28: #{rstb_forward.2} parent=11 // pred_fallthru
        _
      // Predicated region
      $region29: #{rstb_forward.2} parent=11 // pred_check
        %p438 = pneg %p154
      $region30: #{rstb_forward.2} parent=11 // pred_check_branch
        %440 = sbr.rel (%p438) target = $region32
      $region31: #{rstb_forward.2} parent=11 // pred_region
        _
      $region32: #{rstb_forward.2} parent=11 // pred_fallthru
        _
      // Predicated region
      $region33: #{rstb_forward.2} parent=11 // pred_check
        %p441 = pneg %p175
      $region34: #{rstb_forward.2} parent=11 // pred_check_branch
        %443 = sbr.rel (%p441) target = $region36
      $region35: #{rstb_forward.2} parent=11 // pred_region
        _
      $region36: #{rstb_forward.2} parent=11 // pred_fallthru
        _
      // Predicated region
      $region37: #{rstb_forward.2} parent=11 // pred_check
        %p444 = pneg %p196
      $region38: #{rstb_forward.2} parent=11 // pred_check_branch
        %446 = sbr.rel (%p444) target = $region40
      $region39: #{rstb_forward.2} parent=11 // pred_region
        _
      $region40: #{rstb_forward.2} parent=11 // pred_fallthru
        _
      // Predicated region
      $region41: #{rstb_forward.2} parent=11 // pred_check
        %p447 = pneg %p217
      $region42: #{rstb_forward.2} parent=11 // pred_check_branch
        %449 = sbr.rel (%p447) target = $region44
      $region43: #{rstb_forward.2} parent=11 // pred_region
        _
      $region44: #{rstb_forward.2} parent=11 // pred_fallthru
        _
      // Predicated region
      $region45: #{rstb_forward.2} parent=11 // pred_check
        %p450 = pneg %p238
      $region46: #{rstb_forward.2} parent=11 // pred_check_branch
        %452 = sbr.rel (%p450) target = $region48
      $region47: #{rstb_forward.2} parent=11 // pred_region
        _
      $region48: #{rstb_forward.2} parent=11 // pred_fallthru
        _
      // Predicated region
      $region49: #{rstb_forward.2} parent=11 // pred_check
        %p453 = pneg %p259
      $region50: #{rstb_forward.2} parent=11 // pred_check_branch
        %455 = sbr.rel (%p453) target = $region52
      $region51: #{rstb_forward.2} parent=11 // pred_region
        _
      $region52: #{rstb_forward.2} parent=11 // pred_fallthru
        _
      // Predicated region
      $region53: #{rstb_forward.2} parent=11 // pred_check
        %p456 = pneg %p280
      $region54: #{rstb_forward.2} parent=11 // pred_check_branch
        %458 = sbr.rel (%p456) target = $region56
      $region55: #{rstb_forward.2} parent=11 // pred_region
        _
      $region56: #{rstb_forward.2} parent=11 // pred_fallthru
        _
      // Predicated region
      $region57: #{rstb_forward.2} parent=11 // pred_check
        %p459 = pneg %p301
      $region58: #{rstb_forward.2} parent=11 // pred_check_branch
        %461 = sbr.rel (%p459) target = $region60
      $region59: #{rstb_forward.2} parent=11 // pred_region
        _
      $region60: #{rstb_forward.2} parent=11 // pred_fallthru
        _
      // Predicated region
      $region61: #{rstb_forward.2} parent=11 // pred_check
        %p462 = pneg %p322
      $region62: #{rstb_forward.2} parent=11 // pred_check_branch
        %464 = sbr.rel (%p462) target = $region64
      $region63: #{rstb_forward.2} parent=11 // pred_region
        _
      $region64: #{rstb_forward.2} parent=11 // pred_fallthru
        _
      // Predicated region
      $region65: #{rstb_forward.2} parent=11 // pred_check
        %p465 = pneg %p343
      $region66: #{rstb_forward.2} parent=11 // pred_check_branch
        %467 = sbr.rel (%p465) target = $region68
      $region67: #{rstb_forward.2} parent=11 // pred_region
        _
      $region68: #{rstb_forward.2} parent=11 // pred_fallthru
        _
      // Predicated region
      $region69: #{rstb_forward.2} parent=11 // pred_check
        %p468 = pneg %p364
      $region70: #{rstb_forward.2} parent=11 // pred_check_branch
        %470 = sbr.rel (%p468) target = $region72
      $region71: #{rstb_forward.2} parent=11 // pred_region
        _
      $region72: #{rstb_forward.2} parent=11 // pred_fallthru
        _
      // Predicated region
      $region73: #{rstb_forward.2} parent=11 // pred_check
        %p471 = pneg %p385
      $region74: #{rstb_forward.2} parent=11 // pred_check_branch
        %473 = sbr.rel (%p471) target = $region76
      $region75: #{rstb_forward.2} parent=11 // pred_region
        _
      $region76: #{rstb_forward.2} parent=11 // pred_fallthru
        _
    $region12: #{rstb_forward.2} parent=5 // pred_fallthru
      _
    %p474 = scmp.lt.s32.totalorder %s23, 2
    // Predicated region
    $region77: #{rstb_forward.2} parent=5 // pred_check
      %p475 = pneg %p474
    $region78: #{rstb_forward.2} parent=5 // pred_check_branch
      %477 = sbr.rel (%p475) target = $region80
    $region79: #{rstb_forward.2} parent=5 // pred_region
      // Predicated region
      $region81: #{rstb_forward.2} parent=79 // pred_check
        %p478 = pneg %p43
      $region82: #{rstb_forward.2} parent=79 // pred_check_branch
        %480 = sbr.rel (%p478) target = $region84
      $region83: #{rstb_forward.2} parent=79 // pred_region
        %s481 = smul.u32 16, %s23
        %p482 = scmp.lt.s32.totalorder %s481, 31
        %s483 = scalar_select %p482, %s481, 31
        %s484 = smul.addr %s483, 2
        %s485 = smul.addr %s484, 4
        %s486 = scalar_lea.vmem %s0, %s485
        %s487 = smul.u32 16, %s23
      $region84: #{rstb_forward.2} parent=79 // pred_fallthru
        _
    $region80: #{rstb_forward.2} parent=5 // pred_fallthru
      _
    %p488 = scmp.le.s32.totalorder 1, %s23
    %p489 = scmp.lt.s32.totalorder %s23, 3
    %p490 = pnand %p488, %p489
    %p491 = pneg %p490
    // Predicated region
    $region85: #{rstb_forward.2} parent=5 // pred_check
      _
    $region86: #{rstb_forward.2} parent=5 // pred_check_branch
      %493 = sbr.rel (%p490) target = $region88
    $region87: #{rstb_forward.2} parent=5 // pred_region
      %s494 = ssub.s32 %s23, 1
      %s495 = smul.u32 16, %s28
      %p496 = scmp.lt.s32.totalorder %s495, 31
      %s497 = scalar_select %p496, %s495, 31
      %s498 = smul.addr %s497, 2
      %s499 = smul.addr %s498, 4
      %s500 = scalar_lea.vmem %s0, %s499
      %p501 = pneg %p49
      %p502 = pneg %p46
      %p503 = pneg %p70
      %p504 = pneg %p67
      %p505 = pneg %p91
      %p506 = pneg %p88
      %p507 = pneg %p112
      %p508 = pneg %p109
      %p509 = pneg %p133
      %p510 = pneg %p130
      %p511 = pneg %p154
      %p512 = pneg %p151
      %p513 = pneg %p175
      %p514 = pneg %p172
      %p515 = pneg %p196
      %p516 = pneg %p193
      %p517 = pneg %p217
      %p518 = pneg %p214
      %p519 = pneg %p238
      %p520 = pneg %p235
      %p521 = pneg %p259
      %p522 = pneg %p256
      %p523 = pneg %p280
      %p524 = pneg %p277
      %p525 = pneg %p301
      %p526 = pneg %p298
      %p527 = pneg %p322
      %p528 = pneg %p319
      %p529 = pneg %p343
      %p530 = pneg %p340
      %p531 = pneg %p364
      %p532 = pneg %p361
      %p533 = pneg %p385
      %p534 = pneg %p382
      %p535 = pneg %p411
      %p536 = pneg %p408
      %s537 = smul.u32 16, %s28
      %p538 = scmp.lt.s32.totalorder %s537, 31
      %s539 = scalar_select %p538, %s537, 31
      %s540 = smul.addr %s539, 2
      %s541 = smul.addr %s540, 4
      %s542 = scalar_lea.vmem %s17, %s541
      %s543 = smul.u32 16, %s28
      %p544 = scmp.lt.s32.totalorder %s543, 31
      %s545 = scalar_select %p544, %s543, 31
      %s546 = smul.addr %s545, 2
      %s547 = smul.addr %s546, 4
      %s548 = scalar_lea.vmem %s0, %s547
      %s549 = smul.u32 16, %s28
      %s550 = smul.u32 16, %s28
      %p551 = scmp.lt.s32.totalorder %s550, 31
      %s552 = scalar_select %p551, %s550, 31
      %s553 = smul.addr %s552, 2
      %s554 = smul.addr %s553, 4
      %s555 = scalar_lea.vmem %s17, %s554
      %s556 = smul.u32 16, %s28
      %v558 = vld [vmem:[%s548] sm:$0xf]
      %v559 = vld [vmem:[%s548 + $0x4] sm:$0xf]
      %v560 = vld [vmem:[%s548 + $0x8] sm:$0xf]
      %v561 = vld [vmem:[%s548 + $0xc] sm:$0xf]
      %v562 = vld [vmem:[%s548 + $0x10] sm:$0xf]
      %v563 = vld [vmem:[%s548 + $0x14] sm:$0xf]
      %v564 = vld [vmem:[%s548 + $0x18] sm:$0xf]
      %v565 = vld [vmem:[%s548 + $0x1c] sm:$0xf]
      %v566 = vld [vmem:[%s548 + $0x20] sm:$0xf]
      %v567 = vld [vmem:[%s548 + $0x24] sm:$0xf]
      %v568 = vld [vmem:[%s548 + $0x28] sm:$0xf]
      %v569 = vld [vmem:[%s548 + $0x2c] sm:$0xf]
      %v570 = vld [vmem:[%s548 + $0x30] sm:$0xf]
      %v571 = vld [vmem:[%s548 + $0x34] sm:$0xf]
      %v572 = vld [vmem:[%s548 + $0x38] sm:$0xf]
      %v573 = vld [vmem:[%s548 + $0x3c] sm:$0xf]
      %v574 = vld [vmem:[%s548 + $0x40] sm:$0xf]
      %v575 = vld [vmem:[%s548 + $0x44] sm:$0xf]
      %v576 = vld [vmem:[%s548 + $0x48] sm:$0xf]
      %v577 = vld [vmem:[%s548 + $0x4c] sm:$0xf]
      %v578 = vld [vmem:[%s548 + $0x50] sm:$0xf]
      %v579 = vld [vmem:[%s548 + $0x54] sm:$0xf]
      %v580 = vld [vmem:[%s548 + $0x58] sm:$0xf]
      %v581 = vld [vmem:[%s548 + $0x5c] sm:$0xf]
      %v582 = vld [vmem:[%s548 + $0x60] sm:$0xf]
      %v583 = vld [vmem:[%s548 + $0x64] sm:$0xf]
      %v584 = vld [vmem:[%s548 + $0x68] sm:$0xf]
      %v585 = vld [vmem:[%s548 + $0x6c] sm:$0xf]
      %v586 = vld [vmem:[%s548 + $0x70] sm:$0xf]
      %v587 = vld [vmem:[%s548 + $0x74] sm:$0xf]
      %v588 = vld [vmem:[%s548 + $0x78] sm:$0xf]
      %v589 = vld [vmem:[%s548 + $0x7c] sm:$0xf]
      %v590 = vunpack.c.l.bf16 %v558
      %v591 = vunpack.c.l.bf16 %v559
      %v592 = vunpack.c.l.bf16 %v560
      %v593 = vunpack.c.l.bf16 %v561
      %v594 = vunpack.c.l.bf16 %v562
      %v595 = vunpack.c.l.bf16 %v563
      %v596 = vunpack.c.l.bf16 %v564
      %v597 = vunpack.c.l.bf16 %v565
      %v598 = vunpack.c.l.bf16 %v566
      %v599 = vunpack.c.l.bf16 %v567
      %v600 = vunpack.c.l.bf16 %v568
      %v601 = vunpack.c.l.bf16 %v569
      %v602 = vunpack.c.l.bf16 %v570
      %v603 = vunpack.c.l.bf16 %v571
      %v604 = vunpack.c.l.bf16 %v572
      %v605 = vunpack.c.l.bf16 %v573
      %v606 = vunpack.c.l.bf16 %v574
      %v607 = vunpack.c.l.bf16 %v575
      %v608 = vunpack.c.l.bf16 %v576
      %v609 = vunpack.c.l.bf16 %v577
      %v610 = vunpack.c.l.bf16 %v578
      %v611 = vunpack.c.l.bf16 %v579
      %v612 = vunpack.c.l.bf16 %v580
      %v613 = vunpack.c.l.bf16 %v581
      %v614 = vunpack.c.l.bf16 %v582
      %v615 = vunpack.c.l.bf16 %v583
      %v616 = vunpack.c.l.bf16 %v584
      %v617 = vunpack.c.l.bf16 %v585
      %v618 = vunpack.c.l.bf16 %v586
      %v619 = vunpack.c.l.bf16 %v587
      %v620 = vunpack.c.l.bf16 %v588
      %v621 = vunpack.c.l.bf16 %v589
      %vm622 = vcmask 31744
      %623 = vst.msk [vmem:[#allocation2] sm:$0xff] %vm622, %v590
      %624 = vst.msk [vmem:[#allocation2 + $0x8] sm:$0xff] %vm622, %v591
      %625 = vst.msk [vmem:[#allocation2 + $0x10] sm:$0xff] %vm622, %v592
      %626 = vst.msk [vmem:[#allocation2 + $0x18] sm:$0xff] %vm622, %v593
      %627 = vst.msk [vmem:[#allocation2 + $0x20] sm:$0xff] %vm622, %v594
      %628 = vst.msk [vmem:[#allocation2 + $0x28] sm:$0xff] %vm622, %v595
      %629 = vst.msk [vmem:[#allocation2 + $0x30] sm:$0xff] %vm622, %v596
      %630 = vst.msk [vmem:[#allocation2 + $0x38] sm:$0xff] %vm622, %v597
      %631 = vst.msk [vmem:[#allocation2 + $0x40] sm:$0xff] %vm622, %v598
      %632 = vst.msk [vmem:[#allocation2 + $0x48] sm:$0xff] %vm622, %v599
      %633 = vst.msk [vmem:[#allocation2 + $0x50] sm:$0xff] %vm622, %v600
      %634 = vst.msk [vmem:[#allocation2 + $0x58] sm:$0xff] %vm622, %v601
      %635 = vst.msk [vmem:[#allocation2 + $0x60] sm:$0xff] %vm622, %v602
      %636 = vst.msk [vmem:[#allocation2 + $0x68] sm:$0xff] %vm622, %v603
      %637 = vst.msk [vmem:[#allocation2 + $0x70] sm:$0xff] %vm622, %v604
      %638 = vst.msk [vmem:[#allocation2 + $0x78] sm:$0xff] %vm622, %v605
      %639 = vst.msk [vmem:[#allocation2 + $0x80] sm:$0xff] %vm622, %v606
      %640 = vst.msk [vmem:[#allocation2 + $0x88] sm:$0xff] %vm622, %v607
      %641 = vst.msk [vmem:[#allocation2 + $0x90] sm:$0xff] %vm622, %v608
      %642 = vst.msk [vmem:[#allocation2 + $0x98] sm:$0xff] %vm622, %v609
      %643 = vst.msk [vmem:[#allocation2 + $0xa0] sm:$0xff] %vm622, %v610
      %644 = vst.msk [vmem:[#allocation2 + $0xa8] sm:$0xff] %vm622, %v611
      %645 = vst.msk [vmem:[#allocation2 + $0xb0] sm:$0xff] %vm622, %v612
      %646 = vst.msk [vmem:[#allocation2 + $0xb8] sm:$0xff] %vm622, %v613
      %647 = vst.msk [vmem:[#allocation2 + $0xc0] sm:$0xff] %vm622, %v614
      %648 = vst.msk [vmem:[#allocation2 + $0xc8] sm:$0xff] %vm622, %v615
      %649 = vst.msk [vmem:[#allocation2 + $0xd0] sm:$0xff] %vm622, %v616
      %650 = vst.msk [vmem:[#allocation2 + $0xd8] sm:$0xff] %vm622, %v617
      %651 = vst.msk [vmem:[#allocation2 + $0xe0] sm:$0xff] %vm622, %v618
      %652 = vst.msk [vmem:[#allocation2 + $0xe8] sm:$0xff] %vm622, %v619
      %653 = vst.msk [vmem:[#allocation2 + $0xf0] sm:$0xff] %vm622, %v620
      %654 = vst.msk [vmem:[#allocation2 + $0xf8] sm:$0xff] %vm622, %v621
      loop: start=0, step=1, limit=2
      $region89: #{rstb_forward.2} parent=87 // loop_pre_header
        _
      $region90: #{rstb_forward.2} parent=87 // loop_header
        %s656 = sphi 0, %s660
        %p657 = scmp.ge.s32.totalorder %s656, 2
      $region91: #{rstb_forward.2} parent=87 // loop_header_branch
        %659 = sbr.rel (%p657) target = $region95
      $region92: #{rstb_forward.2} parent=87 // loop_body
        %v661 = vld [vmem:[#allocation2] sm:$0xff]
        %v662 = vld [vmem:[#allocation2 + $0x8] sm:$0xff]
        %v663 = vld [vmem:[#allocation2 + $0x10] sm:$0xff]
        %v664 = vld [vmem:[#allocation2 + $0x18] sm:$0xff]
        %v665 = vld [vmem:[#allocation2 + $0x20] sm:$0xff]
        %v666 = vld [vmem:[#allocation2 + $0x28] sm:$0xff]
        %v667 = vld [vmem:[#allocation2 + $0x30] sm:$0xff]
        %v668 = vld [vmem:[#allocation2 + $0x38] sm:$0xff]
        %v669 = vld [vmem:[#allocation2 + $0x40] sm:$0xff]
        %v670 = vld [vmem:[#allocation2 + $0x48] sm:$0xff]
        %v671 = vld [vmem:[#allocation2 + $0x50] sm:$0xff]
        %v672 = vld [vmem:[#allocation2 + $0x58] sm:$0xff]
        %v673 = vld [vmem:[#allocation2 + $0x60] sm:$0xff]
        %v674 = vld [vmem:[#allocation2 + $0x68] sm:$0xff]
        %v675 = vld [vmem:[#allocation2 + $0x70] sm:$0xff]
        %v676 = vld [vmem:[#allocation2 + $0x78] sm:$0xff]
        %v677 = vld [vmem:[#allocation2 + $0x80] sm:$0xff]
        %v678 = vld [vmem:[#allocation2 + $0x88] sm:$0xff]
        %v679 = vld [vmem:[#allocation2 + $0x90] sm:$0xff]
        %v680 = vld [vmem:[#allocation2 + $0x98] sm:$0xff]
        %v681 = vld [vmem:[#allocation2 + $0xa0] sm:$0xff]
        %v682 = vld [vmem:[#allocation2 + $0xa8] sm:$0xff]
        %v683 = vld [vmem:[#allocation2 + $0xb0] sm:$0xff]
        %v684 = vld [vmem:[#allocation2 + $0xb8] sm:$0xff]
        %v685 = vld [vmem:[#allocation2 + $0xc0] sm:$0xff]
        %v686 = vld [vmem:[#allocation2 + $0xc8] sm:$0xff]
        %v687 = vld [vmem:[#allocation2 + $0xd0] sm:$0xff]
        %v688 = vld [vmem:[#allocation2 + $0xd8] sm:$0xff]
        %v689 = vld [vmem:[#allocation2 + $0xe0] sm:$0xff]
        %v690 = vld [vmem:[#allocation2 + $0xe8] sm:$0xff]
        %v691 = vld [vmem:[#allocation2 + $0xf0] sm:$0xff]
        %v692 = vld [vmem:[#allocation2 + $0xf8] sm:$0xff]
        %s693 = scalar_lea.vmem %s1, %s656
        %v694 = vld [vmem:[%s693] sm:$0x1]
        %s695 = scalar_lea.vmem %s2, %s656
        %v696 = vld [vmem:[%s695] sm:$0x1]
        %v697 = vsel %vm622, %v661, 0.0
        %698 = vadd.xlane.f32.xlu0 %v697
        %v699 = vpop.xlane.xlu0 %698
        %v700 = vsel %vm622, %v662, 0.0
        %701 = vadd.xlane.f32.xlu0 %v700
        %v702 = vpop.xlane.xlu0 %701
        %v703 = vsel %vm622, %v663, 0.0
        %704 = vadd.xlane.f32.xlu0 %v703
        %v705 = vpop.xlane.xlu0 %704
        %v706 = vsel %vm622, %v664, 0.0
        %707 = vadd.xlane.f32.xlu0 %v706
        %v708 = vpop.xlane.xlu0 %707
        %v709 = vsel %vm622, %v665, 0.0
        %710 = vadd.xlane.f32.xlu0 %v709
        %v711 = vpop.xlane.xlu0 %710
        %v712 = vsel %vm622, %v666, 0.0
        %713 = vadd.xlane.f32.xlu0 %v712
        %v714 = vpop.xlane.xlu0 %713
        %v715 = vsel %vm622, %v667, 0.0
        %716 = vadd.xlane.f32.xlu0 %v715
        %v717 = vpop.xlane.xlu0 %716
        %v718 = vsel %vm622, %v668, 0.0
        %719 = vadd.xlane.f32.xlu0 %v718
        %v720 = vpop.xlane.xlu0 %719
        %v721 = vsel %vm622, %v669, 0.0
        %722 = vadd.xlane.f32.xlu0 %v721
        %v723 = vpop.xlane.xlu0 %722
        %v724 = vsel %vm622, %v670, 0.0
        %725 = vadd.xlane.f32.xlu0 %v724
        %v726 = vpop.xlane.xlu0 %725
        %v727 = vsel %vm622, %v671, 0.0
        %728 = vadd.xlane.f32.xlu0 %v727
        %v729 = vpop.xlane.xlu0 %728
        %v730 = vsel %vm622, %v672, 0.0
        %731 = vadd.xlane.f32.xlu0 %v730
        %v732 = vpop.xlane.xlu0 %731
        %v733 = vsel %vm622, %v673, 0.0
        %734 = vadd.xlane.f32.xlu0 %v733
        %v735 = vpop.xlane.xlu0 %734
        %v736 = vsel %vm622, %v674, 0.0
        %737 = vadd.xlane.f32.xlu0 %v736
        %v738 = vpop.xlane.xlu0 %737
        %v739 = vsel %vm622, %v675, 0.0
        %740 = vadd.xlane.f32.xlu0 %v739
        %v741 = vpop.xlane.xlu0 %740
        %v742 = vsel %vm622, %v676, 0.0
        %743 = vadd.xlane.f32.xlu0 %v742
        %v744 = vpop.xlane.xlu0 %743
        %v745 = vsel %vm622, %v677, 0.0
        %746 = vadd.xlane.f32.xlu0 %v745
        %v747 = vpop.xlane.xlu0 %746
        %v748 = vsel %vm622, %v678, 0.0
        %749 = vadd.xlane.f32.xlu0 %v748
        %v750 = vpop.xlane.xlu0 %749
        %v751 = vsel %vm622, %v679, 0.0
        %752 = vadd.xlane.f32.xlu0 %v751
        %v753 = vpop.xlane.xlu0 %752
        %v754 = vsel %vm622, %v680, 0.0
        %755 = vadd.xlane.f32.xlu0 %v754
        %v756 = vpop.xlane.xlu0 %755
        %v757 = vsel %vm622, %v681, 0.0
        %758 = vadd.xlane.f32.xlu0 %v757
        %v759 = vpop.xlane.xlu0 %758
        %v760 = vsel %vm622, %v682, 0.0
        %761 = vadd.xlane.f32.xlu0 %v760
        %v762 = vpop.xlane.xlu0 %761
        %v763 = vsel %vm622, %v683, 0.0
        %764 = vadd.xlane.f32.xlu0 %v763
        %v765 = vpop.xlane.xlu0 %764
        %v766 = vsel %vm622, %v684, 0.0
        %767 = vadd.xlane.f32.xlu0 %v766
        %v768 = vpop.xlane.xlu0 %767
        %v769 = vsel %vm622, %v685, 0.0
        %770 = vadd.xlane.f32.xlu0 %v769
        %v771 = vpop.xlane.xlu0 %770
        %v772 = vsel %vm622, %v686, 0.0
        %773 = vadd.xlane.f32.xlu0 %v772
        %v774 = vpop.xlane.xlu0 %773
        %v775 = vsel %vm622, %v687, 0.0
        %776 = vadd.xlane.f32.xlu0 %v775
        %v777 = vpop.xlane.xlu0 %776
        %v778 = vsel %vm622, %v688, 0.0
        %779 = vadd.xlane.f32.xlu0 %v778
        %v780 = vpop.xlane.xlu0 %779
        %v781 = vsel %vm622, %v689, 0.0
        %782 = vadd.xlane.f32.xlu0 %v781
        %v783 = vpop.xlane.xlu0 %782
        %v784 = vsel %vm622, %v690, 0.0
        %785 = vadd.xlane.f32.xlu0 %v784
        %v786 = vpop.xlane.xlu0 %785
        %v787 = vsel %vm622, %v691, 0.0
        %788 = vadd.xlane.f32.xlu0 %v787
        %v789 = vpop.xlane.xlu0 %788
        %v790 = vsel %vm622, %v692, 0.0
        %791 = vadd.xlane.f32.xlu0 %v790
        %v792 = vpop.xlane.xlu0 %791
        %v793 = vrcp.pop 4.0
        %v794 = vmul.f32 %v699, %v793
        %v795 = vmul.f32 %v702, %v793
        %v796 = vmul.f32 %v705, %v793
        %v797 = vmul.f32 %v708, %v793
        %v798 = vmul.f32 %v711, %v793
        %v799 = vmul.f32 %v714, %v793
        %v800 = vmul.f32 %v717, %v793
        %v801 = vmul.f32 %v720, %v793
        %v802 = vmul.f32 %v723, %v793
        %v803 = vmul.f32 %v726, %v793
        %v804 = vmul.f32 %v729, %v793
        %v805 = vmul.f32 %v732, %v793
        %v806 = vmul.f32 %v735, %v793
        %v807 = vmul.f32 %v738, %v793
        %v808 = vmul.f32 %v741, %v793
        %v809 = vmul.f32 %v744, %v793
        %v810 = vmul.f32 %v747, %v793
        %v811 = vmul.f32 %v750, %v793
        %v812 = vmul.f32 %v753, %v793
        %v813 = vmul.f32 %v756, %v793
        %v814 = vmul.f32 %v759, %v793
        %v815 = vmul.f32 %v762, %v793
        %v816 = vmul.f32 %v765, %v793
        %v817 = vmul.f32 %v768, %v793
        %v818 = vmul.f32 %v771, %v793
        %v819 = vmul.f32 %v774, %v793
        %v820 = vmul.f32 %v777, %v793
        %v821 = vmul.f32 %v780, %v793
        %v822 = vmul.f32 %v783, %v793
        %v823 = vmul.f32 %v786, %v793
        %v824 = vmul.f32 %v789, %v793
        %v825 = vmul.f32 %v792, %v793
        %v826 = vsub.f32 %v661, %v794
        %v827 = vsub.f32 %v662, %v795
        %v828 = vsub.f32 %v663, %v796
        %v829 = vsub.f32 %v664, %v797
        %v830 = vsub.f32 %v665, %v798
        %v831 = vsub.f32 %v666, %v799
        %v832 = vsub.f32 %v667, %v800
        %v833 = vsub.f32 %v668, %v801
        %v834 = vsub.f32 %v669, %v802
        %v835 = vsub.f32 %v670, %v803
        %v836 = vsub.f32 %v671, %v804
        %v837 = vsub.f32 %v672, %v805
        %v838 = vsub.f32 %v673, %v806
        %v839 = vsub.f32 %v674, %v807
        %v840 = vsub.f32 %v675, %v808
        %v841 = vsub.f32 %v676, %v809
        %v842 = vsub.f32 %v677, %v810
        %v843 = vsub.f32 %v678, %v811
        %v844 = vsub.f32 %v679, %v812
        %v845 = vsub.f32 %v680, %v813
        %v846 = vsub.f32 %v681, %v814
        %v847 = vsub.f32 %v682, %v815
        %v848 = vsub.f32 %v683, %v816
        %v849 = vsub.f32 %v684, %v817
        %v850 = vsub.f32 %v685, %v818
        %v851 = vsub.f32 %v686, %v819
        %v852 = vsub.f32 %v687, %v820
        %v853 = vsub.f32 %v688, %v821
        %v854 = vsub.f32 %v689, %v822
        %v855 = vsub.f32 %v690, %v823
        %v856 = vsub.f32 %v691, %v824
        %v857 = vsub.f32 %v692, %v825
        %v858 = vmul.f32 %v826, %v826
        %v859 = vmul.f32 %v827, %v827
        %v860 = vmul.f32 %v828, %v828
        %v861 = vmul.f32 %v829, %v829
        %v862 = vmul.f32 %v830, %v830
        %v863 = vmul.f32 %v831, %v831
        %v864 = vmul.f32 %v832, %v832
        %v865 = vmul.f32 %v833, %v833
        %v866 = vmul.f32 %v834, %v834
        %v867 = vmul.f32 %v835, %v835
        %v868 = vmul.f32 %v836, %v836
        %v869 = vmul.f32 %v837, %v837
        %v870 = vmul.f32 %v838, %v838
        %v871 = vmul.f32 %v839, %v839
        %v872 = vmul.f32 %v840, %v840
        %v873 = vmul.f32 %v841, %v841
        %v874 = vmul.f32 %v842, %v842
        %v875 = vmul.f32 %v843, %v843
        %v876 = vmul.f32 %v844, %v844
        %v877 = vmul.f32 %v845, %v845
        %v878 = vmul.f32 %v846, %v846
        %v879 = vmul.f32 %v847, %v847
        %v880 = vmul.f32 %v848, %v848
        %v881 = vmul.f32 %v849, %v849
        %v882 = vmul.f32 %v850, %v850
        %v883 = vmul.f32 %v851, %v851
        %v884 = vmul.f32 %v852, %v852
        %v885 = vmul.f32 %v853, %v853
        %v886 = vmul.f32 %v854, %v854
        %v887 = vmul.f32 %v855, %v855
        %v888 = vmul.f32 %v856, %v856
        %v889 = vmul.f32 %v857, %v857
        %v890 = vsel %vm622, %v858, 0.0
        %891 = vadd.xlane.f32.xlu0 %v890
        %v892 = vpop.xlane.xlu0 %891
        %v893 = vsel %vm622, %v859, 0.0
        %894 = vadd.xlane.f32.xlu0 %v893
        %v895 = vpop.xlane.xlu0 %894
        %v896 = vsel %vm622, %v860, 0.0
        %897 = vadd.xlane.f32.xlu0 %v896
        %v898 = vpop.xlane.xlu0 %897
        %v899 = vsel %vm622, %v861, 0.0
        %900 = vadd.xlane.f32.xlu0 %v899
        %v901 = vpop.xlane.xlu0 %900
        %v902 = vsel %vm622, %v862, 0.0
        %903 = vadd.xlane.f32.xlu0 %v902
        %v904 = vpop.xlane.xlu0 %903
        %v905 = vsel %vm622, %v863, 0.0
        %906 = vadd.xlane.f32.xlu0 %v905
        %v907 = vpop.xlane.xlu0 %906
        %v908 = vsel %vm622, %v864, 0.0
        %909 = vadd.xlane.f32.xlu0 %v908
        %v910 = vpop.xlane.xlu0 %909
        %v911 = vsel %vm622, %v865, 0.0
        %912 = vadd.xlane.f32.xlu0 %v911
        %v913 = vpop.xlane.xlu0 %912
        %v914 = vsel %vm622, %v866, 0.0
        %915 = vadd.xlane.f32.xlu0 %v914
        %v916 = vpop.xlane.xlu0 %915
        %v917 = vsel %vm622, %v867, 0.0
        %918 = vadd.xlane.f32.xlu0 %v917
        %v919 = vpop.xlane.xlu0 %918
        %v920 = vsel %vm622, %v868, 0.0
        %921 = vadd.xlane.f32.xlu0 %v920
        %v922 = vpop.xlane.xlu0 %921
        %v923 = vsel %vm622, %v869, 0.0
        %924 = vadd.xlane.f32.xlu0 %v923
        %v925 = vpop.xlane.xlu0 %924
        %v926 = vsel %vm622, %v870, 0.0
        %927 = vadd.xlane.f32.xlu0 %v926
        %v928 = vpop.xlane.xlu0 %927
        %v929 = vsel %vm622, %v871, 0.0
        %930 = vadd.xlane.f32.xlu0 %v929
        %v931 = vpop.xlane.xlu0 %930
        %v932 = vsel %vm622, %v872, 0.0
        %933 = vadd.xlane.f32.xlu0 %v932
        %v934 = vpop.xlane.xlu0 %933
        %v935 = vsel %vm622, %v873, 0.0
        %936 = vadd.xlane.f32.xlu0 %v935
        %v937 = vpop.xlane.xlu0 %936
        %v938 = vsel %vm622, %v874, 0.0
        %939 = vadd.xlane.f32.xlu0 %v938
        %v940 = vpop.xlane.xlu0 %939
        %v941 = vsel %vm622, %v875, 0.0
        %942 = vadd.xlane.f32.xlu0 %v941
        %v943 = vpop.xlane.xlu0 %942
        %v944 = vsel %vm622, %v876, 0.0
        %945 = vadd.xlane.f32.xlu0 %v944
        %v946 = vpop.xlane.xlu0 %945
        %v947 = vsel %vm622, %v877, 0.0
        %948 = vadd.xlane.f32.xlu0 %v947
        %v949 = vpop.xlane.xlu0 %948
        %v950 = vsel %vm622, %v878, 0.0
        %951 = vadd.xlane.f32.xlu0 %v950
        %v952 = vpop.xlane.xlu0 %951
        %v953 = vsel %vm622, %v879, 0.0
        %954 = vadd.xlane.f32.xlu0 %v953
        %v955 = vpop.xlane.xlu0 %954
        %v956 = vsel %vm622, %v880, 0.0
        %957 = vadd.xlane.f32.xlu0 %v956
        %v958 = vpop.xlane.xlu0 %957
        %v959 = vsel %vm622, %v881, 0.0
        %960 = vadd.xlane.f32.xlu0 %v959
        %v961 = vpop.xlane.xlu0 %960
        %v962 = vsel %vm622, %v882, 0.0
        %963 = vadd.xlane.f32.xlu0 %v962
        %v964 = vpop.xlane.xlu0 %963
        %v965 = vsel %vm622, %v883, 0.0
        %966 = vadd.xlane.f32.xlu0 %v965
        %v967 = vpop.xlane.xlu0 %966
        %v968 = vsel %vm622, %v884, 0.0
        %969 = vadd.xlane.f32.xlu0 %v968
        %v970 = vpop.xlane.xlu0 %969
        %v971 = vsel %vm622, %v885, 0.0
        %972 = vadd.xlane.f32.xlu0 %v971
        %v973 = vpop.xlane.xlu0 %972
        %v974 = vsel %vm622, %v886, 0.0
        %975 = vadd.xlane.f32.xlu0 %v974
        %v976 = vpop.xlane.xlu0 %975
        %v977 = vsel %vm622, %v887, 0.0
        %978 = vadd.xlane.f32.xlu0 %v977
        %v979 = vpop.xlane.xlu0 %978
        %v980 = vsel %vm622, %v888, 0.0
        %981 = vadd.xlane.f32.xlu0 %v980
        %v982 = vpop.xlane.xlu0 %981
        %v983 = vsel %vm622, %v889, 0.0
        %984 = vadd.xlane.f32.xlu0 %v983
        %v985 = vpop.xlane.xlu0 %984
        %v986 = vmul.f32 %v892, %v793
        %v987 = vmul.f32 %v895, %v793
        %v988 = vmul.f32 %v898, %v793
        %v989 = vmul.f32 %v901, %v793
        %v990 = vmul.f32 %v904, %v793
        %v991 = vmul.f32 %v907, %v793
        %v992 = vmul.f32 %v910, %v793
        %v993 = vmul.f32 %v913, %v793
        %v994 = vmul.f32 %v916, %v793
        %v995 = vmul.f32 %v919, %v793
        %v996 = vmul.f32 %v922, %v793
        %v997 = vmul.f32 %v925, %v793
        %v998 = vmul.f32 %v928, %v793
        %v999 = vmul.f32 %v931, %v793
        %v1000 = vmul.f32 %v934, %v793
        %v1001 = vmul.f32 %v937, %v793
        %v1002 = vmul.f32 %v940, %v793
        %v1003 = vmul.f32 %v943, %v793
        %v1004 = vmul.f32 %v946, %v793
        %v1005 = vmul.f32 %v949, %v793
        %v1006 = vmul.f32 %v952, %v793
        %v1007 = vmul.f32 %v955, %v793
        %v1008 = vmul.f32 %v958, %v793
        %v1009 = vmul.f32 %v961, %v793
        %v1010 = vmul.f32 %v964, %v793
        %v1011 = vmul.f32 %v967, %v793
        %v1012 = vmul.f32 %v970, %v793
        %v1013 = vmul.f32 %v973, %v793
        %v1014 = vmul.f32 %v976, %v793
        %v1015 = vmul.f32 %v979, %v793
        %v1016 = vmul.f32 %v982, %v793
        %v1017 = vmul.f32 %v985, %v793
        %v1018 = vadd.f32 %v986, 1e-05
        %v1019 = vadd.f32 %v987, 1e-05
        %v1020 = vadd.f32 %v988, 1e-05
        %v1021 = vadd.f32 %v989, 1e-05
        %v1022 = vadd.f32 %v990, 1e-05
        %v1023 = vadd.f32 %v991, 1e-05
        %v1024 = vadd.f32 %v992, 1e-05
        %v1025 = vadd.f32 %v993, 1e-05
        %v1026 = vadd.f32 %v994, 1e-05
        %v1027 = vadd.f32 %v995, 1e-05
        %v1028 = vadd.f32 %v996, 1e-05
        %v1029 = vadd.f32 %v997, 1e-05
        %v1030 = vadd.f32 %v998, 1e-05
        %v1031 = vadd.f32 %v999, 1e-05
        %v1032 = vadd.f32 %v1000, 1e-05
        %v1033 = vadd.f32 %v1001, 1e-05
        %v1034 = vadd.f32 %v1002, 1e-05
        %v1035 = vadd.f32 %v1003, 1e-05
        %v1036 = vadd.f32 %v1004, 1e-05
        %v1037 = vadd.f32 %v1005, 1e-05
        %v1038 = vadd.f32 %v1006, 1e-05
        %v1039 = vadd.f32 %v1007, 1e-05
        %v1040 = vadd.f32 %v1008, 1e-05
        %v1041 = vadd.f32 %v1009, 1e-05
        %v1042 = vadd.f32 %v1010, 1e-05
        %v1043 = vadd.f32 %v1011, 1e-05
        %v1044 = vadd.f32 %v1012, 1e-05
        %v1045 = vadd.f32 %v1013, 1e-05
        %v1046 = vadd.f32 %v1014, 1e-05
        %v1047 = vadd.f32 %v1015, 1e-05
        %v1048 = vadd.f32 %v1016, 1e-05
        %v1049 = vadd.f32 %v1017, 1e-05
        %v1050 = vrsqrt.pop %v1018
        %v1051 = vrsqrt.pop %v1019
        %v1052 = vrsqrt.pop %v1020
        %v1053 = vrsqrt.pop %v1021
        %v1054 = vrsqrt.pop %v1022
        %v1055 = vrsqrt.pop %v1023
        %v1056 = vrsqrt.pop %v1024
        %v1057 = vrsqrt.pop %v1025
        %v1058 = vrsqrt.pop %v1026
        %v1059 = vrsqrt.pop %v1027
        %v1060 = vrsqrt.pop %v1028
        %v1061 = vrsqrt.pop %v1029
        %v1062 = vrsqrt.pop %v1030
        %v1063 = vrsqrt.pop %v1031
        %v1064 = vrsqrt.pop %v1032
        %v1065 = vrsqrt.pop %v1033
        %v1066 = vrsqrt.pop %v1034
        %v1067 = vrsqrt.pop %v1035
        %v1068 = vrsqrt.pop %v1036
        %v1069 = vrsqrt.pop %v1037
        %v1070 = vrsqrt.pop %v1038
        %v1071 = vrsqrt.pop %v1039
        %v1072 = vrsqrt.pop %v1040
        %v1073 = vrsqrt.pop %v1041
        %v1074 = vrsqrt.pop %v1042
        %v1075 = vrsqrt.pop %v1043
        %v1076 = vrsqrt.pop %v1044
        %v1077 = vrsqrt.pop %v1045
        %v1078 = vrsqrt.pop %v1046
        %v1079 = vrsqrt.pop %v1047
        %v1080 = vrsqrt.pop %v1048
        %v1081 = vrsqrt.pop %v1049
        %v1082 = vmul.f32 %v826, %v1050
        %v1083 = vmul.f32 %v827, %v1051
        %v1084 = vmul.f32 %v828, %v1052
        %v1085 = vmul.f32 %v829, %v1053
        %v1086 = vmul.f32 %v830, %v1054
        %v1087 = vmul.f32 %v831, %v1055
        %v1088 = vmul.f32 %v832, %v1056
        %v1089 = vmul.f32 %v833, %v1057
        %v1090 = vmul.f32 %v834, %v1058
        %v1091 = vmul.f32 %v835, %v1059
        %v1092 = vmul.f32 %v836, %v1060
        %v1093 = vmul.f32 %v837, %v1061
        %v1094 = vmul.f32 %v838, %v1062
        %v1095 = vmul.f32 %v839, %v1063
        %v1096 = vmul.f32 %v840, %v1064
        %v1097 = vmul.f32 %v841, %v1065
        %v1098 = vmul.f32 %v842, %v1066
        %v1099 = vmul.f32 %v843, %v1067
        %v1100 = vmul.f32 %v844, %v1068
        %v1101 = vmul.f32 %v845, %v1069
        %v1102 = vmul.f32 %v846, %v1070
        %v1103 = vmul.f32 %v847, %v1071
        %v1104 = vmul.f32 %v848, %v1072
        %v1105 = vmul.f32 %v849, %v1073
        %v1106 = vmul.f32 %v850, %v1074
        %v1107 = vmul.f32 %v851, %v1075
        %v1108 = vmul.f32 %v852, %v1076
        %v1109 = vmul.f32 %v853, %v1077
        %v1110 = vmul.f32 %v854, %v1078
        %v1111 = vmul.f32 %v855, %v1079
        %v1112 = vmul.f32 %v856, %v1080
        %v1113 = vmul.f32 %v857, %v1081
        %v1115 = vlaneseq
        %v1116 = vshrl.u32 %v1115, 7
        %v1117 = vsub.s32 0, %v1116
        %v1118 = vrot.slane %v694, %v1117
        %v1120 = vmul.f32 %v1082, %v1118
        %v1121 = vmul.f32 %v1083, %v1118
        %v1122 = vmul.f32 %v1084, %v1118
        %v1123 = vmul.f32 %v1085, %v1118
        %v1124 = vmul.f32 %v1086, %v1118
        %v1125 = vmul.f32 %v1087, %v1118
        %v1126 = vmul.f32 %v1088, %v1118
        %v1127 = vmul.f32 %v1089, %v1118
        %v1128 = vmul.f32 %v1090, %v1118
        %v1129 = vmul.f32 %v1091, %v1118
        %v1130 = vmul.f32 %v1092, %v1118
        %v1131 = vmul.f32 %v1093, %v1118
        %v1132 = vmul.f32 %v1094, %v1118
        %v1133 = vmul.f32 %v1095, %v1118
        %v1134 = vmul.f32 %v1096, %v1118
        %v1135 = vmul.f32 %v1097, %v1118
        %v1136 = vmul.f32 %v1098, %v1118
        %v1137 = vmul.f32 %v1099, %v1118
        %v1138 = vmul.f32 %v1100, %v1118
        %v1139 = vmul.f32 %v1101, %v1118
        %v1140 = vmul.f32 %v1102, %v1118
        %v1141 = vmul.f32 %v1103, %v1118
        %v1142 = vmul.f32 %v1104, %v1118
        %v1143 = vmul.f32 %v1105, %v1118
        %v1144 = vmul.f32 %v1106, %v1118
        %v1145 = vmul.f32 %v1107, %v1118
        %v1146 = vmul.f32 %v1108, %v1118
        %v1147 = vmul.f32 %v1109, %v1118
        %v1148 = vmul.f32 %v1110, %v1118
        %v1149 = vmul.f32 %v1111, %v1118
        %v1150 = vmul.f32 %v1112, %v1118
        %v1151 = vmul.f32 %v1113, %v1118
        %v1153 = vlaneseq
        %v1154 = vshrl.u32 %v1153, 7
        %v1155 = vsub.s32 0, %v1154
        %v1156 = vrot.slane %v696, %v1155
        %v1158 = vadd.f32 %v1120, %v1156
        %v1159 = vadd.f32 %v1121, %v1156
        %v1160 = vadd.f32 %v1122, %v1156
        %v1161 = vadd.f32 %v1123, %v1156
        %v1162 = vadd.f32 %v1124, %v1156
        %v1163 = vadd.f32 %v1125, %v1156
        %v1164 = vadd.f32 %v1126, %v1156
        %v1165 = vadd.f32 %v1127, %v1156
        %v1166 = vadd.f32 %v1128, %v1156
        %v1167 = vadd.f32 %v1129, %v1156
        %v1168 = vadd.f32 %v1130, %v1156
        %v1169 = vadd.f32 %v1131, %v1156
        %v1170 = vadd.f32 %v1132, %v1156
        %v1171 = vadd.f32 %v1133, %v1156
        %v1172 = vadd.f32 %v1134, %v1156
        %v1173 = vadd.f32 %v1135, %v1156
        %v1174 = vadd.f32 %v1136, %v1156
        %v1175 = vadd.f32 %v1137, %v1156
        %v1176 = vadd.f32 %v1138, %v1156
        %v1177 = vadd.f32 %v1139, %v1156
        %v1178 = vadd.f32 %v1140, %v1156
        %v1179 = vadd.f32 %v1141, %v1156
        %v1180 = vadd.f32 %v1142, %v1156
        %v1181 = vadd.f32 %v1143, %v1156
        %v1182 = vadd.f32 %v1144, %v1156
        %v1183 = vadd.f32 %v1145, %v1156
        %v1184 = vadd.f32 %v1146, %v1156
        %v1185 = vadd.f32 %v1147, %v1156
        %v1186 = vadd.f32 %v1148, %v1156
        %v1187 = vadd.f32 %v1149, %v1156
        %v1188 = vadd.f32 %v1150, %v1156
        %v1189 = vadd.f32 %v1151, %v1156
        %v1190 = vpack.c.bf16 %v1159, %v1158
        %v1191 = vpack.c.bf16 %v1161, %v1160
        %v1192 = vpack.c.bf16 %v1163, %v1162
        %v1193 = vpack.c.bf16 %v1165, %v1164
        %v1194 = vpack.c.bf16 %v1167, %v1166
        %v1195 = vpack.c.bf16 %v1169, %v1168
        %v1196 = vpack.c.bf16 %v1171, %v1170
        %v1197 = vpack.c.bf16 %v1173, %v1172
        %v1198 = vpack.c.bf16 %v1175, %v1174
        %v1199 = vpack.c.bf16 %v1177, %v1176
        %v1200 = vpack.c.bf16 %v1179, %v1178
        %v1201 = vpack.c.bf16 %v1181, %v1180
        %v1202 = vpack.c.bf16 %v1183, %v1182
        %v1203 = vpack.c.bf16 %v1185, %v1184
        %v1204 = vpack.c.bf16 %v1187, %v1186
        %v1205 = vpack.c.bf16 %v1189, %v1188
        %s1206 = smul.addr %s656, 2
        %s1207 = scalar_lea.vmem %s3, %s1206
        %v1208 = vld [vmem:[%s1207] sm:$0x3]
        %s1209 = scalar_lea.vmem %s4, %s656
        %v1210 = vld [vmem:[%s1209] sm:$0x1]
        %v1212 = vlaneseq
        %v1213 = vshrl.u32 %v1212, 7
        %v1214 = vsub.s32 0, %v1213
        %v1215 = vrot.slane %v1210, %v1214
        %v1218 = vsel %vm622, %v1190, 0
        %v1221 = vsel %vm622, %v1191, 0
        %v1224 = vsel %vm622, %v1192, 0
        %v1227 = vsel %vm622, %v1193, 0
        %v1230 = vsel %vm622, %v1194, 0
        %v1233 = vsel %vm622, %v1195, 0
        %v1236 = vsel %vm622, %v1196, 0
        %v1239 = vsel %vm622, %v1197, 0
        %v1242 = vsel %vm622, %v1198, 0
        %v1245 = vsel %vm622, %v1199, 0
        %v1248 = vsel %vm622, %v1200, 0
        %v1251 = vsel %vm622, %v1201, 0
        %v1254 = vsel %vm622, %v1202, 0
        %v1257 = vsel %vm622, %v1203, 0
        %v1260 = vsel %vm622, %v1204, 0
        %v1263 = vsel %vm622, %v1205, 0
        %vm1265 = vcmask 1041408
        %v1267 = vsel %vm1265, %v1208, 0
        %1269 = vmatprep.subr.bf16.mxu0 0
        %1270 = vmatpush1.bf16.msra.mxu0 0
        %1271 = vmatprep.subr.bf16.mxu0 0
        %1272 = vmatpush1.bf16.msra.mxu0 0
        %1273 = vmatprep.subr.bf16.mxu0 0
        %1274 = vmatpush1.bf16.msra.mxu0 0
        %1275 = vmatprep.subr.bf16.mxu0 0
        %1276 = vmatpush1.bf16.msra.mxu0 0
        %1277 = vmatprep.subr.bf16.mxu0 0
        %1278 = vmatpush1.bf16.msra.mxu0 0
        %1279 = vmatprep.subr.bf16.mxu0 0
        %1280 = vmatpush1.bf16.msra.mxu0 0
        %1281 = vmatprep.subr.bf16.mxu0 0
        %1282 = vmatpush1.bf16.msra.mxu0 0
        %1283 = vmatprep.subr.bf16.mxu0 0
        %1284 = vmatpush1.bf16.msra.mxu0 %v1267
        %1285 = vmatprep.subr.bf16.mxu0 0
        %1286 = vmatpush2.bf16.msra.mxu0 0
        %1287 = vmatprep.subr.bf16.mxu0 0
        %1288 = vmatpush2.bf16.msra.mxu0 0
        %1289 = vmatprep.subr.bf16.mxu0 0
        %1290 = vmatpush2.bf16.msra.mxu0 0
        %1291 = vmatprep.subr.bf16.mxu0 0
        %1292 = vmatpush2.bf16.msra.mxu0 0
        %1293 = vmatprep.subr.bf16.mxu0 0
        %1294 = vmatpush2.bf16.msra.mxu0 0
        %1295 = vmatprep.subr.bf16.mxu0 0
        %1296 = vmatpush2.bf16.msra.mxu0 0
        %1297 = vmatprep.subr.bf16.mxu0 0
        %1298 = vmatpush2.bf16.msra.mxu0 0
        %1299 = vmatprep.subr.bf16.mxu0 0
        %1300 = vmatpush2.bf16.msra.mxu0 0
        %1301 = vmatprep.mubr.bf16.mxu0 0
        %1302 = vmatmul.mubr.bf16.gmra.mxu0 %v1218
        %v1303 = vpop.f32.mrf.mxu0
        %v1304 = vadd.f32 %v1215, %v1303
        %v1305 = vpop.f32.mrf.mxu0
        %v1306 = vpop.f32.mrf.mxu0
        %v1307 = vadd.f32 %v1215, %v1306
        %v1308 = vpop.f32.mrf.mxu0
        %1309 = vmatprep.mubr.bf16.mxu0 0
        %1310 = vmatmul.mubr.bf16.gmra.mxu0 %v1221
        %v1311 = vpop.f32.mrf.mxu0
        %v1312 = vadd.f32 %v1215, %v1311
        %v1313 = vpop.f32.mrf.mxu0
        %v1314 = vpop.f32.mrf.mxu0
        %v1315 = vadd.f32 %v1215, %v1314
        %v1316 = vpop.f32.mrf.mxu0
        %1317 = vmatprep.mubr.bf16.mxu0 0
        %1318 = vmatmul.mubr.bf16.gmra.mxu0 %v1224
        %v1319 = vpop.f32.mrf.mxu0
        %v1320 = vadd.f32 %v1215, %v1319
        %v1321 = vpop.f32.mrf.mxu0
        %v1322 = vpop.f32.mrf.mxu0
        %v1323 = vadd.f32 %v1215, %v1322
        %v1324 = vpop.f32.mrf.mxu0
        %1325 = vmatprep.mubr.bf16.mxu0 0
        %1326 = vmatmul.mubr.bf16.gmra.mxu0 %v1227
        %v1327 = vpop.f32.mrf.mxu0
        %v1328 = vadd.f32 %v1215, %v1327
        %v1329 = vpop.f32.mrf.mxu0
        %v1330 = vpop.f32.mrf.mxu0
        %v1331 = vadd.f32 %v1215, %v1330
        %v1332 = vpop.f32.mrf.mxu0
        %1333 = vmatprep.mubr.bf16.mxu0 0
        %1334 = vmatmul.mubr.bf16.gmra.mxu0 %v1230
        %v1335 = vpop.f32.mrf.mxu0
        %v1336 = vadd.f32 %v1215, %v1335
        %v1337 = vpop.f32.mrf.mxu0
        %v1338 = vpop.f32.mrf.mxu0
        %v1339 = vadd.f32 %v1215, %v1338
        %v1340 = vpop.f32.mrf.mxu0
        %1341 = vmatprep.mubr.bf16.mxu0 0
        %1342 = vmatmul.mubr.bf16.gmra.mxu0 %v1233
        %v1343 = vpop.f32.mrf.mxu0
        %v1344 = vadd.f32 %v1215, %v1343
        %v1345 = vpop.f32.mrf.mxu0
        %v1346 = vpop.f32.mrf.mxu0
        %v1347 = vadd.f32 %v1215, %v1346
        %v1348 = vpop.f32.mrf.mxu0
        %1349 = vmatprep.mubr.bf16.mxu0 0
        %1350 = vmatmul.mubr.bf16.gmra.mxu0 %v1236
        %v1351 = vpop.f32.mrf.mxu0
        %v1352 = vadd.f32 %v1215, %v1351
        %v1353 = vpop.f32.mrf.mxu0
        %v1354 = vpop.f32.mrf.mxu0
        %v1355 = vadd.f32 %v1215, %v1354
        %v1356 = vpop.f32.mrf.mxu0
        %1357 = vmatprep.mubr.bf16.mxu0 0
        %1358 = vmatmul.mubr.bf16.gmra.mxu0 %v1239
        %v1359 = vpop.f32.mrf.mxu0
        %v1360 = vadd.f32 %v1215, %v1359
        %v1361 = vpop.f32.mrf.mxu0
        %v1362 = vpop.f32.mrf.mxu0
        %v1363 = vadd.f32 %v1215, %v1362
        %v1364 = vpop.f32.mrf.mxu0
        %1365 = vmatprep.mubr.bf16.mxu0 0
        %1366 = vmatmul.mubr.bf16.gmra.mxu0 %v1242
        %v1367 = vpop.f32.mrf.mxu0
        %v1368 = vadd.f32 %v1215, %v1367
        %v1369 = vpop.f32.mrf.mxu0
        %v1370 = vpop.f32.mrf.mxu0
        %v1371 = vadd.f32 %v1215, %v1370
        %v1372 = vpop.f32.mrf.mxu0
        %1373 = vmatprep.mubr.bf16.mxu0 0
        %1374 = vmatmul.mubr.bf16.gmra.mxu0 %v1245
        %v1375 = vpop.f32.mrf.mxu0
        %v1376 = vadd.f32 %v1215, %v1375
        %v1377 = vpop.f32.mrf.mxu0
        %v1378 = vpop.f32.mrf.mxu0
        %v1379 = vadd.f32 %v1215, %v1378
        %v1380 = vpop.f32.mrf.mxu0
        %1381 = vmatprep.mubr.bf16.mxu0 0
        %1382 = vmatmul.mubr.bf16.gmra.mxu0 %v1248
        %v1383 = vpop.f32.mrf.mxu0
        %v1384 = vadd.f32 %v1215, %v1383
        %v1385 = vpop.f32.mrf.mxu0
        %v1386 = vpop.f32.mrf.mxu0
        %v1387 = vadd.f32 %v1215, %v1386
        %v1388 = vpop.f32.mrf.mxu0
        %1389 = vmatprep.mubr.bf16.mxu0 0
        %1390 = vmatmul.mubr.bf16.gmra.mxu0 %v1251
        %v1391 = vpop.f32.mrf.mxu0
        %v1392 = vadd.f32 %v1215, %v1391
        %v1393 = vpop.f32.mrf.mxu0
        %v1394 = vpop.f32.mrf.mxu0
        %v1395 = vadd.f32 %v1215, %v1394
        %v1396 = vpop.f32.mrf.mxu0
        %1397 = vmatprep.mubr.bf16.mxu0 0
        %1398 = vmatmul.mubr.bf16.gmra.mxu0 %v1254
        %v1399 = vpop.f32.mrf.mxu0
        %v1400 = vadd.f32 %v1215, %v1399
        %v1401 = vpop.f32.mrf.mxu0
        %v1402 = vpop.f32.mrf.mxu0
        %v1403 = vadd.f32 %v1215, %v1402
        %v1404 = vpop.f32.mrf.mxu0
        %1405 = vmatprep.mubr.bf16.mxu0 0
        %1406 = vmatmul.mubr.bf16.gmra.mxu0 %v1257
        %v1407 = vpop.f32.mrf.mxu0
        %v1408 = vadd.f32 %v1215, %v1407
        %v1409 = vpop.f32.mrf.mxu0
        %v1410 = vpop.f32.mrf.mxu0
        %v1411 = vadd.f32 %v1215, %v1410
        %v1412 = vpop.f32.mrf.mxu0
        %1413 = vmatprep.mubr.bf16.mxu0 0
        %1414 = vmatmul.mubr.bf16.gmra.mxu0 %v1260
        %v1415 = vpop.f32.mrf.mxu0
        %v1416 = vadd.f32 %v1215, %v1415
        %v1417 = vpop.f32.mrf.mxu0
        %v1418 = vpop.f32.mrf.mxu0
        %v1419 = vadd.f32 %v1215, %v1418
        %v1420 = vpop.f32.mrf.mxu0
        %1421 = vmatprep.mubr.bf16.mxu0 0
        %1422 = vmatmul.mubr.bf16.gmra.mxu0 %v1263
        %v1423 = vpop.f32.mrf.mxu0
        %v1424 = vadd.f32 %v1215, %v1423
        %v1425 = vpop.f32.mrf.mxu0
        %v1426 = vpop.f32.mrf.mxu0
        %v1427 = vadd.f32 %v1215, %v1426
        %v1428 = vpop.f32.mrf.mxu0
        %1429 = vdwg.mxu0
        %s1430 = smul.addr %s656, 2
        %s1431 = scalar_lea.vmem %s5, %s1430
        %v1432 = vld [vmem:[%s1431] sm:$0x3]
        %s1433 = scalar_lea.vmem %s6, %s656
        %v1434 = vld [vmem:[%s1433] sm:$0x1]
        %v1436 = vlaneseq
        %v1437 = vshrl.u32 %v1436, 7
        %v1438 = vsub.s32 0, %v1437
        %v1439 = vrot.slane %v1434, %v1438
        %v1442 = vsel %vm1265, %v1432, 0
        %1444 = vmatprep.subr.bf16.mxu0 0
        %1445 = vmatpush1.bf16.msra.mxu0 0
        %1446 = vmatprep.subr.bf16.mxu0 0
        %1447 = vmatpush1.bf16.msra.mxu0 0
        %1448 = vmatprep.subr.bf16.mxu0 0
        %1449 = vmatpush1.bf16.msra.mxu0 0
        %1450 = vmatprep.subr.bf16.mxu0 0
        %1451 = vmatpush1.bf16.msra.mxu0 0
        %1452 = vmatprep.subr.bf16.mxu0 0
        %1453 = vmatpush1.bf16.msra.mxu0 0
        %1454 = vmatprep.subr.bf16.mxu0 0
        %1455 = vmatpush1.bf16.msra.mxu0 0
        %1456 = vmatprep.subr.bf16.mxu0 0
        %1457 = vmatpush1.bf16.msra.mxu0 0
        %1458 = vmatprep.subr.bf16.mxu0 0
        %1459 = vmatpush1.bf16.msra.mxu0 %v1442
        %1460 = vmatprep.subr.bf16.mxu0 0
        %1461 = vmatpush2.bf16.msra.mxu0 0
        %1462 = vmatprep.subr.bf16.mxu0 0
        %1463 = vmatpush2.bf16.msra.mxu0 0
        %1464 = vmatprep.subr.bf16.mxu0 0
        %1465 = vmatpush2.bf16.msra.mxu0 0
        %1466 = vmatprep.subr.bf16.mxu0 0
        %1467 = vmatpush2.bf16.msra.mxu0 0
        %1468 = vmatprep.subr.bf16.mxu0 0
        %1469 = vmatpush2.bf16.msra.mxu0 0
        %1470 = vmatprep.subr.bf16.mxu0 0
        %1471 = vmatpush2.bf16.msra.mxu0 0
        %1472 = vmatprep.subr.bf16.mxu0 0
        %1473 = vmatpush2.bf16.msra.mxu0 0
        %1474 = vmatprep.subr.bf16.mxu0 0
        %1475 = vmatpush2.bf16.msra.mxu0 0
        %1476 = vmatprep.mubr.bf16.mxu0 0
        %1477 = vmatmul.mubr.bf16.gmra.mxu0 %v1218
        %v1478 = vpop.f32.mrf.mxu0
        %v1479 = vadd.f32 %v1439, %v1478
        %v1480 = vpop.f32.mrf.mxu0
        %v1481 = vpop.f32.mrf.mxu0
        %v1482 = vadd.f32 %v1439, %v1481
        %v1483 = vpop.f32.mrf.mxu0
        %1484 = vmatprep.mubr.bf16.mxu0 0
        %1485 = vmatmul.mubr.bf16.gmra.mxu0 %v1221
        %v1486 = vpop.f32.mrf.mxu0
        %v1487 = vadd.f32 %v1439, %v1486
        %v1488 = vpop.f32.mrf.mxu0
        %v1489 = vpop.f32.mrf.mxu0
        %v1490 = vadd.f32 %v1439, %v1489
        %v1491 = vpop.f32.mrf.mxu0
        %1492 = vmatprep.mubr.bf16.mxu0 0
        %1493 = vmatmul.mubr.bf16.gmra.mxu0 %v1224
        %v1494 = vpop.f32.mrf.mxu0
        %v1495 = vadd.f32 %v1439, %v1494
        %v1496 = vpop.f32.mrf.mxu0
        %v1497 = vpop.f32.mrf.mxu0
        %v1498 = vadd.f32 %v1439, %v1497
        %v1499 = vpop.f32.mrf.mxu0
        %1500 = vmatprep.mubr.bf16.mxu0 0
        %1501 = vmatmul.mubr.bf16.gmra.mxu0 %v1227
        %v1502 = vpop.f32.mrf.mxu0
        %v1503 = vadd.f32 %v1439, %v1502
        %v1504 = vpop.f32.mrf.mxu0
        %v1505 = vpop.f32.mrf.mxu0
        %v1506 = vadd.f32 %v1439, %v1505
        %v1507 = vpop.f32.mrf.mxu0
        %1508 = vmatprep.mubr.bf16.mxu0 0
        %1509 = vmatmul.mubr.bf16.gmra.mxu0 %v1230
        %v1510 = vpop.f32.mrf.mxu0
        %v1511 = vadd.f32 %v1439, %v1510
        %v1512 = vpop.f32.mrf.mxu0
        %v1513 = vpop.f32.mrf.mxu0
        %v1514 = vadd.f32 %v1439, %v1513
        %v1515 = vpop.f32.mrf.mxu0
        %1516 = vmatprep.mubr.bf16.mxu0 0
        %1517 = vmatmul.mubr.bf16.gmra.mxu0 %v1233
        %v1518 = vpop.f32.mrf.mxu0
        %v1519 = vadd.f32 %v1439, %v1518
        %v1520 = vpop.f32.mrf.mxu0
        %v1521 = vpop.f32.mrf.mxu0
        %v1522 = vadd.f32 %v1439, %v1521
        %v1523 = vpop.f32.mrf.mxu0
        %1524 = vmatprep.mubr.bf16.mxu0 0
        %1525 = vmatmul.mubr.bf16.gmra.mxu0 %v1236
        %v1526 = vpop.f32.mrf.mxu0
        %v1527 = vadd.f32 %v1439, %v1526
        %v1528 = vpop.f32.mrf.mxu0
        %v1529 = vpop.f32.mrf.mxu0
        %v1530 = vadd.f32 %v1439, %v1529
        %v1531 = vpop.f32.mrf.mxu0
        %1532 = vmatprep.mubr.bf16.mxu0 0
        %1533 = vmatmul.mubr.bf16.gmra.mxu0 %v1239
        %v1534 = vpop.f32.mrf.mxu0
        %v1535 = vadd.f32 %v1439, %v1534
        %v1536 = vpop.f32.mrf.mxu0
        %v1537 = vpop.f32.mrf.mxu0
        %v1538 = vadd.f32 %v1439, %v1537
        %v1539 = vpop.f32.mrf.mxu0
        %1540 = vmatprep.mubr.bf16.mxu0 0
        %1541 = vmatmul.mubr.bf16.gmra.mxu0 %v1242
        %v1542 = vpop.f32.mrf.mxu0
        %v1543 = vadd.f32 %v1439, %v1542
        %v1544 = vpop.f32.mrf.mxu0
        %v1545 = vpop.f32.mrf.mxu0
        %v1546 = vadd.f32 %v1439, %v1545
        %v1547 = vpop.f32.mrf.mxu0
        %1548 = vmatprep.mubr.bf16.mxu0 0
        %1549 = vmatmul.mubr.bf16.gmra.mxu0 %v1245
        %v1550 = vpop.f32.mrf.mxu0
        %v1551 = vadd.f32 %v1439, %v1550
        %v1552 = vpop.f32.mrf.mxu0
        %v1553 = vpop.f32.mrf.mxu0
        %v1554 = vadd.f32 %v1439, %v1553
        %v1555 = vpop.f32.mrf.mxu0
        %1556 = vmatprep.mubr.bf16.mxu0 0
        %1557 = vmatmul.mubr.bf16.gmra.mxu0 %v1248
        %v1558 = vpop.f32.mrf.mxu0
        %v1559 = vadd.f32 %v1439, %v1558
        %v1560 = vpop.f32.mrf.mxu0
        %v1561 = vpop.f32.mrf.mxu0
        %v1562 = vadd.f32 %v1439, %v1561
        %v1563 = vpop.f32.mrf.mxu0
        %1564 = vmatprep.mubr.bf16.mxu0 0
        %1565 = vmatmul.mubr.bf16.gmra.mxu0 %v1251
        %v1566 = vpop.f32.mrf.mxu0
        %v1567 = vadd.f32 %v1439, %v1566
        %v1568 = vpop.f32.mrf.mxu0
        %v1569 = vpop.f32.mrf.mxu0
        %v1570 = vadd.f32 %v1439, %v1569
        %v1571 = vpop.f32.mrf.mxu0
        %1572 = vmatprep.mubr.bf16.mxu0 0
        %1573 = vmatmul.mubr.bf16.gmra.mxu0 %v1254
        %v1574 = vpop.f32.mrf.mxu0
        %v1575 = vadd.f32 %v1439, %v1574
        %v1576 = vpop.f32.mrf.mxu0
        %v1577 = vpop.f32.mrf.mxu0
        %v1578 = vadd.f32 %v1439, %v1577
        %v1579 = vpop.f32.mrf.mxu0
        %1580 = vmatprep.mubr.bf16.mxu0 0
        %1581 = vmatmul.mubr.bf16.gmra.mxu0 %v1257
        %v1582 = vpop.f32.mrf.mxu0
        %v1583 = vadd.f32 %v1439, %v1582
        %v1584 = vpop.f32.mrf.mxu0
        %v1585 = vpop.f32.mrf.mxu0
        %v1586 = vadd.f32 %v1439, %v1585
        %v1587 = vpop.f32.mrf.mxu0
        %1588 = vmatprep.mubr.bf16.mxu0 0
        %1589 = vmatmul.mubr.bf16.gmra.mxu0 %v1260
        %v1590 = vpop.f32.mrf.mxu0
        %v1591 = vadd.f32 %v1439, %v1590
        %v1592 = vpop.f32.mrf.mxu0
        %v1593 = vpop.f32.mrf.mxu0
        %v1594 = vadd.f32 %v1439, %v1593
        %v1595 = vpop.f32.mrf.mxu0
        %1596 = vmatprep.mubr.bf16.mxu0 0
        %1597 = vmatmul.mubr.bf16.gmra.mxu0 %v1263
        %v1598 = vpop.f32.mrf.mxu0
        %v1599 = vadd.f32 %v1439, %v1598
        %v1600 = vpop.f32.mrf.mxu0
        %v1601 = vpop.f32.mrf.mxu0
        %v1602 = vadd.f32 %v1439, %v1601
        %v1603 = vpop.f32.mrf.mxu0
        %1604 = vdwg.mxu0
        %s1605 = smul.addr %s656, 2
        %s1606 = scalar_lea.vmem %s7, %s1605
        %v1607 = vld [vmem:[%s1606] sm:$0x3]
        %s1608 = scalar_lea.vmem %s8, %s656
        %v1609 = vld [vmem:[%s1608] sm:$0x1]
        %v1611 = vlaneseq
        %v1612 = vshrl.u32 %v1611, 7
        %v1613 = vsub.s32 0, %v1612
        %v1614 = vrot.slane %v1609, %v1613
        %v1617 = vsel %vm1265, %v1607, 0
        %1619 = vmatprep.subr.bf16.mxu0 0
        %1620 = vmatpush1.bf16.msra.mxu0 0
        %1621 = vmatprep.subr.bf16.mxu0 0
        %1622 = vmatpush1.bf16.msra.mxu0 0
        %1623 = vmatprep.subr.bf16.mxu0 0
        %1624 = vmatpush1.bf16.msra.mxu0 0
        %1625 = vmatprep.subr.bf16.mxu0 0
        %1626 = vmatpush1.bf16.msra.mxu0 0
        %1627 = vmatprep.subr.bf16.mxu0 0
        %1628 = vmatpush1.bf16.msra.mxu0 0
        %1629 = vmatprep.subr.bf16.mxu0 0
        %1630 = vmatpush1.bf16.msra.mxu0 0
        %1631 = vmatprep.subr.bf16.mxu0 0
        %1632 = vmatpush1.bf16.msra.mxu0 0
        %1633 = vmatprep.subr.bf16.mxu0 0
        %1634 = vmatpush1.bf16.msra.mxu0 %v1617
        %1635 = vmatprep.subr.bf16.mxu0 0
        %1636 = vmatpush2.bf16.msra.mxu0 0
        %1637 = vmatprep.subr.bf16.mxu0 0
        %1638 = vmatpush2.bf16.msra.mxu0 0
        %1639 = vmatprep.subr.bf16.mxu0 0
        %1640 = vmatpush2.bf16.msra.mxu0 0
        %1641 = vmatprep.subr.bf16.mxu0 0
        %1642 = vmatpush2.bf16.msra.mxu0 0
        %1643 = vmatprep.subr.bf16.mxu0 0
        %1644 = vmatpush2.bf16.msra.mxu0 0
        %1645 = vmatprep.subr.bf16.mxu0 0
        %1646 = vmatpush2.bf16.msra.mxu0 0
        %1647 = vmatprep.subr.bf16.mxu0 0
        %1648 = vmatpush2.bf16.msra.mxu0 0
        %1649 = vmatprep.subr.bf16.mxu0 0
        %1650 = vmatpush2.bf16.msra.mxu0 0
        %1651 = vmatprep.mubr.bf16.mxu0 0
        %1652 = vmatmul.mubr.bf16.gmra.mxu0 %v1218
        %v1653 = vpop.f32.mrf.mxu0
        %v1654 = vadd.f32 %v1614, %v1653
        %v1655 = vpop.f32.mrf.mxu0
        %v1656 = vpop.f32.mrf.mxu0
        %v1657 = vadd.f32 %v1614, %v1656
        %v1658 = vpop.f32.mrf.mxu0
        %1659 = vmatprep.mubr.bf16.mxu0 0
        %1660 = vmatmul.mubr.bf16.gmra.mxu0 %v1221
        %v1661 = vpop.f32.mrf.mxu0
        %v1662 = vadd.f32 %v1614, %v1661
        %v1663 = vpop.f32.mrf.mxu0
        %v1664 = vpop.f32.mrf.mxu0
        %v1665 = vadd.f32 %v1614, %v1664
        %v1666 = vpop.f32.mrf.mxu0
        %1667 = vmatprep.mubr.bf16.mxu0 0
        %1668 = vmatmul.mubr.bf16.gmra.mxu0 %v1224
        %v1669 = vpop.f32.mrf.mxu0
        %v1670 = vadd.f32 %v1614, %v1669
        %v1671 = vpop.f32.mrf.mxu0
        %v1672 = vpop.f32.mrf.mxu0
        %v1673 = vadd.f32 %v1614, %v1672
        %v1674 = vpop.f32.mrf.mxu0
        %1675 = vmatprep.mubr.bf16.mxu0 0
        %1676 = vmatmul.mubr.bf16.gmra.mxu0 %v1227
        %v1677 = vpop.f32.mrf.mxu0
        %v1678 = vadd.f32 %v1614, %v1677
        %v1679 = vpop.f32.mrf.mxu0
        %v1680 = vpop.f32.mrf.mxu0
        %v1681 = vadd.f32 %v1614, %v1680
        %v1682 = vpop.f32.mrf.mxu0
        %1683 = vmatprep.mubr.bf16.mxu0 0
        %1684 = vmatmul.mubr.bf16.gmra.mxu0 %v1230
        %v1685 = vpop.f32.mrf.mxu0
        %v1686 = vadd.f32 %v1614, %v1685
        %v1687 = vpop.f32.mrf.mxu0
        %v1688 = vpop.f32.mrf.mxu0
        %v1689 = vadd.f32 %v1614, %v1688
        %v1690 = vpop.f32.mrf.mxu0
        %1691 = vmatprep.mubr.bf16.mxu0 0
        %1692 = vmatmul.mubr.bf16.gmra.mxu0 %v1233
        %v1693 = vpop.f32.mrf.mxu0
        %v1694 = vadd.f32 %v1614, %v1693
        %v1695 = vpop.f32.mrf.mxu0
        %v1696 = vpop.f32.mrf.mxu0
        %v1697 = vadd.f32 %v1614, %v1696
        %v1698 = vpop.f32.mrf.mxu0
        %1699 = vmatprep.mubr.bf16.mxu0 0
        %1700 = vmatmul.mubr.bf16.gmra.mxu0 %v1236
        %v1701 = vpop.f32.mrf.mxu0
        %v1702 = vadd.f32 %v1614, %v1701
        %v1703 = vpop.f32.mrf.mxu0
        %v1704 = vpop.f32.mrf.mxu0
        %v1705 = vadd.f32 %v1614, %v1704
        %v1706 = vpop.f32.mrf.mxu0
        %1707 = vmatprep.mubr.bf16.mxu0 0
        %1708 = vmatmul.mubr.bf16.gmra.mxu0 %v1239
        %v1709 = vpop.f32.mrf.mxu0
        %v1710 = vadd.f32 %v1614, %v1709
        %v1711 = vpop.f32.mrf.mxu0
        %v1712 = vpop.f32.mrf.mxu0
        %v1713 = vadd.f32 %v1614, %v1712
        %v1714 = vpop.f32.mrf.mxu0
        %1715 = vmatprep.mubr.bf16.mxu0 0
        %1716 = vmatmul.mubr.bf16.gmra.mxu0 %v1242
        %v1717 = vpop.f32.mrf.mxu0
        %v1718 = vadd.f32 %v1614, %v1717
        %v1719 = vpop.f32.mrf.mxu0
        %v1720 = vpop.f32.mrf.mxu0
        %v1721 = vadd.f32 %v1614, %v1720
        %v1722 = vpop.f32.mrf.mxu0
        %1723 = vmatprep.mubr.bf16.mxu0 0
        %1724 = vmatmul.mubr.bf16.gmra.mxu0 %v1245
        %v1725 = vpop.f32.mrf.mxu0
        %v1726 = vadd.f32 %v1614, %v1725
        %v1727 = vpop.f32.mrf.mxu0
        %v1728 = vpop.f32.mrf.mxu0
        %v1729 = vadd.f32 %v1614, %v1728
        %v1730 = vpop.f32.mrf.mxu0
        %1731 = vmatprep.mubr.bf16.mxu0 0
        %1732 = vmatmul.mubr.bf16.gmra.mxu0 %v1248
        %v1733 = vpop.f32.mrf.mxu0
        %v1734 = vadd.f32 %v1614, %v1733
        %v1735 = vpop.f32.mrf.mxu0
        %v1736 = vpop.f32.mrf.mxu0
        %v1737 = vadd.f32 %v1614, %v1736
        %v1738 = vpop.f32.mrf.mxu0
        %1739 = vmatprep.mubr.bf16.mxu0 0
        %1740 = vmatmul.mubr.bf16.gmra.mxu0 %v1251
        %v1741 = vpop.f32.mrf.mxu0
        %v1742 = vadd.f32 %v1614, %v1741
        %v1743 = vpop.f32.mrf.mxu0
        %v1744 = vpop.f32.mrf.mxu0
        %v1745 = vadd.f32 %v1614, %v1744
        %v1746 = vpop.f32.mrf.mxu0
        %1747 = vmatprep.mubr.bf16.mxu0 0
        %1748 = vmatmul.mubr.bf16.gmra.mxu0 %v1254
        %v1749 = vpop.f32.mrf.mxu0
        %v1750 = vadd.f32 %v1614, %v1749
        %v1751 = vpop.f32.mrf.mxu0
        %v1752 = vpop.f32.mrf.mxu0
        %v1753 = vadd.f32 %v1614, %v1752
        %v1754 = vpop.f32.mrf.mxu0
        %1755 = vmatprep.mubr.bf16.mxu0 0
        %1756 = vmatmul.mubr.bf16.gmra.mxu0 %v1257
        %v1757 = vpop.f32.mrf.mxu0
        %v1758 = vadd.f32 %v1614, %v1757
        %v1759 = vpop.f32.mrf.mxu0
        %v1760 = vpop.f32.mrf.mxu0
        %v1761 = vadd.f32 %v1614, %v1760
        %v1762 = vpop.f32.mrf.mxu0
        %1763 = vmatprep.mubr.bf16.mxu0 0
        %1764 = vmatmul.mubr.bf16.gmra.mxu0 %v1260
        %v1765 = vpop.f32.mrf.mxu0
        %v1766 = vadd.f32 %v1614, %v1765
        %v1767 = vpop.f32.mrf.mxu0
        %v1768 = vpop.f32.mrf.mxu0
        %v1769 = vadd.f32 %v1614, %v1768
        %v1770 = vpop.f32.mrf.mxu0
        %1771 = vmatprep.mubr.bf16.mxu0 0
        %1772 = vmatmul.mubr.bf16.gmra.mxu0 %v1263
        %v1773 = vpop.f32.mrf.mxu0
        %v1774 = vadd.f32 %v1614, %v1773
        %v1775 = vpop.f32.mrf.mxu0
        %v1776 = vpop.f32.mrf.mxu0
        %v1777 = vadd.f32 %v1614, %v1776
        %v1778 = vpop.f32.mrf.mxu0
        %1779 = vdwg.mxu0
        %1812 = vrot.lane.b32.xlu0 %v1304, 126
        %v1813 = vpop.permute.xlu0 %1812
        %1814 = vrot.lane.b32.xlu0 %v1307, 126
        %v1815 = vpop.permute.xlu0 %1814
        %1816 = vrot.lane.b32.xlu0 %v1312, 126
        %v1817 = vpop.permute.xlu0 %1816
        %1818 = vrot.lane.b32.xlu0 %v1315, 126
        %v1819 = vpop.permute.xlu0 %1818
        %1820 = vrot.lane.b32.xlu0 %v1320, 126
        %v1821 = vpop.permute.xlu0 %1820
        %1822 = vrot.lane.b32.xlu0 %v1323, 126
        %v1823 = vpop.permute.xlu0 %1822
        %1824 = vrot.lane.b32.xlu0 %v1328, 126
        %v1825 = vpop.permute.xlu0 %1824
        %1826 = vrot.lane.b32.xlu0 %v1331, 126
        %v1827 = vpop.permute.xlu0 %1826
        %1828 = vrot.lane.b32.xlu0 %v1336, 126
        %v1829 = vpop.permute.xlu0 %1828
        %1830 = vrot.lane.b32.xlu0 %v1339, 126
        %v1831 = vpop.permute.xlu0 %1830
        %1832 = vrot.lane.b32.xlu0 %v1344, 126
        %v1833 = vpop.permute.xlu0 %1832
        %1834 = vrot.lane.b32.xlu0 %v1347, 126
        %v1835 = vpop.permute.xlu0 %1834
        %1836 = vrot.lane.b32.xlu0 %v1352, 126
        %v1837 = vpop.permute.xlu0 %1836
        %1838 = vrot.lane.b32.xlu0 %v1355, 126
        %v1839 = vpop.permute.xlu0 %1838
        %1840 = vrot.lane.b32.xlu0 %v1360, 126
        %v1841 = vpop.permute.xlu0 %1840
        %1842 = vrot.lane.b32.xlu0 %v1363, 126
        %v1843 = vpop.permute.xlu0 %1842
        %1844 = vrot.lane.b32.xlu0 %v1368, 126
        %v1845 = vpop.permute.xlu0 %1844
        %1846 = vrot.lane.b32.xlu0 %v1371, 126
        %v1847 = vpop.permute.xlu0 %1846
        %1848 = vrot.lane.b32.xlu0 %v1376, 126
        %v1849 = vpop.permute.xlu0 %1848
        %1850 = vrot.lane.b32.xlu0 %v1379, 126
        %v1851 = vpop.permute.xlu0 %1850
        %1852 = vrot.lane.b32.xlu0 %v1384, 126
        %v1853 = vpop.permute.xlu0 %1852
        %1854 = vrot.lane.b32.xlu0 %v1387, 126
        %v1855 = vpop.permute.xlu0 %1854
        %1856 = vrot.lane.b32.xlu0 %v1392, 126
        %v1857 = vpop.permute.xlu0 %1856
        %1858 = vrot.lane.b32.xlu0 %v1395, 126
        %v1859 = vpop.permute.xlu0 %1858
        %1860 = vrot.lane.b32.xlu0 %v1400, 126
        %v1861 = vpop.permute.xlu0 %1860
        %1862 = vrot.lane.b32.xlu0 %v1403, 126
        %v1863 = vpop.permute.xlu0 %1862
        %1864 = vrot.lane.b32.xlu0 %v1408, 126
        %v1865 = vpop.permute.xlu0 %1864
        %1866 = vrot.lane.b32.xlu0 %v1411, 126
        %v1867 = vpop.permute.xlu0 %1866
        %1868 = vrot.lane.b32.xlu0 %v1416, 126
        %v1869 = vpop.permute.xlu0 %1868
        %1870 = vrot.lane.b32.xlu0 %v1419, 126
        %v1871 = vpop.permute.xlu0 %1870
        %1872 = vrot.lane.b32.xlu0 %v1424, 126
        %v1873 = vpop.permute.xlu0 %1872
        %1874 = vrot.lane.b32.xlu0 %v1427, 126
        %v1875 = vpop.permute.xlu0 %1874
        %v1908 = vpack.c.bf16 %v1307, %v1304
        %v1909 = vpack.c.bf16 %v1315, %v1312
        %v1910 = vpack.c.bf16 %v1323, %v1320
        %v1911 = vpack.c.bf16 %v1331, %v1328
        %v1912 = vpack.c.bf16 %v1339, %v1336
        %v1913 = vpack.c.bf16 %v1347, %v1344
        %v1914 = vpack.c.bf16 %v1355, %v1352
        %v1915 = vpack.c.bf16 %v1363, %v1360
        %v1916 = vpack.c.bf16 %v1371, %v1368
        %v1917 = vpack.c.bf16 %v1379, %v1376
        %v1918 = vpack.c.bf16 %v1387, %v1384
        %v1919 = vpack.c.bf16 %v1395, %v1392
        %v1920 = vpack.c.bf16 %v1403, %v1400
        %v1921 = vpack.c.bf16 %v1411, %v1408
        %v1922 = vpack.c.bf16 %v1419, %v1416
        %v1923 = vpack.c.bf16 %v1427, %v1424
        %v1924 = vpack.c.bf16 %v1815, %v1813
        %v1925 = vpack.c.bf16 %v1819, %v1817
        %v1926 = vpack.c.bf16 %v1823, %v1821
        %v1927 = vpack.c.bf16 %v1827, %v1825
        %v1928 = vpack.c.bf16 %v1831, %v1829
        %v1929 = vpack.c.bf16 %v1835, %v1833
        %v1930 = vpack.c.bf16 %v1839, %v1837
        %v1931 = vpack.c.bf16 %v1843, %v1841
        %v1932 = vpack.c.bf16 %v1847, %v1845
        %v1933 = vpack.c.bf16 %v1851, %v1849
        %v1934 = vpack.c.bf16 %v1855, %v1853
        %v1935 = vpack.c.bf16 %v1859, %v1857
        %v1936 = vpack.c.bf16 %v1863, %v1861
        %v1937 = vpack.c.bf16 %v1867, %v1865
        %v1938 = vpack.c.bf16 %v1871, %v1869
        %v1939 = vpack.c.bf16 %v1875, %v1873
        %1972 = vrot.lane.b32.xlu0 %v1479, 126
        %v1973 = vpop.permute.xlu0 %1972
        %1974 = vrot.lane.b32.xlu0 %v1482, 126
        %v1975 = vpop.permute.xlu0 %1974
        %1976 = vrot.lane.b32.xlu0 %v1487, 126
        %v1977 = vpop.permute.xlu0 %1976
        %1978 = vrot.lane.b32.xlu0 %v1490, 126
        %v1979 = vpop.permute.xlu0 %1978
        %1980 = vrot.lane.b32.xlu0 %v1495, 126
        %v1981 = vpop.permute.xlu0 %1980
        %1982 = vrot.lane.b32.xlu0 %v1498, 126
        %v1983 = vpop.permute.xlu0 %1982
        %1984 = vrot.lane.b32.xlu0 %v1503, 126
        %v1985 = vpop.permute.xlu0 %1984
        %1986 = vrot.lane.b32.xlu0 %v1506, 126
        %v1987 = vpop.permute.xlu0 %1986
        %1988 = vrot.lane.b32.xlu0 %v1511, 126
        %v1989 = vpop.permute.xlu0 %1988
        %1990 = vrot.lane.b32.xlu0 %v1514, 126
        %v1991 = vpop.permute.xlu0 %1990
        %1992 = vrot.lane.b32.xlu0 %v1519, 126
        %v1993 = vpop.permute.xlu0 %1992
        %1994 = vrot.lane.b32.xlu0 %v1522, 126
        %v1995 = vpop.permute.xlu0 %1994
        %1996 = vrot.lane.b32.xlu0 %v1527, 126
        %v1997 = vpop.permute.xlu0 %1996
        %1998 = vrot.lane.b32.xlu0 %v1530, 126
        %v1999 = vpop.permute.xlu0 %1998
        %2000 = vrot.lane.b32.xlu0 %v1535, 126
        %v2001 = vpop.permute.xlu0 %2000
        %2002 = vrot.lane.b32.xlu0 %v1538, 126
        %v2003 = vpop.permute.xlu0 %2002
        %2004 = vrot.lane.b32.xlu0 %v1543, 126
        %v2005 = vpop.permute.xlu0 %2004
        %2006 = vrot.lane.b32.xlu0 %v1546, 126
        %v2007 = vpop.permute.xlu0 %2006
        %2008 = vrot.lane.b32.xlu0 %v1551, 126
        %v2009 = vpop.permute.xlu0 %2008
        %2010 = vrot.lane.b32.xlu0 %v1554, 126
        %v2011 = vpop.permute.xlu0 %2010
        %2012 = vrot.lane.b32.xlu0 %v1559, 126
        %v2013 = vpop.permute.xlu0 %2012
        %2014 = vrot.lane.b32.xlu0 %v1562, 126
        %v2015 = vpop.permute.xlu0 %2014
        %2016 = vrot.lane.b32.xlu0 %v1567, 126
        %v2017 = vpop.permute.xlu0 %2016
        %2018 = vrot.lane.b32.xlu0 %v1570, 126
        %v2019 = vpop.permute.xlu0 %2018
        %2020 = vrot.lane.b32.xlu0 %v1575, 126
        %v2021 = vpop.permute.xlu0 %2020
        %2022 = vrot.lane.b32.xlu0 %v1578, 126
        %v2023 = vpop.permute.xlu0 %2022
        %2024 = vrot.lane.b32.xlu0 %v1583, 126
        %v2025 = vpop.permute.xlu0 %2024
        %2026 = vrot.lane.b32.xlu0 %v1586, 126
        %v2027 = vpop.permute.xlu0 %2026
        %2028 = vrot.lane.b32.xlu0 %v1591, 126
        %v2029 = vpop.permute.xlu0 %2028
        %2030 = vrot.lane.b32.xlu0 %v1594, 126
        %v2031 = vpop.permute.xlu0 %2030
        %2032 = vrot.lane.b32.xlu0 %v1599, 126
        %v2033 = vpop.permute.xlu0 %2032
        %2034 = vrot.lane.b32.xlu0 %v1602, 126
        %v2035 = vpop.permute.xlu0 %2034
        %v2068 = vpack.c.bf16 %v1482, %v1479
        %v2069 = vpack.c.bf16 %v1490, %v1487
        %v2070 = vpack.c.bf16 %v1498, %v1495
        %v2071 = vpack.c.bf16 %v1506, %v1503
        %v2072 = vpack.c.bf16 %v1514, %v1511
        %v2073 = vpack.c.bf16 %v1522, %v1519
        %v2074 = vpack.c.bf16 %v1530, %v1527
        %v2075 = vpack.c.bf16 %v1538, %v1535
        %v2076 = vpack.c.bf16 %v1546, %v1543
        %v2077 = vpack.c.bf16 %v1554, %v1551
        %v2078 = vpack.c.bf16 %v1562, %v1559
        %v2079 = vpack.c.bf16 %v1570, %v1567
        %v2080 = vpack.c.bf16 %v1578, %v1575
        %v2081 = vpack.c.bf16 %v1586, %v1583
        %v2082 = vpack.c.bf16 %v1594, %v1591
        %v2083 = vpack.c.bf16 %v1602, %v1599
        %v2084 = vpack.c.bf16 %v1975, %v1973
        %v2085 = vpack.c.bf16 %v1979, %v1977
        %v2086 = vpack.c.bf16 %v1983, %v1981
        %v2087 = vpack.c.bf16 %v1987, %v1985
        %v2088 = vpack.c.bf16 %v1991, %v1989
        %v2089 = vpack.c.bf16 %v1995, %v1993
        %v2090 = vpack.c.bf16 %v1999, %v1997
        %v2091 = vpack.c.bf16 %v2003, %v2001
        %v2092 = vpack.c.bf16 %v2007, %v2005
        %v2093 = vpack.c.bf16 %v2011, %v2009
        %v2094 = vpack.c.bf16 %v2015, %v2013
        %v2095 = vpack.c.bf16 %v2019, %v2017
        %v2096 = vpack.c.bf16 %v2023, %v2021
        %v2097 = vpack.c.bf16 %v2027, %v2025
        %v2098 = vpack.c.bf16 %v2031, %v2029
        %v2099 = vpack.c.bf16 %v2035, %v2033
        %2132 = vrot.lane.b32.xlu0 %v1654, 126
        %v2133 = vpop.permute.xlu0 %2132
        %2134 = vrot.lane.b32.xlu0 %v1657, 126
        %v2135 = vpop.permute.xlu0 %2134
        %2136 = vrot.lane.b32.xlu0 %v1662, 126
        %v2137 = vpop.permute.xlu0 %2136
        %2138 = vrot.lane.b32.xlu0 %v1665, 126
        %v2139 = vpop.permute.xlu0 %2138
        %2140 = vrot.lane.b32.xlu0 %v1670, 126
        %v2141 = vpop.permute.xlu0 %2140
        %2142 = vrot.lane.b32.xlu0 %v1673, 126
        %v2143 = vpop.permute.xlu0 %2142
        %2144 = vrot.lane.b32.xlu0 %v1678, 126
        %v2145 = vpop.permute.xlu0 %2144
        %2146 = vrot.lane.b32.xlu0 %v1681, 126
        %v2147 = vpop.permute.xlu0 %2146
        %2148 = vrot.lane.b32.xlu0 %v1686, 126
        %v2149 = vpop.permute.xlu0 %2148
        %2150 = vrot.lane.b32.xlu0 %v1689, 126
        %v2151 = vpop.permute.xlu0 %2150
        %2152 = vrot.lane.b32.xlu0 %v1694, 126
        %v2153 = vpop.permute.xlu0 %2152
        %2154 = vrot.lane.b32.xlu0 %v1697, 126
        %v2155 = vpop.permute.xlu0 %2154
        %2156 = vrot.lane.b32.xlu0 %v1702, 126
        %v2157 = vpop.permute.xlu0 %2156
        %2158 = vrot.lane.b32.xlu0 %v1705, 126
        %v2159 = vpop.permute.xlu0 %2158
        %2160 = vrot.lane.b32.xlu0 %v1710, 126
        %v2161 = vpop.permute.xlu0 %2160
        %2162 = vrot.lane.b32.xlu0 %v1713, 126
        %v2163 = vpop.permute.xlu0 %2162
        %2164 = vrot.lane.b32.xlu0 %v1718, 126
        %v2165 = vpop.permute.xlu0 %2164
        %2166 = vrot.lane.b32.xlu0 %v1721, 126
        %v2167 = vpop.permute.xlu0 %2166
        %2168 = vrot.lane.b32.xlu0 %v1726, 126
        %v2169 = vpop.permute.xlu0 %2168
        %2170 = vrot.lane.b32.xlu0 %v1729, 126
        %v2171 = vpop.permute.xlu0 %2170
        %2172 = vrot.lane.b32.xlu0 %v1734, 126
        %v2173 = vpop.permute.xlu0 %2172
        %2174 = vrot.lane.b32.xlu0 %v1737, 126
        %v2175 = vpop.permute.xlu0 %2174
        %2176 = vrot.lane.b32.xlu0 %v1742, 126
        %v2177 = vpop.permute.xlu0 %2176
        %2178 = vrot.lane.b32.xlu0 %v1745, 126
        %v2179 = vpop.permute.xlu0 %2178
        %2180 = vrot.lane.b32.xlu0 %v1750, 126
        %v2181 = vpop.permute.xlu0 %2180
        %2182 = vrot.lane.b32.xlu0 %v1753, 126
        %v2183 = vpop.permute.xlu0 %2182
        %2184 = vrot.lane.b32.xlu0 %v1758, 126
        %v2185 = vpop.permute.xlu0 %2184
        %2186 = vrot.lane.b32.xlu0 %v1761, 126
        %v2187 = vpop.permute.xlu0 %2186
        %2188 = vrot.lane.b32.xlu0 %v1766, 126
        %v2189 = vpop.permute.xlu0 %2188
        %2190 = vrot.lane.b32.xlu0 %v1769, 126
        %v2191 = vpop.permute.xlu0 %2190
        %2192 = vrot.lane.b32.xlu0 %v1774, 126
        %v2193 = vpop.permute.xlu0 %2192
        %2194 = vrot.lane.b32.xlu0 %v1777, 126
        %v2195 = vpop.permute.xlu0 %2194
        %v2228 = vpack.c.bf16 %v1657, %v1654
        %v2229 = vpack.c.bf16 %v1665, %v1662
        %v2230 = vpack.c.bf16 %v1673, %v1670
        %v2231 = vpack.c.bf16 %v1681, %v1678
        %v2232 = vpack.c.bf16 %v1689, %v1686
        %v2233 = vpack.c.bf16 %v1697, %v1694
        %v2234 = vpack.c.bf16 %v1705, %v1702
        %v2235 = vpack.c.bf16 %v1713, %v1710
        %v2236 = vpack.c.bf16 %v1721, %v1718
        %v2237 = vpack.c.bf16 %v1729, %v1726
        %v2238 = vpack.c.bf16 %v1737, %v1734
        %v2239 = vpack.c.bf16 %v1745, %v1742
        %v2240 = vpack.c.bf16 %v1753, %v1750
        %v2241 = vpack.c.bf16 %v1761, %v1758
        %v2242 = vpack.c.bf16 %v1769, %v1766
        %v2243 = vpack.c.bf16 %v1777, %v1774
        %v2244 = vpack.c.bf16 %v2135, %v2133
        %v2245 = vpack.c.bf16 %v2139, %v2137
        %v2246 = vpack.c.bf16 %v2143, %v2141
        %v2247 = vpack.c.bf16 %v2147, %v2145
        %v2248 = vpack.c.bf16 %v2151, %v2149
        %v2249 = vpack.c.bf16 %v2155, %v2153
        %v2250 = vpack.c.bf16 %v2159, %v2157
        %v2251 = vpack.c.bf16 %v2163, %v2161
        %v2252 = vpack.c.bf16 %v2167, %v2165
        %v2253 = vpack.c.bf16 %v2171, %v2169
        %v2254 = vpack.c.bf16 %v2175, %v2173
        %v2255 = vpack.c.bf16 %v2179, %v2177
        %v2256 = vpack.c.bf16 %v2183, %v2181
        %v2257 = vpack.c.bf16 %v2187, %v2185
        %v2258 = vpack.c.bf16 %v2191, %v2189
        %v2259 = vpack.c.bf16 %v2195, %v2193
        %vm2260 = vcmask 15360
        %v2262 = vsel %vm2260, %v1908, 0
        %v2265 = vsel %vm2260, %v2068, 0
        %2267 = vmatprep.subr.bf16.mxu0 0
        %2268 = vmatpush1.bf16.xpose.msra.mxu0 0
        %2269 = vmatprep.subr.bf16.mxu0 0
        %2270 = vmatpush1.bf16.xpose.msra.mxu0 0
        %2271 = vmatprep.subr.bf16.mxu0 0
        %2272 = vmatpush1.bf16.xpose.msra.mxu0 0
        %2273 = vmatprep.subr.bf16.mxu0 0
        %2274 = vmatpush1.bf16.xpose.msra.mxu0 0
        %2275 = vmatprep.subr.bf16.mxu0 0
        %2276 = vmatpush1.bf16.xpose.msra.mxu0 0
        %2277 = vmatprep.subr.bf16.mxu0 0
        %2278 = vmatpush1.bf16.xpose.msra.mxu0 0
        %2279 = vmatprep.subr.bf16.mxu0 0
        %2280 = vmatpush1.bf16.xpose.msra.mxu0 0
        %2281 = vmatprep.subr.bf16.mxu0 0
        %2282 = vmatpush1.bf16.xpose.msra.mxu0 %v2265
        %2283 = vmatprep.subr.bf16.mxu0 0
        %2284 = vmatpush2.bf16.xpose.msra.mxu0 0
        %2285 = vmatprep.subr.bf16.mxu0 0
        %2286 = vmatpush2.bf16.xpose.msra.mxu0 0
        %2287 = vmatprep.subr.bf16.mxu0 0
        %2288 = vmatpush2.bf16.xpose.msra.mxu0 0
        %2289 = vmatprep.subr.bf16.mxu0 0
        %2290 = vmatpush2.bf16.xpose.msra.mxu0 0
        %2291 = vmatprep.subr.bf16.mxu0 0
        %2292 = vmatpush2.bf16.xpose.msra.mxu0 0
        %2293 = vmatprep.subr.bf16.mxu0 0
        %2294 = vmatpush2.bf16.xpose.msra.mxu0 0
        %2295 = vmatprep.subr.bf16.mxu0 0
        %2296 = vmatpush2.bf16.xpose.msra.mxu0 0
        %2297 = vmatprep.subr.bf16.mxu0 0
        %2298 = vmatpush2.bf16.xpose.msra.mxu0 0
        %2299 = vmatprep.mubr.bf16.mxu0 0
        %2300 = vmatmul.mubr.bf16.gmra.mxu0 %v2262
        %v2301 = vpop.f32.mrf.mxu0
        %v2302 = vadd.f32 0.0, %v2301
        %v2303 = vpop.f32.mrf.mxu0
        %v2304 = vpop.f32.mrf.mxu0
        %v2305 = vadd.f32 0.0, %v2304
        %v2306 = vpop.f32.mrf.mxu0
        %2307 = vdwg.mxu0
        %v2309 = vsel %vm2260, %v1909, 0
        %v2312 = vsel %vm2260, %v2069, 0
        %2314 = vmatprep.subr.bf16.mxu0 0
        %2315 = vmatpush1.bf16.xpose.msra.mxu0 0
        %2316 = vmatprep.subr.bf16.mxu0 0
        %2317 = vmatpush1.bf16.xpose.msra.mxu0 0
        %2318 = vmatprep.subr.bf16.mxu0 0
        %2319 = vmatpush1.bf16.xpose.msra.mxu0 0
        %2320 = vmatprep.subr.bf16.mxu0 0
        %2321 = vmatpush1.bf16.xpose.msra.mxu0 0
        %2322 = vmatprep.subr.bf16.mxu0 0
        %2323 = vmatpush1.bf16.xpose.msra.mxu0 0
        %2324 = vmatprep.subr.bf16.mxu0 0
        %2325 = vmatpush1.bf16.xpose.msra.mxu0 0
        %2326 = vmatprep.subr.bf16.mxu0 0
        %2327 = vmatpush1.bf16.xpose.msra.mxu0 0
        %2328 = vmatprep.subr.bf16.mxu0 0
        %2329 = vmatpush1.bf16.xpose.msra.mxu0 %v2312
        %2330 = vmatprep.subr.bf16.mxu0 0
        %2331 = vmatpush2.bf16.xpose.msra.mxu0 0
        %2332 = vmatprep.subr.bf16.mxu0 0
        %2333 = vmatpush2.bf16.xpose.msra.mxu0 0
        %2334 = vmatprep.subr.bf16.mxu0 0
        %2335 = vmatpush2.bf16.xpose.msra.mxu0 0
        %2336 = vmatprep.subr.bf16.mxu0 0
        %2337 = vmatpush2.bf16.xpose.msra.mxu0 0
        %2338 = vmatprep.subr.bf16.mxu0 0
        %2339 = vmatpush2.bf16.xpose.msra.mxu0 0
        %2340 = vmatprep.subr.bf16.mxu0 0
        %2341 = vmatpush2.bf16.xpose.msra.mxu0 0
        %2342 = vmatprep.subr.bf16.mxu0 0
        %2343 = vmatpush2.bf16.xpose.msra.mxu0 0
        %2344 = vmatprep.subr.bf16.mxu0 0
        %2345 = vmatpush2.bf16.xpose.msra.mxu0 0
        %2346 = vmatprep.mubr.bf16.mxu0 0
        %2347 = vmatmul.mubr.bf16.gmra.mxu0 %v2309
        %v2348 = vpop.f32.mrf.mxu0
        %v2349 = vadd.f32 0.0, %v2348
        %v2350 = vpop.f32.mrf.mxu0
        %v2351 = vpop.f32.mrf.mxu0
        %v2352 = vadd.f32 0.0, %v2351
        %v2353 = vpop.f32.mrf.mxu0
        %2354 = vdwg.mxu0
        %v2356 = vsel %vm2260, %v1910, 0
        %v2359 = vsel %vm2260, %v2070, 0
        %2361 = vmatprep.subr.bf16.mxu0 0
        %2362 = vmatpush1.bf16.xpose.msra.mxu0 0
        %2363 = vmatprep.subr.bf16.mxu0 0
        %2364 = vmatpush1.bf16.xpose.msra.mxu0 0
        %2365 = vmatprep.subr.bf16.mxu0 0
        %2366 = vmatpush1.bf16.xpose.msra.mxu0 0
        %2367 = vmatprep.subr.bf16.mxu0 0
        %2368 = vmatpush1.bf16.xpose.msra.mxu0 0
        %2369 = vmatprep.subr.bf16.mxu0 0
        %2370 = vmatpush1.bf16.xpose.msra.mxu0 0
        %2371 = vmatprep.subr.bf16.mxu0 0
        %2372 = vmatpush1.bf16.xpose.msra.mxu0 0
        %2373 = vmatprep.subr.bf16.mxu0 0
        %2374 = vmatpush1.bf16.xpose.msra.mxu0 0
        %2375 = vmatprep.subr.bf16.mxu0 0
        %2376 = vmatpush1.bf16.xpose.msra.mxu0 %v2359
        %2377 = vmatprep.subr.bf16.mxu0 0
        %2378 = vmatpush2.bf16.xpose.msra.mxu0 0
        %2379 = vmatprep.subr.bf16.mxu0 0
        %2380 = vmatpush2.bf16.xpose.msra.mxu0 0
        %2381 = vmatprep.subr.bf16.mxu0 0
        %2382 = vmatpush2.bf16.xpose.msra.mxu0 0
        %2383 = vmatprep.subr.bf16.mxu0 0
        %2384 = vmatpush2.bf16.xpose.msra.mxu0 0
        %2385 = vmatprep.subr.bf16.mxu0 0
        %2386 = vmatpush2.bf16.xpose.msra.mxu0 0
        %2387 = vmatprep.subr.bf16.mxu0 0
        %2388 = vmatpush2.bf16.xpose.msra.mxu0 0
        %2389 = vmatprep.subr.bf16.mxu0 0
        %2390 = vmatpush2.bf16.xpose.msra.mxu0 0
        %2391 = vmatprep.subr.bf16.mxu0 0
        %2392 = vmatpush2.bf16.xpose.msra.mxu0 0
        %2393 = vmatprep.mubr.bf16.mxu0 0
        %2394 = vmatmul.mubr.bf16.gmra.mxu0 %v2356
        %v2395 = vpop.f32.mrf.mxu0
        %v2396 = vadd.f32 0.0, %v2395
        %v2397 = vpop.f32.mrf.mxu0
        %v2398 = vpop.f32.mrf.mxu0
        %v2399 = vadd.f32 0.0, %v2398
        %v2400 = vpop.f32.mrf.mxu0
        %2401 = vdwg.mxu0
        %v2403 = vsel %vm2260, %v1911, 0
        %v2406 = vsel %vm2260, %v2071, 0
        %2408 = vmatprep.subr.bf16.mxu0 0
        %2409 = vmatpush1.bf16.xpose.msra.mxu0 0
        %2410 = vmatprep.subr.bf16.mxu0 0
        %2411 = vmatpush1.bf16.xpose.msra.mxu0 0
        %2412 = vmatprep.subr.bf16.mxu0 0
        %2413 = vmatpush1.bf16.xpose.msra.mxu0 0
        %2414 = vmatprep.subr.bf16.mxu0 0
        %2415 = vmatpush1.bf16.xpose.msra.mxu0 0
        %2416 = vmatprep.subr.bf16.mxu0 0
        %2417 = vmatpush1.bf16.xpose.msra.mxu0 0
        %2418 = vmatprep.subr.bf16.mxu0 0
        %2419 = vmatpush1.bf16.xpose.msra.mxu0 0
        %2420 = vmatprep.subr.bf16.mxu0 0
        %2421 = vmatpush1.bf16.xpose.msra.mxu0 0
        %2422 = vmatprep.subr.bf16.mxu0 0
        %2423 = vmatpush1.bf16.xpose.msra.mxu0 %v2406
        %2424 = vmatprep.subr.bf16.mxu0 0
        %2425 = vmatpush2.bf16.xpose.msra.mxu0 0
        %2426 = vmatprep.subr.bf16.mxu0 0
        %2427 = vmatpush2.bf16.xpose.msra.mxu0 0
        %2428 = vmatprep.subr.bf16.mxu0 0
        %2429 = vmatpush2.bf16.xpose.msra.mxu0 0
        %2430 = vmatprep.subr.bf16.mxu0 0
        %2431 = vmatpush2.bf16.xpose.msra.mxu0 0
        %2432 = vmatprep.subr.bf16.mxu0 0
        %2433 = vmatpush2.bf16.xpose.msra.mxu0 0
        %2434 = vmatprep.subr.bf16.mxu0 0
        %2435 = vmatpush2.bf16.xpose.msra.mxu0 0
        %2436 = vmatprep.subr.bf16.mxu0 0
        %2437 = vmatpush2.bf16.xpose.msra.mxu0 0
        %2438 = vmatprep.subr.bf16.mxu0 0
        %2439 = vmatpush2.bf16.xpose.msra.mxu0 0
        %2440 = vmatprep.mubr.bf16.mxu0 0
        %2441 = vmatmul.mubr.bf16.gmra.mxu0 %v2403
        %v2442 = vpop.f32.mrf.mxu0
        %v2443 = vadd.f32 0.0, %v2442
        %v2444 = vpop.f32.mrf.mxu0
        %v2445 = vpop.f32.mrf.mxu0
        %v2446 = vadd.f32 0.0, %v2445
        %v2447 = vpop.f32.mrf.mxu0
        %2448 = vdwg.mxu0
        %v2450 = vsel %vm2260, %v1912, 0
        %v2453 = vsel %vm2260, %v2072, 0
        %2455 = vmatprep.subr.bf16.mxu0 0
        %2456 = vmatpush1.bf16.xpose.msra.mxu0 0
        %2457 = vmatprep.subr.bf16.mxu0 0
        %2458 = vmatpush1.bf16.xpose.msra.mxu0 0
        %2459 = vmatprep.subr.bf16.mxu0 0
        %2460 = vmatpush1.bf16.xpose.msra.mxu0 0
        %2461 = vmatprep.subr.bf16.mxu0 0
        %2462 = vmatpush1.bf16.xpose.msra.mxu0 0
        %2463 = vmatprep.subr.bf16.mxu0 0
        %2464 = vmatpush1.bf16.xpose.msra.mxu0 0
        %2465 = vmatprep.subr.bf16.mxu0 0
        %2466 = vmatpush1.bf16.xpose.msra.mxu0 0
        %2467 = vmatprep.subr.bf16.mxu0 0
        %2468 = vmatpush1.bf16.xpose.msra.mxu0 0
        %2469 = vmatprep.subr.bf16.mxu0 0
        %2470 = vmatpush1.bf16.xpose.msra.mxu0 %v2453
        %2471 = vmatprep.subr.bf16.mxu0 0
        %2472 = vmatpush2.bf16.xpose.msra.mxu0 0
        %2473 = vmatprep.subr.bf16.mxu0 0
        %2474 = vmatpush2.bf16.xpose.msra.mxu0 0
        %2475 = vmatprep.subr.bf16.mxu0 0
        %2476 = vmatpush2.bf16.xpose.msra.mxu0 0
        %2477 = vmatprep.subr.bf16.mxu0 0
        %2478 = vmatpush2.bf16.xpose.msra.mxu0 0
        %2479 = vmatprep.subr.bf16.mxu0 0
        %2480 = vmatpush2.bf16.xpose.msra.mxu0 0
        %2481 = vmatprep.subr.bf16.mxu0 0
        %2482 = vmatpush2.bf16.xpose.msra.mxu0 0
        %2483 = vmatprep.subr.bf16.mxu0 0
        %2484 = vmatpush2.bf16.xpose.msra.mxu0 0
        %2485 = vmatprep.subr.bf16.mxu0 0
        %2486 = vmatpush2.bf16.xpose.msra.mxu0 0
        %2487 = vmatprep.mubr.bf16.mxu0 0
        %2488 = vmatmul.mubr.bf16.gmra.mxu0 %v2450
        %v2489 = vpop.f32.mrf.mxu0
        %v2490 = vadd.f32 0.0, %v2489
        %v2491 = vpop.f32.mrf.mxu0
        %v2492 = vpop.f32.mrf.mxu0
        %v2493 = vadd.f32 0.0, %v2492
        %v2494 = vpop.f32.mrf.mxu0
        %2495 = vdwg.mxu0
        %v2497 = vsel %vm2260, %v1913, 0
        %v2500 = vsel %vm2260, %v2073, 0
        %2502 = vmatprep.subr.bf16.mxu0 0
        %2503 = vmatpush1.bf16.xpose.msra.mxu0 0
        %2504 = vmatprep.subr.bf16.mxu0 0
        %2505 = vmatpush1.bf16.xpose.msra.mxu0 0
        %2506 = vmatprep.subr.bf16.mxu0 0
        %2507 = vmatpush1.bf16.xpose.msra.mxu0 0
        %2508 = vmatprep.subr.bf16.mxu0 0
        %2509 = vmatpush1.bf16.xpose.msra.mxu0 0
        %2510 = vmatprep.subr.bf16.mxu0 0
        %2511 = vmatpush1.bf16.xpose.msra.mxu0 0
        %2512 = vmatprep.subr.bf16.mxu0 0
        %2513 = vmatpush1.bf16.xpose.msra.mxu0 0
        %2514 = vmatprep.subr.bf16.mxu0 0
        %2515 = vmatpush1.bf16.xpose.msra.mxu0 0
        %2516 = vmatprep.subr.bf16.mxu0 0
        %2517 = vmatpush1.bf16.xpose.msra.mxu0 %v2500
        %2518 = vmatprep.subr.bf16.mxu0 0
        %2519 = vmatpush2.bf16.xpose.msra.mxu0 0
        %2520 = vmatprep.subr.bf16.mxu0 0
        %2521 = vmatpush2.bf16.xpose.msra.mxu0 0
        %2522 = vmatprep.subr.bf16.mxu0 0
        %2523 = vmatpush2.bf16.xpose.msra.mxu0 0
        %2524 = vmatprep.subr.bf16.mxu0 0
        %2525 = vmatpush2.bf16.xpose.msra.mxu0 0
        %2526 = vmatprep.subr.bf16.mxu0 0
        %2527 = vmatpush2.bf16.xpose.msra.mxu0 0
        %2528 = vmatprep.subr.bf16.mxu0 0
        %2529 = vmatpush2.bf16.xpose.msra.mxu0 0
        %2530 = vmatprep.subr.bf16.mxu0 0
        %2531 = vmatpush2.bf16.xpose.msra.mxu0 0
        %2532 = vmatprep.subr.bf16.mxu0 0
        %2533 = vmatpush2.bf16.xpose.msra.mxu0 0
        %2534 = vmatprep.mubr.bf16.mxu0 0
        %2535 = vmatmul.mubr.bf16.gmra.mxu0 %v2497
        %v2536 = vpop.f32.mrf.mxu0
        %v2537 = vadd.f32 0.0, %v2536
        %v2538 = vpop.f32.mrf.mxu0
        %v2539 = vpop.f32.mrf.mxu0
        %v2540 = vadd.f32 0.0, %v2539
        %v2541 = vpop.f32.mrf.mxu0
        %2542 = vdwg.mxu0
        %v2544 = vsel %vm2260, %v1914, 0
        %v2547 = vsel %vm2260, %v2074, 0
        %2549 = vmatprep.subr.bf16.mxu0 0
        %2550 = vmatpush1.bf16.xpose.msra.mxu0 0
        %2551 = vmatprep.subr.bf16.mxu0 0
        %2552 = vmatpush1.bf16.xpose.msra.mxu0 0
        %2553 = vmatprep.subr.bf16.mxu0 0
        %2554 = vmatpush1.bf16.xpose.msra.mxu0 0
        %2555 = vmatprep.subr.bf16.mxu0 0
        %2556 = vmatpush1.bf16.xpose.msra.mxu0 0
        %2557 = vmatprep.subr.bf16.mxu0 0
        %2558 = vmatpush1.bf16.xpose.msra.mxu0 0
        %2559 = vmatprep.subr.bf16.mxu0 0
        %2560 = vmatpush1.bf16.xpose.msra.mxu0 0
        %2561 = vmatprep.subr.bf16.mxu0 0
        %2562 = vmatpush1.bf16.xpose.msra.mxu0 0
        %2563 = vmatprep.subr.bf16.mxu0 0
        %2564 = vmatpush1.bf16.xpose.msra.mxu0 %v2547
        %2565 = vmatprep.subr.bf16.mxu0 0
        %2566 = vmatpush2.bf16.xpose.msra.mxu0 0
        %2567 = vmatprep.subr.bf16.mxu0 0
        %2568 = vmatpush2.bf16.xpose.msra.mxu0 0
        %2569 = vmatprep.subr.bf16.mxu0 0
        %2570 = vmatpush2.bf16.xpose.msra.mxu0 0
        %2571 = vmatprep.subr.bf16.mxu0 0
        %2572 = vmatpush2.bf16.xpose.msra.mxu0 0
        %2573 = vmatprep.subr.bf16.mxu0 0
        %2574 = vmatpush2.bf16.xpose.msra.mxu0 0
        %2575 = vmatprep.subr.bf16.mxu0 0
        %2576 = vmatpush2.bf16.xpose.msra.mxu0 0
        %2577 = vmatprep.subr.bf16.mxu0 0
        %2578 = vmatpush2.bf16.xpose.msra.mxu0 0
        %2579 = vmatprep.subr.bf16.mxu0 0
        %2580 = vmatpush2.bf16.xpose.msra.mxu0 0
        %2581 = vmatprep.mubr.bf16.mxu0 0
        %2582 = vmatmul.mubr.bf16.gmra.mxu0 %v2544
        %v2583 = vpop.f32.mrf.mxu0
        %v2584 = vadd.f32 0.0, %v2583
        %v2585 = vpop.f32.mrf.mxu0
        %v2586 = vpop.f32.mrf.mxu0
        %v2587 = vadd.f32 0.0, %v2586
        %v2588 = vpop.f32.mrf.mxu0
        %2589 = vdwg.mxu0
        %v2591 = vsel %vm2260, %v1915, 0
        %v2594 = vsel %vm2260, %v2075, 0
        %2596 = vmatprep.subr.bf16.mxu0 0
        %2597 = vmatpush1.bf16.xpose.msra.mxu0 0
        %2598 = vmatprep.subr.bf16.mxu0 0
        %2599 = vmatpush1.bf16.xpose.msra.mxu0 0
        %2600 = vmatprep.subr.bf16.mxu0 0
        %2601 = vmatpush1.bf16.xpose.msra.mxu0 0
        %2602 = vmatprep.subr.bf16.mxu0 0
        %2603 = vmatpush1.bf16.xpose.msra.mxu0 0
        %2604 = vmatprep.subr.bf16.mxu0 0
        %2605 = vmatpush1.bf16.xpose.msra.mxu0 0
        %2606 = vmatprep.subr.bf16.mxu0 0
        %2607 = vmatpush1.bf16.xpose.msra.mxu0 0
        %2608 = vmatprep.subr.bf16.mxu0 0
        %2609 = vmatpush1.bf16.xpose.msra.mxu0 0
        %2610 = vmatprep.subr.bf16.mxu0 0
        %2611 = vmatpush1.bf16.xpose.msra.mxu0 %v2594
        %2612 = vmatprep.subr.bf16.mxu0 0
        %2613 = vmatpush2.bf16.xpose.msra.mxu0 0
        %2614 = vmatprep.subr.bf16.mxu0 0
        %2615 = vmatpush2.bf16.xpose.msra.mxu0 0
        %2616 = vmatprep.subr.bf16.mxu0 0
        %2617 = vmatpush2.bf16.xpose.msra.mxu0 0
        %2618 = vmatprep.subr.bf16.mxu0 0
        %2619 = vmatpush2.bf16.xpose.msra.mxu0 0
        %2620 = vmatprep.subr.bf16.mxu0 0
        %2621 = vmatpush2.bf16.xpose.msra.mxu0 0
        %2622 = vmatprep.subr.bf16.mxu0 0
        %2623 = vmatpush2.bf16.xpose.msra.mxu0 0
        %2624 = vmatprep.subr.bf16.mxu0 0
        %2625 = vmatpush2.bf16.xpose.msra.mxu0 0
        %2626 = vmatprep.subr.bf16.mxu0 0
        %2627 = vmatpush2.bf16.xpose.msra.mxu0 0
        %2628 = vmatprep.mubr.bf16.mxu0 0
        %2629 = vmatmul.mubr.bf16.gmra.mxu0 %v2591
        %v2630 = vpop.f32.mrf.mxu0
        %v2631 = vadd.f32 0.0, %v2630
        %v2632 = vpop.f32.mrf.mxu0
        %v2633 = vpop.f32.mrf.mxu0
        %v2634 = vadd.f32 0.0, %v2633
        %v2635 = vpop.f32.mrf.mxu0
        %2636 = vdwg.mxu0
        %v2638 = vsel %vm2260, %v1916, 0
        %v2641 = vsel %vm2260, %v2076, 0
        %2643 = vmatprep.subr.bf16.mxu0 0
        %2644 = vmatpush1.bf16.xpose.msra.mxu0 0
        %2645 = vmatprep.subr.bf16.mxu0 0
        %2646 = vmatpush1.bf16.xpose.msra.mxu0 0
        %2647 = vmatprep.subr.bf16.mxu0 0
        %2648 = vmatpush1.bf16.xpose.msra.mxu0 0
        %2649 = vmatprep.subr.bf16.mxu0 0
        %2650 = vmatpush1.bf16.xpose.msra.mxu0 0
        %2651 = vmatprep.subr.bf16.mxu0 0
        %2652 = vmatpush1.bf16.xpose.msra.mxu0 0
        %2653 = vmatprep.subr.bf16.mxu0 0
        %2654 = vmatpush1.bf16.xpose.msra.mxu0 0
        %2655 = vmatprep.subr.bf16.mxu0 0
        %2656 = vmatpush1.bf16.xpose.msra.mxu0 0
        %2657 = vmatprep.subr.bf16.mxu0 0
        %2658 = vmatpush1.bf16.xpose.msra.mxu0 %v2641
        %2659 = vmatprep.subr.bf16.mxu0 0
        %2660 = vmatpush2.bf16.xpose.msra.mxu0 0
        %2661 = vmatprep.subr.bf16.mxu0 0
        %2662 = vmatpush2.bf16.xpose.msra.mxu0 0
        %2663 = vmatprep.subr.bf16.mxu0 0
        %2664 = vmatpush2.bf16.xpose.msra.mxu0 0
        %2665 = vmatprep.subr.bf16.mxu0 0
        %2666 = vmatpush2.bf16.xpose.msra.mxu0 0
        %2667 = vmatprep.subr.bf16.mxu0 0
        %2668 = vmatpush2.bf16.xpose.msra.mxu0 0
        %2669 = vmatprep.subr.bf16.mxu0 0
        %2670 = vmatpush2.bf16.xpose.msra.mxu0 0
        %2671 = vmatprep.subr.bf16.mxu0 0
        %2672 = vmatpush2.bf16.xpose.msra.mxu0 0
        %2673 = vmatprep.subr.bf16.mxu0 0
        %2674 = vmatpush2.bf16.xpose.msra.mxu0 0
        %2675 = vmatprep.mubr.bf16.mxu0 0
        %2676 = vmatmul.mubr.bf16.gmra.mxu0 %v2638
        %v2677 = vpop.f32.mrf.mxu0
        %v2678 = vadd.f32 0.0, %v2677
        %v2679 = vpop.f32.mrf.mxu0
        %v2680 = vpop.f32.mrf.mxu0
        %v2681 = vadd.f32 0.0, %v2680
        %v2682 = vpop.f32.mrf.mxu0
        %2683 = vdwg.mxu0
        %v2685 = vsel %vm2260, %v1917, 0
        %v2688 = vsel %vm2260, %v2077, 0
        %2690 = vmatprep.subr.bf16.mxu0 0
        %2691 = vmatpush1.bf16.xpose.msra.mxu0 0
        %2692 = vmatprep.subr.bf16.mxu0 0
        %2693 = vmatpush1.bf16.xpose.msra.mxu0 0
        %2694 = vmatprep.subr.bf16.mxu0 0
        %2695 = vmatpush1.bf16.xpose.msra.mxu0 0
        %2696 = vmatprep.subr.bf16.mxu0 0
        %2697 = vmatpush1.bf16.xpose.msra.mxu0 0
        %2698 = vmatprep.subr.bf16.mxu0 0
        %2699 = vmatpush1.bf16.xpose.msra.mxu0 0
        %2700 = vmatprep.subr.bf16.mxu0 0
        %2701 = vmatpush1.bf16.xpose.msra.mxu0 0
        %2702 = vmatprep.subr.bf16.mxu0 0
        %2703 = vmatpush1.bf16.xpose.msra.mxu0 0
        %2704 = vmatprep.subr.bf16.mxu0 0
        %2705 = vmatpush1.bf16.xpose.msra.mxu0 %v2688
        %2706 = vmatprep.subr.bf16.mxu0 0
        %2707 = vmatpush2.bf16.xpose.msra.mxu0 0
        %2708 = vmatprep.subr.bf16.mxu0 0
        %2709 = vmatpush2.bf16.xpose.msra.mxu0 0
        %2710 = vmatprep.subr.bf16.mxu0 0
        %2711 = vmatpush2.bf16.xpose.msra.mxu0 0
        %2712 = vmatprep.subr.bf16.mxu0 0
        %2713 = vmatpush2.bf16.xpose.msra.mxu0 0
        %2714 = vmatprep.subr.bf16.mxu0 0
        %2715 = vmatpush2.bf16.xpose.msra.mxu0 0
        %2716 = vmatprep.subr.bf16.mxu0 0
        %2717 = vmatpush2.bf16.xpose.msra.mxu0 0
        %2718 = vmatprep.subr.bf16.mxu0 0
        %2719 = vmatpush2.bf16.xpose.msra.mxu0 0
        %2720 = vmatprep.subr.bf16.mxu0 0
        %2721 = vmatpush2.bf16.xpose.msra.mxu0 0
        %2722 = vmatprep.mubr.bf16.mxu0 0
        %2723 = vmatmul.mubr.bf16.gmra.mxu0 %v2685
        %v2724 = vpop.f32.mrf.mxu0
        %v2725 = vadd.f32 0.0, %v2724
        %v2726 = vpop.f32.mrf.mxu0
        %v2727 = vpop.f32.mrf.mxu0
        %v2728 = vadd.f32 0.0, %v2727
        %v2729 = vpop.f32.mrf.mxu0
        %2730 = vdwg.mxu0
        %v2732 = vsel %vm2260, %v1918, 0
        %v2735 = vsel %vm2260, %v2078, 0
        %2737 = vmatprep.subr.bf16.mxu0 0
        %2738 = vmatpush1.bf16.xpose.msra.mxu0 0
        %2739 = vmatprep.subr.bf16.mxu0 0
        %2740 = vmatpush1.bf16.xpose.msra.mxu0 0
        %2741 = vmatprep.subr.bf16.mxu0 0
        %2742 = vmatpush1.bf16.xpose.msra.mxu0 0
        %2743 = vmatprep.subr.bf16.mxu0 0
        %2744 = vmatpush1.bf16.xpose.msra.mxu0 0
        %2745 = vmatprep.subr.bf16.mxu0 0
        %2746 = vmatpush1.bf16.xpose.msra.mxu0 0
        %2747 = vmatprep.subr.bf16.mxu0 0
        %2748 = vmatpush1.bf16.xpose.msra.mxu0 0
        %2749 = vmatprep.subr.bf16.mxu0 0
        %2750 = vmatpush1.bf16.xpose.msra.mxu0 0
        %2751 = vmatprep.subr.bf16.mxu0 0
        %2752 = vmatpush1.bf16.xpose.msra.mxu0 %v2735
        %2753 = vmatprep.subr.bf16.mxu0 0
        %2754 = vmatpush2.bf16.xpose.msra.mxu0 0
        %2755 = vmatprep.subr.bf16.mxu0 0
        %2756 = vmatpush2.bf16.xpose.msra.mxu0 0
        %2757 = vmatprep.subr.bf16.mxu0 0
        %2758 = vmatpush2.bf16.xpose.msra.mxu0 0
        %2759 = vmatprep.subr.bf16.mxu0 0
        %2760 = vmatpush2.bf16.xpose.msra.mxu0 0
        %2761 = vmatprep.subr.bf16.mxu0 0
        %2762 = vmatpush2.bf16.xpose.msra.mxu0 0
        %2763 = vmatprep.subr.bf16.mxu0 0
        %2764 = vmatpush2.bf16.xpose.msra.mxu0 0
        %2765 = vmatprep.subr.bf16.mxu0 0
        %2766 = vmatpush2.bf16.xpose.msra.mxu0 0
        %2767 = vmatprep.subr.bf16.mxu0 0
        %2768 = vmatpush2.bf16.xpose.msra.mxu0 0
        %2769 = vmatprep.mubr.bf16.mxu0 0
        %2770 = vmatmul.mubr.bf16.gmra.mxu0 %v2732
        %v2771 = vpop.f32.mrf.mxu0
        %v2772 = vadd.f32 0.0, %v2771
        %v2773 = vpop.f32.mrf.mxu0
        %v2774 = vpop.f32.mrf.mxu0
        %v2775 = vadd.f32 0.0, %v2774
        %v2776 = vpop.f32.mrf.mxu0
        %2777 = vdwg.mxu0
        %v2779 = vsel %vm2260, %v1919, 0
        %v2782 = vsel %vm2260, %v2079, 0
        %2784 = vmatprep.subr.bf16.mxu0 0
        %2785 = vmatpush1.bf16.xpose.msra.mxu0 0
        %2786 = vmatprep.subr.bf16.mxu0 0
        %2787 = vmatpush1.bf16.xpose.msra.mxu0 0
        %2788 = vmatprep.subr.bf16.mxu0 0
        %2789 = vmatpush1.bf16.xpose.msra.mxu0 0
        %2790 = vmatprep.subr.bf16.mxu0 0
        %2791 = vmatpush1.bf16.xpose.msra.mxu0 0
        %2792 = vmatprep.subr.bf16.mxu0 0
        %2793 = vmatpush1.bf16.xpose.msra.mxu0 0
        %2794 = vmatprep.subr.bf16.mxu0 0
        %2795 = vmatpush1.bf16.xpose.msra.mxu0 0
        %2796 = vmatprep.subr.bf16.mxu0 0
        %2797 = vmatpush1.bf16.xpose.msra.mxu0 0
        %2798 = vmatprep.subr.bf16.mxu0 0
        %2799 = vmatpush1.bf16.xpose.msra.mxu0 %v2782
        %2800 = vmatprep.subr.bf16.mxu0 0
        %2801 = vmatpush2.bf16.xpose.msra.mxu0 0
        %2802 = vmatprep.subr.bf16.mxu0 0
        %2803 = vmatpush2.bf16.xpose.msra.mxu0 0
        %2804 = vmatprep.subr.bf16.mxu0 0
        %2805 = vmatpush2.bf16.xpose.msra.mxu0 0
        %2806 = vmatprep.subr.bf16.mxu0 0
        %2807 = vmatpush2.bf16.xpose.msra.mxu0 0
        %2808 = vmatprep.subr.bf16.mxu0 0
        %2809 = vmatpush2.bf16.xpose.msra.mxu0 0
        %2810 = vmatprep.subr.bf16.mxu0 0
        %2811 = vmatpush2.bf16.xpose.msra.mxu0 0
        %2812 = vmatprep.subr.bf16.mxu0 0
        %2813 = vmatpush2.bf16.xpose.msra.mxu0 0
        %2814 = vmatprep.subr.bf16.mxu0 0
        %2815 = vmatpush2.bf16.xpose.msra.mxu0 0
        %2816 = vmatprep.mubr.bf16.mxu0 0
        %2817 = vmatmul.mubr.bf16.gmra.mxu0 %v2779
        %v2818 = vpop.f32.mrf.mxu0
        %v2819 = vadd.f32 0.0, %v2818
        %v2820 = vpop.f32.mrf.mxu0
        %v2821 = vpop.f32.mrf.mxu0
        %v2822 = vadd.f32 0.0, %v2821
        %v2823 = vpop.f32.mrf.mxu0
        %2824 = vdwg.mxu0
        %v2826 = vsel %vm2260, %v1920, 0
        %v2829 = vsel %vm2260, %v2080, 0
        %2831 = vmatprep.subr.bf16.mxu0 0
        %2832 = vmatpush1.bf16.xpose.msra.mxu0 0
        %2833 = vmatprep.subr.bf16.mxu0 0
        %2834 = vmatpush1.bf16.xpose.msra.mxu0 0
        %2835 = vmatprep.subr.bf16.mxu0 0
        %2836 = vmatpush1.bf16.xpose.msra.mxu0 0
        %2837 = vmatprep.subr.bf16.mxu0 0
        %2838 = vmatpush1.bf16.xpose.msra.mxu0 0
        %2839 = vmatprep.subr.bf16.mxu0 0
        %2840 = vmatpush1.bf16.xpose.msra.mxu0 0
        %2841 = vmatprep.subr.bf16.mxu0 0
        %2842 = vmatpush1.bf16.xpose.msra.mxu0 0
        %2843 = vmatprep.subr.bf16.mxu0 0
        %2844 = vmatpush1.bf16.xpose.msra.mxu0 0
        %2845 = vmatprep.subr.bf16.mxu0 0
        %2846 = vmatpush1.bf16.xpose.msra.mxu0 %v2829
        %2847 = vmatprep.subr.bf16.mxu0 0
        %2848 = vmatpush2.bf16.xpose.msra.mxu0 0
        %2849 = vmatprep.subr.bf16.mxu0 0
        %2850 = vmatpush2.bf16.xpose.msra.mxu0 0
        %2851 = vmatprep.subr.bf16.mxu0 0
        %2852 = vmatpush2.bf16.xpose.msra.mxu0 0
        %2853 = vmatprep.subr.bf16.mxu0 0
        %2854 = vmatpush2.bf16.xpose.msra.mxu0 0
        %2855 = vmatprep.subr.bf16.mxu0 0
        %2856 = vmatpush2.bf16.xpose.msra.mxu0 0
        %2857 = vmatprep.subr.bf16.mxu0 0
        %2858 = vmatpush2.bf16.xpose.msra.mxu0 0
        %2859 = vmatprep.subr.bf16.mxu0 0
        %2860 = vmatpush2.bf16.xpose.msra.mxu0 0
        %2861 = vmatprep.subr.bf16.mxu0 0
        %2862 = vmatpush2.bf16.xpose.msra.mxu0 0
        %2863 = vmatprep.mubr.bf16.mxu0 0
        %2864 = vmatmul.mubr.bf16.gmra.mxu0 %v2826
        %v2865 = vpop.f32.mrf.mxu0
        %v2866 = vadd.f32 0.0, %v2865
        %v2867 = vpop.f32.mrf.mxu0
        %v2868 = vpop.f32.mrf.mxu0
        %v2869 = vadd.f32 0.0, %v2868
        %v2870 = vpop.f32.mrf.mxu0
        %2871 = vdwg.mxu0
        %v2873 = vsel %vm2260, %v1921, 0
        %v2876 = vsel %vm2260, %v2081, 0
        %2878 = vmatprep.subr.bf16.mxu0 0
        %2879 = vmatpush1.bf16.xpose.msra.mxu0 0
        %2880 = vmatprep.subr.bf16.mxu0 0
        %2881 = vmatpush1.bf16.xpose.msra.mxu0 0
        %2882 = vmatprep.subr.bf16.mxu0 0
        %2883 = vmatpush1.bf16.xpose.msra.mxu0 0
        %2884 = vmatprep.subr.bf16.mxu0 0
        %2885 = vmatpush1.bf16.xpose.msra.mxu0 0
        %2886 = vmatprep.subr.bf16.mxu0 0
        %2887 = vmatpush1.bf16.xpose.msra.mxu0 0
        %2888 = vmatprep.subr.bf16.mxu0 0
        %2889 = vmatpush1.bf16.xpose.msra.mxu0 0
        %2890 = vmatprep.subr.bf16.mxu0 0
        %2891 = vmatpush1.bf16.xpose.msra.mxu0 0
        %2892 = vmatprep.subr.bf16.mxu0 0
        %2893 = vmatpush1.bf16.xpose.msra.mxu0 %v2876
        %2894 = vmatprep.subr.bf16.mxu0 0
        %2895 = vmatpush2.bf16.xpose.msra.mxu0 0
        %2896 = vmatprep.subr.bf16.mxu0 0
        %2897 = vmatpush2.bf16.xpose.msra.mxu0 0
        %2898 = vmatprep.subr.bf16.mxu0 0
        %2899 = vmatpush2.bf16.xpose.msra.mxu0 0
        %2900 = vmatprep.subr.bf16.mxu0 0
        %2901 = vmatpush2.bf16.xpose.msra.mxu0 0
        %2902 = vmatprep.subr.bf16.mxu0 0
        %2903 = vmatpush2.bf16.xpose.msra.mxu0 0
        %2904 = vmatprep.subr.bf16.mxu0 0
        %2905 = vmatpush2.bf16.xpose.msra.mxu0 0
        %2906 = vmatprep.subr.bf16.mxu0 0
        %2907 = vmatpush2.bf16.xpose.msra.mxu0 0
        %2908 = vmatprep.subr.bf16.mxu0 0
        %2909 = vmatpush2.bf16.xpose.msra.mxu0 0
        %2910 = vmatprep.mubr.bf16.mxu0 0
        %2911 = vmatmul.mubr.bf16.gmra.mxu0 %v2873
        %v2912 = vpop.f32.mrf.mxu0
        %v2913 = vadd.f32 0.0, %v2912
        %v2914 = vpop.f32.mrf.mxu0
        %v2915 = vpop.f32.mrf.mxu0
        %v2916 = vadd.f32 0.0, %v2915
        %v2917 = vpop.f32.mrf.mxu0
        %2918 = vdwg.mxu0
        %v2920 = vsel %vm2260, %v1922, 0
        %v2923 = vsel %vm2260, %v2082, 0
        %2925 = vmatprep.subr.bf16.mxu0 0
        %2926 = vmatpush1.bf16.xpose.msra.mxu0 0
        %2927 = vmatprep.subr.bf16.mxu0 0
        %2928 = vmatpush1.bf16.xpose.msra.mxu0 0
        %2929 = vmatprep.subr.bf16.mxu0 0
        %2930 = vmatpush1.bf16.xpose.msra.mxu0 0
        %2931 = vmatprep.subr.bf16.mxu0 0
        %2932 = vmatpush1.bf16.xpose.msra.mxu0 0
        %2933 = vmatprep.subr.bf16.mxu0 0
        %2934 = vmatpush1.bf16.xpose.msra.mxu0 0
        %2935 = vmatprep.subr.bf16.mxu0 0
        %2936 = vmatpush1.bf16.xpose.msra.mxu0 0
        %2937 = vmatprep.subr.bf16.mxu0 0
        %2938 = vmatpush1.bf16.xpose.msra.mxu0 0
        %2939 = vmatprep.subr.bf16.mxu0 0
        %2940 = vmatpush1.bf16.xpose.msra.mxu0 %v2923
        %2941 = vmatprep.subr.bf16.mxu0 0
        %2942 = vmatpush2.bf16.xpose.msra.mxu0 0
        %2943 = vmatprep.subr.bf16.mxu0 0
        %2944 = vmatpush2.bf16.xpose.msra.mxu0 0
        %2945 = vmatprep.subr.bf16.mxu0 0
        %2946 = vmatpush2.bf16.xpose.msra.mxu0 0
        %2947 = vmatprep.subr.bf16.mxu0 0
        %2948 = vmatpush2.bf16.xpose.msra.mxu0 0
        %2949 = vmatprep.subr.bf16.mxu0 0
        %2950 = vmatpush2.bf16.xpose.msra.mxu0 0
        %2951 = vmatprep.subr.bf16.mxu0 0
        %2952 = vmatpush2.bf16.xpose.msra.mxu0 0
        %2953 = vmatprep.subr.bf16.mxu0 0
        %2954 = vmatpush2.bf16.xpose.msra.mxu0 0
        %2955 = vmatprep.subr.bf16.mxu0 0
        %2956 = vmatpush2.bf16.xpose.msra.mxu0 0
        %2957 = vmatprep.mubr.bf16.mxu0 0
        %2958 = vmatmul.mubr.bf16.gmra.mxu0 %v2920
        %v2959 = vpop.f32.mrf.mxu0
        %v2960 = vadd.f32 0.0, %v2959
        %v2961 = vpop.f32.mrf.mxu0
        %v2962 = vpop.f32.mrf.mxu0
        %v2963 = vadd.f32 0.0, %v2962
        %v2964 = vpop.f32.mrf.mxu0
        %2965 = vdwg.mxu0
        %v2967 = vsel %vm2260, %v1923, 0
        %v2970 = vsel %vm2260, %v2083, 0
        %2972 = vmatprep.subr.bf16.mxu0 0
        %2973 = vmatpush1.bf16.xpose.msra.mxu0 0
        %2974 = vmatprep.subr.bf16.mxu0 0
        %2975 = vmatpush1.bf16.xpose.msra.mxu0 0
        %2976 = vmatprep.subr.bf16.mxu0 0
        %2977 = vmatpush1.bf16.xpose.msra.mxu0 0
        %2978 = vmatprep.subr.bf16.mxu0 0
        %2979 = vmatpush1.bf16.xpose.msra.mxu0 0
        %2980 = vmatprep.subr.bf16.mxu0 0
        %2981 = vmatpush1.bf16.xpose.msra.mxu0 0
        %2982 = vmatprep.subr.bf16.mxu0 0
        %2983 = vmatpush1.bf16.xpose.msra.mxu0 0
        %2984 = vmatprep.subr.bf16.mxu0 0
        %2985 = vmatpush1.bf16.xpose.msra.mxu0 0
        %2986 = vmatprep.subr.bf16.mxu0 0
        %2987 = vmatpush1.bf16.xpose.msra.mxu0 %v2970
        %2988 = vmatprep.subr.bf16.mxu0 0
        %2989 = vmatpush2.bf16.xpose.msra.mxu0 0
        %2990 = vmatprep.subr.bf16.mxu0 0
        %2991 = vmatpush2.bf16.xpose.msra.mxu0 0
        %2992 = vmatprep.subr.bf16.mxu0 0
        %2993 = vmatpush2.bf16.xpose.msra.mxu0 0
        %2994 = vmatprep.subr.bf16.mxu0 0
        %2995 = vmatpush2.bf16.xpose.msra.mxu0 0
        %2996 = vmatprep.subr.bf16.mxu0 0
        %2997 = vmatpush2.bf16.xpose.msra.mxu0 0
        %2998 = vmatprep.subr.bf16.mxu0 0
        %2999 = vmatpush2.bf16.xpose.msra.mxu0 0
        %3000 = vmatprep.subr.bf16.mxu0 0
        %3001 = vmatpush2.bf16.xpose.msra.mxu0 0
        %3002 = vmatprep.subr.bf16.mxu0 0
        %3003 = vmatpush2.bf16.xpose.msra.mxu0 0
        %3004 = vmatprep.mubr.bf16.mxu0 0
        %3005 = vmatmul.mubr.bf16.gmra.mxu0 %v2967
        %v3006 = vpop.f32.mrf.mxu0
        %v3007 = vadd.f32 0.0, %v3006
        %v3008 = vpop.f32.mrf.mxu0
        %v3009 = vpop.f32.mrf.mxu0
        %v3010 = vadd.f32 0.0, %v3009
        %v3011 = vpop.f32.mrf.mxu0
        %3012 = vdwg.mxu0
        %v3014 = vsel %vm2260, %v1924, 0
        %v3017 = vsel %vm2260, %v2084, 0
        %3019 = vmatprep.subr.bf16.mxu0 0
        %3020 = vmatpush1.bf16.xpose.msra.mxu0 0
        %3021 = vmatprep.subr.bf16.mxu0 0
        %3022 = vmatpush1.bf16.xpose.msra.mxu0 0
        %3023 = vmatprep.subr.bf16.mxu0 0
        %3024 = vmatpush1.bf16.xpose.msra.mxu0 0
        %3025 = vmatprep.subr.bf16.mxu0 0
        %3026 = vmatpush1.bf16.xpose.msra.mxu0 0
        %3027 = vmatprep.subr.bf16.mxu0 0
        %3028 = vmatpush1.bf16.xpose.msra.mxu0 0
        %3029 = vmatprep.subr.bf16.mxu0 0
        %3030 = vmatpush1.bf16.xpose.msra.mxu0 0
        %3031 = vmatprep.subr.bf16.mxu0 0
        %3032 = vmatpush1.bf16.xpose.msra.mxu0 0
        %3033 = vmatprep.subr.bf16.mxu0 0
        %3034 = vmatpush1.bf16.xpose.msra.mxu0 %v3017
        %3035 = vmatprep.subr.bf16.mxu0 0
        %3036 = vmatpush2.bf16.xpose.msra.mxu0 0
        %3037 = vmatprep.subr.bf16.mxu0 0
        %3038 = vmatpush2.bf16.xpose.msra.mxu0 0
        %3039 = vmatprep.subr.bf16.mxu0 0
        %3040 = vmatpush2.bf16.xpose.msra.mxu0 0
        %3041 = vmatprep.subr.bf16.mxu0 0
        %3042 = vmatpush2.bf16.xpose.msra.mxu0 0
        %3043 = vmatprep.subr.bf16.mxu0 0
        %3044 = vmatpush2.bf16.xpose.msra.mxu0 0
        %3045 = vmatprep.subr.bf16.mxu0 0
        %3046 = vmatpush2.bf16.xpose.msra.mxu0 0
        %3047 = vmatprep.subr.bf16.mxu0 0
        %3048 = vmatpush2.bf16.xpose.msra.mxu0 0
        %3049 = vmatprep.subr.bf16.mxu0 0
        %3050 = vmatpush2.bf16.xpose.msra.mxu0 0
        %3051 = vmatprep.mubr.bf16.mxu0 0
        %3052 = vmatmul.mubr.bf16.gmra.mxu0 %v3014
        %v3053 = vpop.f32.mrf.mxu0
        %v3054 = vadd.f32 0.0, %v3053
        %v3055 = vpop.f32.mrf.mxu0
        %v3056 = vpop.f32.mrf.mxu0
        %v3057 = vadd.f32 0.0, %v3056
        %v3058 = vpop.f32.mrf.mxu0
        %3059 = vdwg.mxu0
        %v3061 = vsel %vm2260, %v1925, 0
        %v3064 = vsel %vm2260, %v2085, 0
        %3066 = vmatprep.subr.bf16.mxu0 0
        %3067 = vmatpush1.bf16.xpose.msra.mxu0 0
        %3068 = vmatprep.subr.bf16.mxu0 0
        %3069 = vmatpush1.bf16.xpose.msra.mxu0 0
        %3070 = vmatprep.subr.bf16.mxu0 0
        %3071 = vmatpush1.bf16.xpose.msra.mxu0 0
        %3072 = vmatprep.subr.bf16.mxu0 0
        %3073 = vmatpush1.bf16.xpose.msra.mxu0 0
        %3074 = vmatprep.subr.bf16.mxu0 0
        %3075 = vmatpush1.bf16.xpose.msra.mxu0 0
        %3076 = vmatprep.subr.bf16.mxu0 0
        %3077 = vmatpush1.bf16.xpose.msra.mxu0 0
        %3078 = vmatprep.subr.bf16.mxu0 0
        %3079 = vmatpush1.bf16.xpose.msra.mxu0 0
        %3080 = vmatprep.subr.bf16.mxu0 0
        %3081 = vmatpush1.bf16.xpose.msra.mxu0 %v3064
        %3082 = vmatprep.subr.bf16.mxu0 0
        %3083 = vmatpush2.bf16.xpose.msra.mxu0 0
        %3084 = vmatprep.subr.bf16.mxu0 0
        %3085 = vmatpush2.bf16.xpose.msra.mxu0 0
        %3086 = vmatprep.subr.bf16.mxu0 0
        %3087 = vmatpush2.bf16.xpose.msra.mxu0 0
        %3088 = vmatprep.subr.bf16.mxu0 0
        %3089 = vmatpush2.bf16.xpose.msra.mxu0 0
        %3090 = vmatprep.subr.bf16.mxu0 0
        %3091 = vmatpush2.bf16.xpose.msra.mxu0 0
        %3092 = vmatprep.subr.bf16.mxu0 0
        %3093 = vmatpush2.bf16.xpose.msra.mxu0 0
        %3094 = vmatprep.subr.bf16.mxu0 0
        %3095 = vmatpush2.bf16.xpose.msra.mxu0 0
        %3096 = vmatprep.subr.bf16.mxu0 0
        %3097 = vmatpush2.bf16.xpose.msra.mxu0 0
        %3098 = vmatprep.mubr.bf16.mxu0 0
        %3099 = vmatmul.mubr.bf16.gmra.mxu0 %v3061
        %v3100 = vpop.f32.mrf.mxu0
        %v3101 = vadd.f32 0.0, %v3100
        %v3102 = vpop.f32.mrf.mxu0
        %v3103 = vpop.f32.mrf.mxu0
        %v3104 = vadd.f32 0.0, %v3103
        %v3105 = vpop.f32.mrf.mxu0
        %3106 = vdwg.mxu0
        %v3108 = vsel %vm2260, %v1926, 0
        %v3111 = vsel %vm2260, %v2086, 0
        %3113 = vmatprep.subr.bf16.mxu0 0
        %3114 = vmatpush1.bf16.xpose.msra.mxu0 0
        %3115 = vmatprep.subr.bf16.mxu0 0
        %3116 = vmatpush1.bf16.xpose.msra.mxu0 0
        %3117 = vmatprep.subr.bf16.mxu0 0
        %3118 = vmatpush1.bf16.xpose.msra.mxu0 0
        %3119 = vmatprep.subr.bf16.mxu0 0
        %3120 = vmatpush1.bf16.xpose.msra.mxu0 0
        %3121 = vmatprep.subr.bf16.mxu0 0
        %3122 = vmatpush1.bf16.xpose.msra.mxu0 0
        %3123 = vmatprep.subr.bf16.mxu0 0
        %3124 = vmatpush1.bf16.xpose.msra.mxu0 0
        %3125 = vmatprep.subr.bf16.mxu0 0
        %3126 = vmatpush1.bf16.xpose.msra.mxu0 0
        %3127 = vmatprep.subr.bf16.mxu0 0
        %3128 = vmatpush1.bf16.xpose.msra.mxu0 %v3111
        %3129 = vmatprep.subr.bf16.mxu0 0
        %3130 = vmatpush2.bf16.xpose.msra.mxu0 0
        %3131 = vmatprep.subr.bf16.mxu0 0
        %3132 = vmatpush2.bf16.xpose.msra.mxu0 0
        %3133 = vmatprep.subr.bf16.mxu0 0
        %3134 = vmatpush2.bf16.xpose.msra.mxu0 0
        %3135 = vmatprep.subr.bf16.mxu0 0
        %3136 = vmatpush2.bf16.xpose.msra.mxu0 0
        %3137 = vmatprep.subr.bf16.mxu0 0
        %3138 = vmatpush2.bf16.xpose.msra.mxu0 0
        %3139 = vmatprep.subr.bf16.mxu0 0
        %3140 = vmatpush2.bf16.xpose.msra.mxu0 0
        %3141 = vmatprep.subr.bf16.mxu0 0
        %3142 = vmatpush2.bf16.xpose.msra.mxu0 0
        %3143 = vmatprep.subr.bf16.mxu0 0
        %3144 = vmatpush2.bf16.xpose.msra.mxu0 0
        %3145 = vmatprep.mubr.bf16.mxu0 0
        %3146 = vmatmul.mubr.bf16.gmra.mxu0 %v3108
        %v3147 = vpop.f32.mrf.mxu0
        %v3148 = vadd.f32 0.0, %v3147
        %v3149 = vpop.f32.mrf.mxu0
        %v3150 = vpop.f32.mrf.mxu0
        %v3151 = vadd.f32 0.0, %v3150
        %v3152 = vpop.f32.mrf.mxu0
        %3153 = vdwg.mxu0
        %v3155 = vsel %vm2260, %v1927, 0
        %v3158 = vsel %vm2260, %v2087, 0
        %3160 = vmatprep.subr.bf16.mxu0 0
        %3161 = vmatpush1.bf16.xpose.msra.mxu0 0
        %3162 = vmatprep.subr.bf16.mxu0 0
        %3163 = vmatpush1.bf16.xpose.msra.mxu0 0
        %3164 = vmatprep.subr.bf16.mxu0 0
        %3165 = vmatpush1.bf16.xpose.msra.mxu0 0
        %3166 = vmatprep.subr.bf16.mxu0 0
        %3167 = vmatpush1.bf16.xpose.msra.mxu0 0
        %3168 = vmatprep.subr.bf16.mxu0 0
        %3169 = vmatpush1.bf16.xpose.msra.mxu0 0
        %3170 = vmatprep.subr.bf16.mxu0 0
        %3171 = vmatpush1.bf16.xpose.msra.mxu0 0
        %3172 = vmatprep.subr.bf16.mxu0 0
        %3173 = vmatpush1.bf16.xpose.msra.mxu0 0
        %3174 = vmatprep.subr.bf16.mxu0 0
        %3175 = vmatpush1.bf16.xpose.msra.mxu0 %v3158
        %3176 = vmatprep.subr.bf16.mxu0 0
        %3177 = vmatpush2.bf16.xpose.msra.mxu0 0
        %3178 = vmatprep.subr.bf16.mxu0 0
        %3179 = vmatpush2.bf16.xpose.msra.mxu0 0
        %3180 = vmatprep.subr.bf16.mxu0 0
        %3181 = vmatpush2.bf16.xpose.msra.mxu0 0
        %3182 = vmatprep.subr.bf16.mxu0 0
        %3183 = vmatpush2.bf16.xpose.msra.mxu0 0
        %3184 = vmatprep.subr.bf16.mxu0 0
        %3185 = vmatpush2.bf16.xpose.msra.mxu0 0
        %3186 = vmatprep.subr.bf16.mxu0 0
        %3187 = vmatpush2.bf16.xpose.msra.mxu0 0
        %3188 = vmatprep.subr.bf16.mxu0 0
        %3189 = vmatpush2.bf16.xpose.msra.mxu0 0
        %3190 = vmatprep.subr.bf16.mxu0 0
        %3191 = vmatpush2.bf16.xpose.msra.mxu0 0
        %3192 = vmatprep.mubr.bf16.mxu0 0
        %3193 = vmatmul.mubr.bf16.gmra.mxu0 %v3155
        %v3194 = vpop.f32.mrf.mxu0
        %v3195 = vadd.f32 0.0, %v3194
        %v3196 = vpop.f32.mrf.mxu0
        %v3197 = vpop.f32.mrf.mxu0
        %v3198 = vadd.f32 0.0, %v3197
        %v3199 = vpop.f32.mrf.mxu0
        %3200 = vdwg.mxu0
        %v3202 = vsel %vm2260, %v1928, 0
        %v3205 = vsel %vm2260, %v2088, 0
        %3207 = vmatprep.subr.bf16.mxu0 0
        %3208 = vmatpush1.bf16.xpose.msra.mxu0 0
        %3209 = vmatprep.subr.bf16.mxu0 0
        %3210 = vmatpush1.bf16.xpose.msra.mxu0 0
        %3211 = vmatprep.subr.bf16.mxu0 0
        %3212 = vmatpush1.bf16.xpose.msra.mxu0 0
        %3213 = vmatprep.subr.bf16.mxu0 0
        %3214 = vmatpush1.bf16.xpose.msra.mxu0 0
        %3215 = vmatprep.subr.bf16.mxu0 0
        %3216 = vmatpush1.bf16.xpose.msra.mxu0 0
        %3217 = vmatprep.subr.bf16.mxu0 0
        %3218 = vmatpush1.bf16.xpose.msra.mxu0 0
        %3219 = vmatprep.subr.bf16.mxu0 0
        %3220 = vmatpush1.bf16.xpose.msra.mxu0 0
        %3221 = vmatprep.subr.bf16.mxu0 0
        %3222 = vmatpush1.bf16.xpose.msra.mxu0 %v3205
        %3223 = vmatprep.subr.bf16.mxu0 0
        %3224 = vmatpush2.bf16.xpose.msra.mxu0 0
        %3225 = vmatprep.subr.bf16.mxu0 0
        %3226 = vmatpush2.bf16.xpose.msra.mxu0 0
        %3227 = vmatprep.subr.bf16.mxu0 0
        %3228 = vmatpush2.bf16.xpose.msra.mxu0 0
        %3229 = vmatprep.subr.bf16.mxu0 0
        %3230 = vmatpush2.bf16.xpose.msra.mxu0 0
        %3231 = vmatprep.subr.bf16.mxu0 0
        %3232 = vmatpush2.bf16.xpose.msra.mxu0 0
        %3233 = vmatprep.subr.bf16.mxu0 0
        %3234 = vmatpush2.bf16.xpose.msra.mxu0 0
        %3235 = vmatprep.subr.bf16.mxu0 0
        %3236 = vmatpush2.bf16.xpose.msra.mxu0 0
        %3237 = vmatprep.subr.bf16.mxu0 0
        %3238 = vmatpush2.bf16.xpose.msra.mxu0 0
        %3239 = vmatprep.mubr.bf16.mxu0 0
        %3240 = vmatmul.mubr.bf16.gmra.mxu0 %v3202
        %v3241 = vpop.f32.mrf.mxu0
        %v3242 = vadd.f32 0.0, %v3241
        %v3243 = vpop.f32.mrf.mxu0
        %v3244 = vpop.f32.mrf.mxu0
        %v3245 = vadd.f32 0.0, %v3244
        %v3246 = vpop.f32.mrf.mxu0
        %3247 = vdwg.mxu0
        %v3249 = vsel %vm2260, %v1929, 0
        %v3252 = vsel %vm2260, %v2089, 0
        %3254 = vmatprep.subr.bf16.mxu0 0
        %3255 = vmatpush1.bf16.xpose.msra.mxu0 0
        %3256 = vmatprep.subr.bf16.mxu0 0
        %3257 = vmatpush1.bf16.xpose.msra.mxu0 0
        %3258 = vmatprep.subr.bf16.mxu0 0
        %3259 = vmatpush1.bf16.xpose.msra.mxu0 0
        %3260 = vmatprep.subr.bf16.mxu0 0
        %3261 = vmatpush1.bf16.xpose.msra.mxu0 0
        %3262 = vmatprep.subr.bf16.mxu0 0
        %3263 = vmatpush1.bf16.xpose.msra.mxu0 0
        %3264 = vmatprep.subr.bf16.mxu0 0
        %3265 = vmatpush1.bf16.xpose.msra.mxu0 0
        %3266 = vmatprep.subr.bf16.mxu0 0
        %3267 = vmatpush1.bf16.xpose.msra.mxu0 0
        %3268 = vmatprep.subr.bf16.mxu0 0
        %3269 = vmatpush1.bf16.xpose.msra.mxu0 %v3252
        %3270 = vmatprep.subr.bf16.mxu0 0
        %3271 = vmatpush2.bf16.xpose.msra.mxu0 0
        %3272 = vmatprep.subr.bf16.mxu0 0
        %3273 = vmatpush2.bf16.xpose.msra.mxu0 0
        %3274 = vmatprep.subr.bf16.mxu0 0
        %3275 = vmatpush2.bf16.xpose.msra.mxu0 0
        %3276 = vmatprep.subr.bf16.mxu0 0
        %3277 = vmatpush2.bf16.xpose.msra.mxu0 0
        %3278 = vmatprep.subr.bf16.mxu0 0
        %3279 = vmatpush2.bf16.xpose.msra.mxu0 0
        %3280 = vmatprep.subr.bf16.mxu0 0
        %3281 = vmatpush2.bf16.xpose.msra.mxu0 0
        %3282 = vmatprep.subr.bf16.mxu0 0
        %3283 = vmatpush2.bf16.xpose.msra.mxu0 0
        %3284 = vmatprep.subr.bf16.mxu0 0
        %3285 = vmatpush2.bf16.xpose.msra.mxu0 0
        %3286 = vmatprep.mubr.bf16.mxu0 0
        %3287 = vmatmul.mubr.bf16.gmra.mxu0 %v3249
        %v3288 = vpop.f32.mrf.mxu0
        %v3289 = vadd.f32 0.0, %v3288
        %v3290 = vpop.f32.mrf.mxu0
        %v3291 = vpop.f32.mrf.mxu0
        %v3292 = vadd.f32 0.0, %v3291
        %v3293 = vpop.f32.mrf.mxu0
        %3294 = vdwg.mxu0
        %v3296 = vsel %vm2260, %v1930, 0
        %v3299 = vsel %vm2260, %v2090, 0
        %3301 = vmatprep.subr.bf16.mxu0 0
        %3302 = vmatpush1.bf16.xpose.msra.mxu0 0
        %3303 = vmatprep.subr.bf16.mxu0 0
        %3304 = vmatpush1.bf16.xpose.msra.mxu0 0
        %3305 = vmatprep.subr.bf16.mxu0 0
        %3306 = vmatpush1.bf16.xpose.msra.mxu0 0
        %3307 = vmatprep.subr.bf16.mxu0 0
        %3308 = vmatpush1.bf16.xpose.msra.mxu0 0
        %3309 = vmatprep.subr.bf16.mxu0 0
        %3310 = vmatpush1.bf16.xpose.msra.mxu0 0
        %3311 = vmatprep.subr.bf16.mxu0 0
        %3312 = vmatpush1.bf16.xpose.msra.mxu0 0
        %3313 = vmatprep.subr.bf16.mxu0 0
        %3314 = vmatpush1.bf16.xpose.msra.mxu0 0
        %3315 = vmatprep.subr.bf16.mxu0 0
        %3316 = vmatpush1.bf16.xpose.msra.mxu0 %v3299
        %3317 = vmatprep.subr.bf16.mxu0 0
        %3318 = vmatpush2.bf16.xpose.msra.mxu0 0
        %3319 = vmatprep.subr.bf16.mxu0 0
        %3320 = vmatpush2.bf16.xpose.msra.mxu0 0
        %3321 = vmatprep.subr.bf16.mxu0 0
        %3322 = vmatpush2.bf16.xpose.msra.mxu0 0
        %3323 = vmatprep.subr.bf16.mxu0 0
        %3324 = vmatpush2.bf16.xpose.msra.mxu0 0
        %3325 = vmatprep.subr.bf16.mxu0 0
        %3326 = vmatpush2.bf16.xpose.msra.mxu0 0
        %3327 = vmatprep.subr.bf16.mxu0 0
        %3328 = vmatpush2.bf16.xpose.msra.mxu0 0
        %3329 = vmatprep.subr.bf16.mxu0 0
        %3330 = vmatpush2.bf16.xpose.msra.mxu0 0
        %3331 = vmatprep.subr.bf16.mxu0 0
        %3332 = vmatpush2.bf16.xpose.msra.mxu0 0
        %3333 = vmatprep.mubr.bf16.mxu0 0
        %3334 = vmatmul.mubr.bf16.gmra.mxu0 %v3296
        %v3335 = vpop.f32.mrf.mxu0
        %v3336 = vadd.f32 0.0, %v3335
        %v3337 = vpop.f32.mrf.mxu0
        %v3338 = vpop.f32.mrf.mxu0
        %v3339 = vadd.f32 0.0, %v3338
        %v3340 = vpop.f32.mrf.mxu0
        %3341 = vdwg.mxu0
        %v3343 = vsel %vm2260, %v1931, 0
        %v3346 = vsel %vm2260, %v2091, 0
        %3348 = vmatprep.subr.bf16.mxu0 0
        %3349 = vmatpush1.bf16.xpose.msra.mxu0 0
        %3350 = vmatprep.subr.bf16.mxu0 0
        %3351 = vmatpush1.bf16.xpose.msra.mxu0 0
        %3352 = vmatprep.subr.bf16.mxu0 0
        %3353 = vmatpush1.bf16.xpose.msra.mxu0 0
        %3354 = vmatprep.subr.bf16.mxu0 0
        %3355 = vmatpush1.bf16.xpose.msra.mxu0 0
        %3356 = vmatprep.subr.bf16.mxu0 0
        %3357 = vmatpush1.bf16.xpose.msra.mxu0 0
        %3358 = vmatprep.subr.bf16.mxu0 0
        %3359 = vmatpush1.bf16.xpose.msra.mxu0 0
        %3360 = vmatprep.subr.bf16.mxu0 0
        %3361 = vmatpush1.bf16.xpose.msra.mxu0 0
        %3362 = vmatprep.subr.bf16.mxu0 0
        %3363 = vmatpush1.bf16.xpose.msra.mxu0 %v3346
        %3364 = vmatprep.subr.bf16.mxu0 0
        %3365 = vmatpush2.bf16.xpose.msra.mxu0 0
        %3366 = vmatprep.subr.bf16.mxu0 0
        %3367 = vmatpush2.bf16.xpose.msra.mxu0 0
        %3368 = vmatprep.subr.bf16.mxu0 0
        %3369 = vmatpush2.bf16.xpose.msra.mxu0 0
        %3370 = vmatprep.subr.bf16.mxu0 0
        %3371 = vmatpush2.bf16.xpose.msra.mxu0 0
        %3372 = vmatprep.subr.bf16.mxu0 0
        %3373 = vmatpush2.bf16.xpose.msra.mxu0 0
        %3374 = vmatprep.subr.bf16.mxu0 0
        %3375 = vmatpush2.bf16.xpose.msra.mxu0 0
        %3376 = vmatprep.subr.bf16.mxu0 0
        %3377 = vmatpush2.bf16.xpose.msra.mxu0 0
        %3378 = vmatprep.subr.bf16.mxu0 0
        %3379 = vmatpush2.bf16.xpose.msra.mxu0 0
        %3380 = vmatprep.mubr.bf16.mxu0 0
        %3381 = vmatmul.mubr.bf16.gmra.mxu0 %v3343
        %v3382 = vpop.f32.mrf.mxu0
        %v3383 = vadd.f32 0.0, %v3382
        %v3384 = vpop.f32.mrf.mxu0
        %v3385 = vpop.f32.mrf.mxu0
        %v3386 = vadd.f32 0.0, %v3385
        %v3387 = vpop.f32.mrf.mxu0
        %3388 = vdwg.mxu0
        %v3390 = vsel %vm2260, %v1932, 0
        %v3393 = vsel %vm2260, %v2092, 0
        %3395 = vmatprep.subr.bf16.mxu0 0
        %3396 = vmatpush1.bf16.xpose.msra.mxu0 0
        %3397 = vmatprep.subr.bf16.mxu0 0
        %3398 = vmatpush1.bf16.xpose.msra.mxu0 0
        %3399 = vmatprep.subr.bf16.mxu0 0
        %3400 = vmatpush1.bf16.xpose.msra.mxu0 0
        %3401 = vmatprep.subr.bf16.mxu0 0
        %3402 = vmatpush1.bf16.xpose.msra.mxu0 0
        %3403 = vmatprep.subr.bf16.mxu0 0
        %3404 = vmatpush1.bf16.xpose.msra.mxu0 0
        %3405 = vmatprep.subr.bf16.mxu0 0
        %3406 = vmatpush1.bf16.xpose.msra.mxu0 0
        %3407 = vmatprep.subr.bf16.mxu0 0
        %3408 = vmatpush1.bf16.xpose.msra.mxu0 0
        %3409 = vmatprep.subr.bf16.mxu0 0
        %3410 = vmatpush1.bf16.xpose.msra.mxu0 %v3393
        %3411 = vmatprep.subr.bf16.mxu0 0
        %3412 = vmatpush2.bf16.xpose.msra.mxu0 0
        %3413 = vmatprep.subr.bf16.mxu0 0
        %3414 = vmatpush2.bf16.xpose.msra.mxu0 0
        %3415 = vmatprep.subr.bf16.mxu0 0
        %3416 = vmatpush2.bf16.xpose.msra.mxu0 0
        %3417 = vmatprep.subr.bf16.mxu0 0
        %3418 = vmatpush2.bf16.xpose.msra.mxu0 0
        %3419 = vmatprep.subr.bf16.mxu0 0
        %3420 = vmatpush2.bf16.xpose.msra.mxu0 0
        %3421 = vmatprep.subr.bf16.mxu0 0
        %3422 = vmatpush2.bf16.xpose.msra.mxu0 0
        %3423 = vmatprep.subr.bf16.mxu0 0
        %3424 = vmatpush2.bf16.xpose.msra.mxu0 0
        %3425 = vmatprep.subr.bf16.mxu0 0
        %3426 = vmatpush2.bf16.xpose.msra.mxu0 0
        %3427 = vmatprep.mubr.bf16.mxu0 0
        %3428 = vmatmul.mubr.bf16.gmra.mxu0 %v3390
        %v3429 = vpop.f32.mrf.mxu0
        %v3430 = vadd.f32 0.0, %v3429
        %v3431 = vpop.f32.mrf.mxu0
        %v3432 = vpop.f32.mrf.mxu0
        %v3433 = vadd.f32 0.0, %v3432
        %v3434 = vpop.f32.mrf.mxu0
        %3435 = vdwg.mxu0
        %v3437 = vsel %vm2260, %v1933, 0
        %v3440 = vsel %vm2260, %v2093, 0
        %3442 = vmatprep.subr.bf16.mxu0 0
        %3443 = vmatpush1.bf16.xpose.msra.mxu0 0
        %3444 = vmatprep.subr.bf16.mxu0 0
        %3445 = vmatpush1.bf16.xpose.msra.mxu0 0
        %3446 = vmatprep.subr.bf16.mxu0 0
        %3447 = vmatpush1.bf16.xpose.msra.mxu0 0
        %3448 = vmatprep.subr.bf16.mxu0 0
        %3449 = vmatpush1.bf16.xpose.msra.mxu0 0
        %3450 = vmatprep.subr.bf16.mxu0 0
        %3451 = vmatpush1.bf16.xpose.msra.mxu0 0
        %3452 = vmatprep.subr.bf16.mxu0 0
        %3453 = vmatpush1.bf16.xpose.msra.mxu0 0
        %3454 = vmatprep.subr.bf16.mxu0 0
        %3455 = vmatpush1.bf16.xpose.msra.mxu0 0
        %3456 = vmatprep.subr.bf16.mxu0 0
        %3457 = vmatpush1.bf16.xpose.msra.mxu0 %v3440
        %3458 = vmatprep.subr.bf16.mxu0 0
        %3459 = vmatpush2.bf16.xpose.msra.mxu0 0
        %3460 = vmatprep.subr.bf16.mxu0 0
        %3461 = vmatpush2.bf16.xpose.msra.mxu0 0
        %3462 = vmatprep.subr.bf16.mxu0 0
        %3463 = vmatpush2.bf16.xpose.msra.mxu0 0
        %3464 = vmatprep.subr.bf16.mxu0 0
        %3465 = vmatpush2.bf16.xpose.msra.mxu0 0
        %3466 = vmatprep.subr.bf16.mxu0 0
        %3467 = vmatpush2.bf16.xpose.msra.mxu0 0
        %3468 = vmatprep.subr.bf16.mxu0 0
        %3469 = vmatpush2.bf16.xpose.msra.mxu0 0
        %3470 = vmatprep.subr.bf16.mxu0 0
        %3471 = vmatpush2.bf16.xpose.msra.mxu0 0
        %3472 = vmatprep.subr.bf16.mxu0 0
        %3473 = vmatpush2.bf16.xpose.msra.mxu0 0
        %3474 = vmatprep.mubr.bf16.mxu0 0
        %3475 = vmatmul.mubr.bf16.gmra.mxu0 %v3437
        %v3476 = vpop.f32.mrf.mxu0
        %v3477 = vadd.f32 0.0, %v3476
        %v3478 = vpop.f32.mrf.mxu0
        %v3479 = vpop.f32.mrf.mxu0
        %v3480 = vadd.f32 0.0, %v3479
        %v3481 = vpop.f32.mrf.mxu0
        %3482 = vdwg.mxu0
        %v3484 = vsel %vm2260, %v1934, 0
        %v3487 = vsel %vm2260, %v2094, 0
        %3489 = vmatprep.subr.bf16.mxu0 0
        %3490 = vmatpush1.bf16.xpose.msra.mxu0 0
        %3491 = vmatprep.subr.bf16.mxu0 0
        %3492 = vmatpush1.bf16.xpose.msra.mxu0 0
        %3493 = vmatprep.subr.bf16.mxu0 0
        %3494 = vmatpush1.bf16.xpose.msra.mxu0 0
        %3495 = vmatprep.subr.bf16.mxu0 0
        %3496 = vmatpush1.bf16.xpose.msra.mxu0 0
        %3497 = vmatprep.subr.bf16.mxu0 0
        %3498 = vmatpush1.bf16.xpose.msra.mxu0 0
        %3499 = vmatprep.subr.bf16.mxu0 0
        %3500 = vmatpush1.bf16.xpose.msra.mxu0 0
        %3501 = vmatprep.subr.bf16.mxu0 0
        %3502 = vmatpush1.bf16.xpose.msra.mxu0 0
        %3503 = vmatprep.subr.bf16.mxu0 0
        %3504 = vmatpush1.bf16.xpose.msra.mxu0 %v3487
        %3505 = vmatprep.subr.bf16.mxu0 0
        %3506 = vmatpush2.bf16.xpose.msra.mxu0 0
        %3507 = vmatprep.subr.bf16.mxu0 0
        %3508 = vmatpush2.bf16.xpose.msra.mxu0 0
        %3509 = vmatprep.subr.bf16.mxu0 0
        %3510 = vmatpush2.bf16.xpose.msra.mxu0 0
        %3511 = vmatprep.subr.bf16.mxu0 0
        %3512 = vmatpush2.bf16.xpose.msra.mxu0 0
        %3513 = vmatprep.subr.bf16.mxu0 0
        %3514 = vmatpush2.bf16.xpose.msra.mxu0 0
        %3515 = vmatprep.subr.bf16.mxu0 0
        %3516 = vmatpush2.bf16.xpose.msra.mxu0 0
        %3517 = vmatprep.subr.bf16.mxu0 0
        %3518 = vmatpush2.bf16.xpose.msra.mxu0 0
        %3519 = vmatprep.subr.bf16.mxu0 0
        %3520 = vmatpush2.bf16.xpose.msra.mxu0 0
        %3521 = vmatprep.mubr.bf16.mxu0 0
        %3522 = vmatmul.mubr.bf16.gmra.mxu0 %v3484
        %v3523 = vpop.f32.mrf.mxu0
        %v3524 = vadd.f32 0.0, %v3523
        %v3525 = vpop.f32.mrf.mxu0
        %v3526 = vpop.f32.mrf.mxu0
        %v3527 = vadd.f32 0.0, %v3526
        %v3528 = vpop.f32.mrf.mxu0
        %3529 = vdwg.mxu0
        %v3531 = vsel %vm2260, %v1935, 0
        %v3534 = vsel %vm2260, %v2095, 0
        %3536 = vmatprep.subr.bf16.mxu0 0
        %3537 = vmatpush1.bf16.xpose.msra.mxu0 0
        %3538 = vmatprep.subr.bf16.mxu0 0
        %3539 = vmatpush1.bf16.xpose.msra.mxu0 0
        %3540 = vmatprep.subr.bf16.mxu0 0
        %3541 = vmatpush1.bf16.xpose.msra.mxu0 0
        %3542 = vmatprep.subr.bf16.mxu0 0
        %3543 = vmatpush1.bf16.xpose.msra.mxu0 0
        %3544 = vmatprep.subr.bf16.mxu0 0
        %3545 = vmatpush1.bf16.xpose.msra.mxu0 0
        %3546 = vmatprep.subr.bf16.mxu0 0
        %3547 = vmatpush1.bf16.xpose.msra.mxu0 0
        %3548 = vmatprep.subr.bf16.mxu0 0
        %3549 = vmatpush1.bf16.xpose.msra.mxu0 0
        %3550 = vmatprep.subr.bf16.mxu0 0
        %3551 = vmatpush1.bf16.xpose.msra.mxu0 %v3534
        %3552 = vmatprep.subr.bf16.mxu0 0
        %3553 = vmatpush2.bf16.xpose.msra.mxu0 0
        %3554 = vmatprep.subr.bf16.mxu0 0
        %3555 = vmatpush2.bf16.xpose.msra.mxu0 0
        %3556 = vmatprep.subr.bf16.mxu0 0
        %3557 = vmatpush2.bf16.xpose.msra.mxu0 0
        %3558 = vmatprep.subr.bf16.mxu0 0
        %3559 = vmatpush2.bf16.xpose.msra.mxu0 0
        %3560 = vmatprep.subr.bf16.mxu0 0
        %3561 = vmatpush2.bf16.xpose.msra.mxu0 0
        %3562 = vmatprep.subr.bf16.mxu0 0
        %3563 = vmatpush2.bf16.xpose.msra.mxu0 0
        %3564 = vmatprep.subr.bf16.mxu0 0
        %3565 = vmatpush2.bf16.xpose.msra.mxu0 0
        %3566 = vmatprep.subr.bf16.mxu0 0
        %3567 = vmatpush2.bf16.xpose.msra.mxu0 0
        %3568 = vmatprep.mubr.bf16.mxu0 0
        %3569 = vmatmul.mubr.bf16.gmra.mxu0 %v3531
        %v3570 = vpop.f32.mrf.mxu0
        %v3571 = vadd.f32 0.0, %v3570
        %v3572 = vpop.f32.mrf.mxu0
        %v3573 = vpop.f32.mrf.mxu0
        %v3574 = vadd.f32 0.0, %v3573
        %v3575 = vpop.f32.mrf.mxu0
        %3576 = vdwg.mxu0
        %v3578 = vsel %vm2260, %v1936, 0
        %v3581 = vsel %vm2260, %v2096, 0
        %3583 = vmatprep.subr.bf16.mxu0 0
        %3584 = vmatpush1.bf16.xpose.msra.mxu0 0
        %3585 = vmatprep.subr.bf16.mxu0 0
        %3586 = vmatpush1.bf16.xpose.msra.mxu0 0
        %3587 = vmatprep.subr.bf16.mxu0 0
        %3588 = vmatpush1.bf16.xpose.msra.mxu0 0
        %3589 = vmatprep.subr.bf16.mxu0 0
        %3590 = vmatpush1.bf16.xpose.msra.mxu0 0
        %3591 = vmatprep.subr.bf16.mxu0 0
        %3592 = vmatpush1.bf16.xpose.msra.mxu0 0
        %3593 = vmatprep.subr.bf16.mxu0 0
        %3594 = vmatpush1.bf16.xpose.msra.mxu0 0
        %3595 = vmatprep.subr.bf16.mxu0 0
        %3596 = vmatpush1.bf16.xpose.msra.mxu0 0
        %3597 = vmatprep.subr.bf16.mxu0 0
        %3598 = vmatpush1.bf16.xpose.msra.mxu0 %v3581
        %3599 = vmatprep.subr.bf16.mxu0 0
        %3600 = vmatpush2.bf16.xpose.msra.mxu0 0
        %3601 = vmatprep.subr.bf16.mxu0 0
        %3602 = vmatpush2.bf16.xpose.msra.mxu0 0
        %3603 = vmatprep.subr.bf16.mxu0 0
        %3604 = vmatpush2.bf16.xpose.msra.mxu0 0
        %3605 = vmatprep.subr.bf16.mxu0 0
        %3606 = vmatpush2.bf16.xpose.msra.mxu0 0
        %3607 = vmatprep.subr.bf16.mxu0 0
        %3608 = vmatpush2.bf16.xpose.msra.mxu0 0
        %3609 = vmatprep.subr.bf16.mxu0 0
        %3610 = vmatpush2.bf16.xpose.msra.mxu0 0
        %3611 = vmatprep.subr.bf16.mxu0 0
        %3612 = vmatpush2.bf16.xpose.msra.mxu0 0
        %3613 = vmatprep.subr.bf16.mxu0 0
        %3614 = vmatpush2.bf16.xpose.msra.mxu0 0
        %3615 = vmatprep.mubr.bf16.mxu0 0
        %3616 = vmatmul.mubr.bf16.gmra.mxu0 %v3578
        %v3617 = vpop.f32.mrf.mxu0
        %v3618 = vadd.f32 0.0, %v3617
        %v3619 = vpop.f32.mrf.mxu0
        %v3620 = vpop.f32.mrf.mxu0
        %v3621 = vadd.f32 0.0, %v3620
        %v3622 = vpop.f32.mrf.mxu0
        %3623 = vdwg.mxu0
        %v3625 = vsel %vm2260, %v1937, 0
        %v3628 = vsel %vm2260, %v2097, 0
        %3630 = vmatprep.subr.bf16.mxu0 0
        %3631 = vmatpush1.bf16.xpose.msra.mxu0 0
        %3632 = vmatprep.subr.bf16.mxu0 0
        %3633 = vmatpush1.bf16.xpose.msra.mxu0 0
        %3634 = vmatprep.subr.bf16.mxu0 0
        %3635 = vmatpush1.bf16.xpose.msra.mxu0 0
        %3636 = vmatprep.subr.bf16.mxu0 0
        %3637 = vmatpush1.bf16.xpose.msra.mxu0 0
        %3638 = vmatprep.subr.bf16.mxu0 0
        %3639 = vmatpush1.bf16.xpose.msra.mxu0 0
        %3640 = vmatprep.subr.bf16.mxu0 0
        %3641 = vmatpush1.bf16.xpose.msra.mxu0 0
        %3642 = vmatprep.subr.bf16.mxu0 0
        %3643 = vmatpush1.bf16.xpose.msra.mxu0 0
        %3644 = vmatprep.subr.bf16.mxu0 0
        %3645 = vmatpush1.bf16.xpose.msra.mxu0 %v3628
        %3646 = vmatprep.subr.bf16.mxu0 0
        %3647 = vmatpush2.bf16.xpose.msra.mxu0 0
        %3648 = vmatprep.subr.bf16.mxu0 0
        %3649 = vmatpush2.bf16.xpose.msra.mxu0 0
        %3650 = vmatprep.subr.bf16.mxu0 0
        %3651 = vmatpush2.bf16.xpose.msra.mxu0 0
        %3652 = vmatprep.subr.bf16.mxu0 0
        %3653 = vmatpush2.bf16.xpose.msra.mxu0 0
        %3654 = vmatprep.subr.bf16.mxu0 0
        %3655 = vmatpush2.bf16.xpose.msra.mxu0 0
        %3656 = vmatprep.subr.bf16.mxu0 0
        %3657 = vmatpush2.bf16.xpose.msra.mxu0 0
        %3658 = vmatprep.subr.bf16.mxu0 0
        %3659 = vmatpush2.bf16.xpose.msra.mxu0 0
        %3660 = vmatprep.subr.bf16.mxu0 0
        %3661 = vmatpush2.bf16.xpose.msra.mxu0 0
        %3662 = vmatprep.mubr.bf16.mxu0 0
        %3663 = vmatmul.mubr.bf16.gmra.mxu0 %v3625
        %v3664 = vpop.f32.mrf.mxu0
        %v3665 = vadd.f32 0.0, %v3664
        %v3666 = vpop.f32.mrf.mxu0
        %v3667 = vpop.f32.mrf.mxu0
        %v3668 = vadd.f32 0.0, %v3667
        %v3669 = vpop.f32.mrf.mxu0
        %3670 = vdwg.mxu0
        %v3672 = vsel %vm2260, %v1938, 0
        %v3675 = vsel %vm2260, %v2098, 0
        %3677 = vmatprep.subr.bf16.mxu0 0
        %3678 = vmatpush1.bf16.xpose.msra.mxu0 0
        %3679 = vmatprep.subr.bf16.mxu0 0
        %3680 = vmatpush1.bf16.xpose.msra.mxu0 0
        %3681 = vmatprep.subr.bf16.mxu0 0
        %3682 = vmatpush1.bf16.xpose.msra.mxu0 0
        %3683 = vmatprep.subr.bf16.mxu0 0
        %3684 = vmatpush1.bf16.xpose.msra.mxu0 0
        %3685 = vmatprep.subr.bf16.mxu0 0
        %3686 = vmatpush1.bf16.xpose.msra.mxu0 0
        %3687 = vmatprep.subr.bf16.mxu0 0
        %3688 = vmatpush1.bf16.xpose.msra.mxu0 0
        %3689 = vmatprep.subr.bf16.mxu0 0
        %3690 = vmatpush1.bf16.xpose.msra.mxu0 0
        %3691 = vmatprep.subr.bf16.mxu0 0
        %3692 = vmatpush1.bf16.xpose.msra.mxu0 %v3675
        %3693 = vmatprep.subr.bf16.mxu0 0
        %3694 = vmatpush2.bf16.xpose.msra.mxu0 0
        %3695 = vmatprep.subr.bf16.mxu0 0
        %3696 = vmatpush2.bf16.xpose.msra.mxu0 0
        %3697 = vmatprep.subr.bf16.mxu0 0
        %3698 = vmatpush2.bf16.xpose.msra.mxu0 0
        %3699 = vmatprep.subr.bf16.mxu0 0
        %3700 = vmatpush2.bf16.xpose.msra.mxu0 0
        %3701 = vmatprep.subr.bf16.mxu0 0
        %3702 = vmatpush2.bf16.xpose.msra.mxu0 0
        %3703 = vmatprep.subr.bf16.mxu0 0
        %3704 = vmatpush2.bf16.xpose.msra.mxu0 0
        %3705 = vmatprep.subr.bf16.mxu0 0
        %3706 = vmatpush2.bf16.xpose.msra.mxu0 0
        %3707 = vmatprep.subr.bf16.mxu0 0
        %3708 = vmatpush2.bf16.xpose.msra.mxu0 0
        %3709 = vmatprep.mubr.bf16.mxu0 0
        %3710 = vmatmul.mubr.bf16.gmra.mxu0 %v3672
        %v3711 = vpop.f32.mrf.mxu0
        %v3712 = vadd.f32 0.0, %v3711
        %v3713 = vpop.f32.mrf.mxu0
        %v3714 = vpop.f32.mrf.mxu0
        %v3715 = vadd.f32 0.0, %v3714
        %v3716 = vpop.f32.mrf.mxu0
        %3717 = vdwg.mxu0
        %v3719 = vsel %vm2260, %v1939, 0
        %v3722 = vsel %vm2260, %v2099, 0
        %3724 = vmatprep.subr.bf16.mxu0 0
        %3725 = vmatpush1.bf16.xpose.msra.mxu0 0
        %3726 = vmatprep.subr.bf16.mxu0 0
        %3727 = vmatpush1.bf16.xpose.msra.mxu0 0
        %3728 = vmatprep.subr.bf16.mxu0 0
        %3729 = vmatpush1.bf16.xpose.msra.mxu0 0
        %3730 = vmatprep.subr.bf16.mxu0 0
        %3731 = vmatpush1.bf16.xpose.msra.mxu0 0
        %3732 = vmatprep.subr.bf16.mxu0 0
        %3733 = vmatpush1.bf16.xpose.msra.mxu0 0
        %3734 = vmatprep.subr.bf16.mxu0 0
        %3735 = vmatpush1.bf16.xpose.msra.mxu0 0
        %3736 = vmatprep.subr.bf16.mxu0 0
        %3737 = vmatpush1.bf16.xpose.msra.mxu0 0
        %3738 = vmatprep.subr.bf16.mxu0 0
        %3739 = vmatpush1.bf16.xpose.msra.mxu0 %v3722
        %3740 = vmatprep.subr.bf16.mxu0 0
        %3741 = vmatpush2.bf16.xpose.msra.mxu0 0
        %3742 = vmatprep.subr.bf16.mxu0 0
        %3743 = vmatpush2.bf16.xpose.msra.mxu0 0
        %3744 = vmatprep.subr.bf16.mxu0 0
        %3745 = vmatpush2.bf16.xpose.msra.mxu0 0
        %3746 = vmatprep.subr.bf16.mxu0 0
        %3747 = vmatpush2.bf16.xpose.msra.mxu0 0
        %3748 = vmatprep.subr.bf16.mxu0 0
        %3749 = vmatpush2.bf16.xpose.msra.mxu0 0
        %3750 = vmatprep.subr.bf16.mxu0 0
        %3751 = vmatpush2.bf16.xpose.msra.mxu0 0
        %3752 = vmatprep.subr.bf16.mxu0 0
        %3753 = vmatpush2.bf16.xpose.msra.mxu0 0
        %3754 = vmatprep.subr.bf16.mxu0 0
        %3755 = vmatpush2.bf16.xpose.msra.mxu0 0
        %3756 = vmatprep.mubr.bf16.mxu0 0
        %3757 = vmatmul.mubr.bf16.gmra.mxu0 %v3719
        %v3758 = vpop.f32.mrf.mxu0
        %v3759 = vadd.f32 0.0, %v3758
        %v3760 = vpop.f32.mrf.mxu0
        %v3761 = vpop.f32.mrf.mxu0
        %v3762 = vadd.f32 0.0, %v3761
        %v3763 = vpop.f32.mrf.mxu0
        %3764 = vdwg.mxu0
        %vm3765 = vcmask 130048
        %v3766 = vsel %vm3765, %v2302, -inf
        %3767 = vmax.xlane.f32.xlu0 %v3766
        %v3768 = vpop.xlane.xlu0 %3767
        %v3769 = vsel %vm3765, %v2305, -inf
        %3770 = vmax.xlane.f32.xlu0 %v3769
        %v3771 = vpop.xlane.xlu0 %3770
        %v3772 = vsel %vm3765, %v2349, -inf
        %3773 = vmax.xlane.f32.xlu0 %v3772
        %v3774 = vpop.xlane.xlu0 %3773
        %v3775 = vsel %vm3765, %v2352, -inf
        %3776 = vmax.xlane.f32.xlu0 %v3775
        %v3777 = vpop.xlane.xlu0 %3776
        %v3778 = vsel %vm3765, %v2396, -inf
        %3779 = vmax.xlane.f32.xlu0 %v3778
        %v3780 = vpop.xlane.xlu0 %3779
        %v3781 = vsel %vm3765, %v2399, -inf
        %3782 = vmax.xlane.f32.xlu0 %v3781
        %v3783 = vpop.xlane.xlu0 %3782
        %v3784 = vsel %vm3765, %v2443, -inf
        %3785 = vmax.xlane.f32.xlu0 %v3784
        %v3786 = vpop.xlane.xlu0 %3785
        %v3787 = vsel %vm3765, %v2446, -inf
        %3788 = vmax.xlane.f32.xlu0 %v3787
        %v3789 = vpop.xlane.xlu0 %3788
        %v3790 = vsel %vm3765, %v2490, -inf
        %3791 = vmax.xlane.f32.xlu0 %v3790
        %v3792 = vpop.xlane.xlu0 %3791
        %v3793 = vsel %vm3765, %v2493, -inf
        %3794 = vmax.xlane.f32.xlu0 %v3793
        %v3795 = vpop.xlane.xlu0 %3794
        %v3796 = vsel %vm3765, %v2537, -inf
        %3797 = vmax.xlane.f32.xlu0 %v3796
        %v3798 = vpop.xlane.xlu0 %3797
        %v3799 = vsel %vm3765, %v2540, -inf
        %3800 = vmax.xlane.f32.xlu0 %v3799
        %v3801 = vpop.xlane.xlu0 %3800
        %v3802 = vsel %vm3765, %v2584, -inf
        %3803 = vmax.xlane.f32.xlu0 %v3802
        %v3804 = vpop.xlane.xlu0 %3803
        %v3805 = vsel %vm3765, %v2587, -inf
        %3806 = vmax.xlane.f32.xlu0 %v3805
        %v3807 = vpop.xlane.xlu0 %3806
        %v3808 = vsel %vm3765, %v2631, -inf
        %3809 = vmax.xlane.f32.xlu0 %v3808
        %v3810 = vpop.xlane.xlu0 %3809
        %v3811 = vsel %vm3765, %v2634, -inf
        %3812 = vmax.xlane.f32.xlu0 %v3811
        %v3813 = vpop.xlane.xlu0 %3812
        %v3814 = vsel %vm3765, %v2678, -inf
        %3815 = vmax.xlane.f32.xlu0 %v3814
        %v3816 = vpop.xlane.xlu0 %3815
        %v3817 = vsel %vm3765, %v2681, -inf
        %3818 = vmax.xlane.f32.xlu0 %v3817
        %v3819 = vpop.xlane.xlu0 %3818
        %v3820 = vsel %vm3765, %v2725, -inf
        %3821 = vmax.xlane.f32.xlu0 %v3820
        %v3822 = vpop.xlane.xlu0 %3821
        %v3823 = vsel %vm3765, %v2728, -inf
        %3824 = vmax.xlane.f32.xlu0 %v3823
        %v3825 = vpop.xlane.xlu0 %3824
        %v3826 = vsel %vm3765, %v2772, -inf
        %3827 = vmax.xlane.f32.xlu0 %v3826
        %v3828 = vpop.xlane.xlu0 %3827
        %v3829 = vsel %vm3765, %v2775, -inf
        %3830 = vmax.xlane.f32.xlu0 %v3829
        %v3831 = vpop.xlane.xlu0 %3830
        %v3832 = vsel %vm3765, %v2819, -inf
        %3833 = vmax.xlane.f32.xlu0 %v3832
        %v3834 = vpop.xlane.xlu0 %3833
        %v3835 = vsel %vm3765, %v2822, -inf
        %3836 = vmax.xlane.f32.xlu0 %v3835
        %v3837 = vpop.xlane.xlu0 %3836
        %v3838 = vsel %vm3765, %v2866, -inf
        %3839 = vmax.xlane.f32.xlu0 %v3838
        %v3840 = vpop.xlane.xlu0 %3839
        %v3841 = vsel %vm3765, %v2869, -inf
        %3842 = vmax.xlane.f32.xlu0 %v3841
        %v3843 = vpop.xlane.xlu0 %3842
        %v3844 = vsel %vm3765, %v2913, -inf
        %3845 = vmax.xlane.f32.xlu0 %v3844
        %v3846 = vpop.xlane.xlu0 %3845
        %v3847 = vsel %vm3765, %v2916, -inf
        %3848 = vmax.xlane.f32.xlu0 %v3847
        %v3849 = vpop.xlane.xlu0 %3848
        %v3850 = vsel %vm3765, %v2960, -inf
        %3851 = vmax.xlane.f32.xlu0 %v3850
        %v3852 = vpop.xlane.xlu0 %3851
        %v3853 = vsel %vm3765, %v2963, -inf
        %3854 = vmax.xlane.f32.xlu0 %v3853
        %v3855 = vpop.xlane.xlu0 %3854
        %v3856 = vsel %vm3765, %v3007, -inf
        %3857 = vmax.xlane.f32.xlu0 %v3856
        %v3858 = vpop.xlane.xlu0 %3857
        %v3859 = vsel %vm3765, %v3010, -inf
        %3860 = vmax.xlane.f32.xlu0 %v3859
        %v3861 = vpop.xlane.xlu0 %3860
        %v3862 = vsel %vm3765, %v3054, -inf
        %3863 = vmax.xlane.f32.xlu0 %v3862
        %v3864 = vpop.xlane.xlu0 %3863
        %v3865 = vsel %vm3765, %v3057, -inf
        %3866 = vmax.xlane.f32.xlu0 %v3865
        %v3867 = vpop.xlane.xlu0 %3866
        %v3868 = vsel %vm3765, %v3101, -inf
        %3869 = vmax.xlane.f32.xlu0 %v3868
        %v3870 = vpop.xlane.xlu0 %3869
        %v3871 = vsel %vm3765, %v3104, -inf
        %3872 = vmax.xlane.f32.xlu0 %v3871
        %v3873 = vpop.xlane.xlu0 %3872
        %v3874 = vsel %vm3765, %v3148, -inf
        %3875 = vmax.xlane.f32.xlu0 %v3874
        %v3876 = vpop.xlane.xlu0 %3875
        %v3877 = vsel %vm3765, %v3151, -inf
        %3878 = vmax.xlane.f32.xlu0 %v3877
        %v3879 = vpop.xlane.xlu0 %3878
        %v3880 = vsel %vm3765, %v3195, -inf
        %3881 = vmax.xlane.f32.xlu0 %v3880
        %v3882 = vpop.xlane.xlu0 %3881
        %v3883 = vsel %vm3765, %v3198, -inf
        %3884 = vmax.xlane.f32.xlu0 %v3883
        %v3885 = vpop.xlane.xlu0 %3884
        %v3886 = vsel %vm3765, %v3242, -inf
        %3887 = vmax.xlane.f32.xlu0 %v3886
        %v3888 = vpop.xlane.xlu0 %3887
        %v3889 = vsel %vm3765, %v3245, -inf
        %3890 = vmax.xlane.f32.xlu0 %v3889
        %v3891 = vpop.xlane.xlu0 %3890
        %v3892 = vsel %vm3765, %v3289, -inf
        %3893 = vmax.xlane.f32.xlu0 %v3892
        %v3894 = vpop.xlane.xlu0 %3893
        %v3895 = vsel %vm3765, %v3292, -inf
        %3896 = vmax.xlane.f32.xlu0 %v3895
        %v3897 = vpop.xlane.xlu0 %3896
        %v3898 = vsel %vm3765, %v3336, -inf
        %3899 = vmax.xlane.f32.xlu0 %v3898
        %v3900 = vpop.xlane.xlu0 %3899
        %v3901 = vsel %vm3765, %v3339, -inf
        %3902 = vmax.xlane.f32.xlu0 %v3901
        %v3903 = vpop.xlane.xlu0 %3902
        %v3904 = vsel %vm3765, %v3383, -inf
        %3905 = vmax.xlane.f32.xlu0 %v3904
        %v3906 = vpop.xlane.xlu0 %3905
        %v3907 = vsel %vm3765, %v3386, -inf
        %3908 = vmax.xlane.f32.xlu0 %v3907
        %v3909 = vpop.xlane.xlu0 %3908
        %v3910 = vsel %vm3765, %v3430, -inf
        %3911 = vmax.xlane.f32.xlu0 %v3910
        %v3912 = vpop.xlane.xlu0 %3911
        %v3913 = vsel %vm3765, %v3433, -inf
        %3914 = vmax.xlane.f32.xlu0 %v3913
        %v3915 = vpop.xlane.xlu0 %3914
        %v3916 = vsel %vm3765, %v3477, -inf
        %3917 = vmax.xlane.f32.xlu0 %v3916
        %v3918 = vpop.xlane.xlu0 %3917
        %v3919 = vsel %vm3765, %v3480, -inf
        %3920 = vmax.xlane.f32.xlu0 %v3919
        %v3921 = vpop.xlane.xlu0 %3920
        %v3922 = vsel %vm3765, %v3524, -inf
        %3923 = vmax.xlane.f32.xlu0 %v3922
        %v3924 = vpop.xlane.xlu0 %3923
        %v3925 = vsel %vm3765, %v3527, -inf
        %3926 = vmax.xlane.f32.xlu0 %v3925
        %v3927 = vpop.xlane.xlu0 %3926
        %v3928 = vsel %vm3765, %v3571, -inf
        %3929 = vmax.xlane.f32.xlu0 %v3928
        %v3930 = vpop.xlane.xlu0 %3929
        %v3931 = vsel %vm3765, %v3574, -inf
        %3932 = vmax.xlane.f32.xlu0 %v3931
        %v3933 = vpop.xlane.xlu0 %3932
        %v3934 = vsel %vm3765, %v3618, -inf
        %3935 = vmax.xlane.f32.xlu0 %v3934
        %v3936 = vpop.xlane.xlu0 %3935
        %v3937 = vsel %vm3765, %v3621, -inf
        %3938 = vmax.xlane.f32.xlu0 %v3937
        %v3939 = vpop.xlane.xlu0 %3938
        %v3940 = vsel %vm3765, %v3665, -inf
        %3941 = vmax.xlane.f32.xlu0 %v3940
        %v3942 = vpop.xlane.xlu0 %3941
        %v3943 = vsel %vm3765, %v3668, -inf
        %3944 = vmax.xlane.f32.xlu0 %v3943
        %v3945 = vpop.xlane.xlu0 %3944
        %v3946 = vsel %vm3765, %v3712, -inf
        %3947 = vmax.xlane.f32.xlu0 %v3946
        %v3948 = vpop.xlane.xlu0 %3947
        %v3949 = vsel %vm3765, %v3715, -inf
        %3950 = vmax.xlane.f32.xlu0 %v3949
        %v3951 = vpop.xlane.xlu0 %3950
        %v3952 = vsel %vm3765, %v3759, -inf
        %3953 = vmax.xlane.f32.xlu0 %v3952
        %v3954 = vpop.xlane.xlu0 %3953
        %v3955 = vsel %vm3765, %v3762, -inf
        %3956 = vmax.xlane.f32.xlu0 %v3955
        %v3957 = vpop.xlane.xlu0 %3956
        %v3958 = vsub.f32 %v2302, %v3768
        %v3959 = vsub.f32 %v2305, %v3771
        %v3960 = vsub.f32 %v2349, %v3774
        %v3961 = vsub.f32 %v2352, %v3777
        %v3962 = vsub.f32 %v2396, %v3780
        %v3963 = vsub.f32 %v2399, %v3783
        %v3964 = vsub.f32 %v2443, %v3786
        %v3965 = vsub.f32 %v2446, %v3789
        %v3966 = vsub.f32 %v2490, %v3792
        %v3967 = vsub.f32 %v2493, %v3795
        %v3968 = vsub.f32 %v2537, %v3798
        %v3969 = vsub.f32 %v2540, %v3801
        %v3970 = vsub.f32 %v2584, %v3804
        %v3971 = vsub.f32 %v2587, %v3807
        %v3972 = vsub.f32 %v2631, %v3810
        %v3973 = vsub.f32 %v2634, %v3813
        %v3974 = vsub.f32 %v2678, %v3816
        %v3975 = vsub.f32 %v2681, %v3819
        %v3976 = vsub.f32 %v2725, %v3822
        %v3977 = vsub.f32 %v2728, %v3825
        %v3978 = vsub.f32 %v2772, %v3828
        %v3979 = vsub.f32 %v2775, %v3831
        %v3980 = vsub.f32 %v2819, %v3834
        %v3981 = vsub.f32 %v2822, %v3837
        %v3982 = vsub.f32 %v2866, %v3840
        %v3983 = vsub.f32 %v2869, %v3843
        %v3984 = vsub.f32 %v2913, %v3846
        %v3985 = vsub.f32 %v2916, %v3849
        %v3986 = vsub.f32 %v2960, %v3852
        %v3987 = vsub.f32 %v2963, %v3855
        %v3988 = vsub.f32 %v3007, %v3858
        %v3989 = vsub.f32 %v3010, %v3861
        %v3990 = vsub.f32 %v3054, %v3864
        %v3991 = vsub.f32 %v3057, %v3867
        %v3992 = vsub.f32 %v3101, %v3870
        %v3993 = vsub.f32 %v3104, %v3873
        %v3994 = vsub.f32 %v3148, %v3876
        %v3995 = vsub.f32 %v3151, %v3879
        %v3996 = vsub.f32 %v3195, %v3882
        %v3997 = vsub.f32 %v3198, %v3885
        %v3998 = vsub.f32 %v3242, %v3888
        %v3999 = vsub.f32 %v3245, %v3891
        %v4000 = vsub.f32 %v3289, %v3894
        %v4001 = vsub.f32 %v3292, %v3897
        %v4002 = vsub.f32 %v3336, %v3900
        %v4003 = vsub.f32 %v3339, %v3903
        %v4004 = vsub.f32 %v3383, %v3906
        %v4005 = vsub.f32 %v3386, %v3909
        %v4006 = vsub.f32 %v3430, %v3912
        %v4007 = vsub.f32 %v3433, %v3915
        %v4008 = vsub.f32 %v3477, %v3918
        %v4009 = vsub.f32 %v3480, %v3921
        %v4010 = vsub.f32 %v3524, %v3924
        %v4011 = vsub.f32 %v3527, %v3927
        %v4012 = vsub.f32 %v3571, %v3930
        %v4013 = vsub.f32 %v3574, %v3933
        %v4014 = vsub.f32 %v3618, %v3936
        %v4015 = vsub.f32 %v3621, %v3939
        %v4016 = vsub.f32 %v3665, %v3942
        %v4017 = vsub.f32 %v3668, %v3945
        %v4018 = vsub.f32 %v3712, %v3948
        %v4019 = vsub.f32 %v3715, %v3951
        %v4020 = vsub.f32 %v3759, %v3954
        %v4021 = vsub.f32 %v3762, %v3957
        %v4022 = vmul.f32 %v3958, 1.442695
        %v4023 = vpow.pop %v4022
        %v4024 = vmul.f32 %v3959, 1.442695
        %v4025 = vpow.pop %v4024
        %v4026 = vmul.f32 %v3960, 1.442695
        %v4027 = vpow.pop %v4026
        %v4028 = vmul.f32 %v3961, 1.442695
        %v4029 = vpow.pop %v4028
        %v4030 = vmul.f32 %v3962, 1.442695
        %v4031 = vpow.pop %v4030
        %v4032 = vmul.f32 %v3963, 1.442695
        %v4033 = vpow.pop %v4032
        %v4034 = vmul.f32 %v3964, 1.442695
        %v4035 = vpow.pop %v4034
        %v4036 = vmul.f32 %v3965, 1.442695
        %v4037 = vpow.pop %v4036
        %v4038 = vmul.f32 %v3966, 1.442695
        %v4039 = vpow.pop %v4038
        %v4040 = vmul.f32 %v3967, 1.442695
        %v4041 = vpow.pop %v4040
        %v4042 = vmul.f32 %v3968, 1.442695
        %v4043 = vpow.pop %v4042
        %v4044 = vmul.f32 %v3969, 1.442695
        %v4045 = vpow.pop %v4044
        %v4046 = vmul.f32 %v3970, 1.442695
        %v4047 = vpow.pop %v4046
        %v4048 = vmul.f32 %v3971, 1.442695
        %v4049 = vpow.pop %v4048
        %v4050 = vmul.f32 %v3972, 1.442695
        %v4051 = vpow.pop %v4050
        %v4052 = vmul.f32 %v3973, 1.442695
        %v4053 = vpow.pop %v4052
        %v4054 = vmul.f32 %v3974, 1.442695
        %v4055 = vpow.pop %v4054
        %v4056 = vmul.f32 %v3975, 1.442695
        %v4057 = vpow.pop %v4056
        %v4058 = vmul.f32 %v3976, 1.442695
        %v4059 = vpow.pop %v4058
        %v4060 = vmul.f32 %v3977, 1.442695
        %v4061 = vpow.pop %v4060
        %v4062 = vmul.f32 %v3978, 1.442695
        %v4063 = vpow.pop %v4062
        %v4064 = vmul.f32 %v3979, 1.442695
        %v4065 = vpow.pop %v4064
        %v4066 = vmul.f32 %v3980, 1.442695
        %v4067 = vpow.pop %v4066
        %v4068 = vmul.f32 %v3981, 1.442695
        %v4069 = vpow.pop %v4068
        %v4070 = vmul.f32 %v3982, 1.442695
        %v4071 = vpow.pop %v4070
        %v4072 = vmul.f32 %v3983, 1.442695
        %v4073 = vpow.pop %v4072
        %v4074 = vmul.f32 %v3984, 1.442695
        %v4075 = vpow.pop %v4074
        %v4076 = vmul.f32 %v3985, 1.442695
        %v4077 = vpow.pop %v4076
        %v4078 = vmul.f32 %v3986, 1.442695
        %v4079 = vpow.pop %v4078
        %v4080 = vmul.f32 %v3987, 1.442695
        %v4081 = vpow.pop %v4080
        %v4082 = vmul.f32 %v3988, 1.442695
        %v4083 = vpow.pop %v4082
        %v4084 = vmul.f32 %v3989, 1.442695
        %v4085 = vpow.pop %v4084
        %v4086 = vmul.f32 %v3990, 1.442695
        %v4087 = vpow.pop %v4086
        %v4088 = vmul.f32 %v3991, 1.442695
        %v4089 = vpow.pop %v4088
        %v4090 = vmul.f32 %v3992, 1.442695
        %v4091 = vpow.pop %v4090
        %v4092 = vmul.f32 %v3993, 1.442695
        %v4093 = vpow.pop %v4092
        %v4094 = vmul.f32 %v3994, 1.442695
        %v4095 = vpow.pop %v4094
        %v4096 = vmul.f32 %v3995, 1.442695
        %v4097 = vpow.pop %v4096
        %v4098 = vmul.f32 %v3996, 1.442695
        %v4099 = vpow.pop %v4098
        %v4100 = vmul.f32 %v3997, 1.442695
        %v4101 = vpow.pop %v4100
        %v4102 = vmul.f32 %v3998, 1.442695
        %v4103 = vpow.pop %v4102
        %v4104 = vmul.f32 %v3999, 1.442695
        %v4105 = vpow.pop %v4104
        %v4106 = vmul.f32 %v4000, 1.442695
        %v4107 = vpow.pop %v4106
        %v4108 = vmul.f32 %v4001, 1.442695
        %v4109 = vpow.pop %v4108
        %v4110 = vmul.f32 %v4002, 1.442695
        %v4111 = vpow.pop %v4110
        %v4112 = vmul.f32 %v4003, 1.442695
        %v4113 = vpow.pop %v4112
        %v4114 = vmul.f32 %v4004, 1.442695
        %v4115 = vpow.pop %v4114
        %v4116 = vmul.f32 %v4005, 1.442695
        %v4117 = vpow.pop %v4116
        %v4118 = vmul.f32 %v4006, 1.442695
        %v4119 = vpow.pop %v4118
        %v4120 = vmul.f32 %v4007, 1.442695
        %v4121 = vpow.pop %v4120
        %v4122 = vmul.f32 %v4008, 1.442695
        %v4123 = vpow.pop %v4122
        %v4124 = vmul.f32 %v4009, 1.442695
        %v4125 = vpow.pop %v4124
        %v4126 = vmul.f32 %v4010, 1.442695
        %v4127 = vpow.pop %v4126
        %v4128 = vmul.f32 %v4011, 1.442695
        %v4129 = vpow.pop %v4128
        %v4130 = vmul.f32 %v4012, 1.442695
        %v4131 = vpow.pop %v4130
        %v4132 = vmul.f32 %v4013, 1.442695
        %v4133 = vpow.pop %v4132
        %v4134 = vmul.f32 %v4014, 1.442695
        %v4135 = vpow.pop %v4134
        %v4136 = vmul.f32 %v4015, 1.442695
        %v4137 = vpow.pop %v4136
        %v4138 = vmul.f32 %v4016, 1.442695
        %v4139 = vpow.pop %v4138
        %v4140 = vmul.f32 %v4017, 1.442695
        %v4141 = vpow.pop %v4140
        %v4142 = vmul.f32 %v4018, 1.442695
        %v4143 = vpow.pop %v4142
        %v4144 = vmul.f32 %v4019, 1.442695
        %v4145 = vpow.pop %v4144
        %v4146 = vmul.f32 %v4020, 1.442695
        %v4147 = vpow.pop %v4146
        %v4148 = vmul.f32 %v4021, 1.442695
        %v4149 = vpow.pop %v4148
        %v4150 = vsel %vm3765, %v4023, 0.0
        %4151 = vadd.xlane.f32.xlu0 %v4150
        %v4152 = vpop.xlane.xlu0 %4151
        %v4153 = vsel %vm3765, %v4025, 0.0
        %4154 = vadd.xlane.f32.xlu0 %v4153
        %v4155 = vpop.xlane.xlu0 %4154
        %v4156 = vsel %vm3765, %v4027, 0.0
        %4157 = vadd.xlane.f32.xlu0 %v4156
        %v4158 = vpop.xlane.xlu0 %4157
        %v4159 = vsel %vm3765, %v4029, 0.0
        %4160 = vadd.xlane.f32.xlu0 %v4159
        %v4161 = vpop.xlane.xlu0 %4160
        %v4162 = vsel %vm3765, %v4031, 0.0
        %4163 = vadd.xlane.f32.xlu0 %v4162
        %v4164 = vpop.xlane.xlu0 %4163
        %v4165 = vsel %vm3765, %v4033, 0.0
        %4166 = vadd.xlane.f32.xlu0 %v4165
        %v4167 = vpop.xlane.xlu0 %4166
        %v4168 = vsel %vm3765, %v4035, 0.0
        %4169 = vadd.xlane.f32.xlu0 %v4168
        %v4170 = vpop.xlane.xlu0 %4169
        %v4171 = vsel %vm3765, %v4037, 0.0
        %4172 = vadd.xlane.f32.xlu0 %v4171
        %v4173 = vpop.xlane.xlu0 %4172
        %v4174 = vsel %vm3765, %v4039, 0.0
        %4175 = vadd.xlane.f32.xlu0 %v4174
        %v4176 = vpop.xlane.xlu0 %4175
        %v4177 = vsel %vm3765, %v4041, 0.0
        %4178 = vadd.xlane.f32.xlu0 %v4177
        %v4179 = vpop.xlane.xlu0 %4178
        %v4180 = vsel %vm3765, %v4043, 0.0
        %4181 = vadd.xlane.f32.xlu0 %v4180
        %v4182 = vpop.xlane.xlu0 %4181
        %v4183 = vsel %vm3765, %v4045, 0.0
        %4184 = vadd.xlane.f32.xlu0 %v4183
        %v4185 = vpop.xlane.xlu0 %4184
        %v4186 = vsel %vm3765, %v4047, 0.0
        %4187 = vadd.xlane.f32.xlu0 %v4186
        %v4188 = vpop.xlane.xlu0 %4187
        %v4189 = vsel %vm3765, %v4049, 0.0
        %4190 = vadd.xlane.f32.xlu0 %v4189
        %v4191 = vpop.xlane.xlu0 %4190
        %v4192 = vsel %vm3765, %v4051, 0.0
        %4193 = vadd.xlane.f32.xlu0 %v4192
        %v4194 = vpop.xlane.xlu0 %4193
        %v4195 = vsel %vm3765, %v4053, 0.0
        %4196 = vadd.xlane.f32.xlu0 %v4195
        %v4197 = vpop.xlane.xlu0 %4196
        %v4198 = vsel %vm3765, %v4055, 0.0
        %4199 = vadd.xlane.f32.xlu0 %v4198
        %v4200 = vpop.xlane.xlu0 %4199
        %v4201 = vsel %vm3765, %v4057, 0.0
        %4202 = vadd.xlane.f32.xlu0 %v4201
        %v4203 = vpop.xlane.xlu0 %4202
        %v4204 = vsel %vm3765, %v4059, 0.0
        %4205 = vadd.xlane.f32.xlu0 %v4204
        %v4206 = vpop.xlane.xlu0 %4205
        %v4207 = vsel %vm3765, %v4061, 0.0
        %4208 = vadd.xlane.f32.xlu0 %v4207
        %v4209 = vpop.xlane.xlu0 %4208
        %v4210 = vsel %vm3765, %v4063, 0.0
        %4211 = vadd.xlane.f32.xlu0 %v4210
        %v4212 = vpop.xlane.xlu0 %4211
        %v4213 = vsel %vm3765, %v4065, 0.0
        %4214 = vadd.xlane.f32.xlu0 %v4213
        %v4215 = vpop.xlane.xlu0 %4214
        %v4216 = vsel %vm3765, %v4067, 0.0
        %4217 = vadd.xlane.f32.xlu0 %v4216
        %v4218 = vpop.xlane.xlu0 %4217
        %v4219 = vsel %vm3765, %v4069, 0.0
        %4220 = vadd.xlane.f32.xlu0 %v4219
        %v4221 = vpop.xlane.xlu0 %4220
        %v4222 = vsel %vm3765, %v4071, 0.0
        %4223 = vadd.xlane.f32.xlu0 %v4222
        %v4224 = vpop.xlane.xlu0 %4223
        %v4225 = vsel %vm3765, %v4073, 0.0
        %4226 = vadd.xlane.f32.xlu0 %v4225
        %v4227 = vpop.xlane.xlu0 %4226
        %v4228 = vsel %vm3765, %v4075, 0.0
        %4229 = vadd.xlane.f32.xlu0 %v4228
        %v4230 = vpop.xlane.xlu0 %4229
        %v4231 = vsel %vm3765, %v4077, 0.0
        %4232 = vadd.xlane.f32.xlu0 %v4231
        %v4233 = vpop.xlane.xlu0 %4232
        %v4234 = vsel %vm3765, %v4079, 0.0
        %4235 = vadd.xlane.f32.xlu0 %v4234
        %v4236 = vpop.xlane.xlu0 %4235
        %v4237 = vsel %vm3765, %v4081, 0.0
        %4238 = vadd.xlane.f32.xlu0 %v4237
        %v4239 = vpop.xlane.xlu0 %4238
        %v4240 = vsel %vm3765, %v4083, 0.0
        %4241 = vadd.xlane.f32.xlu0 %v4240
        %v4242 = vpop.xlane.xlu0 %4241
        %v4243 = vsel %vm3765, %v4085, 0.0
        %4244 = vadd.xlane.f32.xlu0 %v4243
        %v4245 = vpop.xlane.xlu0 %4244
        %v4246 = vsel %vm3765, %v4087, 0.0
        %4247 = vadd.xlane.f32.xlu0 %v4246
        %v4248 = vpop.xlane.xlu0 %4247
        %v4249 = vsel %vm3765, %v4089, 0.0
        %4250 = vadd.xlane.f32.xlu0 %v4249
        %v4251 = vpop.xlane.xlu0 %4250
        %v4252 = vsel %vm3765, %v4091, 0.0
        %4253 = vadd.xlane.f32.xlu0 %v4252
        %v4254 = vpop.xlane.xlu0 %4253
        %v4255 = vsel %vm3765, %v4093, 0.0
        %4256 = vadd.xlane.f32.xlu0 %v4255
        %v4257 = vpop.xlane.xlu0 %4256
        %v4258 = vsel %vm3765, %v4095, 0.0
        %4259 = vadd.xlane.f32.xlu0 %v4258
        %v4260 = vpop.xlane.xlu0 %4259
        %v4261 = vsel %vm3765, %v4097, 0.0
        %4262 = vadd.xlane.f32.xlu0 %v4261
        %v4263 = vpop.xlane.xlu0 %4262
        %v4264 = vsel %vm3765, %v4099, 0.0
        %4265 = vadd.xlane.f32.xlu0 %v4264
        %v4266 = vpop.xlane.xlu0 %4265
        %v4267 = vsel %vm3765, %v4101, 0.0
        %4268 = vadd.xlane.f32.xlu0 %v4267
        %v4269 = vpop.xlane.xlu0 %4268
        %v4270 = vsel %vm3765, %v4103, 0.0
        %4271 = vadd.xlane.f32.xlu0 %v4270
        %v4272 = vpop.xlane.xlu0 %4271
        %v4273 = vsel %vm3765, %v4105, 0.0
        %4274 = vadd.xlane.f32.xlu0 %v4273
        %v4275 = vpop.xlane.xlu0 %4274
        %v4276 = vsel %vm3765, %v4107, 0.0
        %4277 = vadd.xlane.f32.xlu0 %v4276
        %v4278 = vpop.xlane.xlu0 %4277
        %v4279 = vsel %vm3765, %v4109, 0.0
        %4280 = vadd.xlane.f32.xlu0 %v4279
        %v4281 = vpop.xlane.xlu0 %4280
        %v4282 = vsel %vm3765, %v4111, 0.0
        %4283 = vadd.xlane.f32.xlu0 %v4282
        %v4284 = vpop.xlane.xlu0 %4283
        %v4285 = vsel %vm3765, %v4113, 0.0
        %4286 = vadd.xlane.f32.xlu0 %v4285
        %v4287 = vpop.xlane.xlu0 %4286
        %v4288 = vsel %vm3765, %v4115, 0.0
        %4289 = vadd.xlane.f32.xlu0 %v4288
        %v4290 = vpop.xlane.xlu0 %4289
        %v4291 = vsel %vm3765, %v4117, 0.0
        %4292 = vadd.xlane.f32.xlu0 %v4291
        %v4293 = vpop.xlane.xlu0 %4292
        %v4294 = vsel %vm3765, %v4119, 0.0
        %4295 = vadd.xlane.f32.xlu0 %v4294
        %v4296 = vpop.xlane.xlu0 %4295
        %v4297 = vsel %vm3765, %v4121, 0.0
        %4298 = vadd.xlane.f32.xlu0 %v4297
        %v4299 = vpop.xlane.xlu0 %4298
        %v4300 = vsel %vm3765, %v4123, 0.0
        %4301 = vadd.xlane.f32.xlu0 %v4300
        %v4302 = vpop.xlane.xlu0 %4301
        %v4303 = vsel %vm3765, %v4125, 0.0
        %4304 = vadd.xlane.f32.xlu0 %v4303
        %v4305 = vpop.xlane.xlu0 %4304
        %v4306 = vsel %vm3765, %v4127, 0.0
        %4307 = vadd.xlane.f32.xlu0 %v4306
        %v4308 = vpop.xlane.xlu0 %4307
        %v4309 = vsel %vm3765, %v4129, 0.0
        %4310 = vadd.xlane.f32.xlu0 %v4309
        %v4311 = vpop.xlane.xlu0 %4310
        %v4312 = vsel %vm3765, %v4131, 0.0
        %4313 = vadd.xlane.f32.xlu0 %v4312
        %v4314 = vpop.xlane.xlu0 %4313
        %v4315 = vsel %vm3765, %v4133, 0.0
        %4316 = vadd.xlane.f32.xlu0 %v4315
        %v4317 = vpop.xlane.xlu0 %4316
        %v4318 = vsel %vm3765, %v4135, 0.0
        %4319 = vadd.xlane.f32.xlu0 %v4318
        %v4320 = vpop.xlane.xlu0 %4319
        %v4321 = vsel %vm3765, %v4137, 0.0
        %4322 = vadd.xlane.f32.xlu0 %v4321
        %v4323 = vpop.xlane.xlu0 %4322
        %v4324 = vsel %vm3765, %v4139, 0.0
        %4325 = vadd.xlane.f32.xlu0 %v4324
        %v4326 = vpop.xlane.xlu0 %4325
        %v4327 = vsel %vm3765, %v4141, 0.0
        %4328 = vadd.xlane.f32.xlu0 %v4327
        %v4329 = vpop.xlane.xlu0 %4328
        %v4330 = vsel %vm3765, %v4143, 0.0
        %4331 = vadd.xlane.f32.xlu0 %v4330
        %v4332 = vpop.xlane.xlu0 %4331
        %v4333 = vsel %vm3765, %v4145, 0.0
        %4334 = vadd.xlane.f32.xlu0 %v4333
        %v4335 = vpop.xlane.xlu0 %4334
        %v4336 = vsel %vm3765, %v4147, 0.0
        %4337 = vadd.xlane.f32.xlu0 %v4336
        %v4338 = vpop.xlane.xlu0 %4337
        %v4339 = vsel %vm3765, %v4149, 0.0
        %4340 = vadd.xlane.f32.xlu0 %v4339
        %v4341 = vpop.xlane.xlu0 %4340
        %v4342 = vrcp.pop %v4152
        %v4343 = vrcp.pop %v4155
        %v4344 = vrcp.pop %v4158
        %v4345 = vrcp.pop %v4161
        %v4346 = vrcp.pop %v4164
        %v4347 = vrcp.pop %v4167
        %v4348 = vrcp.pop %v4170
        %v4349 = vrcp.pop %v4173
        %v4350 = vrcp.pop %v4176
        %v4351 = vrcp.pop %v4179
        %v4352 = vrcp.pop %v4182
        %v4353 = vrcp.pop %v4185
        %v4354 = vrcp.pop %v4188
        %v4355 = vrcp.pop %v4191
        %v4356 = vrcp.pop %v4194
        %v4357 = vrcp.pop %v4197
        %v4358 = vrcp.pop %v4200
        %v4359 = vrcp.pop %v4203
        %v4360 = vrcp.pop %v4206
        %v4361 = vrcp.pop %v4209
        %v4362 = vrcp.pop %v4212
        %v4363 = vrcp.pop %v4215
        %v4364 = vrcp.pop %v4218
        %v4365 = vrcp.pop %v4221
        %v4366 = vrcp.pop %v4224
        %v4367 = vrcp.pop %v4227
        %v4368 = vrcp.pop %v4230
        %v4369 = vrcp.pop %v4233
        %v4370 = vrcp.pop %v4236
        %v4371 = vrcp.pop %v4239
        %v4372 = vrcp.pop %v4242
        %v4373 = vrcp.pop %v4245
        %v4374 = vrcp.pop %v4248
        %v4375 = vrcp.pop %v4251
        %v4376 = vrcp.pop %v4254
        %v4377 = vrcp.pop %v4257
        %v4378 = vrcp.pop %v4260
        %v4379 = vrcp.pop %v4263
        %v4380 = vrcp.pop %v4266
        %v4381 = vrcp.pop %v4269
        %v4382 = vrcp.pop %v4272
        %v4383 = vrcp.pop %v4275
        %v4384 = vrcp.pop %v4278
        %v4385 = vrcp.pop %v4281
        %v4386 = vrcp.pop %v4284
        %v4387 = vrcp.pop %v4287
        %v4388 = vrcp.pop %v4290
        %v4389 = vrcp.pop %v4293
        %v4390 = vrcp.pop %v4296
        %v4391 = vrcp.pop %v4299
        %v4392 = vrcp.pop %v4302
        %v4393 = vrcp.pop %v4305
        %v4394 = vrcp.pop %v4308
        %v4395 = vrcp.pop %v4311
        %v4396 = vrcp.pop %v4314
        %v4397 = vrcp.pop %v4317
        %v4398 = vrcp.pop %v4320
        %v4399 = vrcp.pop %v4323
        %v4400 = vrcp.pop %v4326
        %v4401 = vrcp.pop %v4329
        %v4402 = vrcp.pop %v4332
        %v4403 = vrcp.pop %v4335
        %v4404 = vrcp.pop %v4338
        %v4405 = vrcp.pop %v4341
        %v4406 = vmul.f32 %v4023, %v4342
        %v4407 = vmul.f32 %v4025, %v4343
        %v4408 = vmul.f32 %v4027, %v4344
        %v4409 = vmul.f32 %v4029, %v4345
        %v4410 = vmul.f32 %v4031, %v4346
        %v4411 = vmul.f32 %v4033, %v4347
        %v4412 = vmul.f32 %v4035, %v4348
        %v4413 = vmul.f32 %v4037, %v4349
        %v4414 = vmul.f32 %v4039, %v4350
        %v4415 = vmul.f32 %v4041, %v4351
        %v4416 = vmul.f32 %v4043, %v4352
        %v4417 = vmul.f32 %v4045, %v4353
        %v4418 = vmul.f32 %v4047, %v4354
        %v4419 = vmul.f32 %v4049, %v4355
        %v4420 = vmul.f32 %v4051, %v4356
        %v4421 = vmul.f32 %v4053, %v4357
        %v4422 = vmul.f32 %v4055, %v4358
        %v4423 = vmul.f32 %v4057, %v4359
        %v4424 = vmul.f32 %v4059, %v4360
        %v4425 = vmul.f32 %v4061, %v4361
        %v4426 = vmul.f32 %v4063, %v4362
        %v4427 = vmul.f32 %v4065, %v4363
        %v4428 = vmul.f32 %v4067, %v4364
        %v4429 = vmul.f32 %v4069, %v4365
        %v4430 = vmul.f32 %v4071, %v4366
        %v4431 = vmul.f32 %v4073, %v4367
        %v4432 = vmul.f32 %v4075, %v4368
        %v4433 = vmul.f32 %v4077, %v4369
        %v4434 = vmul.f32 %v4079, %v4370
        %v4435 = vmul.f32 %v4081, %v4371
        %v4436 = vmul.f32 %v4083, %v4372
        %v4437 = vmul.f32 %v4085, %v4373
        %v4438 = vmul.f32 %v4087, %v4374
        %v4439 = vmul.f32 %v4089, %v4375
        %v4440 = vmul.f32 %v4091, %v4376
        %v4441 = vmul.f32 %v4093, %v4377
        %v4442 = vmul.f32 %v4095, %v4378
        %v4443 = vmul.f32 %v4097, %v4379
        %v4444 = vmul.f32 %v4099, %v4380
        %v4445 = vmul.f32 %v4101, %v4381
        %v4446 = vmul.f32 %v4103, %v4382
        %v4447 = vmul.f32 %v4105, %v4383
        %v4448 = vmul.f32 %v4107, %v4384
        %v4449 = vmul.f32 %v4109, %v4385
        %v4450 = vmul.f32 %v4111, %v4386
        %v4451 = vmul.f32 %v4113, %v4387
        %v4452 = vmul.f32 %v4115, %v4388
        %v4453 = vmul.f32 %v4117, %v4389
        %v4454 = vmul.f32 %v4119, %v4390
        %v4455 = vmul.f32 %v4121, %v4391
        %v4456 = vmul.f32 %v4123, %v4392
        %v4457 = vmul.f32 %v4125, %v4393
        %v4458 = vmul.f32 %v4127, %v4394
        %v4459 = vmul.f32 %v4129, %v4395
        %v4460 = vmul.f32 %v4131, %v4396
        %v4461 = vmul.f32 %v4133, %v4397
        %v4462 = vmul.f32 %v4135, %v4398
        %v4463 = vmul.f32 %v4137, %v4399
        %v4464 = vmul.f32 %v4139, %v4400
        %v4465 = vmul.f32 %v4141, %v4401
        %v4466 = vmul.f32 %v4143, %v4402
        %v4467 = vmul.f32 %v4145, %v4403
        %v4468 = vmul.f32 %v4147, %v4404
        %v4469 = vmul.f32 %v4149, %v4405
        %v4470 = vpack.c.bf16 %v4407, %v4406
        %v4471 = vpack.c.bf16 %v4409, %v4408
        %v4472 = vpack.c.bf16 %v4411, %v4410
        %v4473 = vpack.c.bf16 %v4413, %v4412
        %v4474 = vpack.c.bf16 %v4415, %v4414
        %v4475 = vpack.c.bf16 %v4417, %v4416
        %v4476 = vpack.c.bf16 %v4419, %v4418
        %v4477 = vpack.c.bf16 %v4421, %v4420
        %v4478 = vpack.c.bf16 %v4423, %v4422
        %v4479 = vpack.c.bf16 %v4425, %v4424
        %v4480 = vpack.c.bf16 %v4427, %v4426
        %v4481 = vpack.c.bf16 %v4429, %v4428
        %v4482 = vpack.c.bf16 %v4431, %v4430
        %v4483 = vpack.c.bf16 %v4433, %v4432
        %v4484 = vpack.c.bf16 %v4435, %v4434
        %v4485 = vpack.c.bf16 %v4437, %v4436
        %v4486 = vpack.c.bf16 %v4439, %v4438
        %v4487 = vpack.c.bf16 %v4441, %v4440
        %v4488 = vpack.c.bf16 %v4443, %v4442
        %v4489 = vpack.c.bf16 %v4445, %v4444
        %v4490 = vpack.c.bf16 %v4447, %v4446
        %v4491 = vpack.c.bf16 %v4449, %v4448
        %v4492 = vpack.c.bf16 %v4451, %v4450
        %v4493 = vpack.c.bf16 %v4453, %v4452
        %v4494 = vpack.c.bf16 %v4455, %v4454
        %v4495 = vpack.c.bf16 %v4457, %v4456
        %v4496 = vpack.c.bf16 %v4459, %v4458
        %v4497 = vpack.c.bf16 %v4461, %v4460
        %v4498 = vpack.c.bf16 %v4463, %v4462
        %v4499 = vpack.c.bf16 %v4465, %v4464
        %v4500 = vpack.c.bf16 %v4467, %v4466
        %v4501 = vpack.c.bf16 %v4469, %v4468
        %v4503 = vsel %vm3765, %v4470, 0
        %4505 = vmatprep.subr.bf16.mxu0 0
        %4506 = vmatpush1.bf16.msra.mxu0 0
        %4507 = vmatprep.subr.bf16.mxu0 0
        %4508 = vmatpush1.bf16.msra.mxu0 0
        %4509 = vmatprep.subr.bf16.mxu0 0
        %4510 = vmatpush1.bf16.msra.mxu0 0
        %4511 = vmatprep.subr.bf16.mxu0 0
        %4512 = vmatpush1.bf16.msra.mxu0 0
        %4513 = vmatprep.subr.bf16.mxu0 0
        %4514 = vmatpush1.bf16.msra.mxu0 0
        %4515 = vmatprep.subr.bf16.mxu0 0
        %4516 = vmatpush1.bf16.msra.mxu0 0
        %4517 = vmatprep.subr.bf16.mxu0 0
        %4518 = vmatpush1.bf16.msra.mxu0 0
        %4519 = vmatprep.subr.bf16.mxu0 0
        %4520 = vmatpush1.bf16.msra.mxu0 %v2228
        %4521 = vmatprep.subr.bf16.mxu0 0
        %4522 = vmatpush2.bf16.msra.mxu0 0
        %4523 = vmatprep.subr.bf16.mxu0 0
        %4524 = vmatpush2.bf16.msra.mxu0 0
        %4525 = vmatprep.subr.bf16.mxu0 0
        %4526 = vmatpush2.bf16.msra.mxu0 0
        %4527 = vmatprep.subr.bf16.mxu0 0
        %4528 = vmatpush2.bf16.msra.mxu0 0
        %4529 = vmatprep.subr.bf16.mxu0 0
        %4530 = vmatpush2.bf16.msra.mxu0 0
        %4531 = vmatprep.subr.bf16.mxu0 0
        %4532 = vmatpush2.bf16.msra.mxu0 0
        %4533 = vmatprep.subr.bf16.mxu0 0
        %4534 = vmatpush2.bf16.msra.mxu0 0
        %4535 = vmatprep.subr.bf16.mxu0 0
        %4536 = vmatpush2.bf16.msra.mxu0 0
        %4537 = vmatprep.mubr.bf16.mxu0 0
        %4538 = vmatmul.mubr.bf16.gmra.mxu0 %v4503
        %v4539 = vpop.f32.mrf.mxu0
        %v4540 = vadd.f32 0.0, %v4539
        %v4541 = vpop.f32.mrf.mxu0
        %v4542 = vpop.f32.mrf.mxu0
        %v4543 = vadd.f32 0.0, %v4542
        %v4544 = vpop.f32.mrf.mxu0
        %4545 = vdwg.mxu0
        %v4547 = vsel %vm3765, %v4471, 0
        %4549 = vmatprep.subr.bf16.mxu0 0
        %4550 = vmatpush1.bf16.msra.mxu0 0
        %4551 = vmatprep.subr.bf16.mxu0 0
        %4552 = vmatpush1.bf16.msra.mxu0 0
        %4553 = vmatprep.subr.bf16.mxu0 0
        %4554 = vmatpush1.bf16.msra.mxu0 0
        %4555 = vmatprep.subr.bf16.mxu0 0
        %4556 = vmatpush1.bf16.msra.mxu0 0
        %4557 = vmatprep.subr.bf16.mxu0 0
        %4558 = vmatpush1.bf16.msra.mxu0 0
        %4559 = vmatprep.subr.bf16.mxu0 0
        %4560 = vmatpush1.bf16.msra.mxu0 0
        %4561 = vmatprep.subr.bf16.mxu0 0
        %4562 = vmatpush1.bf16.msra.mxu0 0
        %4563 = vmatprep.subr.bf16.mxu0 0
        %4564 = vmatpush1.bf16.msra.mxu0 %v2229
        %4565 = vmatprep.subr.bf16.mxu0 0
        %4566 = vmatpush2.bf16.msra.mxu0 0
        %4567 = vmatprep.subr.bf16.mxu0 0
        %4568 = vmatpush2.bf16.msra.mxu0 0
        %4569 = vmatprep.subr.bf16.mxu0 0
        %4570 = vmatpush2.bf16.msra.mxu0 0
        %4571 = vmatprep.subr.bf16.mxu0 0
        %4572 = vmatpush2.bf16.msra.mxu0 0
        %4573 = vmatprep.subr.bf16.mxu0 0
        %4574 = vmatpush2.bf16.msra.mxu0 0
        %4575 = vmatprep.subr.bf16.mxu0 0
        %4576 = vmatpush2.bf16.msra.mxu0 0
        %4577 = vmatprep.subr.bf16.mxu0 0
        %4578 = vmatpush2.bf16.msra.mxu0 0
        %4579 = vmatprep.subr.bf16.mxu0 0
        %4580 = vmatpush2.bf16.msra.mxu0 0
        %4581 = vmatprep.mubr.bf16.mxu0 0
        %4582 = vmatmul.mubr.bf16.gmra.mxu0 %v4547
        %v4583 = vpop.f32.mrf.mxu0
        %v4584 = vadd.f32 0.0, %v4583
        %v4585 = vpop.f32.mrf.mxu0
        %v4586 = vpop.f32.mrf.mxu0
        %v4587 = vadd.f32 0.0, %v4586
        %v4588 = vpop.f32.mrf.mxu0
        %4589 = vdwg.mxu0
        %v4591 = vsel %vm3765, %v4472, 0
        %4593 = vmatprep.subr.bf16.mxu0 0
        %4594 = vmatpush1.bf16.msra.mxu0 0
        %4595 = vmatprep.subr.bf16.mxu0 0
        %4596 = vmatpush1.bf16.msra.mxu0 0
        %4597 = vmatprep.subr.bf16.mxu0 0
        %4598 = vmatpush1.bf16.msra.mxu0 0
        %4599 = vmatprep.subr.bf16.mxu0 0
        %4600 = vmatpush1.bf16.msra.mxu0 0
        %4601 = vmatprep.subr.bf16.mxu0 0
        %4602 = vmatpush1.bf16.msra.mxu0 0
        %4603 = vmatprep.subr.bf16.mxu0 0
        %4604 = vmatpush1.bf16.msra.mxu0 0
        %4605 = vmatprep.subr.bf16.mxu0 0
        %4606 = vmatpush1.bf16.msra.mxu0 0
        %4607 = vmatprep.subr.bf16.mxu0 0
        %4608 = vmatpush1.bf16.msra.mxu0 %v2230
        %4609 = vmatprep.subr.bf16.mxu0 0
        %4610 = vmatpush2.bf16.msra.mxu0 0
        %4611 = vmatprep.subr.bf16.mxu0 0
        %4612 = vmatpush2.bf16.msra.mxu0 0
        %4613 = vmatprep.subr.bf16.mxu0 0
        %4614 = vmatpush2.bf16.msra.mxu0 0
        %4615 = vmatprep.subr.bf16.mxu0 0
        %4616 = vmatpush2.bf16.msra.mxu0 0
        %4617 = vmatprep.subr.bf16.mxu0 0
        %4618 = vmatpush2.bf16.msra.mxu0 0
        %4619 = vmatprep.subr.bf16.mxu0 0
        %4620 = vmatpush2.bf16.msra.mxu0 0
        %4621 = vmatprep.subr.bf16.mxu0 0
        %4622 = vmatpush2.bf16.msra.mxu0 0
        %4623 = vmatprep.subr.bf16.mxu0 0
        %4624 = vmatpush2.bf16.msra.mxu0 0
        %4625 = vmatprep.mubr.bf16.mxu0 0
        %4626 = vmatmul.mubr.bf16.gmra.mxu0 %v4591
        %v4627 = vpop.f32.mrf.mxu0
        %v4628 = vadd.f32 0.0, %v4627
        %v4629 = vpop.f32.mrf.mxu0
        %v4630 = vpop.f32.mrf.mxu0
        %v4631 = vadd.f32 0.0, %v4630
        %v4632 = vpop.f32.mrf.mxu0
        %4633 = vdwg.mxu0
        %v4635 = vsel %vm3765, %v4473, 0
        %4637 = vmatprep.subr.bf16.mxu0 0
        %4638 = vmatpush1.bf16.msra.mxu0 0
        %4639 = vmatprep.subr.bf16.mxu0 0
        %4640 = vmatpush1.bf16.msra.mxu0 0
        %4641 = vmatprep.subr.bf16.mxu0 0
        %4642 = vmatpush1.bf16.msra.mxu0 0
        %4643 = vmatprep.subr.bf16.mxu0 0
        %4644 = vmatpush1.bf16.msra.mxu0 0
        %4645 = vmatprep.subr.bf16.mxu0 0
        %4646 = vmatpush1.bf16.msra.mxu0 0
        %4647 = vmatprep.subr.bf16.mxu0 0
        %4648 = vmatpush1.bf16.msra.mxu0 0
        %4649 = vmatprep.subr.bf16.mxu0 0
        %4650 = vmatpush1.bf16.msra.mxu0 0
        %4651 = vmatprep.subr.bf16.mxu0 0
        %4652 = vmatpush1.bf16.msra.mxu0 %v2231
        %4653 = vmatprep.subr.bf16.mxu0 0
        %4654 = vmatpush2.bf16.msra.mxu0 0
        %4655 = vmatprep.subr.bf16.mxu0 0
        %4656 = vmatpush2.bf16.msra.mxu0 0
        %4657 = vmatprep.subr.bf16.mxu0 0
        %4658 = vmatpush2.bf16.msra.mxu0 0
        %4659 = vmatprep.subr.bf16.mxu0 0
        %4660 = vmatpush2.bf16.msra.mxu0 0
        %4661 = vmatprep.subr.bf16.mxu0 0
        %4662 = vmatpush2.bf16.msra.mxu0 0
        %4663 = vmatprep.subr.bf16.mxu0 0
        %4664 = vmatpush2.bf16.msra.mxu0 0
        %4665 = vmatprep.subr.bf16.mxu0 0
        %4666 = vmatpush2.bf16.msra.mxu0 0
        %4667 = vmatprep.subr.bf16.mxu0 0
        %4668 = vmatpush2.bf16.msra.mxu0 0
        %4669 = vmatprep.mubr.bf16.mxu0 0
        %4670 = vmatmul.mubr.bf16.gmra.mxu0 %v4635
        %v4671 = vpop.f32.mrf.mxu0
        %v4672 = vadd.f32 0.0, %v4671
        %v4673 = vpop.f32.mrf.mxu0
        %v4674 = vpop.f32.mrf.mxu0
        %v4675 = vadd.f32 0.0, %v4674
        %v4676 = vpop.f32.mrf.mxu0
        %4677 = vdwg.mxu0
        %v4679 = vsel %vm3765, %v4474, 0
        %4681 = vmatprep.subr.bf16.mxu0 0
        %4682 = vmatpush1.bf16.msra.mxu0 0
        %4683 = vmatprep.subr.bf16.mxu0 0
        %4684 = vmatpush1.bf16.msra.mxu0 0
        %4685 = vmatprep.subr.bf16.mxu0 0
        %4686 = vmatpush1.bf16.msra.mxu0 0
        %4687 = vmatprep.subr.bf16.mxu0 0
        %4688 = vmatpush1.bf16.msra.mxu0 0
        %4689 = vmatprep.subr.bf16.mxu0 0
        %4690 = vmatpush1.bf16.msra.mxu0 0
        %4691 = vmatprep.subr.bf16.mxu0 0
        %4692 = vmatpush1.bf16.msra.mxu0 0
        %4693 = vmatprep.subr.bf16.mxu0 0
        %4694 = vmatpush1.bf16.msra.mxu0 0
        %4695 = vmatprep.subr.bf16.mxu0 0
        %4696 = vmatpush1.bf16.msra.mxu0 %v2232
        %4697 = vmatprep.subr.bf16.mxu0 0
        %4698 = vmatpush2.bf16.msra.mxu0 0
        %4699 = vmatprep.subr.bf16.mxu0 0
        %4700 = vmatpush2.bf16.msra.mxu0 0
        %4701 = vmatprep.subr.bf16.mxu0 0
        %4702 = vmatpush2.bf16.msra.mxu0 0
        %4703 = vmatprep.subr.bf16.mxu0 0
        %4704 = vmatpush2.bf16.msra.mxu0 0
        %4705 = vmatprep.subr.bf16.mxu0 0
        %4706 = vmatpush2.bf16.msra.mxu0 0
        %4707 = vmatprep.subr.bf16.mxu0 0
        %4708 = vmatpush2.bf16.msra.mxu0 0
        %4709 = vmatprep.subr.bf16.mxu0 0
        %4710 = vmatpush2.bf16.msra.mxu0 0
        %4711 = vmatprep.subr.bf16.mxu0 0
        %4712 = vmatpush2.bf16.msra.mxu0 0
        %4713 = vmatprep.mubr.bf16.mxu0 0
        %4714 = vmatmul.mubr.bf16.gmra.mxu0 %v4679
        %v4715 = vpop.f32.mrf.mxu0
        %v4716 = vadd.f32 0.0, %v4715
        %v4717 = vpop.f32.mrf.mxu0
        %v4718 = vpop.f32.mrf.mxu0
        %v4719 = vadd.f32 0.0, %v4718
        %v4720 = vpop.f32.mrf.mxu0
        %4721 = vdwg.mxu0
        %v4723 = vsel %vm3765, %v4475, 0
        %4725 = vmatprep.subr.bf16.mxu0 0
        %4726 = vmatpush1.bf16.msra.mxu0 0
        %4727 = vmatprep.subr.bf16.mxu0 0
        %4728 = vmatpush1.bf16.msra.mxu0 0
        %4729 = vmatprep.subr.bf16.mxu0 0
        %4730 = vmatpush1.bf16.msra.mxu0 0
        %4731 = vmatprep.subr.bf16.mxu0 0
        %4732 = vmatpush1.bf16.msra.mxu0 0
        %4733 = vmatprep.subr.bf16.mxu0 0
        %4734 = vmatpush1.bf16.msra.mxu0 0
        %4735 = vmatprep.subr.bf16.mxu0 0
        %4736 = vmatpush1.bf16.msra.mxu0 0
        %4737 = vmatprep.subr.bf16.mxu0 0
        %4738 = vmatpush1.bf16.msra.mxu0 0
        %4739 = vmatprep.subr.bf16.mxu0 0
        %4740 = vmatpush1.bf16.msra.mxu0 %v2233
        %4741 = vmatprep.subr.bf16.mxu0 0
        %4742 = vmatpush2.bf16.msra.mxu0 0
        %4743 = vmatprep.subr.bf16.mxu0 0
        %4744 = vmatpush2.bf16.msra.mxu0 0
        %4745 = vmatprep.subr.bf16.mxu0 0
        %4746 = vmatpush2.bf16.msra.mxu0 0
        %4747 = vmatprep.subr.bf16.mxu0 0
        %4748 = vmatpush2.bf16.msra.mxu0 0
        %4749 = vmatprep.subr.bf16.mxu0 0
        %4750 = vmatpush2.bf16.msra.mxu0 0
        %4751 = vmatprep.subr.bf16.mxu0 0
        %4752 = vmatpush2.bf16.msra.mxu0 0
        %4753 = vmatprep.subr.bf16.mxu0 0
        %4754 = vmatpush2.bf16.msra.mxu0 0
        %4755 = vmatprep.subr.bf16.mxu0 0
        %4756 = vmatpush2.bf16.msra.mxu0 0
        %4757 = vmatprep.mubr.bf16.mxu0 0
        %4758 = vmatmul.mubr.bf16.gmra.mxu0 %v4723
        %v4759 = vpop.f32.mrf.mxu0
        %v4760 = vadd.f32 0.0, %v4759
        %v4761 = vpop.f32.mrf.mxu0
        %v4762 = vpop.f32.mrf.mxu0
        %v4763 = vadd.f32 0.0, %v4762
        %v4764 = vpop.f32.mrf.mxu0
        %4765 = vdwg.mxu0
        %v4767 = vsel %vm3765, %v4476, 0
        %4769 = vmatprep.subr.bf16.mxu0 0
        %4770 = vmatpush1.bf16.msra.mxu0 0
        %4771 = vmatprep.subr.bf16.mxu0 0
        %4772 = vmatpush1.bf16.msra.mxu0 0
        %4773 = vmatprep.subr.bf16.mxu0 0
        %4774 = vmatpush1.bf16.msra.mxu0 0
        %4775 = vmatprep.subr.bf16.mxu0 0
        %4776 = vmatpush1.bf16.msra.mxu0 0
        %4777 = vmatprep.subr.bf16.mxu0 0
        %4778 = vmatpush1.bf16.msra.mxu0 0
        %4779 = vmatprep.subr.bf16.mxu0 0
        %4780 = vmatpush1.bf16.msra.mxu0 0
        %4781 = vmatprep.subr.bf16.mxu0 0
        %4782 = vmatpush1.bf16.msra.mxu0 0
        %4783 = vmatprep.subr.bf16.mxu0 0
        %4784 = vmatpush1.bf16.msra.mxu0 %v2234
        %4785 = vmatprep.subr.bf16.mxu0 0
        %4786 = vmatpush2.bf16.msra.mxu0 0
        %4787 = vmatprep.subr.bf16.mxu0 0
        %4788 = vmatpush2.bf16.msra.mxu0 0
        %4789 = vmatprep.subr.bf16.mxu0 0
        %4790 = vmatpush2.bf16.msra.mxu0 0
        %4791 = vmatprep.subr.bf16.mxu0 0
        %4792 = vmatpush2.bf16.msra.mxu0 0
        %4793 = vmatprep.subr.bf16.mxu0 0
        %4794 = vmatpush2.bf16.msra.mxu0 0
        %4795 = vmatprep.subr.bf16.mxu0 0
        %4796 = vmatpush2.bf16.msra.mxu0 0
        %4797 = vmatprep.subr.bf16.mxu0 0
        %4798 = vmatpush2.bf16.msra.mxu0 0
        %4799 = vmatprep.subr.bf16.mxu0 0
        %4800 = vmatpush2.bf16.msra.mxu0 0
        %4801 = vmatprep.mubr.bf16.mxu0 0
        %4802 = vmatmul.mubr.bf16.gmra.mxu0 %v4767
        %v4803 = vpop.f32.mrf.mxu0
        %v4804 = vadd.f32 0.0, %v4803
        %v4805 = vpop.f32.mrf.mxu0
        %v4806 = vpop.f32.mrf.mxu0
        %v4807 = vadd.f32 0.0, %v4806
        %v4808 = vpop.f32.mrf.mxu0
        %4809 = vdwg.mxu0
        %v4811 = vsel %vm3765, %v4477, 0
        %4813 = vmatprep.subr.bf16.mxu0 0
        %4814 = vmatpush1.bf16.msra.mxu0 0
        %4815 = vmatprep.subr.bf16.mxu0 0
        %4816 = vmatpush1.bf16.msra.mxu0 0
        %4817 = vmatprep.subr.bf16.mxu0 0
        %4818 = vmatpush1.bf16.msra.mxu0 0
        %4819 = vmatprep.subr.bf16.mxu0 0
        %4820 = vmatpush1.bf16.msra.mxu0 0
        %4821 = vmatprep.subr.bf16.mxu0 0
        %4822 = vmatpush1.bf16.msra.mxu0 0
        %4823 = vmatprep.subr.bf16.mxu0 0
        %4824 = vmatpush1.bf16.msra.mxu0 0
        %4825 = vmatprep.subr.bf16.mxu0 0
        %4826 = vmatpush1.bf16.msra.mxu0 0
        %4827 = vmatprep.subr.bf16.mxu0 0
        %4828 = vmatpush1.bf16.msra.mxu0 %v2235
        %4829 = vmatprep.subr.bf16.mxu0 0
        %4830 = vmatpush2.bf16.msra.mxu0 0
        %4831 = vmatprep.subr.bf16.mxu0 0
        %4832 = vmatpush2.bf16.msra.mxu0 0
        %4833 = vmatprep.subr.bf16.mxu0 0
        %4834 = vmatpush2.bf16.msra.mxu0 0
        %4835 = vmatprep.subr.bf16.mxu0 0
        %4836 = vmatpush2.bf16.msra.mxu0 0
        %4837 = vmatprep.subr.bf16.mxu0 0
        %4838 = vmatpush2.bf16.msra.mxu0 0
        %4839 = vmatprep.subr.bf16.mxu0 0
        %4840 = vmatpush2.bf16.msra.mxu0 0
        %4841 = vmatprep.subr.bf16.mxu0 0
        %4842 = vmatpush2.bf16.msra.mxu0 0
        %4843 = vmatprep.subr.bf16.mxu0 0
        %4844 = vmatpush2.bf16.msra.mxu0 0
        %4845 = vmatprep.mubr.bf16.mxu0 0
        %4846 = vmatmul.mubr.bf16.gmra.mxu0 %v4811
        %v4847 = vpop.f32.mrf.mxu0
        %v4848 = vadd.f32 0.0, %v4847
        %v4849 = vpop.f32.mrf.mxu0
        %v4850 = vpop.f32.mrf.mxu0
        %v4851 = vadd.f32 0.0, %v4850
        %v4852 = vpop.f32.mrf.mxu0
        %4853 = vdwg.mxu0
        %v4855 = vsel %vm3765, %v4478, 0
        %4857 = vmatprep.subr.bf16.mxu0 0
        %4858 = vmatpush1.bf16.msra.mxu0 0
        %4859 = vmatprep.subr.bf16.mxu0 0
        %4860 = vmatpush1.bf16.msra.mxu0 0
        %4861 = vmatprep.subr.bf16.mxu0 0
        %4862 = vmatpush1.bf16.msra.mxu0 0
        %4863 = vmatprep.subr.bf16.mxu0 0
        %4864 = vmatpush1.bf16.msra.mxu0 0
        %4865 = vmatprep.subr.bf16.mxu0 0
        %4866 = vmatpush1.bf16.msra.mxu0 0
        %4867 = vmatprep.subr.bf16.mxu0 0
        %4868 = vmatpush1.bf16.msra.mxu0 0
        %4869 = vmatprep.subr.bf16.mxu0 0
        %4870 = vmatpush1.bf16.msra.mxu0 0
        %4871 = vmatprep.subr.bf16.mxu0 0
        %4872 = vmatpush1.bf16.msra.mxu0 %v2236
        %4873 = vmatprep.subr.bf16.mxu0 0
        %4874 = vmatpush2.bf16.msra.mxu0 0
        %4875 = vmatprep.subr.bf16.mxu0 0
        %4876 = vmatpush2.bf16.msra.mxu0 0
        %4877 = vmatprep.subr.bf16.mxu0 0
        %4878 = vmatpush2.bf16.msra.mxu0 0
        %4879 = vmatprep.subr.bf16.mxu0 0
        %4880 = vmatpush2.bf16.msra.mxu0 0
        %4881 = vmatprep.subr.bf16.mxu0 0
        %4882 = vmatpush2.bf16.msra.mxu0 0
        %4883 = vmatprep.subr.bf16.mxu0 0
        %4884 = vmatpush2.bf16.msra.mxu0 0
        %4885 = vmatprep.subr.bf16.mxu0 0
        %4886 = vmatpush2.bf16.msra.mxu0 0
        %4887 = vmatprep.subr.bf16.mxu0 0
        %4888 = vmatpush2.bf16.msra.mxu0 0
        %4889 = vmatprep.mubr.bf16.mxu0 0
        %4890 = vmatmul.mubr.bf16.gmra.mxu0 %v4855
        %v4891 = vpop.f32.mrf.mxu0
        %v4892 = vadd.f32 0.0, %v4891
        %v4893 = vpop.f32.mrf.mxu0
        %v4894 = vpop.f32.mrf.mxu0
        %v4895 = vadd.f32 0.0, %v4894
        %v4896 = vpop.f32.mrf.mxu0
        %4897 = vdwg.mxu0
        %v4899 = vsel %vm3765, %v4479, 0
        %4901 = vmatprep.subr.bf16.mxu0 0
        %4902 = vmatpush1.bf16.msra.mxu0 0
        %4903 = vmatprep.subr.bf16.mxu0 0
        %4904 = vmatpush1.bf16.msra.mxu0 0
        %4905 = vmatprep.subr.bf16.mxu0 0
        %4906 = vmatpush1.bf16.msra.mxu0 0
        %4907 = vmatprep.subr.bf16.mxu0 0
        %4908 = vmatpush1.bf16.msra.mxu0 0
        %4909 = vmatprep.subr.bf16.mxu0 0
        %4910 = vmatpush1.bf16.msra.mxu0 0
        %4911 = vmatprep.subr.bf16.mxu0 0
        %4912 = vmatpush1.bf16.msra.mxu0 0
        %4913 = vmatprep.subr.bf16.mxu0 0
        %4914 = vmatpush1.bf16.msra.mxu0 0
        %4915 = vmatprep.subr.bf16.mxu0 0
        %4916 = vmatpush1.bf16.msra.mxu0 %v2237
        %4917 = vmatprep.subr.bf16.mxu0 0
        %4918 = vmatpush2.bf16.msra.mxu0 0
        %4919 = vmatprep.subr.bf16.mxu0 0
        %4920 = vmatpush2.bf16.msra.mxu0 0
        %4921 = vmatprep.subr.bf16.mxu0 0
        %4922 = vmatpush2.bf16.msra.mxu0 0
        %4923 = vmatprep.subr.bf16.mxu0 0
        %4924 = vmatpush2.bf16.msra.mxu0 0
        %4925 = vmatprep.subr.bf16.mxu0 0
        %4926 = vmatpush2.bf16.msra.mxu0 0
        %4927 = vmatprep.subr.bf16.mxu0 0
        %4928 = vmatpush2.bf16.msra.mxu0 0
        %4929 = vmatprep.subr.bf16.mxu0 0
        %4930 = vmatpush2.bf16.msra.mxu0 0
        %4931 = vmatprep.subr.bf16.mxu0 0
        %4932 = vmatpush2.bf16.msra.mxu0 0
        %4933 = vmatprep.mubr.bf16.mxu0 0
        %4934 = vmatmul.mubr.bf16.gmra.mxu0 %v4899
        %v4935 = vpop.f32.mrf.mxu0
        %v4936 = vadd.f32 0.0, %v4935
        %v4937 = vpop.f32.mrf.mxu0
        %v4938 = vpop.f32.mrf.mxu0
        %v4939 = vadd.f32 0.0, %v4938
        %v4940 = vpop.f32.mrf.mxu0
        %4941 = vdwg.mxu0
        %v4943 = vsel %vm3765, %v4480, 0
        %4945 = vmatprep.subr.bf16.mxu0 0
        %4946 = vmatpush1.bf16.msra.mxu0 0
        %4947 = vmatprep.subr.bf16.mxu0 0
        %4948 = vmatpush1.bf16.msra.mxu0 0
        %4949 = vmatprep.subr.bf16.mxu0 0
        %4950 = vmatpush1.bf16.msra.mxu0 0
        %4951 = vmatprep.subr.bf16.mxu0 0
        %4952 = vmatpush1.bf16.msra.mxu0 0
        %4953 = vmatprep.subr.bf16.mxu0 0
        %4954 = vmatpush1.bf16.msra.mxu0 0
        %4955 = vmatprep.subr.bf16.mxu0 0
        %4956 = vmatpush1.bf16.msra.mxu0 0
        %4957 = vmatprep.subr.bf16.mxu0 0
        %4958 = vmatpush1.bf16.msra.mxu0 0
        %4959 = vmatprep.subr.bf16.mxu0 0
        %4960 = vmatpush1.bf16.msra.mxu0 %v2238
        %4961 = vmatprep.subr.bf16.mxu0 0
        %4962 = vmatpush2.bf16.msra.mxu0 0
        %4963 = vmatprep.subr.bf16.mxu0 0
        %4964 = vmatpush2.bf16.msra.mxu0 0
        %4965 = vmatprep.subr.bf16.mxu0 0
        %4966 = vmatpush2.bf16.msra.mxu0 0
        %4967 = vmatprep.subr.bf16.mxu0 0
        %4968 = vmatpush2.bf16.msra.mxu0 0
        %4969 = vmatprep.subr.bf16.mxu0 0
        %4970 = vmatpush2.bf16.msra.mxu0 0
        %4971 = vmatprep.subr.bf16.mxu0 0
        %4972 = vmatpush2.bf16.msra.mxu0 0
        %4973 = vmatprep.subr.bf16.mxu0 0
        %4974 = vmatpush2.bf16.msra.mxu0 0
        %4975 = vmatprep.subr.bf16.mxu0 0
        %4976 = vmatpush2.bf16.msra.mxu0 0
        %4977 = vmatprep.mubr.bf16.mxu0 0
        %4978 = vmatmul.mubr.bf16.gmra.mxu0 %v4943
        %v4979 = vpop.f32.mrf.mxu0
        %v4980 = vadd.f32 0.0, %v4979
        %v4981 = vpop.f32.mrf.mxu0
        %v4982 = vpop.f32.mrf.mxu0
        %v4983 = vadd.f32 0.0, %v4982
        %v4984 = vpop.f32.mrf.mxu0
        %4985 = vdwg.mxu0
        %v4987 = vsel %vm3765, %v4481, 0
        %4989 = vmatprep.subr.bf16.mxu0 0
        %4990 = vmatpush1.bf16.msra.mxu0 0
        %4991 = vmatprep.subr.bf16.mxu0 0
        %4992 = vmatpush1.bf16.msra.mxu0 0
        %4993 = vmatprep.subr.bf16.mxu0 0
        %4994 = vmatpush1.bf16.msra.mxu0 0
        %4995 = vmatprep.subr.bf16.mxu0 0
        %4996 = vmatpush1.bf16.msra.mxu0 0
        %4997 = vmatprep.subr.bf16.mxu0 0
        %4998 = vmatpush1.bf16.msra.mxu0 0
        %4999 = vmatprep.subr.bf16.mxu0 0
        %5000 = vmatpush1.bf16.msra.mxu0 0
        %5001 = vmatprep.subr.bf16.mxu0 0
        %5002 = vmatpush1.bf16.msra.mxu0 0
        %5003 = vmatprep.subr.bf16.mxu0 0
        %5004 = vmatpush1.bf16.msra.mxu0 %v2239
        %5005 = vmatprep.subr.bf16.mxu0 0
        %5006 = vmatpush2.bf16.msra.mxu0 0
        %5007 = vmatprep.subr.bf16.mxu0 0
        %5008 = vmatpush2.bf16.msra.mxu0 0
        %5009 = vmatprep.subr.bf16.mxu0 0
        %5010 = vmatpush2.bf16.msra.mxu0 0
        %5011 = vmatprep.subr.bf16.mxu0 0
        %5012 = vmatpush2.bf16.msra.mxu0 0
        %5013 = vmatprep.subr.bf16.mxu0 0
        %5014 = vmatpush2.bf16.msra.mxu0 0
        %5015 = vmatprep.subr.bf16.mxu0 0
        %5016 = vmatpush2.bf16.msra.mxu0 0
        %5017 = vmatprep.subr.bf16.mxu0 0
        %5018 = vmatpush2.bf16.msra.mxu0 0
        %5019 = vmatprep.subr.bf16.mxu0 0
        %5020 = vmatpush2.bf16.msra.mxu0 0
        %5021 = vmatprep.mubr.bf16.mxu0 0
        %5022 = vmatmul.mubr.bf16.gmra.mxu0 %v4987
        %v5023 = vpop.f32.mrf.mxu0
        %v5024 = vadd.f32 0.0, %v5023
        %v5025 = vpop.f32.mrf.mxu0
        %v5026 = vpop.f32.mrf.mxu0
        %v5027 = vadd.f32 0.0, %v5026
        %v5028 = vpop.f32.mrf.mxu0
        %5029 = vdwg.mxu0
        %v5031 = vsel %vm3765, %v4482, 0
        %5033 = vmatprep.subr.bf16.mxu0 0
        %5034 = vmatpush1.bf16.msra.mxu0 0
        %5035 = vmatprep.subr.bf16.mxu0 0
        %5036 = vmatpush1.bf16.msra.mxu0 0
        %5037 = vmatprep.subr.bf16.mxu0 0
        %5038 = vmatpush1.bf16.msra.mxu0 0
        %5039 = vmatprep.subr.bf16.mxu0 0
        %5040 = vmatpush1.bf16.msra.mxu0 0
        %5041 = vmatprep.subr.bf16.mxu0 0
        %5042 = vmatpush1.bf16.msra.mxu0 0
        %5043 = vmatprep.subr.bf16.mxu0 0
        %5044 = vmatpush1.bf16.msra.mxu0 0
        %5045 = vmatprep.subr.bf16.mxu0 0
        %5046 = vmatpush1.bf16.msra.mxu0 0
        %5047 = vmatprep.subr.bf16.mxu0 0
        %5048 = vmatpush1.bf16.msra.mxu0 %v2240
        %5049 = vmatprep.subr.bf16.mxu0 0
        %5050 = vmatpush2.bf16.msra.mxu0 0
        %5051 = vmatprep.subr.bf16.mxu0 0
        %5052 = vmatpush2.bf16.msra.mxu0 0
        %5053 = vmatprep.subr.bf16.mxu0 0
        %5054 = vmatpush2.bf16.msra.mxu0 0
        %5055 = vmatprep.subr.bf16.mxu0 0
        %5056 = vmatpush2.bf16.msra.mxu0 0
        %5057 = vmatprep.subr.bf16.mxu0 0
        %5058 = vmatpush2.bf16.msra.mxu0 0
        %5059 = vmatprep.subr.bf16.mxu0 0
        %5060 = vmatpush2.bf16.msra.mxu0 0
        %5061 = vmatprep.subr.bf16.mxu0 0
        %5062 = vmatpush2.bf16.msra.mxu0 0
        %5063 = vmatprep.subr.bf16.mxu0 0
        %5064 = vmatpush2.bf16.msra.mxu0 0
        %5065 = vmatprep.mubr.bf16.mxu0 0
        %5066 = vmatmul.mubr.bf16.gmra.mxu0 %v5031
        %v5067 = vpop.f32.mrf.mxu0
        %v5068 = vadd.f32 0.0, %v5067
        %v5069 = vpop.f32.mrf.mxu0
        %v5070 = vpop.f32.mrf.mxu0
        %v5071 = vadd.f32 0.0, %v5070
        %v5072 = vpop.f32.mrf.mxu0
        %5073 = vdwg.mxu0
        %v5075 = vsel %vm3765, %v4483, 0
        %5077 = vmatprep.subr.bf16.mxu0 0
        %5078 = vmatpush1.bf16.msra.mxu0 0
        %5079 = vmatprep.subr.bf16.mxu0 0
        %5080 = vmatpush1.bf16.msra.mxu0 0
        %5081 = vmatprep.subr.bf16.mxu0 0
        %5082 = vmatpush1.bf16.msra.mxu0 0
        %5083 = vmatprep.subr.bf16.mxu0 0
        %5084 = vmatpush1.bf16.msra.mxu0 0
        %5085 = vmatprep.subr.bf16.mxu0 0
        %5086 = vmatpush1.bf16.msra.mxu0 0
        %5087 = vmatprep.subr.bf16.mxu0 0
        %5088 = vmatpush1.bf16.msra.mxu0 0
        %5089 = vmatprep.subr.bf16.mxu0 0
        %5090 = vmatpush1.bf16.msra.mxu0 0
        %5091 = vmatprep.subr.bf16.mxu0 0
        %5092 = vmatpush1.bf16.msra.mxu0 %v2241
        %5093 = vmatprep.subr.bf16.mxu0 0
        %5094 = vmatpush2.bf16.msra.mxu0 0
        %5095 = vmatprep.subr.bf16.mxu0 0
        %5096 = vmatpush2.bf16.msra.mxu0 0
        %5097 = vmatprep.subr.bf16.mxu0 0
        %5098 = vmatpush2.bf16.msra.mxu0 0
        %5099 = vmatprep.subr.bf16.mxu0 0
        %5100 = vmatpush2.bf16.msra.mxu0 0
        %5101 = vmatprep.subr.bf16.mxu0 0
        %5102 = vmatpush2.bf16.msra.mxu0 0
        %5103 = vmatprep.subr.bf16.mxu0 0
        %5104 = vmatpush2.bf16.msra.mxu0 0
        %5105 = vmatprep.subr.bf16.mxu0 0
        %5106 = vmatpush2.bf16.msra.mxu0 0
        %5107 = vmatprep.subr.bf16.mxu0 0
        %5108 = vmatpush2.bf16.msra.mxu0 0
        %5109 = vmatprep.mubr.bf16.mxu0 0
        %5110 = vmatmul.mubr.bf16.gmra.mxu0 %v5075
        %v5111 = vpop.f32.mrf.mxu0
        %v5112 = vadd.f32 0.0, %v5111
        %v5113 = vpop.f32.mrf.mxu0
        %v5114 = vpop.f32.mrf.mxu0
        %v5115 = vadd.f32 0.0, %v5114
        %v5116 = vpop.f32.mrf.mxu0
        %5117 = vdwg.mxu0
        %v5119 = vsel %vm3765, %v4484, 0
        %5121 = vmatprep.subr.bf16.mxu0 0
        %5122 = vmatpush1.bf16.msra.mxu0 0
        %5123 = vmatprep.subr.bf16.mxu0 0
        %5124 = vmatpush1.bf16.msra.mxu0 0
        %5125 = vmatprep.subr.bf16.mxu0 0
        %5126 = vmatpush1.bf16.msra.mxu0 0
        %5127 = vmatprep.subr.bf16.mxu0 0
        %5128 = vmatpush1.bf16.msra.mxu0 0
        %5129 = vmatprep.subr.bf16.mxu0 0
        %5130 = vmatpush1.bf16.msra.mxu0 0
        %5131 = vmatprep.subr.bf16.mxu0 0
        %5132 = vmatpush1.bf16.msra.mxu0 0
        %5133 = vmatprep.subr.bf16.mxu0 0
        %5134 = vmatpush1.bf16.msra.mxu0 0
        %5135 = vmatprep.subr.bf16.mxu0 0
        %5136 = vmatpush1.bf16.msra.mxu0 %v2242
        %5137 = vmatprep.subr.bf16.mxu0 0
        %5138 = vmatpush2.bf16.msra.mxu0 0
        %5139 = vmatprep.subr.bf16.mxu0 0
        %5140 = vmatpush2.bf16.msra.mxu0 0
        %5141 = vmatprep.subr.bf16.mxu0 0
        %5142 = vmatpush2.bf16.msra.mxu0 0
        %5143 = vmatprep.subr.bf16.mxu0 0
        %5144 = vmatpush2.bf16.msra.mxu0 0
        %5145 = vmatprep.subr.bf16.mxu0 0
        %5146 = vmatpush2.bf16.msra.mxu0 0
        %5147 = vmatprep.subr.bf16.mxu0 0
        %5148 = vmatpush2.bf16.msra.mxu0 0
        %5149 = vmatprep.subr.bf16.mxu0 0
        %5150 = vmatpush2.bf16.msra.mxu0 0
        %5151 = vmatprep.subr.bf16.mxu0 0
        %5152 = vmatpush2.bf16.msra.mxu0 0
        %5153 = vmatprep.mubr.bf16.mxu0 0
        %5154 = vmatmul.mubr.bf16.gmra.mxu0 %v5119
        %v5155 = vpop.f32.mrf.mxu0
        %v5156 = vadd.f32 0.0, %v5155
        %v5157 = vpop.f32.mrf.mxu0
        %v5158 = vpop.f32.mrf.mxu0
        %v5159 = vadd.f32 0.0, %v5158
        %v5160 = vpop.f32.mrf.mxu0
        %5161 = vdwg.mxu0
        %v5163 = vsel %vm3765, %v4485, 0
        %5165 = vmatprep.subr.bf16.mxu0 0
        %5166 = vmatpush1.bf16.msra.mxu0 0
        %5167 = vmatprep.subr.bf16.mxu0 0
        %5168 = vmatpush1.bf16.msra.mxu0 0
        %5169 = vmatprep.subr.bf16.mxu0 0
        %5170 = vmatpush1.bf16.msra.mxu0 0
        %5171 = vmatprep.subr.bf16.mxu0 0
        %5172 = vmatpush1.bf16.msra.mxu0 0
        %5173 = vmatprep.subr.bf16.mxu0 0
        %5174 = vmatpush1.bf16.msra.mxu0 0
        %5175 = vmatprep.subr.bf16.mxu0 0
        %5176 = vmatpush1.bf16.msra.mxu0 0
        %5177 = vmatprep.subr.bf16.mxu0 0
        %5178 = vmatpush1.bf16.msra.mxu0 0
        %5179 = vmatprep.subr.bf16.mxu0 0
        %5180 = vmatpush1.bf16.msra.mxu0 %v2243
        %5181 = vmatprep.subr.bf16.mxu0 0
        %5182 = vmatpush2.bf16.msra.mxu0 0
        %5183 = vmatprep.subr.bf16.mxu0 0
        %5184 = vmatpush2.bf16.msra.mxu0 0
        %5185 = vmatprep.subr.bf16.mxu0 0
        %5186 = vmatpush2.bf16.msra.mxu0 0
        %5187 = vmatprep.subr.bf16.mxu0 0
        %5188 = vmatpush2.bf16.msra.mxu0 0
        %5189 = vmatprep.subr.bf16.mxu0 0
        %5190 = vmatpush2.bf16.msra.mxu0 0
        %5191 = vmatprep.subr.bf16.mxu0 0
        %5192 = vmatpush2.bf16.msra.mxu0 0
        %5193 = vmatprep.subr.bf16.mxu0 0
        %5194 = vmatpush2.bf16.msra.mxu0 0
        %5195 = vmatprep.subr.bf16.mxu0 0
        %5196 = vmatpush2.bf16.msra.mxu0 0
        %5197 = vmatprep.mubr.bf16.mxu0 0
        %5198 = vmatmul.mubr.bf16.gmra.mxu0 %v5163
        %v5199 = vpop.f32.mrf.mxu0
        %v5200 = vadd.f32 0.0, %v5199
        %v5201 = vpop.f32.mrf.mxu0
        %v5202 = vpop.f32.mrf.mxu0
        %v5203 = vadd.f32 0.0, %v5202
        %v5204 = vpop.f32.mrf.mxu0
        %5205 = vdwg.mxu0
        %v5207 = vsel %vm3765, %v4486, 0
        %5209 = vmatprep.subr.bf16.mxu0 0
        %5210 = vmatpush1.bf16.msra.mxu0 0
        %5211 = vmatprep.subr.bf16.mxu0 0
        %5212 = vmatpush1.bf16.msra.mxu0 0
        %5213 = vmatprep.subr.bf16.mxu0 0
        %5214 = vmatpush1.bf16.msra.mxu0 0
        %5215 = vmatprep.subr.bf16.mxu0 0
        %5216 = vmatpush1.bf16.msra.mxu0 0
        %5217 = vmatprep.subr.bf16.mxu0 0
        %5218 = vmatpush1.bf16.msra.mxu0 0
        %5219 = vmatprep.subr.bf16.mxu0 0
        %5220 = vmatpush1.bf16.msra.mxu0 0
        %5221 = vmatprep.subr.bf16.mxu0 0
        %5222 = vmatpush1.bf16.msra.mxu0 0
        %5223 = vmatprep.subr.bf16.mxu0 0
        %5224 = vmatpush1.bf16.msra.mxu0 %v2244
        %5225 = vmatprep.subr.bf16.mxu0 0
        %5226 = vmatpush2.bf16.msra.mxu0 0
        %5227 = vmatprep.subr.bf16.mxu0 0
        %5228 = vmatpush2.bf16.msra.mxu0 0
        %5229 = vmatprep.subr.bf16.mxu0 0
        %5230 = vmatpush2.bf16.msra.mxu0 0
        %5231 = vmatprep.subr.bf16.mxu0 0
        %5232 = vmatpush2.bf16.msra.mxu0 0
        %5233 = vmatprep.subr.bf16.mxu0 0
        %5234 = vmatpush2.bf16.msra.mxu0 0
        %5235 = vmatprep.subr.bf16.mxu0 0
        %5236 = vmatpush2.bf16.msra.mxu0 0
        %5237 = vmatprep.subr.bf16.mxu0 0
        %5238 = vmatpush2.bf16.msra.mxu0 0
        %5239 = vmatprep.subr.bf16.mxu0 0
        %5240 = vmatpush2.bf16.msra.mxu0 0
        %5241 = vmatprep.mubr.bf16.mxu0 0
        %5242 = vmatmul.mubr.bf16.gmra.mxu0 %v5207
        %v5243 = vpop.f32.mrf.mxu0
        %v5244 = vadd.f32 0.0, %v5243
        %v5245 = vpop.f32.mrf.mxu0
        %v5246 = vpop.f32.mrf.mxu0
        %v5247 = vadd.f32 0.0, %v5246
        %v5248 = vpop.f32.mrf.mxu0
        %5249 = vdwg.mxu0
        %v5251 = vsel %vm3765, %v4487, 0
        %5253 = vmatprep.subr.bf16.mxu0 0
        %5254 = vmatpush1.bf16.msra.mxu0 0
        %5255 = vmatprep.subr.bf16.mxu0 0
        %5256 = vmatpush1.bf16.msra.mxu0 0
        %5257 = vmatprep.subr.bf16.mxu0 0
        %5258 = vmatpush1.bf16.msra.mxu0 0
        %5259 = vmatprep.subr.bf16.mxu0 0
        %5260 = vmatpush1.bf16.msra.mxu0 0
        %5261 = vmatprep.subr.bf16.mxu0 0
        %5262 = vmatpush1.bf16.msra.mxu0 0
        %5263 = vmatprep.subr.bf16.mxu0 0
        %5264 = vmatpush1.bf16.msra.mxu0 0
        %5265 = vmatprep.subr.bf16.mxu0 0
        %5266 = vmatpush1.bf16.msra.mxu0 0
        %5267 = vmatprep.subr.bf16.mxu0 0
        %5268 = vmatpush1.bf16.msra.mxu0 %v2245
        %5269 = vmatprep.subr.bf16.mxu0 0
        %5270 = vmatpush2.bf16.msra.mxu0 0
        %5271 = vmatprep.subr.bf16.mxu0 0
        %5272 = vmatpush2.bf16.msra.mxu0 0
        %5273 = vmatprep.subr.bf16.mxu0 0
        %5274 = vmatpush2.bf16.msra.mxu0 0
        %5275 = vmatprep.subr.bf16.mxu0 0
        %5276 = vmatpush2.bf16.msra.mxu0 0
        %5277 = vmatprep.subr.bf16.mxu0 0
        %5278 = vmatpush2.bf16.msra.mxu0 0
        %5279 = vmatprep.subr.bf16.mxu0 0
        %5280 = vmatpush2.bf16.msra.mxu0 0
        %5281 = vmatprep.subr.bf16.mxu0 0
        %5282 = vmatpush2.bf16.msra.mxu0 0
        %5283 = vmatprep.subr.bf16.mxu0 0
        %5284 = vmatpush2.bf16.msra.mxu0 0
        %5285 = vmatprep.mubr.bf16.mxu0 0
        %5286 = vmatmul.mubr.bf16.gmra.mxu0 %v5251
        %v5287 = vpop.f32.mrf.mxu0
        %v5288 = vadd.f32 0.0, %v5287
        %v5289 = vpop.f32.mrf.mxu0
        %v5290 = vpop.f32.mrf.mxu0
        %v5291 = vadd.f32 0.0, %v5290
        %v5292 = vpop.f32.mrf.mxu0
        %5293 = vdwg.mxu0
        %v5295 = vsel %vm3765, %v4488, 0
        %5297 = vmatprep.subr.bf16.mxu0 0
        %5298 = vmatpush1.bf16.msra.mxu0 0
        %5299 = vmatprep.subr.bf16.mxu0 0
        %5300 = vmatpush1.bf16.msra.mxu0 0
        %5301 = vmatprep.subr.bf16.mxu0 0
        %5302 = vmatpush1.bf16.msra.mxu0 0
        %5303 = vmatprep.subr.bf16.mxu0 0
        %5304 = vmatpush1.bf16.msra.mxu0 0
        %5305 = vmatprep.subr.bf16.mxu0 0
        %5306 = vmatpush1.bf16.msra.mxu0 0
        %5307 = vmatprep.subr.bf16.mxu0 0
        %5308 = vmatpush1.bf16.msra.mxu0 0
        %5309 = vmatprep.subr.bf16.mxu0 0
        %5310 = vmatpush1.bf16.msra.mxu0 0
        %5311 = vmatprep.subr.bf16.mxu0 0
        %5312 = vmatpush1.bf16.msra.mxu0 %v2246
        %5313 = vmatprep.subr.bf16.mxu0 0
        %5314 = vmatpush2.bf16.msra.mxu0 0
        %5315 = vmatprep.subr.bf16.mxu0 0
        %5316 = vmatpush2.bf16.msra.mxu0 0
        %5317 = vmatprep.subr.bf16.mxu0 0
        %5318 = vmatpush2.bf16.msra.mxu0 0
        %5319 = vmatprep.subr.bf16.mxu0 0
        %5320 = vmatpush2.bf16.msra.mxu0 0
        %5321 = vmatprep.subr.bf16.mxu0 0
        %5322 = vmatpush2.bf16.msra.mxu0 0
        %5323 = vmatprep.subr.bf16.mxu0 0
        %5324 = vmatpush2.bf16.msra.mxu0 0
        %5325 = vmatprep.subr.bf16.mxu0 0
        %5326 = vmatpush2.bf16.msra.mxu0 0
        %5327 = vmatprep.subr.bf16.mxu0 0
        %5328 = vmatpush2.bf16.msra.mxu0 0
        %5329 = vmatprep.mubr.bf16.mxu0 0
        %5330 = vmatmul.mubr.bf16.gmra.mxu0 %v5295
        %v5331 = vpop.f32.mrf.mxu0
        %v5332 = vadd.f32 0.0, %v5331
        %v5333 = vpop.f32.mrf.mxu0
        %v5334 = vpop.f32.mrf.mxu0
        %v5335 = vadd.f32 0.0, %v5334
        %v5336 = vpop.f32.mrf.mxu0
        %5337 = vdwg.mxu0
        %v5339 = vsel %vm3765, %v4489, 0
        %5341 = vmatprep.subr.bf16.mxu0 0
        %5342 = vmatpush1.bf16.msra.mxu0 0
        %5343 = vmatprep.subr.bf16.mxu0 0
        %5344 = vmatpush1.bf16.msra.mxu0 0
        %5345 = vmatprep.subr.bf16.mxu0 0
        %5346 = vmatpush1.bf16.msra.mxu0 0
        %5347 = vmatprep.subr.bf16.mxu0 0
        %5348 = vmatpush1.bf16.msra.mxu0 0
        %5349 = vmatprep.subr.bf16.mxu0 0
        %5350 = vmatpush1.bf16.msra.mxu0 0
        %5351 = vmatprep.subr.bf16.mxu0 0
        %5352 = vmatpush1.bf16.msra.mxu0 0
        %5353 = vmatprep.subr.bf16.mxu0 0
        %5354 = vmatpush1.bf16.msra.mxu0 0
        %5355 = vmatprep.subr.bf16.mxu0 0
        %5356 = vmatpush1.bf16.msra.mxu0 %v2247
        %5357 = vmatprep.subr.bf16.mxu0 0
        %5358 = vmatpush2.bf16.msra.mxu0 0
        %5359 = vmatprep.subr.bf16.mxu0 0
        %5360 = vmatpush2.bf16.msra.mxu0 0
        %5361 = vmatprep.subr.bf16.mxu0 0
        %5362 = vmatpush2.bf16.msra.mxu0 0
        %5363 = vmatprep.subr.bf16.mxu0 0
        %5364 = vmatpush2.bf16.msra.mxu0 0
        %5365 = vmatprep.subr.bf16.mxu0 0
        %5366 = vmatpush2.bf16.msra.mxu0 0
        %5367 = vmatprep.subr.bf16.mxu0 0
        %5368 = vmatpush2.bf16.msra.mxu0 0
        %5369 = vmatprep.subr.bf16.mxu0 0
        %5370 = vmatpush2.bf16.msra.mxu0 0
        %5371 = vmatprep.subr.bf16.mxu0 0
        %5372 = vmatpush2.bf16.msra.mxu0 0
        %5373 = vmatprep.mubr.bf16.mxu0 0
        %5374 = vmatmul.mubr.bf16.gmra.mxu0 %v5339
        %v5375 = vpop.f32.mrf.mxu0
        %v5376 = vadd.f32 0.0, %v5375
        %v5377 = vpop.f32.mrf.mxu0
        %v5378 = vpop.f32.mrf.mxu0
        %v5379 = vadd.f32 0.0, %v5378
        %v5380 = vpop.f32.mrf.mxu0
        %5381 = vdwg.mxu0
        %v5383 = vsel %vm3765, %v4490, 0
        %5385 = vmatprep.subr.bf16.mxu0 0
        %5386 = vmatpush1.bf16.msra.mxu0 0
        %5387 = vmatprep.subr.bf16.mxu0 0
        %5388 = vmatpush1.bf16.msra.mxu0 0
        %5389 = vmatprep.subr.bf16.mxu0 0
        %5390 = vmatpush1.bf16.msra.mxu0 0
        %5391 = vmatprep.subr.bf16.mxu0 0
        %5392 = vmatpush1.bf16.msra.mxu0 0
        %5393 = vmatprep.subr.bf16.mxu0 0
        %5394 = vmatpush1.bf16.msra.mxu0 0
        %5395 = vmatprep.subr.bf16.mxu0 0
        %5396 = vmatpush1.bf16.msra.mxu0 0
        %5397 = vmatprep.subr.bf16.mxu0 0
        %5398 = vmatpush1.bf16.msra.mxu0 0
        %5399 = vmatprep.subr.bf16.mxu0 0
        %5400 = vmatpush1.bf16.msra.mxu0 %v2248
        %5401 = vmatprep.subr.bf16.mxu0 0
        %5402 = vmatpush2.bf16.msra.mxu0 0
        %5403 = vmatprep.subr.bf16.mxu0 0
        %5404 = vmatpush2.bf16.msra.mxu0 0
        %5405 = vmatprep.subr.bf16.mxu0 0
        %5406 = vmatpush2.bf16.msra.mxu0 0
        %5407 = vmatprep.subr.bf16.mxu0 0
        %5408 = vmatpush2.bf16.msra.mxu0 0
        %5409 = vmatprep.subr.bf16.mxu0 0
        %5410 = vmatpush2.bf16.msra.mxu0 0
        %5411 = vmatprep.subr.bf16.mxu0 0
        %5412 = vmatpush2.bf16.msra.mxu0 0
        %5413 = vmatprep.subr.bf16.mxu0 0
        %5414 = vmatpush2.bf16.msra.mxu0 0
        %5415 = vmatprep.subr.bf16.mxu0 0
        %5416 = vmatpush2.bf16.msra.mxu0 0
        %5417 = vmatprep.mubr.bf16.mxu0 0
        %5418 = vmatmul.mubr.bf16.gmra.mxu0 %v5383
        %v5419 = vpop.f32.mrf.mxu0
        %v5420 = vadd.f32 0.0, %v5419
        %v5421 = vpop.f32.mrf.mxu0
        %v5422 = vpop.f32.mrf.mxu0
        %v5423 = vadd.f32 0.0, %v5422
        %v5424 = vpop.f32.mrf.mxu0
        %5425 = vdwg.mxu0
        %v5427 = vsel %vm3765, %v4491, 0
        %5429 = vmatprep.subr.bf16.mxu0 0
        %5430 = vmatpush1.bf16.msra.mxu0 0
        %5431 = vmatprep.subr.bf16.mxu0 0
        %5432 = vmatpush1.bf16.msra.mxu0 0
        %5433 = vmatprep.subr.bf16.mxu0 0
        %5434 = vmatpush1.bf16.msra.mxu0 0
        %5435 = vmatprep.subr.bf16.mxu0 0
        %5436 = vmatpush1.bf16.msra.mxu0 0
        %5437 = vmatprep.subr.bf16.mxu0 0
        %5438 = vmatpush1.bf16.msra.mxu0 0
        %5439 = vmatprep.subr.bf16.mxu0 0
        %5440 = vmatpush1.bf16.msra.mxu0 0
        %5441 = vmatprep.subr.bf16.mxu0 0
        %5442 = vmatpush1.bf16.msra.mxu0 0
        %5443 = vmatprep.subr.bf16.mxu0 0
        %5444 = vmatpush1.bf16.msra.mxu0 %v2249
        %5445 = vmatprep.subr.bf16.mxu0 0
        %5446 = vmatpush2.bf16.msra.mxu0 0
        %5447 = vmatprep.subr.bf16.mxu0 0
        %5448 = vmatpush2.bf16.msra.mxu0 0
        %5449 = vmatprep.subr.bf16.mxu0 0
        %5450 = vmatpush2.bf16.msra.mxu0 0
        %5451 = vmatprep.subr.bf16.mxu0 0
        %5452 = vmatpush2.bf16.msra.mxu0 0
        %5453 = vmatprep.subr.bf16.mxu0 0
        %5454 = vmatpush2.bf16.msra.mxu0 0
        %5455 = vmatprep.subr.bf16.mxu0 0
        %5456 = vmatpush2.bf16.msra.mxu0 0
        %5457 = vmatprep.subr.bf16.mxu0 0
        %5458 = vmatpush2.bf16.msra.mxu0 0
        %5459 = vmatprep.subr.bf16.mxu0 0
        %5460 = vmatpush2.bf16.msra.mxu0 0
        %5461 = vmatprep.mubr.bf16.mxu0 0
        %5462 = vmatmul.mubr.bf16.gmra.mxu0 %v5427
        %v5463 = vpop.f32.mrf.mxu0
        %v5464 = vadd.f32 0.0, %v5463
        %v5465 = vpop.f32.mrf.mxu0
        %v5466 = vpop.f32.mrf.mxu0
        %v5467 = vadd.f32 0.0, %v5466
        %v5468 = vpop.f32.mrf.mxu0
        %5469 = vdwg.mxu0
        %v5471 = vsel %vm3765, %v4492, 0
        %5473 = vmatprep.subr.bf16.mxu0 0
        %5474 = vmatpush1.bf16.msra.mxu0 0
        %5475 = vmatprep.subr.bf16.mxu0 0
        %5476 = vmatpush1.bf16.msra.mxu0 0
        %5477 = vmatprep.subr.bf16.mxu0 0
        %5478 = vmatpush1.bf16.msra.mxu0 0
        %5479 = vmatprep.subr.bf16.mxu0 0
        %5480 = vmatpush1.bf16.msra.mxu0 0
        %5481 = vmatprep.subr.bf16.mxu0 0
        %5482 = vmatpush1.bf16.msra.mxu0 0
        %5483 = vmatprep.subr.bf16.mxu0 0
        %5484 = vmatpush1.bf16.msra.mxu0 0
        %5485 = vmatprep.subr.bf16.mxu0 0
        %5486 = vmatpush1.bf16.msra.mxu0 0
        %5487 = vmatprep.subr.bf16.mxu0 0
        %5488 = vmatpush1.bf16.msra.mxu0 %v2250
        %5489 = vmatprep.subr.bf16.mxu0 0
        %5490 = vmatpush2.bf16.msra.mxu0 0
        %5491 = vmatprep.subr.bf16.mxu0 0
        %5492 = vmatpush2.bf16.msra.mxu0 0
        %5493 = vmatprep.subr.bf16.mxu0 0
        %5494 = vmatpush2.bf16.msra.mxu0 0
        %5495 = vmatprep.subr.bf16.mxu0 0
        %5496 = vmatpush2.bf16.msra.mxu0 0
        %5497 = vmatprep.subr.bf16.mxu0 0
        %5498 = vmatpush2.bf16.msra.mxu0 0
        %5499 = vmatprep.subr.bf16.mxu0 0
        %5500 = vmatpush2.bf16.msra.mxu0 0
        %5501 = vmatprep.subr.bf16.mxu0 0
        %5502 = vmatpush2.bf16.msra.mxu0 0
        %5503 = vmatprep.subr.bf16.mxu0 0
        %5504 = vmatpush2.bf16.msra.mxu0 0
        %5505 = vmatprep.mubr.bf16.mxu0 0
        %5506 = vmatmul.mubr.bf16.gmra.mxu0 %v5471
        %v5507 = vpop.f32.mrf.mxu0
        %v5508 = vadd.f32 0.0, %v5507
        %v5509 = vpop.f32.mrf.mxu0
        %v5510 = vpop.f32.mrf.mxu0
        %v5511 = vadd.f32 0.0, %v5510
        %v5512 = vpop.f32.mrf.mxu0
        %5513 = vdwg.mxu0
        %v5515 = vsel %vm3765, %v4493, 0
        %5517 = vmatprep.subr.bf16.mxu0 0
        %5518 = vmatpush1.bf16.msra.mxu0 0
        %5519 = vmatprep.subr.bf16.mxu0 0
        %5520 = vmatpush1.bf16.msra.mxu0 0
        %5521 = vmatprep.subr.bf16.mxu0 0
        %5522 = vmatpush1.bf16.msra.mxu0 0
        %5523 = vmatprep.subr.bf16.mxu0 0
        %5524 = vmatpush1.bf16.msra.mxu0 0
        %5525 = vmatprep.subr.bf16.mxu0 0
        %5526 = vmatpush1.bf16.msra.mxu0 0
        %5527 = vmatprep.subr.bf16.mxu0 0
        %5528 = vmatpush1.bf16.msra.mxu0 0
        %5529 = vmatprep.subr.bf16.mxu0 0
        %5530 = vmatpush1.bf16.msra.mxu0 0
        %5531 = vmatprep.subr.bf16.mxu0 0
        %5532 = vmatpush1.bf16.msra.mxu0 %v2251
        %5533 = vmatprep.subr.bf16.mxu0 0
        %5534 = vmatpush2.bf16.msra.mxu0 0
        %5535 = vmatprep.subr.bf16.mxu0 0
        %5536 = vmatpush2.bf16.msra.mxu0 0
        %5537 = vmatprep.subr.bf16.mxu0 0
        %5538 = vmatpush2.bf16.msra.mxu0 0
        %5539 = vmatprep.subr.bf16.mxu0 0
        %5540 = vmatpush2.bf16.msra.mxu0 0
        %5541 = vmatprep.subr.bf16.mxu0 0
        %5542 = vmatpush2.bf16.msra.mxu0 0
        %5543 = vmatprep.subr.bf16.mxu0 0
        %5544 = vmatpush2.bf16.msra.mxu0 0
        %5545 = vmatprep.subr.bf16.mxu0 0
        %5546 = vmatpush2.bf16.msra.mxu0 0
        %5547 = vmatprep.subr.bf16.mxu0 0
        %5548 = vmatpush2.bf16.msra.mxu0 0
        %5549 = vmatprep.mubr.bf16.mxu0 0
        %5550 = vmatmul.mubr.bf16.gmra.mxu0 %v5515
        %v5551 = vpop.f32.mrf.mxu0
        %v5552 = vadd.f32 0.0, %v5551
        %v5553 = vpop.f32.mrf.mxu0
        %v5554 = vpop.f32.mrf.mxu0
        %v5555 = vadd.f32 0.0, %v5554
        %v5556 = vpop.f32.mrf.mxu0
        %5557 = vdwg.mxu0
        %v5559 = vsel %vm3765, %v4494, 0
        %5561 = vmatprep.subr.bf16.mxu0 0
        %5562 = vmatpush1.bf16.msra.mxu0 0
        %5563 = vmatprep.subr.bf16.mxu0 0
        %5564 = vmatpush1.bf16.msra.mxu0 0
        %5565 = vmatprep.subr.bf16.mxu0 0
        %5566 = vmatpush1.bf16.msra.mxu0 0
        %5567 = vmatprep.subr.bf16.mxu0 0
        %5568 = vmatpush1.bf16.msra.mxu0 0
        %5569 = vmatprep.subr.bf16.mxu0 0
        %5570 = vmatpush1.bf16.msra.mxu0 0
        %5571 = vmatprep.subr.bf16.mxu0 0
        %5572 = vmatpush1.bf16.msra.mxu0 0
        %5573 = vmatprep.subr.bf16.mxu0 0
        %5574 = vmatpush1.bf16.msra.mxu0 0
        %5575 = vmatprep.subr.bf16.mxu0 0
        %5576 = vmatpush1.bf16.msra.mxu0 %v2252
        %5577 = vmatprep.subr.bf16.mxu0 0
        %5578 = vmatpush2.bf16.msra.mxu0 0
        %5579 = vmatprep.subr.bf16.mxu0 0
        %5580 = vmatpush2.bf16.msra.mxu0 0
        %5581 = vmatprep.subr.bf16.mxu0 0
        %5582 = vmatpush2.bf16.msra.mxu0 0
        %5583 = vmatprep.subr.bf16.mxu0 0
        %5584 = vmatpush2.bf16.msra.mxu0 0
        %5585 = vmatprep.subr.bf16.mxu0 0
        %5586 = vmatpush2.bf16.msra.mxu0 0
        %5587 = vmatprep.subr.bf16.mxu0 0
        %5588 = vmatpush2.bf16.msra.mxu0 0
        %5589 = vmatprep.subr.bf16.mxu0 0
        %5590 = vmatpush2.bf16.msra.mxu0 0
        %5591 = vmatprep.subr.bf16.mxu0 0
        %5592 = vmatpush2.bf16.msra.mxu0 0
        %5593 = vmatprep.mubr.bf16.mxu0 0
        %5594 = vmatmul.mubr.bf16.gmra.mxu0 %v5559
        %v5595 = vpop.f32.mrf.mxu0
        %v5596 = vadd.f32 0.0, %v5595
        %v5597 = vpop.f32.mrf.mxu0
        %v5598 = vpop.f32.mrf.mxu0
        %v5599 = vadd.f32 0.0, %v5598
        %v5600 = vpop.f32.mrf.mxu0
        %5601 = vdwg.mxu0
        %v5603 = vsel %vm3765, %v4495, 0
        %5605 = vmatprep.subr.bf16.mxu0 0
        %5606 = vmatpush1.bf16.msra.mxu0 0
        %5607 = vmatprep.subr.bf16.mxu0 0
        %5608 = vmatpush1.bf16.msra.mxu0 0
        %5609 = vmatprep.subr.bf16.mxu0 0
        %5610 = vmatpush1.bf16.msra.mxu0 0
        %5611 = vmatprep.subr.bf16.mxu0 0
        %5612 = vmatpush1.bf16.msra.mxu0 0
        %5613 = vmatprep.subr.bf16.mxu0 0
        %5614 = vmatpush1.bf16.msra.mxu0 0
        %5615 = vmatprep.subr.bf16.mxu0 0
        %5616 = vmatpush1.bf16.msra.mxu0 0
        %5617 = vmatprep.subr.bf16.mxu0 0
        %5618 = vmatpush1.bf16.msra.mxu0 0
        %5619 = vmatprep.subr.bf16.mxu0 0
        %5620 = vmatpush1.bf16.msra.mxu0 %v2253
        %5621 = vmatprep.subr.bf16.mxu0 0
        %5622 = vmatpush2.bf16.msra.mxu0 0
        %5623 = vmatprep.subr.bf16.mxu0 0
        %5624 = vmatpush2.bf16.msra.mxu0 0
        %5625 = vmatprep.subr.bf16.mxu0 0
        %5626 = vmatpush2.bf16.msra.mxu0 0
        %5627 = vmatprep.subr.bf16.mxu0 0
        %5628 = vmatpush2.bf16.msra.mxu0 0
        %5629 = vmatprep.subr.bf16.mxu0 0
        %5630 = vmatpush2.bf16.msra.mxu0 0
        %5631 = vmatprep.subr.bf16.mxu0 0
        %5632 = vmatpush2.bf16.msra.mxu0 0
        %5633 = vmatprep.subr.bf16.mxu0 0
        %5634 = vmatpush2.bf16.msra.mxu0 0
        %5635 = vmatprep.subr.bf16.mxu0 0
        %5636 = vmatpush2.bf16.msra.mxu0 0
        %5637 = vmatprep.mubr.bf16.mxu0 0
        %5638 = vmatmul.mubr.bf16.gmra.mxu0 %v5603
        %v5639 = vpop.f32.mrf.mxu0
        %v5640 = vadd.f32 0.0, %v5639
        %v5641 = vpop.f32.mrf.mxu0
        %v5642 = vpop.f32.mrf.mxu0
        %v5643 = vadd.f32 0.0, %v5642
        %v5644 = vpop.f32.mrf.mxu0
        %5645 = vdwg.mxu0
        %v5647 = vsel %vm3765, %v4496, 0
        %5649 = vmatprep.subr.bf16.mxu0 0
        %5650 = vmatpush1.bf16.msra.mxu0 0
        %5651 = vmatprep.subr.bf16.mxu0 0
        %5652 = vmatpush1.bf16.msra.mxu0 0
        %5653 = vmatprep.subr.bf16.mxu0 0
        %5654 = vmatpush1.bf16.msra.mxu0 0
        %5655 = vmatprep.subr.bf16.mxu0 0
        %5656 = vmatpush1.bf16.msra.mxu0 0
        %5657 = vmatprep.subr.bf16.mxu0 0
        %5658 = vmatpush1.bf16.msra.mxu0 0
        %5659 = vmatprep.subr.bf16.mxu0 0
        %5660 = vmatpush1.bf16.msra.mxu0 0
        %5661 = vmatprep.subr.bf16.mxu0 0
        %5662 = vmatpush1.bf16.msra.mxu0 0
        %5663 = vmatprep.subr.bf16.mxu0 0
        %5664 = vmatpush1.bf16.msra.mxu0 %v2254
        %5665 = vmatprep.subr.bf16.mxu0 0
        %5666 = vmatpush2.bf16.msra.mxu0 0
        %5667 = vmatprep.subr.bf16.mxu0 0
        %5668 = vmatpush2.bf16.msra.mxu0 0
        %5669 = vmatprep.subr.bf16.mxu0 0
        %5670 = vmatpush2.bf16.msra.mxu0 0
        %5671 = vmatprep.subr.bf16.mxu0 0
        %5672 = vmatpush2.bf16.msra.mxu0 0
        %5673 = vmatprep.subr.bf16.mxu0 0
        %5674 = vmatpush2.bf16.msra.mxu0 0
        %5675 = vmatprep.subr.bf16.mxu0 0
        %5676 = vmatpush2.bf16.msra.mxu0 0
        %5677 = vmatprep.subr.bf16.mxu0 0
        %5678 = vmatpush2.bf16.msra.mxu0 0
        %5679 = vmatprep.subr.bf16.mxu0 0
        %5680 = vmatpush2.bf16.msra.mxu0 0
        %5681 = vmatprep.mubr.bf16.mxu0 0
        %5682 = vmatmul.mubr.bf16.gmra.mxu0 %v5647
        %v5683 = vpop.f32.mrf.mxu0
        %v5684 = vadd.f32 0.0, %v5683
        %v5685 = vpop.f32.mrf.mxu0
        %v5686 = vpop.f32.mrf.mxu0
        %v5687 = vadd.f32 0.0, %v5686
        %v5688 = vpop.f32.mrf.mxu0
        %5689 = vdwg.mxu0
        %v5691 = vsel %vm3765, %v4497, 0
        %5693 = vmatprep.subr.bf16.mxu0 0
        %5694 = vmatpush1.bf16.msra.mxu0 0
        %5695 = vmatprep.subr.bf16.mxu0 0
        %5696 = vmatpush1.bf16.msra.mxu0 0
        %5697 = vmatprep.subr.bf16.mxu0 0
        %5698 = vmatpush1.bf16.msra.mxu0 0
        %5699 = vmatprep.subr.bf16.mxu0 0
        %5700 = vmatpush1.bf16.msra.mxu0 0
        %5701 = vmatprep.subr.bf16.mxu0 0
        %5702 = vmatpush1.bf16.msra.mxu0 0
        %5703 = vmatprep.subr.bf16.mxu0 0
        %5704 = vmatpush1.bf16.msra.mxu0 0
        %5705 = vmatprep.subr.bf16.mxu0 0
        %5706 = vmatpush1.bf16.msra.mxu0 0
        %5707 = vmatprep.subr.bf16.mxu0 0
        %5708 = vmatpush1.bf16.msra.mxu0 %v2255
        %5709 = vmatprep.subr.bf16.mxu0 0
        %5710 = vmatpush2.bf16.msra.mxu0 0
        %5711 = vmatprep.subr.bf16.mxu0 0
        %5712 = vmatpush2.bf16.msra.mxu0 0
        %5713 = vmatprep.subr.bf16.mxu0 0
        %5714 = vmatpush2.bf16.msra.mxu0 0
        %5715 = vmatprep.subr.bf16.mxu0 0
        %5716 = vmatpush2.bf16.msra.mxu0 0
        %5717 = vmatprep.subr.bf16.mxu0 0
        %5718 = vmatpush2.bf16.msra.mxu0 0
        %5719 = vmatprep.subr.bf16.mxu0 0
        %5720 = vmatpush2.bf16.msra.mxu0 0
        %5721 = vmatprep.subr.bf16.mxu0 0
        %5722 = vmatpush2.bf16.msra.mxu0 0
        %5723 = vmatprep.subr.bf16.mxu0 0
        %5724 = vmatpush2.bf16.msra.mxu0 0
        %5725 = vmatprep.mubr.bf16.mxu0 0
        %5726 = vmatmul.mubr.bf16.gmra.mxu0 %v5691
        %v5727 = vpop.f32.mrf.mxu0
        %v5728 = vadd.f32 0.0, %v5727
        %v5729 = vpop.f32.mrf.mxu0
        %v5730 = vpop.f32.mrf.mxu0
        %v5731 = vadd.f32 0.0, %v5730
        %v5732 = vpop.f32.mrf.mxu0
        %5733 = vdwg.mxu0
        %v5735 = vsel %vm3765, %v4498, 0
        %5737 = vmatprep.subr.bf16.mxu0 0
        %5738 = vmatpush1.bf16.msra.mxu0 0
        %5739 = vmatprep.subr.bf16.mxu0 0
        %5740 = vmatpush1.bf16.msra.mxu0 0
        %5741 = vmatprep.subr.bf16.mxu0 0
        %5742 = vmatpush1.bf16.msra.mxu0 0
        %5743 = vmatprep.subr.bf16.mxu0 0
        %5744 = vmatpush1.bf16.msra.mxu0 0
        %5745 = vmatprep.subr.bf16.mxu0 0
        %5746 = vmatpush1.bf16.msra.mxu0 0
        %5747 = vmatprep.subr.bf16.mxu0 0
        %5748 = vmatpush1.bf16.msra.mxu0 0
        %5749 = vmatprep.subr.bf16.mxu0 0
        %5750 = vmatpush1.bf16.msra.mxu0 0
        %5751 = vmatprep.subr.bf16.mxu0 0
        %5752 = vmatpush1.bf16.msra.mxu0 %v2256
        %5753 = vmatprep.subr.bf16.mxu0 0
        %5754 = vmatpush2.bf16.msra.mxu0 0
        %5755 = vmatprep.subr.bf16.mxu0 0
        %5756 = vmatpush2.bf16.msra.mxu0 0
        %5757 = vmatprep.subr.bf16.mxu0 0
        %5758 = vmatpush2.bf16.msra.mxu0 0
        %5759 = vmatprep.subr.bf16.mxu0 0
        %5760 = vmatpush2.bf16.msra.mxu0 0
        %5761 = vmatprep.subr.bf16.mxu0 0
        %5762 = vmatpush2.bf16.msra.mxu0 0
        %5763 = vmatprep.subr.bf16.mxu0 0
        %5764 = vmatpush2.bf16.msra.mxu0 0
        %5765 = vmatprep.subr.bf16.mxu0 0
        %5766 = vmatpush2.bf16.msra.mxu0 0
        %5767 = vmatprep.subr.bf16.mxu0 0
        %5768 = vmatpush2.bf16.msra.mxu0 0
        %5769 = vmatprep.mubr.bf16.mxu0 0
        %5770 = vmatmul.mubr.bf16.gmra.mxu0 %v5735
        %v5771 = vpop.f32.mrf.mxu0
        %v5772 = vadd.f32 0.0, %v5771
        %v5773 = vpop.f32.mrf.mxu0
        %v5774 = vpop.f32.mrf.mxu0
        %v5775 = vadd.f32 0.0, %v5774
        %v5776 = vpop.f32.mrf.mxu0
        %5777 = vdwg.mxu0
        %v5779 = vsel %vm3765, %v4499, 0
        %5781 = vmatprep.subr.bf16.mxu0 0
        %5782 = vmatpush1.bf16.msra.mxu0 0
        %5783 = vmatprep.subr.bf16.mxu0 0
        %5784 = vmatpush1.bf16.msra.mxu0 0
        %5785 = vmatprep.subr.bf16.mxu0 0
        %5786 = vmatpush1.bf16.msra.mxu0 0
        %5787 = vmatprep.subr.bf16.mxu0 0
        %5788 = vmatpush1.bf16.msra.mxu0 0
        %5789 = vmatprep.subr.bf16.mxu0 0
        %5790 = vmatpush1.bf16.msra.mxu0 0
        %5791 = vmatprep.subr.bf16.mxu0 0
        %5792 = vmatpush1.bf16.msra.mxu0 0
        %5793 = vmatprep.subr.bf16.mxu0 0
        %5794 = vmatpush1.bf16.msra.mxu0 0
        %5795 = vmatprep.subr.bf16.mxu0 0
        %5796 = vmatpush1.bf16.msra.mxu0 %v2257
        %5797 = vmatprep.subr.bf16.mxu0 0
        %5798 = vmatpush2.bf16.msra.mxu0 0
        %5799 = vmatprep.subr.bf16.mxu0 0
        %5800 = vmatpush2.bf16.msra.mxu0 0
        %5801 = vmatprep.subr.bf16.mxu0 0
        %5802 = vmatpush2.bf16.msra.mxu0 0
        %5803 = vmatprep.subr.bf16.mxu0 0
        %5804 = vmatpush2.bf16.msra.mxu0 0
        %5805 = vmatprep.subr.bf16.mxu0 0
        %5806 = vmatpush2.bf16.msra.mxu0 0
        %5807 = vmatprep.subr.bf16.mxu0 0
        %5808 = vmatpush2.bf16.msra.mxu0 0
        %5809 = vmatprep.subr.bf16.mxu0 0
        %5810 = vmatpush2.bf16.msra.mxu0 0
        %5811 = vmatprep.subr.bf16.mxu0 0
        %5812 = vmatpush2.bf16.msra.mxu0 0
        %5813 = vmatprep.mubr.bf16.mxu0 0
        %5814 = vmatmul.mubr.bf16.gmra.mxu0 %v5779
        %v5815 = vpop.f32.mrf.mxu0
        %v5816 = vadd.f32 0.0, %v5815
        %v5817 = vpop.f32.mrf.mxu0
        %v5818 = vpop.f32.mrf.mxu0
        %v5819 = vadd.f32 0.0, %v5818
        %v5820 = vpop.f32.mrf.mxu0
        %5821 = vdwg.mxu0
        %v5823 = vsel %vm3765, %v4500, 0
        %5825 = vmatprep.subr.bf16.mxu0 0
        %5826 = vmatpush1.bf16.msra.mxu0 0
        %5827 = vmatprep.subr.bf16.mxu0 0
        %5828 = vmatpush1.bf16.msra.mxu0 0
        %5829 = vmatprep.subr.bf16.mxu0 0
        %5830 = vmatpush1.bf16.msra.mxu0 0
        %5831 = vmatprep.subr.bf16.mxu0 0
        %5832 = vmatpush1.bf16.msra.mxu0 0
        %5833 = vmatprep.subr.bf16.mxu0 0
        %5834 = vmatpush1.bf16.msra.mxu0 0
        %5835 = vmatprep.subr.bf16.mxu0 0
        %5836 = vmatpush1.bf16.msra.mxu0 0
        %5837 = vmatprep.subr.bf16.mxu0 0
        %5838 = vmatpush1.bf16.msra.mxu0 0
        %5839 = vmatprep.subr.bf16.mxu0 0
        %5840 = vmatpush1.bf16.msra.mxu0 %v2258
        %5841 = vmatprep.subr.bf16.mxu0 0
        %5842 = vmatpush2.bf16.msra.mxu0 0
        %5843 = vmatprep.subr.bf16.mxu0 0
        %5844 = vmatpush2.bf16.msra.mxu0 0
        %5845 = vmatprep.subr.bf16.mxu0 0
        %5846 = vmatpush2.bf16.msra.mxu0 0
        %5847 = vmatprep.subr.bf16.mxu0 0
        %5848 = vmatpush2.bf16.msra.mxu0 0
        %5849 = vmatprep.subr.bf16.mxu0 0
        %5850 = vmatpush2.bf16.msra.mxu0 0
        %5851 = vmatprep.subr.bf16.mxu0 0
        %5852 = vmatpush2.bf16.msra.mxu0 0
        %5853 = vmatprep.subr.bf16.mxu0 0
        %5854 = vmatpush2.bf16.msra.mxu0 0
        %5855 = vmatprep.subr.bf16.mxu0 0
        %5856 = vmatpush2.bf16.msra.mxu0 0
        %5857 = vmatprep.mubr.bf16.mxu0 0
        %5858 = vmatmul.mubr.bf16.gmra.mxu0 %v5823
        %v5859 = vpop.f32.mrf.mxu0
        %v5860 = vadd.f32 0.0, %v5859
        %v5861 = vpop.f32.mrf.mxu0
        %v5862 = vpop.f32.mrf.mxu0
        %v5863 = vadd.f32 0.0, %v5862
        %v5864 = vpop.f32.mrf.mxu0
        %5865 = vdwg.mxu0
        %v5867 = vsel %vm3765, %v4501, 0
        %5869 = vmatprep.subr.bf16.mxu0 0
        %5870 = vmatpush1.bf16.msra.mxu0 0
        %5871 = vmatprep.subr.bf16.mxu0 0
        %5872 = vmatpush1.bf16.msra.mxu0 0
        %5873 = vmatprep.subr.bf16.mxu0 0
        %5874 = vmatpush1.bf16.msra.mxu0 0
        %5875 = vmatprep.subr.bf16.mxu0 0
        %5876 = vmatpush1.bf16.msra.mxu0 0
        %5877 = vmatprep.subr.bf16.mxu0 0
        %5878 = vmatpush1.bf16.msra.mxu0 0
        %5879 = vmatprep.subr.bf16.mxu0 0
        %5880 = vmatpush1.bf16.msra.mxu0 0
        %5881 = vmatprep.subr.bf16.mxu0 0
        %5882 = vmatpush1.bf16.msra.mxu0 0
        %5883 = vmatprep.subr.bf16.mxu0 0
        %5884 = vmatpush1.bf16.msra.mxu0 %v2259
        %5885 = vmatprep.subr.bf16.mxu0 0
        %5886 = vmatpush2.bf16.msra.mxu0 0
        %5887 = vmatprep.subr.bf16.mxu0 0
        %5888 = vmatpush2.bf16.msra.mxu0 0
        %5889 = vmatprep.subr.bf16.mxu0 0
        %5890 = vmatpush2.bf16.msra.mxu0 0
        %5891 = vmatprep.subr.bf16.mxu0 0
        %5892 = vmatpush2.bf16.msra.mxu0 0
        %5893 = vmatprep.subr.bf16.mxu0 0
        %5894 = vmatpush2.bf16.msra.mxu0 0
        %5895 = vmatprep.subr.bf16.mxu0 0
        %5896 = vmatpush2.bf16.msra.mxu0 0
        %5897 = vmatprep.subr.bf16.mxu0 0
        %5898 = vmatpush2.bf16.msra.mxu0 0
        %5899 = vmatprep.subr.bf16.mxu0 0
        %5900 = vmatpush2.bf16.msra.mxu0 0
        %5901 = vmatprep.mubr.bf16.mxu0 0
        %5902 = vmatmul.mubr.bf16.gmra.mxu0 %v5867
        %v5903 = vpop.f32.mrf.mxu0
        %v5904 = vadd.f32 0.0, %v5903
        %v5905 = vpop.f32.mrf.mxu0
        %v5906 = vpop.f32.mrf.mxu0
        %v5907 = vadd.f32 0.0, %v5906
        %v5908 = vpop.f32.mrf.mxu0
        %5909 = vdwg.mxu0
        %5942 = vrot.lane.b32.xlu0 %v5244, 2
        %v5943 = vpop.permute.xlu0 %5942
        %5944 = vrot.lane.b32.xlu0 %v5247, 2
        %v5945 = vpop.permute.xlu0 %5944
        %5946 = vrot.lane.b32.xlu0 %v5288, 2
        %v5947 = vpop.permute.xlu0 %5946
        %5948 = vrot.lane.b32.xlu0 %v5291, 2
        %v5949 = vpop.permute.xlu0 %5948
        %5950 = vrot.lane.b32.xlu0 %v5332, 2
        %v5951 = vpop.permute.xlu0 %5950
        %5952 = vrot.lane.b32.xlu0 %v5335, 2
        %v5953 = vpop.permute.xlu0 %5952
        %5954 = vrot.lane.b32.xlu0 %v5376, 2
        %v5955 = vpop.permute.xlu0 %5954
        %5956 = vrot.lane.b32.xlu0 %v5379, 2
        %v5957 = vpop.permute.xlu0 %5956
        %5958 = vrot.lane.b32.xlu0 %v5420, 2
        %v5959 = vpop.permute.xlu0 %5958
        %5960 = vrot.lane.b32.xlu0 %v5423, 2
        %v5961 = vpop.permute.xlu0 %5960
        %5962 = vrot.lane.b32.xlu0 %v5464, 2
        %v5963 = vpop.permute.xlu0 %5962
        %5964 = vrot.lane.b32.xlu0 %v5467, 2
        %v5965 = vpop.permute.xlu0 %5964
        %5966 = vrot.lane.b32.xlu0 %v5508, 2
        %v5967 = vpop.permute.xlu0 %5966
        %5968 = vrot.lane.b32.xlu0 %v5511, 2
        %v5969 = vpop.permute.xlu0 %5968
        %5970 = vrot.lane.b32.xlu0 %v5552, 2
        %v5971 = vpop.permute.xlu0 %5970
        %5972 = vrot.lane.b32.xlu0 %v5555, 2
        %v5973 = vpop.permute.xlu0 %5972
        %5974 = vrot.lane.b32.xlu0 %v5596, 2
        %v5975 = vpop.permute.xlu0 %5974
        %5976 = vrot.lane.b32.xlu0 %v5599, 2
        %v5977 = vpop.permute.xlu0 %5976
        %5978 = vrot.lane.b32.xlu0 %v5640, 2
        %v5979 = vpop.permute.xlu0 %5978
        %5980 = vrot.lane.b32.xlu0 %v5643, 2
        %v5981 = vpop.permute.xlu0 %5980
        %5982 = vrot.lane.b32.xlu0 %v5684, 2
        %v5983 = vpop.permute.xlu0 %5982
        %5984 = vrot.lane.b32.xlu0 %v5687, 2
        %v5985 = vpop.permute.xlu0 %5984
        %5986 = vrot.lane.b32.xlu0 %v5728, 2
        %v5987 = vpop.permute.xlu0 %5986
        %5988 = vrot.lane.b32.xlu0 %v5731, 2
        %v5989 = vpop.permute.xlu0 %5988
        %5990 = vrot.lane.b32.xlu0 %v5772, 2
        %v5991 = vpop.permute.xlu0 %5990
        %5992 = vrot.lane.b32.xlu0 %v5775, 2
        %v5993 = vpop.permute.xlu0 %5992
        %5994 = vrot.lane.b32.xlu0 %v5816, 2
        %v5995 = vpop.permute.xlu0 %5994
        %5996 = vrot.lane.b32.xlu0 %v5819, 2
        %v5997 = vpop.permute.xlu0 %5996
        %5998 = vrot.lane.b32.xlu0 %v5860, 2
        %v5999 = vpop.permute.xlu0 %5998
        %6000 = vrot.lane.b32.xlu0 %v5863, 2
        %v6001 = vpop.permute.xlu0 %6000
        %6002 = vrot.lane.b32.xlu0 %v5904, 2
        %v6003 = vpop.permute.xlu0 %6002
        %6004 = vrot.lane.b32.xlu0 %v5907, 2
        %v6005 = vpop.permute.xlu0 %6004
        %v6038 = vsel %vm2260, %v4540, %v5943
        %v6039 = vsel %vm2260, %v4543, %v5945
        %v6040 = vsel %vm2260, %v4584, %v5947
        %v6041 = vsel %vm2260, %v4587, %v5949
        %v6042 = vsel %vm2260, %v4628, %v5951
        %v6043 = vsel %vm2260, %v4631, %v5953
        %v6044 = vsel %vm2260, %v4672, %v5955
        %v6045 = vsel %vm2260, %v4675, %v5957
        %v6046 = vsel %vm2260, %v4716, %v5959
        %v6047 = vsel %vm2260, %v4719, %v5961
        %v6048 = vsel %vm2260, %v4760, %v5963
        %v6049 = vsel %vm2260, %v4763, %v5965
        %v6050 = vsel %vm2260, %v4804, %v5967
        %v6051 = vsel %vm2260, %v4807, %v5969
        %v6052 = vsel %vm2260, %v4848, %v5971
        %v6053 = vsel %vm2260, %v4851, %v5973
        %v6054 = vsel %vm2260, %v4892, %v5975
        %v6055 = vsel %vm2260, %v4895, %v5977
        %v6056 = vsel %vm2260, %v4936, %v5979
        %v6057 = vsel %vm2260, %v4939, %v5981
        %v6058 = vsel %vm2260, %v4980, %v5983
        %v6059 = vsel %vm2260, %v4983, %v5985
        %v6060 = vsel %vm2260, %v5024, %v5987
        %v6061 = vsel %vm2260, %v5027, %v5989
        %v6062 = vsel %vm2260, %v5068, %v5991
        %v6063 = vsel %vm2260, %v5071, %v5993
        %v6064 = vsel %vm2260, %v5112, %v5995
        %v6065 = vsel %vm2260, %v5115, %v5997
        %v6066 = vsel %vm2260, %v5156, %v5999
        %v6067 = vsel %vm2260, %v5159, %v6001
        %v6068 = vsel %vm2260, %v5200, %v6003
        %v6069 = vsel %vm2260, %v5203, %v6005
        %v6070 = vpack.c.bf16 %v6039, %v6038
        %v6071 = vpack.c.bf16 %v6041, %v6040
        %v6072 = vpack.c.bf16 %v6043, %v6042
        %v6073 = vpack.c.bf16 %v6045, %v6044
        %v6074 = vpack.c.bf16 %v6047, %v6046
        %v6075 = vpack.c.bf16 %v6049, %v6048
        %v6076 = vpack.c.bf16 %v6051, %v6050
        %v6077 = vpack.c.bf16 %v6053, %v6052
        %v6078 = vpack.c.bf16 %v6055, %v6054
        %v6079 = vpack.c.bf16 %v6057, %v6056
        %v6080 = vpack.c.bf16 %v6059, %v6058
        %v6081 = vpack.c.bf16 %v6061, %v6060
        %v6082 = vpack.c.bf16 %v6063, %v6062
        %v6083 = vpack.c.bf16 %v6065, %v6064
        %v6084 = vpack.c.bf16 %v6067, %v6066
        %v6085 = vpack.c.bf16 %v6069, %v6068
        %s6086 = smul.addr %s656, 2
        %s6087 = scalar_lea.vmem %s9, %s6086
        %v6088 = vld [vmem:[%s6087] sm:$0x3]
        %s6089 = scalar_lea.vmem %s10, %s656
        %v6090 = vld [vmem:[%s6089] sm:$0x1]
        %v6092 = vlaneseq
        %v6093 = vshrl.u32 %v6092, 7
        %v6094 = vsub.s32 0, %v6093
        %v6095 = vrot.slane %v6090, %v6094
        %v6098 = vsel %vm622, %v6070, 0
        %v6101 = vsel %vm622, %v6071, 0
        %v6104 = vsel %vm622, %v6072, 0
        %v6107 = vsel %vm622, %v6073, 0
        %v6110 = vsel %vm622, %v6074, 0
        %v6113 = vsel %vm622, %v6075, 0
        %v6116 = vsel %vm622, %v6076, 0
        %v6119 = vsel %vm622, %v6077, 0
        %v6122 = vsel %vm622, %v6078, 0
        %v6125 = vsel %vm622, %v6079, 0
        %v6128 = vsel %vm622, %v6080, 0
        %v6131 = vsel %vm622, %v6081, 0
        %v6134 = vsel %vm622, %v6082, 0
        %v6137 = vsel %vm622, %v6083, 0
        %v6140 = vsel %vm622, %v6084, 0
        %v6143 = vsel %vm622, %v6085, 0
        %v6146 = vsel %vm1265, %v6088, 0
        %6148 = vmatprep.subr.bf16.mxu0 0
        %6149 = vmatpush1.bf16.msra.mxu0 0
        %6150 = vmatprep.subr.bf16.mxu0 0
        %6151 = vmatpush1.bf16.msra.mxu0 0
        %6152 = vmatprep.subr.bf16.mxu0 0
        %6153 = vmatpush1.bf16.msra.mxu0 0
        %6154 = vmatprep.subr.bf16.mxu0 0
        %6155 = vmatpush1.bf16.msra.mxu0 0
        %6156 = vmatprep.subr.bf16.mxu0 0
        %6157 = vmatpush1.bf16.msra.mxu0 0
        %6158 = vmatprep.subr.bf16.mxu0 0
        %6159 = vmatpush1.bf16.msra.mxu0 0
        %6160 = vmatprep.subr.bf16.mxu0 0
        %6161 = vmatpush1.bf16.msra.mxu0 0
        %6162 = vmatprep.subr.bf16.mxu0 0
        %6163 = vmatpush1.bf16.msra.mxu0 %v6146
        %6164 = vmatprep.subr.bf16.mxu0 0
        %6165 = vmatpush2.bf16.msra.mxu0 0
        %6166 = vmatprep.subr.bf16.mxu0 0
        %6167 = vmatpush2.bf16.msra.mxu0 0
        %6168 = vmatprep.subr.bf16.mxu0 0
        %6169 = vmatpush2.bf16.msra.mxu0 0
        %6170 = vmatprep.subr.bf16.mxu0 0
        %6171 = vmatpush2.bf16.msra.mxu0 0
        %6172 = vmatprep.subr.bf16.mxu0 0
        %6173 = vmatpush2.bf16.msra.mxu0 0
        %6174 = vmatprep.subr.bf16.mxu0 0
        %6175 = vmatpush2.bf16.msra.mxu0 0
        %6176 = vmatprep.subr.bf16.mxu0 0
        %6177 = vmatpush2.bf16.msra.mxu0 0
        %6178 = vmatprep.subr.bf16.mxu0 0
        %6179 = vmatpush2.bf16.msra.mxu0 0
        %6180 = vmatprep.mubr.bf16.mxu0 0
        %6181 = vmatmul.mubr.bf16.gmra.mxu0 %v6098
        %v6182 = vpop.f32.mrf.mxu0
        %v6183 = vadd.f32 %v6095, %v6182
        %v6184 = vpop.f32.mrf.mxu0
        %v6185 = vpop.f32.mrf.mxu0
        %v6186 = vadd.f32 %v6095, %v6185
        %v6187 = vpop.f32.mrf.mxu0
        %6188 = vmatprep.mubr.bf16.mxu0 0
        %6189 = vmatmul.mubr.bf16.gmra.mxu0 %v6101
        %v6190 = vpop.f32.mrf.mxu0
        %v6191 = vadd.f32 %v6095, %v6190
        %v6192 = vpop.f32.mrf.mxu0
        %v6193 = vpop.f32.mrf.mxu0
        %v6194 = vadd.f32 %v6095, %v6193
        %v6195 = vpop.f32.mrf.mxu0
        %6196 = vmatprep.mubr.bf16.mxu0 0
        %6197 = vmatmul.mubr.bf16.gmra.mxu0 %v6104
        %v6198 = vpop.f32.mrf.mxu0
        %v6199 = vadd.f32 %v6095, %v6198
        %v6200 = vpop.f32.mrf.mxu0
        %v6201 = vpop.f32.mrf.mxu0
        %v6202 = vadd.f32 %v6095, %v6201
        %v6203 = vpop.f32.mrf.mxu0
        %6204 = vmatprep.mubr.bf16.mxu0 0
        %6205 = vmatmul.mubr.bf16.gmra.mxu0 %v6107
        %v6206 = vpop.f32.mrf.mxu0
        %v6207 = vadd.f32 %v6095, %v6206
        %v6208 = vpop.f32.mrf.mxu0
        %v6209 = vpop.f32.mrf.mxu0
        %v6210 = vadd.f32 %v6095, %v6209
        %v6211 = vpop.f32.mrf.mxu0
        %6212 = vmatprep.mubr.bf16.mxu0 0
        %6213 = vmatmul.mubr.bf16.gmra.mxu0 %v6110
        %v6214 = vpop.f32.mrf.mxu0
        %v6215 = vadd.f32 %v6095, %v6214
        %v6216 = vpop.f32.mrf.mxu0
        %v6217 = vpop.f32.mrf.mxu0
        %v6218 = vadd.f32 %v6095, %v6217
        %v6219 = vpop.f32.mrf.mxu0
        %6220 = vmatprep.mubr.bf16.mxu0 0
        %6221 = vmatmul.mubr.bf16.gmra.mxu0 %v6113
        %v6222 = vpop.f32.mrf.mxu0
        %v6223 = vadd.f32 %v6095, %v6222
        %v6224 = vpop.f32.mrf.mxu0
        %v6225 = vpop.f32.mrf.mxu0
        %v6226 = vadd.f32 %v6095, %v6225
        %v6227 = vpop.f32.mrf.mxu0
        %6228 = vmatprep.mubr.bf16.mxu0 0
        %6229 = vmatmul.mubr.bf16.gmra.mxu0 %v6116
        %v6230 = vpop.f32.mrf.mxu0
        %v6231 = vadd.f32 %v6095, %v6230
        %v6232 = vpop.f32.mrf.mxu0
        %v6233 = vpop.f32.mrf.mxu0
        %v6234 = vadd.f32 %v6095, %v6233
        %v6235 = vpop.f32.mrf.mxu0
        %6236 = vmatprep.mubr.bf16.mxu0 0
        %6237 = vmatmul.mubr.bf16.gmra.mxu0 %v6119
        %v6238 = vpop.f32.mrf.mxu0
        %v6239 = vadd.f32 %v6095, %v6238
        %v6240 = vpop.f32.mrf.mxu0
        %v6241 = vpop.f32.mrf.mxu0
        %v6242 = vadd.f32 %v6095, %v6241
        %v6243 = vpop.f32.mrf.mxu0
        %6244 = vmatprep.mubr.bf16.mxu0 0
        %6245 = vmatmul.mubr.bf16.gmra.mxu0 %v6122
        %v6246 = vpop.f32.mrf.mxu0
        %v6247 = vadd.f32 %v6095, %v6246
        %v6248 = vpop.f32.mrf.mxu0
        %v6249 = vpop.f32.mrf.mxu0
        %v6250 = vadd.f32 %v6095, %v6249
        %v6251 = vpop.f32.mrf.mxu0
        %6252 = vmatprep.mubr.bf16.mxu0 0
        %6253 = vmatmul.mubr.bf16.gmra.mxu0 %v6125
        %v6254 = vpop.f32.mrf.mxu0
        %v6255 = vadd.f32 %v6095, %v6254
        %v6256 = vpop.f32.mrf.mxu0
        %v6257 = vpop.f32.mrf.mxu0
        %v6258 = vadd.f32 %v6095, %v6257
        %v6259 = vpop.f32.mrf.mxu0
        %6260 = vmatprep.mubr.bf16.mxu0 0
        %6261 = vmatmul.mubr.bf16.gmra.mxu0 %v6128
        %v6262 = vpop.f32.mrf.mxu0
        %v6263 = vadd.f32 %v6095, %v6262
        %v6264 = vpop.f32.mrf.mxu0
        %v6265 = vpop.f32.mrf.mxu0
        %v6266 = vadd.f32 %v6095, %v6265
        %v6267 = vpop.f32.mrf.mxu0
        %6268 = vmatprep.mubr.bf16.mxu0 0
        %6269 = vmatmul.mubr.bf16.gmra.mxu0 %v6131
        %v6270 = vpop.f32.mrf.mxu0
        %v6271 = vadd.f32 %v6095, %v6270
        %v6272 = vpop.f32.mrf.mxu0
        %v6273 = vpop.f32.mrf.mxu0
        %v6274 = vadd.f32 %v6095, %v6273
        %v6275 = vpop.f32.mrf.mxu0
        %6276 = vmatprep.mubr.bf16.mxu0 0
        %6277 = vmatmul.mubr.bf16.gmra.mxu0 %v6134
        %v6278 = vpop.f32.mrf.mxu0
        %v6279 = vadd.f32 %v6095, %v6278
        %v6280 = vpop.f32.mrf.mxu0
        %v6281 = vpop.f32.mrf.mxu0
        %v6282 = vadd.f32 %v6095, %v6281
        %v6283 = vpop.f32.mrf.mxu0
        %6284 = vmatprep.mubr.bf16.mxu0 0
        %6285 = vmatmul.mubr.bf16.gmra.mxu0 %v6137
        %v6286 = vpop.f32.mrf.mxu0
        %v6287 = vadd.f32 %v6095, %v6286
        %v6288 = vpop.f32.mrf.mxu0
        %v6289 = vpop.f32.mrf.mxu0
        %v6290 = vadd.f32 %v6095, %v6289
        %v6291 = vpop.f32.mrf.mxu0
        %6292 = vmatprep.mubr.bf16.mxu0 0
        %6293 = vmatmul.mubr.bf16.gmra.mxu0 %v6140
        %v6294 = vpop.f32.mrf.mxu0
        %v6295 = vadd.f32 %v6095, %v6294
        %v6296 = vpop.f32.mrf.mxu0
        %v6297 = vpop.f32.mrf.mxu0
        %v6298 = vadd.f32 %v6095, %v6297
        %v6299 = vpop.f32.mrf.mxu0
        %6300 = vmatprep.mubr.bf16.mxu0 0
        %6301 = vmatmul.mubr.bf16.gmra.mxu0 %v6143
        %v6302 = vpop.f32.mrf.mxu0
        %v6303 = vadd.f32 %v6095, %v6302
        %v6304 = vpop.f32.mrf.mxu0
        %v6305 = vpop.f32.mrf.mxu0
        %v6306 = vadd.f32 %v6095, %v6305
        %v6307 = vpop.f32.mrf.mxu0
        %6308 = vdwg.mxu0
        %v6309 = vadd.f32 %v661, %v6183
        %v6310 = vadd.f32 %v662, %v6186
        %v6311 = vadd.f32 %v663, %v6191
        %v6312 = vadd.f32 %v664, %v6194
        %v6313 = vadd.f32 %v665, %v6199
        %v6314 = vadd.f32 %v666, %v6202
        %v6315 = vadd.f32 %v667, %v6207
        %v6316 = vadd.f32 %v668, %v6210
        %v6317 = vadd.f32 %v669, %v6215
        %v6318 = vadd.f32 %v670, %v6218
        %v6319 = vadd.f32 %v671, %v6223
        %v6320 = vadd.f32 %v672, %v6226
        %v6321 = vadd.f32 %v673, %v6231
        %v6322 = vadd.f32 %v674, %v6234
        %v6323 = vadd.f32 %v675, %v6239
        %v6324 = vadd.f32 %v676, %v6242
        %v6325 = vadd.f32 %v677, %v6247
        %v6326 = vadd.f32 %v678, %v6250
        %v6327 = vadd.f32 %v679, %v6255
        %v6328 = vadd.f32 %v680, %v6258
        %v6329 = vadd.f32 %v681, %v6263
        %v6330 = vadd.f32 %v682, %v6266
        %v6331 = vadd.f32 %v683, %v6271
        %v6332 = vadd.f32 %v684, %v6274
        %v6333 = vadd.f32 %v685, %v6279
        %v6334 = vadd.f32 %v686, %v6282
        %v6335 = vadd.f32 %v687, %v6287
        %v6336 = vadd.f32 %v688, %v6290
        %v6337 = vadd.f32 %v689, %v6295
        %v6338 = vadd.f32 %v690, %v6298
        %v6339 = vadd.f32 %v691, %v6303
        %v6340 = vadd.f32 %v692, %v6306
        %s6341 = scalar_lea.vmem %s11, %s656
        %v6342 = vld [vmem:[%s6341] sm:$0x1]
        %s6343 = scalar_lea.vmem %s12, %s656
        %v6344 = vld [vmem:[%s6343] sm:$0x1]
        %v6345 = vsel %vm622, %v6309, 0.0
        %6346 = vadd.xlane.f32.xlu0 %v6345
        %v6347 = vpop.xlane.xlu0 %6346
        %v6348 = vsel %vm622, %v6310, 0.0
        %6349 = vadd.xlane.f32.xlu0 %v6348
        %v6350 = vpop.xlane.xlu0 %6349
        %v6351 = vsel %vm622, %v6311, 0.0
        %6352 = vadd.xlane.f32.xlu0 %v6351
        %v6353 = vpop.xlane.xlu0 %6352
        %v6354 = vsel %vm622, %v6312, 0.0
        %6355 = vadd.xlane.f32.xlu0 %v6354
        %v6356 = vpop.xlane.xlu0 %6355
        %v6357 = vsel %vm622, %v6313, 0.0
        %6358 = vadd.xlane.f32.xlu0 %v6357
        %v6359 = vpop.xlane.xlu0 %6358
        %v6360 = vsel %vm622, %v6314, 0.0
        %6361 = vadd.xlane.f32.xlu0 %v6360
        %v6362 = vpop.xlane.xlu0 %6361
        %v6363 = vsel %vm622, %v6315, 0.0
        %6364 = vadd.xlane.f32.xlu0 %v6363
        %v6365 = vpop.xlane.xlu0 %6364
        %v6366 = vsel %vm622, %v6316, 0.0
        %6367 = vadd.xlane.f32.xlu0 %v6366
        %v6368 = vpop.xlane.xlu0 %6367
        %v6369 = vsel %vm622, %v6317, 0.0
        %6370 = vadd.xlane.f32.xlu0 %v6369
        %v6371 = vpop.xlane.xlu0 %6370
        %v6372 = vsel %vm622, %v6318, 0.0
        %6373 = vadd.xlane.f32.xlu0 %v6372
        %v6374 = vpop.xlane.xlu0 %6373
        %v6375 = vsel %vm622, %v6319, 0.0
        %6376 = vadd.xlane.f32.xlu0 %v6375
        %v6377 = vpop.xlane.xlu0 %6376
        %v6378 = vsel %vm622, %v6320, 0.0
        %6379 = vadd.xlane.f32.xlu0 %v6378
        %v6380 = vpop.xlane.xlu0 %6379
        %v6381 = vsel %vm622, %v6321, 0.0
        %6382 = vadd.xlane.f32.xlu0 %v6381
        %v6383 = vpop.xlane.xlu0 %6382
        %v6384 = vsel %vm622, %v6322, 0.0
        %6385 = vadd.xlane.f32.xlu0 %v6384
        %v6386 = vpop.xlane.xlu0 %6385
        %v6387 = vsel %vm622, %v6323, 0.0
        %6388 = vadd.xlane.f32.xlu0 %v6387
        %v6389 = vpop.xlane.xlu0 %6388
        %v6390 = vsel %vm622, %v6324, 0.0
        %6391 = vadd.xlane.f32.xlu0 %v6390
        %v6392 = vpop.xlane.xlu0 %6391
        %v6393 = vsel %vm622, %v6325, 0.0
        %6394 = vadd.xlane.f32.xlu0 %v6393
        %v6395 = vpop.xlane.xlu0 %6394
        %v6396 = vsel %vm622, %v6326, 0.0
        %6397 = vadd.xlane.f32.xlu0 %v6396
        %v6398 = vpop.xlane.xlu0 %6397
        %v6399 = vsel %vm622, %v6327, 0.0
        %6400 = vadd.xlane.f32.xlu0 %v6399
        %v6401 = vpop.xlane.xlu0 %6400
        %v6402 = vsel %vm622, %v6328, 0.0
        %6403 = vadd.xlane.f32.xlu0 %v6402
        %v6404 = vpop.xlane.xlu0 %6403
        %v6405 = vsel %vm622, %v6329, 0.0
        %6406 = vadd.xlane.f32.xlu0 %v6405
        %v6407 = vpop.xlane.xlu0 %6406
        %v6408 = vsel %vm622, %v6330, 0.0
        %6409 = vadd.xlane.f32.xlu0 %v6408
        %v6410 = vpop.xlane.xlu0 %6409
        %v6411 = vsel %vm622, %v6331, 0.0
        %6412 = vadd.xlane.f32.xlu0 %v6411
        %v6413 = vpop.xlane.xlu0 %6412
        %v6414 = vsel %vm622, %v6332, 0.0
        %6415 = vadd.xlane.f32.xlu0 %v6414
        %v6416 = vpop.xlane.xlu0 %6415
        %v6417 = vsel %vm622, %v6333, 0.0
        %6418 = vadd.xlane.f32.xlu0 %v6417
        %v6419 = vpop.xlane.xlu0 %6418
        %v6420 = vsel %vm622, %v6334, 0.0
        %6421 = vadd.xlane.f32.xlu0 %v6420
        %v6422 = vpop.xlane.xlu0 %6421
        %v6423 = vsel %vm622, %v6335, 0.0
        %6424 = vadd.xlane.f32.xlu0 %v6423
        %v6425 = vpop.xlane.xlu0 %6424
        %v6426 = vsel %vm622, %v6336, 0.0
        %6427 = vadd.xlane.f32.xlu0 %v6426
        %v6428 = vpop.xlane.xlu0 %6427
        %v6429 = vsel %vm622, %v6337, 0.0
        %6430 = vadd.xlane.f32.xlu0 %v6429
        %v6431 = vpop.xlane.xlu0 %6430
        %v6432 = vsel %vm622, %v6338, 0.0
        %6433 = vadd.xlane.f32.xlu0 %v6432
        %v6434 = vpop.xlane.xlu0 %6433
        %v6435 = vsel %vm622, %v6339, 0.0
        %6436 = vadd.xlane.f32.xlu0 %v6435
        %v6437 = vpop.xlane.xlu0 %6436
        %v6438 = vsel %vm622, %v6340, 0.0
        %6439 = vadd.xlane.f32.xlu0 %v6438
        %v6440 = vpop.xlane.xlu0 %6439
        %v6441 = vmul.f32 %v6347, %v793
        %v6442 = vmul.f32 %v6350, %v793
        %v6443 = vmul.f32 %v6353, %v793
        %v6444 = vmul.f32 %v6356, %v793
        %v6445 = vmul.f32 %v6359, %v793
        %v6446 = vmul.f32 %v6362, %v793
        %v6447 = vmul.f32 %v6365, %v793
        %v6448 = vmul.f32 %v6368, %v793
        %v6449 = vmul.f32 %v6371, %v793
        %v6450 = vmul.f32 %v6374, %v793
        %v6451 = vmul.f32 %v6377, %v793
        %v6452 = vmul.f32 %v6380, %v793
        %v6453 = vmul.f32 %v6383, %v793
        %v6454 = vmul.f32 %v6386, %v793
        %v6455 = vmul.f32 %v6389, %v793
        %v6456 = vmul.f32 %v6392, %v793
        %v6457 = vmul.f32 %v6395, %v793
        %v6458 = vmul.f32 %v6398, %v793
        %v6459 = vmul.f32 %v6401, %v793
        %v6460 = vmul.f32 %v6404, %v793
        %v6461 = vmul.f32 %v6407, %v793
        %v6462 = vmul.f32 %v6410, %v793
        %v6463 = vmul.f32 %v6413, %v793
        %v6464 = vmul.f32 %v6416, %v793
        %v6465 = vmul.f32 %v6419, %v793
        %v6466 = vmul.f32 %v6422, %v793
        %v6467 = vmul.f32 %v6425, %v793
        %v6468 = vmul.f32 %v6428, %v793
        %v6469 = vmul.f32 %v6431, %v793
        %v6470 = vmul.f32 %v6434, %v793
        %v6471 = vmul.f32 %v6437, %v793
        %v6472 = vmul.f32 %v6440, %v793
        %v6473 = vsub.f32 %v6309, %v6441
        %v6474 = vsub.f32 %v6310, %v6442
        %v6475 = vsub.f32 %v6311, %v6443
        %v6476 = vsub.f32 %v6312, %v6444
        %v6477 = vsub.f32 %v6313, %v6445
        %v6478 = vsub.f32 %v6314, %v6446
        %v6479 = vsub.f32 %v6315, %v6447
        %v6480 = vsub.f32 %v6316, %v6448
        %v6481 = vsub.f32 %v6317, %v6449
        %v6482 = vsub.f32 %v6318, %v6450
        %v6483 = vsub.f32 %v6319, %v6451
        %v6484 = vsub.f32 %v6320, %v6452
        %v6485 = vsub.f32 %v6321, %v6453
        %v6486 = vsub.f32 %v6322, %v6454
        %v6487 = vsub.f32 %v6323, %v6455
        %v6488 = vsub.f32 %v6324, %v6456
        %v6489 = vsub.f32 %v6325, %v6457
        %v6490 = vsub.f32 %v6326, %v6458
        %v6491 = vsub.f32 %v6327, %v6459
        %v6492 = vsub.f32 %v6328, %v6460
        %v6493 = vsub.f32 %v6329, %v6461
        %v6494 = vsub.f32 %v6330, %v6462
        %v6495 = vsub.f32 %v6331, %v6463
        %v6496 = vsub.f32 %v6332, %v6464
        %v6497 = vsub.f32 %v6333, %v6465
        %v6498 = vsub.f32 %v6334, %v6466
        %v6499 = vsub.f32 %v6335, %v6467
        %v6500 = vsub.f32 %v6336, %v6468
        %v6501 = vsub.f32 %v6337, %v6469
        %v6502 = vsub.f32 %v6338, %v6470
        %v6503 = vsub.f32 %v6339, %v6471
        %v6504 = vsub.f32 %v6340, %v6472
        %v6505 = vmul.f32 %v6473, %v6473
        %v6506 = vmul.f32 %v6474, %v6474
        %v6507 = vmul.f32 %v6475, %v6475
        %v6508 = vmul.f32 %v6476, %v6476
        %v6509 = vmul.f32 %v6477, %v6477
        %v6510 = vmul.f32 %v6478, %v6478
        %v6511 = vmul.f32 %v6479, %v6479
        %v6512 = vmul.f32 %v6480, %v6480
        %v6513 = vmul.f32 %v6481, %v6481
        %v6514 = vmul.f32 %v6482, %v6482
        %v6515 = vmul.f32 %v6483, %v6483
        %v6516 = vmul.f32 %v6484, %v6484
        %v6517 = vmul.f32 %v6485, %v6485
        %v6518 = vmul.f32 %v6486, %v6486
        %v6519 = vmul.f32 %v6487, %v6487
        %v6520 = vmul.f32 %v6488, %v6488
        %v6521 = vmul.f32 %v6489, %v6489
        %v6522 = vmul.f32 %v6490, %v6490
        %v6523 = vmul.f32 %v6491, %v6491
        %v6524 = vmul.f32 %v6492, %v6492
        %v6525 = vmul.f32 %v6493, %v6493
        %v6526 = vmul.f32 %v6494, %v6494
        %v6527 = vmul.f32 %v6495, %v6495
        %v6528 = vmul.f32 %v6496, %v6496
        %v6529 = vmul.f32 %v6497, %v6497
        %v6530 = vmul.f32 %v6498, %v6498
        %v6531 = vmul.f32 %v6499, %v6499
        %v6532 = vmul.f32 %v6500, %v6500
        %v6533 = vmul.f32 %v6501, %v6501
        %v6534 = vmul.f32 %v6502, %v6502
        %v6535 = vmul.f32 %v6503, %v6503
        %v6536 = vmul.f32 %v6504, %v6504
        %v6537 = vsel %vm622, %v6505, 0.0
        %6538 = vadd.xlane.f32.xlu0 %v6537
        %v6539 = vpop.xlane.xlu0 %6538
        %v6540 = vsel %vm622, %v6506, 0.0
        %6541 = vadd.xlane.f32.xlu0 %v6540
        %v6542 = vpop.xlane.xlu0 %6541
        %v6543 = vsel %vm622, %v6507, 0.0
        %6544 = vadd.xlane.f32.xlu0 %v6543
        %v6545 = vpop.xlane.xlu0 %6544
        %v6546 = vsel %vm622, %v6508, 0.0
        %6547 = vadd.xlane.f32.xlu0 %v6546
        %v6548 = vpop.xlane.xlu0 %6547
        %v6549 = vsel %vm622, %v6509, 0.0
        %6550 = vadd.xlane.f32.xlu0 %v6549
        %v6551 = vpop.xlane.xlu0 %6550
        %v6552 = vsel %vm622, %v6510, 0.0
        %6553 = vadd.xlane.f32.xlu0 %v6552
        %v6554 = vpop.xlane.xlu0 %6553
        %v6555 = vsel %vm622, %v6511, 0.0
        %6556 = vadd.xlane.f32.xlu0 %v6555
        %v6557 = vpop.xlane.xlu0 %6556
        %v6558 = vsel %vm622, %v6512, 0.0
        %6559 = vadd.xlane.f32.xlu0 %v6558
        %v6560 = vpop.xlane.xlu0 %6559
        %v6561 = vsel %vm622, %v6513, 0.0
        %6562 = vadd.xlane.f32.xlu0 %v6561
        %v6563 = vpop.xlane.xlu0 %6562
        %v6564 = vsel %vm622, %v6514, 0.0
        %6565 = vadd.xlane.f32.xlu0 %v6564
        %v6566 = vpop.xlane.xlu0 %6565
        %v6567 = vsel %vm622, %v6515, 0.0
        %6568 = vadd.xlane.f32.xlu0 %v6567
        %v6569 = vpop.xlane.xlu0 %6568
        %v6570 = vsel %vm622, %v6516, 0.0
        %6571 = vadd.xlane.f32.xlu0 %v6570
        %v6572 = vpop.xlane.xlu0 %6571
        %v6573 = vsel %vm622, %v6517, 0.0
        %6574 = vadd.xlane.f32.xlu0 %v6573
        %v6575 = vpop.xlane.xlu0 %6574
        %v6576 = vsel %vm622, %v6518, 0.0
        %6577 = vadd.xlane.f32.xlu0 %v6576
        %v6578 = vpop.xlane.xlu0 %6577
        %v6579 = vsel %vm622, %v6519, 0.0
        %6580 = vadd.xlane.f32.xlu0 %v6579
        %v6581 = vpop.xlane.xlu0 %6580
        %v6582 = vsel %vm622, %v6520, 0.0
        %6583 = vadd.xlane.f32.xlu0 %v6582
        %v6584 = vpop.xlane.xlu0 %6583
        %v6585 = vsel %vm622, %v6521, 0.0
        %6586 = vadd.xlane.f32.xlu0 %v6585
        %v6587 = vpop.xlane.xlu0 %6586
        %v6588 = vsel %vm622, %v6522, 0.0
        %6589 = vadd.xlane.f32.xlu0 %v6588
        %v6590 = vpop.xlane.xlu0 %6589
        %v6591 = vsel %vm622, %v6523, 0.0
        %6592 = vadd.xlane.f32.xlu0 %v6591
        %v6593 = vpop.xlane.xlu0 %6592
        %v6594 = vsel %vm622, %v6524, 0.0
        %6595 = vadd.xlane.f32.xlu0 %v6594
        %v6596 = vpop.xlane.xlu0 %6595
        %v6597 = vsel %vm622, %v6525, 0.0
        %6598 = vadd.xlane.f32.xlu0 %v6597
        %v6599 = vpop.xlane.xlu0 %6598
        %v6600 = vsel %vm622, %v6526, 0.0
        %6601 = vadd.xlane.f32.xlu0 %v6600
        %v6602 = vpop.xlane.xlu0 %6601
        %v6603 = vsel %vm622, %v6527, 0.0
        %6604 = vadd.xlane.f32.xlu0 %v6603
        %v6605 = vpop.xlane.xlu0 %6604
        %v6606 = vsel %vm622, %v6528, 0.0
        %6607 = vadd.xlane.f32.xlu0 %v6606
        %v6608 = vpop.xlane.xlu0 %6607
        %v6609 = vsel %vm622, %v6529, 0.0
        %6610 = vadd.xlane.f32.xlu0 %v6609
        %v6611 = vpop.xlane.xlu0 %6610
        %v6612 = vsel %vm622, %v6530, 0.0
        %6613 = vadd.xlane.f32.xlu0 %v6612
        %v6614 = vpop.xlane.xlu0 %6613
        %v6615 = vsel %vm622, %v6531, 0.0
        %6616 = vadd.xlane.f32.xlu0 %v6615
        %v6617 = vpop.xlane.xlu0 %6616
        %v6618 = vsel %vm622, %v6532, 0.0
        %6619 = vadd.xlane.f32.xlu0 %v6618
        %v6620 = vpop.xlane.xlu0 %6619
        %v6621 = vsel %vm622, %v6533, 0.0
        %6622 = vadd.xlane.f32.xlu0 %v6621
        %v6623 = vpop.xlane.xlu0 %6622
        %v6624 = vsel %vm622, %v6534, 0.0
        %6625 = vadd.xlane.f32.xlu0 %v6624
        %v6626 = vpop.xlane.xlu0 %6625
        %v6627 = vsel %vm622, %v6535, 0.0
        %6628 = vadd.xlane.f32.xlu0 %v6627
        %v6629 = vpop.xlane.xlu0 %6628
        %v6630 = vsel %vm622, %v6536, 0.0
        %6631 = vadd.xlane.f32.xlu0 %v6630
        %v6632 = vpop.xlane.xlu0 %6631
        %v6633 = vmul.f32 %v6539, %v793
        %v6634 = vmul.f32 %v6542, %v793
        %v6635 = vmul.f32 %v6545, %v793
        %v6636 = vmul.f32 %v6548, %v793
        %v6637 = vmul.f32 %v6551, %v793
        %v6638 = vmul.f32 %v6554, %v793
        %v6639 = vmul.f32 %v6557, %v793
        %v6640 = vmul.f32 %v6560, %v793
        %v6641 = vmul.f32 %v6563, %v793
        %v6642 = vmul.f32 %v6566, %v793
        %v6643 = vmul.f32 %v6569, %v793
        %v6644 = vmul.f32 %v6572, %v793
        %v6645 = vmul.f32 %v6575, %v793
        %v6646 = vmul.f32 %v6578, %v793
        %v6647 = vmul.f32 %v6581, %v793
        %v6648 = vmul.f32 %v6584, %v793
        %v6649 = vmul.f32 %v6587, %v793
        %v6650 = vmul.f32 %v6590, %v793
        %v6651 = vmul.f32 %v6593, %v793
        %v6652 = vmul.f32 %v6596, %v793
        %v6653 = vmul.f32 %v6599, %v793
        %v6654 = vmul.f32 %v6602, %v793
        %v6655 = vmul.f32 %v6605, %v793
        %v6656 = vmul.f32 %v6608, %v793
        %v6657 = vmul.f32 %v6611, %v793
        %v6658 = vmul.f32 %v6614, %v793
        %v6659 = vmul.f32 %v6617, %v793
        %v6660 = vmul.f32 %v6620, %v793
        %v6661 = vmul.f32 %v6623, %v793
        %v6662 = vmul.f32 %v6626, %v793
        %v6663 = vmul.f32 %v6629, %v793
        %v6664 = vmul.f32 %v6632, %v793
        %v6665 = vadd.f32 %v6633, 1e-05
        %v6666 = vadd.f32 %v6634, 1e-05
        %v6667 = vadd.f32 %v6635, 1e-05
        %v6668 = vadd.f32 %v6636, 1e-05
        %v6669 = vadd.f32 %v6637, 1e-05
        %v6670 = vadd.f32 %v6638, 1e-05
        %v6671 = vadd.f32 %v6639, 1e-05
        %v6672 = vadd.f32 %v6640, 1e-05
        %v6673 = vadd.f32 %v6641, 1e-05
        %v6674 = vadd.f32 %v6642, 1e-05
        %v6675 = vadd.f32 %v6643, 1e-05
        %v6676 = vadd.f32 %v6644, 1e-05
        %v6677 = vadd.f32 %v6645, 1e-05
        %v6678 = vadd.f32 %v6646, 1e-05
        %v6679 = vadd.f32 %v6647, 1e-05
        %v6680 = vadd.f32 %v6648, 1e-05
        %v6681 = vadd.f32 %v6649, 1e-05
        %v6682 = vadd.f32 %v6650, 1e-05
        %v6683 = vadd.f32 %v6651, 1e-05
        %v6684 = vadd.f32 %v6652, 1e-05
        %v6685 = vadd.f32 %v6653, 1e-05
        %v6686 = vadd.f32 %v6654, 1e-05
        %v6687 = vadd.f32 %v6655, 1e-05
        %v6688 = vadd.f32 %v6656, 1e-05
        %v6689 = vadd.f32 %v6657, 1e-05
        %v6690 = vadd.f32 %v6658, 1e-05
        %v6691 = vadd.f32 %v6659, 1e-05
        %v6692 = vadd.f32 %v6660, 1e-05
        %v6693 = vadd.f32 %v6661, 1e-05
        %v6694 = vadd.f32 %v6662, 1e-05
        %v6695 = vadd.f32 %v6663, 1e-05
        %v6696 = vadd.f32 %v6664, 1e-05
        %v6697 = vrsqrt.pop %v6665
        %v6698 = vrsqrt.pop %v6666
        %v6699 = vrsqrt.pop %v6667
        %v6700 = vrsqrt.pop %v6668
        %v6701 = vrsqrt.pop %v6669
        %v6702 = vrsqrt.pop %v6670
        %v6703 = vrsqrt.pop %v6671
        %v6704 = vrsqrt.pop %v6672
        %v6705 = vrsqrt.pop %v6673
        %v6706 = vrsqrt.pop %v6674
        %v6707 = vrsqrt.pop %v6675
        %v6708 = vrsqrt.pop %v6676
        %v6709 = vrsqrt.pop %v6677
        %v6710 = vrsqrt.pop %v6678
        %v6711 = vrsqrt.pop %v6679
        %v6712 = vrsqrt.pop %v6680
        %v6713 = vrsqrt.pop %v6681
        %v6714 = vrsqrt.pop %v6682
        %v6715 = vrsqrt.pop %v6683
        %v6716 = vrsqrt.pop %v6684
        %v6717 = vrsqrt.pop %v6685
        %v6718 = vrsqrt.pop %v6686
        %v6719 = vrsqrt.pop %v6687
        %v6720 = vrsqrt.pop %v6688
        %v6721 = vrsqrt.pop %v6689
        %v6722 = vrsqrt.pop %v6690
        %v6723 = vrsqrt.pop %v6691
        %v6724 = vrsqrt.pop %v6692
        %v6725 = vrsqrt.pop %v6693
        %v6726 = vrsqrt.pop %v6694
        %v6727 = vrsqrt.pop %v6695
        %v6728 = vrsqrt.pop %v6696
        %v6729 = vmul.f32 %v6473, %v6697
        %v6730 = vmul.f32 %v6474, %v6698
        %v6731 = vmul.f32 %v6475, %v6699
        %v6732 = vmul.f32 %v6476, %v6700
        %v6733 = vmul.f32 %v6477, %v6701
        %v6734 = vmul.f32 %v6478, %v6702
        %v6735 = vmul.f32 %v6479, %v6703
        %v6736 = vmul.f32 %v6480, %v6704
        %v6737 = vmul.f32 %v6481, %v6705
        %v6738 = vmul.f32 %v6482, %v6706
        %v6739 = vmul.f32 %v6483, %v6707
        %v6740 = vmul.f32 %v6484, %v6708
        %v6741 = vmul.f32 %v6485, %v6709
        %v6742 = vmul.f32 %v6486, %v6710
        %v6743 = vmul.f32 %v6487, %v6711
        %v6744 = vmul.f32 %v6488, %v6712
        %v6745 = vmul.f32 %v6489, %v6713
        %v6746 = vmul.f32 %v6490, %v6714
        %v6747 = vmul.f32 %v6491, %v6715
        %v6748 = vmul.f32 %v6492, %v6716
        %v6749 = vmul.f32 %v6493, %v6717
        %v6750 = vmul.f32 %v6494, %v6718
        %v6751 = vmul.f32 %v6495, %v6719
        %v6752 = vmul.f32 %v6496, %v6720
        %v6753 = vmul.f32 %v6497, %v6721
        %v6754 = vmul.f32 %v6498, %v6722
        %v6755 = vmul.f32 %v6499, %v6723
        %v6756 = vmul.f32 %v6500, %v6724
        %v6757 = vmul.f32 %v6501, %v6725
        %v6758 = vmul.f32 %v6502, %v6726
        %v6759 = vmul.f32 %v6503, %v6727
        %v6760 = vmul.f32 %v6504, %v6728
        %v6762 = vlaneseq
        %v6763 = vshrl.u32 %v6762, 7
        %v6764 = vsub.s32 0, %v6763
        %v6765 = vrot.slane %v6342, %v6764
        %v6767 = vmul.f32 %v6729, %v6765
        %v6768 = vmul.f32 %v6730, %v6765
        %v6769 = vmul.f32 %v6731, %v6765
        %v6770 = vmul.f32 %v6732, %v6765
        %v6771 = vmul.f32 %v6733, %v6765
        %v6772 = vmul.f32 %v6734, %v6765
        %v6773 = vmul.f32 %v6735, %v6765
        %v6774 = vmul.f32 %v6736, %v6765
        %v6775 = vmul.f32 %v6737, %v6765
        %v6776 = vmul.f32 %v6738, %v6765
        %v6777 = vmul.f32 %v6739, %v6765
        %v6778 = vmul.f32 %v6740, %v6765
        %v6779 = vmul.f32 %v6741, %v6765
        %v6780 = vmul.f32 %v6742, %v6765
        %v6781 = vmul.f32 %v6743, %v6765
        %v6782 = vmul.f32 %v6744, %v6765
        %v6783 = vmul.f32 %v6745, %v6765
        %v6784 = vmul.f32 %v6746, %v6765
        %v6785 = vmul.f32 %v6747, %v6765
        %v6786 = vmul.f32 %v6748, %v6765
        %v6787 = vmul.f32 %v6749, %v6765
        %v6788 = vmul.f32 %v6750, %v6765
        %v6789 = vmul.f32 %v6751, %v6765
        %v6790 = vmul.f32 %v6752, %v6765
        %v6791 = vmul.f32 %v6753, %v6765
        %v6792 = vmul.f32 %v6754, %v6765
        %v6793 = vmul.f32 %v6755, %v6765
        %v6794 = vmul.f32 %v6756, %v6765
        %v6795 = vmul.f32 %v6757, %v6765
        %v6796 = vmul.f32 %v6758, %v6765
        %v6797 = vmul.f32 %v6759, %v6765
        %v6798 = vmul.f32 %v6760, %v6765
        %v6800 = vlaneseq
        %v6801 = vshrl.u32 %v6800, 7
        %v6802 = vsub.s32 0, %v6801
        %v6803 = vrot.slane %v6344, %v6802
        %v6805 = vadd.f32 %v6767, %v6803
        %v6806 = vadd.f32 %v6768, %v6803
        %v6807 = vadd.f32 %v6769, %v6803
        %v6808 = vadd.f32 %v6770, %v6803
        %v6809 = vadd.f32 %v6771, %v6803
        %v6810 = vadd.f32 %v6772, %v6803
        %v6811 = vadd.f32 %v6773, %v6803
        %v6812 = vadd.f32 %v6774, %v6803
        %v6813 = vadd.f32 %v6775, %v6803
        %v6814 = vadd.f32 %v6776, %v6803
        %v6815 = vadd.f32 %v6777, %v6803
        %v6816 = vadd.f32 %v6778, %v6803
        %v6817 = vadd.f32 %v6779, %v6803
        %v6818 = vadd.f32 %v6780, %v6803
        %v6819 = vadd.f32 %v6781, %v6803
        %v6820 = vadd.f32 %v6782, %v6803
        %v6821 = vadd.f32 %v6783, %v6803
        %v6822 = vadd.f32 %v6784, %v6803
        %v6823 = vadd.f32 %v6785, %v6803
        %v6824 = vadd.f32 %v6786, %v6803
        %v6825 = vadd.f32 %v6787, %v6803
        %v6826 = vadd.f32 %v6788, %v6803
        %v6827 = vadd.f32 %v6789, %v6803
        %v6828 = vadd.f32 %v6790, %v6803
        %v6829 = vadd.f32 %v6791, %v6803
        %v6830 = vadd.f32 %v6792, %v6803
        %v6831 = vadd.f32 %v6793, %v6803
        %v6832 = vadd.f32 %v6794, %v6803
        %v6833 = vadd.f32 %v6795, %v6803
        %v6834 = vadd.f32 %v6796, %v6803
        %v6835 = vadd.f32 %v6797, %v6803
        %v6836 = vadd.f32 %v6798, %v6803
        %v6837 = vpack.c.bf16 %v6806, %v6805
        %v6838 = vpack.c.bf16 %v6808, %v6807
        %v6839 = vpack.c.bf16 %v6810, %v6809
        %v6840 = vpack.c.bf16 %v6812, %v6811
        %v6841 = vpack.c.bf16 %v6814, %v6813
        %v6842 = vpack.c.bf16 %v6816, %v6815
        %v6843 = vpack.c.bf16 %v6818, %v6817
        %v6844 = vpack.c.bf16 %v6820, %v6819
        %v6845 = vpack.c.bf16 %v6822, %v6821
        %v6846 = vpack.c.bf16 %v6824, %v6823
        %v6847 = vpack.c.bf16 %v6826, %v6825
        %v6848 = vpack.c.bf16 %v6828, %v6827
        %v6849 = vpack.c.bf16 %v6830, %v6829
        %v6850 = vpack.c.bf16 %v6832, %v6831
        %v6851 = vpack.c.bf16 %v6834, %v6833
        %v6852 = vpack.c.bf16 %v6836, %v6835
        %s6853 = smul.addr %s656, 2
        %s6854 = scalar_lea.vmem %s13, %s6853
        %v6855 = vld [vmem:[%s6854] sm:$0x3]
        %s6856 = scalar_lea.vmem %s14, %s656
        %v6857 = vld [vmem:[%s6856] sm:$0x1]
        %v6859 = vlaneseq
        %v6860 = vshrl.u32 %v6859, 7
        %v6861 = vsub.s32 0, %v6860
        %v6862 = vrot.slane %v6857, %v6861
        %v6865 = vsel %vm622, %v6837, 0
        %v6868 = vsel %vm622, %v6838, 0
        %v6871 = vsel %vm622, %v6839, 0
        %v6874 = vsel %vm622, %v6840, 0
        %v6877 = vsel %vm622, %v6841, 0
        %v6880 = vsel %vm622, %v6842, 0
        %v6883 = vsel %vm622, %v6843, 0
        %v6886 = vsel %vm622, %v6844, 0
        %v6889 = vsel %vm622, %v6845, 0
        %v6892 = vsel %vm622, %v6846, 0
        %v6895 = vsel %vm622, %v6847, 0
        %v6898 = vsel %vm622, %v6848, 0
        %v6901 = vsel %vm622, %v6849, 0
        %v6904 = vsel %vm622, %v6850, 0
        %v6907 = vsel %vm622, %v6851, 0
        %v6910 = vsel %vm622, %v6852, 0
        %v6913 = vsel %vm1265, %v6855, 0
        %6915 = vmatprep.subr.bf16.mxu0 0
        %6916 = vmatpush1.bf16.msra.mxu0 0
        %6917 = vmatprep.subr.bf16.mxu0 0
        %6918 = vmatpush1.bf16.msra.mxu0 0
        %6919 = vmatprep.subr.bf16.mxu0 0
        %6920 = vmatpush1.bf16.msra.mxu0 0
        %6921 = vmatprep.subr.bf16.mxu0 0
        %6922 = vmatpush1.bf16.msra.mxu0 0
        %6923 = vmatprep.subr.bf16.mxu0 0
        %6924 = vmatpush1.bf16.msra.mxu0 0
        %6925 = vmatprep.subr.bf16.mxu0 0
        %6926 = vmatpush1.bf16.msra.mxu0 0
        %6927 = vmatprep.subr.bf16.mxu0 0
        %6928 = vmatpush1.bf16.msra.mxu0 0
        %6929 = vmatprep.subr.bf16.mxu0 0
        %6930 = vmatpush1.bf16.msra.mxu0 %v6913
        %6931 = vmatprep.subr.bf16.mxu0 0
        %6932 = vmatpush2.bf16.msra.mxu0 0
        %6933 = vmatprep.subr.bf16.mxu0 0
        %6934 = vmatpush2.bf16.msra.mxu0 0
        %6935 = vmatprep.subr.bf16.mxu0 0
        %6936 = vmatpush2.bf16.msra.mxu0 0
        %6937 = vmatprep.subr.bf16.mxu0 0
        %6938 = vmatpush2.bf16.msra.mxu0 0
        %6939 = vmatprep.subr.bf16.mxu0 0
        %6940 = vmatpush2.bf16.msra.mxu0 0
        %6941 = vmatprep.subr.bf16.mxu0 0
        %6942 = vmatpush2.bf16.msra.mxu0 0
        %6943 = vmatprep.subr.bf16.mxu0 0
        %6944 = vmatpush2.bf16.msra.mxu0 0
        %6945 = vmatprep.subr.bf16.mxu0 0
        %6946 = vmatpush2.bf16.msra.mxu0 0
        %6947 = vmatprep.mubr.bf16.mxu0 0
        %6948 = vmatmul.mubr.bf16.gmra.mxu0 %v6865
        %v6949 = vpop.f32.mrf.mxu0
        %v6950 = vadd.f32 %v6862, %v6949
        %v6951 = vpop.f32.mrf.mxu0
        %v6952 = vpop.f32.mrf.mxu0
        %v6953 = vadd.f32 %v6862, %v6952
        %v6954 = vpop.f32.mrf.mxu0
        %6955 = vmatprep.mubr.bf16.mxu0 0
        %6956 = vmatmul.mubr.bf16.gmra.mxu0 %v6868
        %v6957 = vpop.f32.mrf.mxu0
        %v6958 = vadd.f32 %v6862, %v6957
        %v6959 = vpop.f32.mrf.mxu0
        %v6960 = vpop.f32.mrf.mxu0
        %v6961 = vadd.f32 %v6862, %v6960
        %v6962 = vpop.f32.mrf.mxu0
        %6963 = vmatprep.mubr.bf16.mxu0 0
        %6964 = vmatmul.mubr.bf16.gmra.mxu0 %v6871
        %v6965 = vpop.f32.mrf.mxu0
        %v6966 = vadd.f32 %v6862, %v6965
        %v6967 = vpop.f32.mrf.mxu0
        %v6968 = vpop.f32.mrf.mxu0
        %v6969 = vadd.f32 %v6862, %v6968
        %v6970 = vpop.f32.mrf.mxu0
        %6971 = vmatprep.mubr.bf16.mxu0 0
        %6972 = vmatmul.mubr.bf16.gmra.mxu0 %v6874
        %v6973 = vpop.f32.mrf.mxu0
        %v6974 = vadd.f32 %v6862, %v6973
        %v6975 = vpop.f32.mrf.mxu0
        %v6976 = vpop.f32.mrf.mxu0
        %v6977 = vadd.f32 %v6862, %v6976
        %v6978 = vpop.f32.mrf.mxu0
        %6979 = vmatprep.mubr.bf16.mxu0 0
        %6980 = vmatmul.mubr.bf16.gmra.mxu0 %v6877
        %v6981 = vpop.f32.mrf.mxu0
        %v6982 = vadd.f32 %v6862, %v6981
        %v6983 = vpop.f32.mrf.mxu0
        %v6984 = vpop.f32.mrf.mxu0
        %v6985 = vadd.f32 %v6862, %v6984
        %v6986 = vpop.f32.mrf.mxu0
        %6987 = vmatprep.mubr.bf16.mxu0 0
        %6988 = vmatmul.mubr.bf16.gmra.mxu0 %v6880
        %v6989 = vpop.f32.mrf.mxu0
        %v6990 = vadd.f32 %v6862, %v6989
        %v6991 = vpop.f32.mrf.mxu0
        %v6992 = vpop.f32.mrf.mxu0
        %v6993 = vadd.f32 %v6862, %v6992
        %v6994 = vpop.f32.mrf.mxu0
        %6995 = vmatprep.mubr.bf16.mxu0 0
        %6996 = vmatmul.mubr.bf16.gmra.mxu0 %v6883
        %v6997 = vpop.f32.mrf.mxu0
        %v6998 = vadd.f32 %v6862, %v6997
        %v6999 = vpop.f32.mrf.mxu0
        %v7000 = vpop.f32.mrf.mxu0
        %v7001 = vadd.f32 %v6862, %v7000
        %v7002 = vpop.f32.mrf.mxu0
        %7003 = vmatprep.mubr.bf16.mxu0 0
        %7004 = vmatmul.mubr.bf16.gmra.mxu0 %v6886
        %v7005 = vpop.f32.mrf.mxu0
        %v7006 = vadd.f32 %v6862, %v7005
        %v7007 = vpop.f32.mrf.mxu0
        %v7008 = vpop.f32.mrf.mxu0
        %v7009 = vadd.f32 %v6862, %v7008
        %v7010 = vpop.f32.mrf.mxu0
        %7011 = vmatprep.mubr.bf16.mxu0 0
        %7012 = vmatmul.mubr.bf16.gmra.mxu0 %v6889
        %v7013 = vpop.f32.mrf.mxu0
        %v7014 = vadd.f32 %v6862, %v7013
        %v7015 = vpop.f32.mrf.mxu0
        %v7016 = vpop.f32.mrf.mxu0
        %v7017 = vadd.f32 %v6862, %v7016
        %v7018 = vpop.f32.mrf.mxu0
        %7019 = vmatprep.mubr.bf16.mxu0 0
        %7020 = vmatmul.mubr.bf16.gmra.mxu0 %v6892
        %v7021 = vpop.f32.mrf.mxu0
        %v7022 = vadd.f32 %v6862, %v7021
        %v7023 = vpop.f32.mrf.mxu0
        %v7024 = vpop.f32.mrf.mxu0
        %v7025 = vadd.f32 %v6862, %v7024
        %v7026 = vpop.f32.mrf.mxu0
        %7027 = vmatprep.mubr.bf16.mxu0 0
        %7028 = vmatmul.mubr.bf16.gmra.mxu0 %v6895
        %v7029 = vpop.f32.mrf.mxu0
        %v7030 = vadd.f32 %v6862, %v7029
        %v7031 = vpop.f32.mrf.mxu0
        %v7032 = vpop.f32.mrf.mxu0
        %v7033 = vadd.f32 %v6862, %v7032
        %v7034 = vpop.f32.mrf.mxu0
        %7035 = vmatprep.mubr.bf16.mxu0 0
        %7036 = vmatmul.mubr.bf16.gmra.mxu0 %v6898
        %v7037 = vpop.f32.mrf.mxu0
        %v7038 = vadd.f32 %v6862, %v7037
        %v7039 = vpop.f32.mrf.mxu0
        %v7040 = vpop.f32.mrf.mxu0
        %v7041 = vadd.f32 %v6862, %v7040
        %v7042 = vpop.f32.mrf.mxu0
        %7043 = vmatprep.mubr.bf16.mxu0 0
        %7044 = vmatmul.mubr.bf16.gmra.mxu0 %v6901
        %v7045 = vpop.f32.mrf.mxu0
        %v7046 = vadd.f32 %v6862, %v7045
        %v7047 = vpop.f32.mrf.mxu0
        %v7048 = vpop.f32.mrf.mxu0
        %v7049 = vadd.f32 %v6862, %v7048
        %v7050 = vpop.f32.mrf.mxu0
        %7051 = vmatprep.mubr.bf16.mxu0 0
        %7052 = vmatmul.mubr.bf16.gmra.mxu0 %v6904
        %v7053 = vpop.f32.mrf.mxu0
        %v7054 = vadd.f32 %v6862, %v7053
        %v7055 = vpop.f32.mrf.mxu0
        %v7056 = vpop.f32.mrf.mxu0
        %v7057 = vadd.f32 %v6862, %v7056
        %v7058 = vpop.f32.mrf.mxu0
        %7059 = vmatprep.mubr.bf16.mxu0 0
        %7060 = vmatmul.mubr.bf16.gmra.mxu0 %v6907
        %v7061 = vpop.f32.mrf.mxu0
        %v7062 = vadd.f32 %v6862, %v7061
        %v7063 = vpop.f32.mrf.mxu0
        %v7064 = vpop.f32.mrf.mxu0
        %v7065 = vadd.f32 %v6862, %v7064
        %v7066 = vpop.f32.mrf.mxu0
        %7067 = vmatprep.mubr.bf16.mxu0 0
        %7068 = vmatmul.mubr.bf16.gmra.mxu0 %v6910
        %v7069 = vpop.f32.mrf.mxu0
        %v7070 = vadd.f32 %v6862, %v7069
        %v7071 = vpop.f32.mrf.mxu0
        %v7072 = vpop.f32.mrf.mxu0
        %v7073 = vadd.f32 %v6862, %v7072
        %v7074 = vpop.f32.mrf.mxu0
        %7075 = vdwg.mxu0
        %v7076 = vmul.f32 %v6950, %v6950
        %v7077 = vmul.f32 %v6953, %v6953
        %v7078 = vmul.f32 %v6958, %v6958
        %v7079 = vmul.f32 %v6961, %v6961
        %v7080 = vmul.f32 %v6966, %v6966
        %v7081 = vmul.f32 %v6969, %v6969
        %v7082 = vmul.f32 %v6974, %v6974
        %v7083 = vmul.f32 %v6977, %v6977
        %v7084 = vmul.f32 %v6982, %v6982
        %v7085 = vmul.f32 %v6985, %v6985
        %v7086 = vmul.f32 %v6990, %v6990
        %v7087 = vmul.f32 %v6993, %v6993
        %v7088 = vmul.f32 %v6998, %v6998
        %v7089 = vmul.f32 %v7001, %v7001
        %v7090 = vmul.f32 %v7006, %v7006
        %v7091 = vmul.f32 %v7009, %v7009
        %v7092 = vmul.f32 %v7014, %v7014
        %v7093 = vmul.f32 %v7017, %v7017
        %v7094 = vmul.f32 %v7022, %v7022
        %v7095 = vmul.f32 %v7025, %v7025
        %v7096 = vmul.f32 %v7030, %v7030
        %v7097 = vmul.f32 %v7033, %v7033
        %v7098 = vmul.f32 %v7038, %v7038
        %v7099 = vmul.f32 %v7041, %v7041
        %v7100 = vmul.f32 %v7046, %v7046
        %v7101 = vmul.f32 %v7049, %v7049
        %v7102 = vmul.f32 %v7054, %v7054
        %v7103 = vmul.f32 %v7057, %v7057
        %v7104 = vmul.f32 %v7062, %v7062
        %v7105 = vmul.f32 %v7065, %v7065
        %v7106 = vmul.f32 %v7070, %v7070
        %v7107 = vmul.f32 %v7073, %v7073
        %v7108 = vmul.f32 %v6950, %v7076
        %v7109 = vmul.f32 %v6953, %v7077
        %v7110 = vmul.f32 %v6958, %v7078
        %v7111 = vmul.f32 %v6961, %v7079
        %v7112 = vmul.f32 %v6966, %v7080
        %v7113 = vmul.f32 %v6969, %v7081
        %v7114 = vmul.f32 %v6974, %v7082
        %v7115 = vmul.f32 %v6977, %v7083
        %v7116 = vmul.f32 %v6982, %v7084
        %v7117 = vmul.f32 %v6985, %v7085
        %v7118 = vmul.f32 %v6990, %v7086
        %v7119 = vmul.f32 %v6993, %v7087
        %v7120 = vmul.f32 %v6998, %v7088
        %v7121 = vmul.f32 %v7001, %v7089
        %v7122 = vmul.f32 %v7006, %v7090
        %v7123 = vmul.f32 %v7009, %v7091
        %v7124 = vmul.f32 %v7014, %v7092
        %v7125 = vmul.f32 %v7017, %v7093
        %v7126 = vmul.f32 %v7022, %v7094
        %v7127 = vmul.f32 %v7025, %v7095
        %v7128 = vmul.f32 %v7030, %v7096
        %v7129 = vmul.f32 %v7033, %v7097
        %v7130 = vmul.f32 %v7038, %v7098
        %v7131 = vmul.f32 %v7041, %v7099
        %v7132 = vmul.f32 %v7046, %v7100
        %v7133 = vmul.f32 %v7049, %v7101
        %v7134 = vmul.f32 %v7054, %v7102
        %v7135 = vmul.f32 %v7057, %v7103
        %v7136 = vmul.f32 %v7062, %v7104
        %v7137 = vmul.f32 %v7065, %v7105
        %v7138 = vmul.f32 %v7070, %v7106
        %v7139 = vmul.f32 %v7073, %v7107
        %v7140 = vmul.f32 %v7108, 0.044715
        %v7141 = vmul.f32 %v7109, 0.044715
        %v7142 = vmul.f32 %v7110, 0.044715
        %v7143 = vmul.f32 %v7111, 0.044715
        %v7144 = vmul.f32 %v7112, 0.044715
        %v7145 = vmul.f32 %v7113, 0.044715
        %v7146 = vmul.f32 %v7114, 0.044715
        %v7147 = vmul.f32 %v7115, 0.044715
        %v7148 = vmul.f32 %v7116, 0.044715
        %v7149 = vmul.f32 %v7117, 0.044715
        %v7150 = vmul.f32 %v7118, 0.044715
        %v7151 = vmul.f32 %v7119, 0.044715
        %v7152 = vmul.f32 %v7120, 0.044715
        %v7153 = vmul.f32 %v7121, 0.044715
        %v7154 = vmul.f32 %v7122, 0.044715
        %v7155 = vmul.f32 %v7123, 0.044715
        %v7156 = vmul.f32 %v7124, 0.044715
        %v7157 = vmul.f32 %v7125, 0.044715
        %v7158 = vmul.f32 %v7126, 0.044715
        %v7159 = vmul.f32 %v7127, 0.044715
        %v7160 = vmul.f32 %v7128, 0.044715
        %v7161 = vmul.f32 %v7129, 0.044715
        %v7162 = vmul.f32 %v7130, 0.044715
        %v7163 = vmul.f32 %v7131, 0.044715
        %v7164 = vmul.f32 %v7132, 0.044715
        %v7165 = vmul.f32 %v7133, 0.044715
        %v7166 = vmul.f32 %v7134, 0.044715
        %v7167 = vmul.f32 %v7135, 0.044715
        %v7168 = vmul.f32 %v7136, 0.044715
        %v7169 = vmul.f32 %v7137, 0.044715
        %v7170 = vmul.f32 %v7138, 0.044715
        %v7171 = vmul.f32 %v7139, 0.044715
        %v7172 = vadd.f32 %v6950, %v7140
        %v7173 = vadd.f32 %v6953, %v7141
        %v7174 = vadd.f32 %v6958, %v7142
        %v7175 = vadd.f32 %v6961, %v7143
        %v7176 = vadd.f32 %v6966, %v7144
        %v7177 = vadd.f32 %v6969, %v7145
        %v7178 = vadd.f32 %v6974, %v7146
        %v7179 = vadd.f32 %v6977, %v7147
        %v7180 = vadd.f32 %v6982, %v7148
        %v7181 = vadd.f32 %v6985, %v7149
        %v7182 = vadd.f32 %v6990, %v7150
        %v7183 = vadd.f32 %v6993, %v7151
        %v7184 = vadd.f32 %v6998, %v7152
        %v7185 = vadd.f32 %v7001, %v7153
        %v7186 = vadd.f32 %v7006, %v7154
        %v7187 = vadd.f32 %v7009, %v7155
        %v7188 = vadd.f32 %v7014, %v7156
        %v7189 = vadd.f32 %v7017, %v7157
        %v7190 = vadd.f32 %v7022, %v7158
        %v7191 = vadd.f32 %v7025, %v7159
        %v7192 = vadd.f32 %v7030, %v7160
        %v7193 = vadd.f32 %v7033, %v7161
        %v7194 = vadd.f32 %v7038, %v7162
        %v7195 = vadd.f32 %v7041, %v7163
        %v7196 = vadd.f32 %v7046, %v7164
        %v7197 = vadd.f32 %v7049, %v7165
        %v7198 = vadd.f32 %v7054, %v7166
        %v7199 = vadd.f32 %v7057, %v7167
        %v7200 = vadd.f32 %v7062, %v7168
        %v7201 = vadd.f32 %v7065, %v7169
        %v7202 = vadd.f32 %v7070, %v7170
        %v7203 = vadd.f32 %v7073, %v7171
        %v7204 = vmul.f32 %v7172, 0.7978846
        %v7205 = vmul.f32 %v7173, 0.7978846
        %v7206 = vmul.f32 %v7174, 0.7978846
        %v7207 = vmul.f32 %v7175, 0.7978846
        %v7208 = vmul.f32 %v7176, 0.7978846
        %v7209 = vmul.f32 %v7177, 0.7978846
        %v7210 = vmul.f32 %v7178, 0.7978846
        %v7211 = vmul.f32 %v7179, 0.7978846
        %v7212 = vmul.f32 %v7180, 0.7978846
        %v7213 = vmul.f32 %v7181, 0.7978846
        %v7214 = vmul.f32 %v7182, 0.7978846
        %v7215 = vmul.f32 %v7183, 0.7978846
        %v7216 = vmul.f32 %v7184, 0.7978846
        %v7217 = vmul.f32 %v7185, 0.7978846
        %v7218 = vmul.f32 %v7186, 0.7978846
        %v7219 = vmul.f32 %v7187, 0.7978846
        %v7220 = vmul.f32 %v7188, 0.7978846
        %v7221 = vmul.f32 %v7189, 0.7978846
        %v7222 = vmul.f32 %v7190, 0.7978846
        %v7223 = vmul.f32 %v7191, 0.7978846
        %v7224 = vmul.f32 %v7192, 0.7978846
        %v7225 = vmul.f32 %v7193, 0.7978846
        %v7226 = vmul.f32 %v7194, 0.7978846
        %v7227 = vmul.f32 %v7195, 0.7978846
        %v7228 = vmul.f32 %v7196, 0.7978846
        %v7229 = vmul.f32 %v7197, 0.7978846
        %v7230 = vmul.f32 %v7198, 0.7978846
        %v7231 = vmul.f32 %v7199, 0.7978846
        %v7232 = vmul.f32 %v7200, 0.7978846
        %v7233 = vmul.f32 %v7201, 0.7978846
        %v7234 = vmul.f32 %v7202, 0.7978846
        %v7235 = vmul.f32 %v7203, 0.7978846
        %v7236 = vtanh.pop %v7204
        %v7237 = vtanh.pop %v7205
        %v7238 = vtanh.pop %v7206
        %v7239 = vtanh.pop %v7207
        %v7240 = vtanh.pop %v7208
        %v7241 = vtanh.pop %v7209
        %v7242 = vtanh.pop %v7210
        %v7243 = vtanh.pop %v7211
        %v7244 = vtanh.pop %v7212
        %v7245 = vtanh.pop %v7213
        %v7246 = vtanh.pop %v7214
        %v7247 = vtanh.pop %v7215
        %v7248 = vtanh.pop %v7216
        %v7249 = vtanh.pop %v7217
        %v7250 = vtanh.pop %v7218
        %v7251 = vtanh.pop %v7219
        %v7252 = vtanh.pop %v7220
        %v7253 = vtanh.pop %v7221
        %v7254 = vtanh.pop %v7222
        %v7255 = vtanh.pop %v7223
        %v7256 = vtanh.pop %v7224
        %v7257 = vtanh.pop %v7225
        %v7258 = vtanh.pop %v7226
        %v7259 = vtanh.pop %v7227
        %v7260 = vtanh.pop %v7228
        %v7261 = vtanh.pop %v7229
        %v7262 = vtanh.pop %v7230
        %v7263 = vtanh.pop %v7231
        %v7264 = vtanh.pop %v7232
        %v7265 = vtanh.pop %v7233
        %v7266 = vtanh.pop %v7234
        %v7267 = vtanh.pop %v7235
        %v7268 = vadd.f32 %v7236, 1.0
        %v7269 = vadd.f32 %v7237, 1.0
        %v7270 = vadd.f32 %v7238, 1.0
        %v7271 = vadd.f32 %v7239, 1.0
        %v7272 = vadd.f32 %v7240, 1.0
        %v7273 = vadd.f32 %v7241, 1.0
        %v7274 = vadd.f32 %v7242, 1.0
        %v7275 = vadd.f32 %v7243, 1.0
        %v7276 = vadd.f32 %v7244, 1.0
        %v7277 = vadd.f32 %v7245, 1.0
        %v7278 = vadd.f32 %v7246, 1.0
        %v7279 = vadd.f32 %v7247, 1.0
        %v7280 = vadd.f32 %v7248, 1.0
        %v7281 = vadd.f32 %v7249, 1.0
        %v7282 = vadd.f32 %v7250, 1.0
        %v7283 = vadd.f32 %v7251, 1.0
        %v7284 = vadd.f32 %v7252, 1.0
        %v7285 = vadd.f32 %v7253, 1.0
        %v7286 = vadd.f32 %v7254, 1.0
        %v7287 = vadd.f32 %v7255, 1.0
        %v7288 = vadd.f32 %v7256, 1.0
        %v7289 = vadd.f32 %v7257, 1.0
        %v7290 = vadd.f32 %v7258, 1.0
        %v7291 = vadd.f32 %v7259, 1.0
        %v7292 = vadd.f32 %v7260, 1.0
        %v7293 = vadd.f32 %v7261, 1.0
        %v7294 = vadd.f32 %v7262, 1.0
        %v7295 = vadd.f32 %v7263, 1.0
        %v7296 = vadd.f32 %v7264, 1.0
        %v7297 = vadd.f32 %v7265, 1.0
        %v7298 = vadd.f32 %v7266, 1.0
        %v7299 = vadd.f32 %v7267, 1.0
        %v7300 = vmul.f32 %v7268, 0.5
        %v7301 = vmul.f32 %v7269, 0.5
        %v7302 = vmul.f32 %v7270, 0.5
        %v7303 = vmul.f32 %v7271, 0.5
        %v7304 = vmul.f32 %v7272, 0.5
        %v7305 = vmul.f32 %v7273, 0.5
        %v7306 = vmul.f32 %v7274, 0.5
        %v7307 = vmul.f32 %v7275, 0.5
        %v7308 = vmul.f32 %v7276, 0.5
        %v7309 = vmul.f32 %v7277, 0.5
        %v7310 = vmul.f32 %v7278, 0.5
        %v7311 = vmul.f32 %v7279, 0.5
        %v7312 = vmul.f32 %v7280, 0.5
        %v7313 = vmul.f32 %v7281, 0.5
        %v7314 = vmul.f32 %v7282, 0.5
        %v7315 = vmul.f32 %v7283, 0.5
        %v7316 = vmul.f32 %v7284, 0.5
        %v7317 = vmul.f32 %v7285, 0.5
        %v7318 = vmul.f32 %v7286, 0.5
        %v7319 = vmul.f32 %v7287, 0.5
        %v7320 = vmul.f32 %v7288, 0.5
        %v7321 = vmul.f32 %v7289, 0.5
        %v7322 = vmul.f32 %v7290, 0.5
        %v7323 = vmul.f32 %v7291, 0.5
        %v7324 = vmul.f32 %v7292, 0.5
        %v7325 = vmul.f32 %v7293, 0.5
        %v7326 = vmul.f32 %v7294, 0.5
        %v7327 = vmul.f32 %v7295, 0.5
        %v7328 = vmul.f32 %v7296, 0.5
        %v7329 = vmul.f32 %v7297, 0.5
        %v7330 = vmul.f32 %v7298, 0.5
        %v7331 = vmul.f32 %v7299, 0.5
        %v7332 = vmul.f32 %v6950, %v7300
        %v7333 = vmul.f32 %v6953, %v7301
        %v7334 = vmul.f32 %v6958, %v7302
        %v7335 = vmul.f32 %v6961, %v7303
        %v7336 = vmul.f32 %v6966, %v7304
        %v7337 = vmul.f32 %v6969, %v7305
        %v7338 = vmul.f32 %v6974, %v7306
        %v7339 = vmul.f32 %v6977, %v7307
        %v7340 = vmul.f32 %v6982, %v7308
        %v7341 = vmul.f32 %v6985, %v7309
        %v7342 = vmul.f32 %v6990, %v7310
        %v7343 = vmul.f32 %v6993, %v7311
        %v7344 = vmul.f32 %v6998, %v7312
        %v7345 = vmul.f32 %v7001, %v7313
        %v7346 = vmul.f32 %v7006, %v7314
        %v7347 = vmul.f32 %v7009, %v7315
        %v7348 = vmul.f32 %v7014, %v7316
        %v7349 = vmul.f32 %v7017, %v7317
        %v7350 = vmul.f32 %v7022, %v7318
        %v7351 = vmul.f32 %v7025, %v7319
        %v7352 = vmul.f32 %v7030, %v7320
        %v7353 = vmul.f32 %v7033, %v7321
        %v7354 = vmul.f32 %v7038, %v7322
        %v7355 = vmul.f32 %v7041, %v7323
        %v7356 = vmul.f32 %v7046, %v7324
        %v7357 = vmul.f32 %v7049, %v7325
        %v7358 = vmul.f32 %v7054, %v7326
        %v7359 = vmul.f32 %v7057, %v7327
        %v7360 = vmul.f32 %v7062, %v7328
        %v7361 = vmul.f32 %v7065, %v7329
        %v7362 = vmul.f32 %v7070, %v7330
        %v7363 = vmul.f32 %v7073, %v7331
        %v7364 = vpack.c.bf16 %v7333, %v7332
        %v7365 = vpack.c.bf16 %v7335, %v7334
        %v7366 = vpack.c.bf16 %v7337, %v7336
        %v7367 = vpack.c.bf16 %v7339, %v7338
        %v7368 = vpack.c.bf16 %v7341, %v7340
        %v7369 = vpack.c.bf16 %v7343, %v7342
        %v7370 = vpack.c.bf16 %v7345, %v7344
        %v7371 = vpack.c.bf16 %v7347, %v7346
        %v7372 = vpack.c.bf16 %v7349, %v7348
        %v7373 = vpack.c.bf16 %v7351, %v7350
        %v7374 = vpack.c.bf16 %v7353, %v7352
        %v7375 = vpack.c.bf16 %v7355, %v7354
        %v7376 = vpack.c.bf16 %v7357, %v7356
        %v7377 = vpack.c.bf16 %v7359, %v7358
        %v7378 = vpack.c.bf16 %v7361, %v7360
        %v7379 = vpack.c.bf16 %v7363, %v7362
        %s7380 = smul.u32 %s656, 2
        %s7381 = smul.addr %s7380, 4
        %s7382 = scalar_lea.vmem %s15, %s7381
        %v7383 = vld [vmem:[%s7382] sm:$0xf]
        %v7384 = vld [vmem:[%s7382 + $0x4] sm:$0xf]
        %s7385 = scalar_lea.vmem %s16, %s656
        %v7386 = vld [vmem:[%s7385] sm:$0x1]
        %v7388 = vlaneseq
        %v7389 = vshrl.u32 %v7388, 7
        %v7390 = vsub.s32 0, %v7389
        %v7391 = vrot.slane %v7386, %v7390
        %v7395 = vunpack.c.l.b16 %v7383
        %v7396 = vunpack.c.l.b16 %v7384
        %v7397 = vpack.c.b16 %v7396, %v7395
        %v7400 = vsel %vm3765, %v7364, 0
        %v7403 = vsel %vm3765, %v7365, 0
        %v7406 = vsel %vm3765, %v7366, 0
        %v7409 = vsel %vm3765, %v7367, 0
        %v7412 = vsel %vm3765, %v7368, 0
        %v7415 = vsel %vm3765, %v7369, 0
        %v7418 = vsel %vm3765, %v7370, 0
        %v7421 = vsel %vm3765, %v7371, 0
        %v7424 = vsel %vm3765, %v7372, 0
        %v7427 = vsel %vm3765, %v7373, 0
        %v7430 = vsel %vm3765, %v7374, 0
        %v7433 = vsel %vm3765, %v7375, 0
        %v7436 = vsel %vm3765, %v7376, 0
        %v7439 = vsel %vm3765, %v7377, 0
        %v7442 = vsel %vm3765, %v7378, 0
        %v7445 = vsel %vm3765, %v7379, 0
        %7447 = vmatprep.subr.bf16.mxu0 0
        %7448 = vmatpush1.bf16.msra.mxu0 0
        %7449 = vmatprep.subr.bf16.mxu0 0
        %7450 = vmatpush1.bf16.msra.mxu0 0
        %7451 = vmatprep.subr.bf16.mxu0 0
        %7452 = vmatpush1.bf16.msra.mxu0 0
        %7453 = vmatprep.subr.bf16.mxu0 0
        %7454 = vmatpush1.bf16.msra.mxu0 0
        %7455 = vmatprep.subr.bf16.mxu0 0
        %7456 = vmatpush1.bf16.msra.mxu0 0
        %7457 = vmatprep.subr.bf16.mxu0 0
        %7458 = vmatpush1.bf16.msra.mxu0 0
        %7459 = vmatprep.subr.bf16.mxu0 0
        %7460 = vmatpush1.bf16.msra.mxu0 0
        %7461 = vmatprep.subr.bf16.mxu0 0
        %7462 = vmatpush1.bf16.msra.mxu0 %v7397
        %7463 = vmatprep.subr.bf16.mxu0 0
        %7464 = vmatpush2.bf16.msra.mxu0 0
        %7465 = vmatprep.subr.bf16.mxu0 0
        %7466 = vmatpush2.bf16.msra.mxu0 0
        %7467 = vmatprep.subr.bf16.mxu0 0
        %7468 = vmatpush2.bf16.msra.mxu0 0
        %7469 = vmatprep.subr.bf16.mxu0 0
        %7470 = vmatpush2.bf16.msra.mxu0 0
        %7471 = vmatprep.subr.bf16.mxu0 0
        %7472 = vmatpush2.bf16.msra.mxu0 0
        %7473 = vmatprep.subr.bf16.mxu0 0
        %7474 = vmatpush2.bf16.msra.mxu0 0
        %7475 = vmatprep.subr.bf16.mxu0 0
        %7476 = vmatpush2.bf16.msra.mxu0 0
        %7477 = vmatprep.subr.bf16.mxu0 0
        %7478 = vmatpush2.bf16.msra.mxu0 0
        %7479 = vmatprep.mubr.bf16.mxu0 0
        %7480 = vmatmul.mubr.bf16.gmra.mxu0 %v7400
        %v7481 = vpop.f32.mrf.mxu0
        %v7482 = vadd.f32 %v7391, %v7481
        %v7483 = vpop.f32.mrf.mxu0
        %v7484 = vpop.f32.mrf.mxu0
        %v7485 = vadd.f32 %v7391, %v7484
        %v7486 = vpop.f32.mrf.mxu0
        %7487 = vmatprep.mubr.bf16.mxu0 0
        %7488 = vmatmul.mubr.bf16.gmra.mxu0 %v7403
        %v7489 = vpop.f32.mrf.mxu0
        %v7490 = vadd.f32 %v7391, %v7489
        %v7491 = vpop.f32.mrf.mxu0
        %v7492 = vpop.f32.mrf.mxu0
        %v7493 = vadd.f32 %v7391, %v7492
        %v7494 = vpop.f32.mrf.mxu0
        %7495 = vmatprep.mubr.bf16.mxu0 0
        %7496 = vmatmul.mubr.bf16.gmra.mxu0 %v7406
        %v7497 = vpop.f32.mrf.mxu0
        %v7498 = vadd.f32 %v7391, %v7497
        %v7499 = vpop.f32.mrf.mxu0
        %v7500 = vpop.f32.mrf.mxu0
        %v7501 = vadd.f32 %v7391, %v7500
        %v7502 = vpop.f32.mrf.mxu0
        %7503 = vmatprep.mubr.bf16.mxu0 0
        %7504 = vmatmul.mubr.bf16.gmra.mxu0 %v7409
        %v7505 = vpop.f32.mrf.mxu0
        %v7506 = vadd.f32 %v7391, %v7505
        %v7507 = vpop.f32.mrf.mxu0
        %v7508 = vpop.f32.mrf.mxu0
        %v7509 = vadd.f32 %v7391, %v7508
        %v7510 = vpop.f32.mrf.mxu0
        %7511 = vmatprep.mubr.bf16.mxu0 0
        %7512 = vmatmul.mubr.bf16.gmra.mxu0 %v7412
        %v7513 = vpop.f32.mrf.mxu0
        %v7514 = vadd.f32 %v7391, %v7513
        %v7515 = vpop.f32.mrf.mxu0
        %v7516 = vpop.f32.mrf.mxu0
        %v7517 = vadd.f32 %v7391, %v7516
        %v7518 = vpop.f32.mrf.mxu0
        %7519 = vmatprep.mubr.bf16.mxu0 0
        %7520 = vmatmul.mubr.bf16.gmra.mxu0 %v7415
        %v7521 = vpop.f32.mrf.mxu0
        %v7522 = vadd.f32 %v7391, %v7521
        %v7523 = vpop.f32.mrf.mxu0
        %v7524 = vpop.f32.mrf.mxu0
        %v7525 = vadd.f32 %v7391, %v7524
        %v7526 = vpop.f32.mrf.mxu0
        %7527 = vmatprep.mubr.bf16.mxu0 0
        %7528 = vmatmul.mubr.bf16.gmra.mxu0 %v7418
        %v7529 = vpop.f32.mrf.mxu0
        %v7530 = vadd.f32 %v7391, %v7529
        %v7531 = vpop.f32.mrf.mxu0
        %v7532 = vpop.f32.mrf.mxu0
        %v7533 = vadd.f32 %v7391, %v7532
        %v7534 = vpop.f32.mrf.mxu0
        %7535 = vmatprep.mubr.bf16.mxu0 0
        %7536 = vmatmul.mubr.bf16.gmra.mxu0 %v7421
        %v7537 = vpop.f32.mrf.mxu0
        %v7538 = vadd.f32 %v7391, %v7537
        %v7539 = vpop.f32.mrf.mxu0
        %v7540 = vpop.f32.mrf.mxu0
        %v7541 = vadd.f32 %v7391, %v7540
        %v7542 = vpop.f32.mrf.mxu0
        %7543 = vmatprep.mubr.bf16.mxu0 0
        %7544 = vmatmul.mubr.bf16.gmra.mxu0 %v7424
        %v7545 = vpop.f32.mrf.mxu0
        %v7546 = vadd.f32 %v7391, %v7545
        %v7547 = vpop.f32.mrf.mxu0
        %v7548 = vpop.f32.mrf.mxu0
        %v7549 = vadd.f32 %v7391, %v7548
        %v7550 = vpop.f32.mrf.mxu0
        %7551 = vmatprep.mubr.bf16.mxu0 0
        %7552 = vmatmul.mubr.bf16.gmra.mxu0 %v7427
        %v7553 = vpop.f32.mrf.mxu0
        %v7554 = vadd.f32 %v7391, %v7553
        %v7555 = vpop.f32.mrf.mxu0
        %v7556 = vpop.f32.mrf.mxu0
        %v7557 = vadd.f32 %v7391, %v7556
        %v7558 = vpop.f32.mrf.mxu0
        %7559 = vmatprep.mubr.bf16.mxu0 0
        %7560 = vmatmul.mubr.bf16.gmra.mxu0 %v7430
        %v7561 = vpop.f32.mrf.mxu0
        %v7562 = vadd.f32 %v7391, %v7561
        %v7563 = vpop.f32.mrf.mxu0
        %v7564 = vpop.f32.mrf.mxu0
        %v7565 = vadd.f32 %v7391, %v7564
        %v7566 = vpop.f32.mrf.mxu0
        %7567 = vmatprep.mubr.bf16.mxu0 0
        %7568 = vmatmul.mubr.bf16.gmra.mxu0 %v7433
        %v7569 = vpop.f32.mrf.mxu0
        %v7570 = vadd.f32 %v7391, %v7569
        %v7571 = vpop.f32.mrf.mxu0
        %v7572 = vpop.f32.mrf.mxu0
        %v7573 = vadd.f32 %v7391, %v7572
        %v7574 = vpop.f32.mrf.mxu0
        %7575 = vmatprep.mubr.bf16.mxu0 0
        %7576 = vmatmul.mubr.bf16.gmra.mxu0 %v7436
        %v7577 = vpop.f32.mrf.mxu0
        %v7578 = vadd.f32 %v7391, %v7577
        %v7579 = vpop.f32.mrf.mxu0
        %v7580 = vpop.f32.mrf.mxu0
        %v7581 = vadd.f32 %v7391, %v7580
        %v7582 = vpop.f32.mrf.mxu0
        %7583 = vmatprep.mubr.bf16.mxu0 0
        %7584 = vmatmul.mubr.bf16.gmra.mxu0 %v7439
        %v7585 = vpop.f32.mrf.mxu0
        %v7586 = vadd.f32 %v7391, %v7585
        %v7587 = vpop.f32.mrf.mxu0
        %v7588 = vpop.f32.mrf.mxu0
        %v7589 = vadd.f32 %v7391, %v7588
        %v7590 = vpop.f32.mrf.mxu0
        %7591 = vmatprep.mubr.bf16.mxu0 0
        %7592 = vmatmul.mubr.bf16.gmra.mxu0 %v7442
        %v7593 = vpop.f32.mrf.mxu0
        %v7594 = vadd.f32 %v7391, %v7593
        %v7595 = vpop.f32.mrf.mxu0
        %v7596 = vpop.f32.mrf.mxu0
        %v7597 = vadd.f32 %v7391, %v7596
        %v7598 = vpop.f32.mrf.mxu0
        %7599 = vmatprep.mubr.bf16.mxu0 0
        %7600 = vmatmul.mubr.bf16.gmra.mxu0 %v7445
        %v7601 = vpop.f32.mrf.mxu0
        %v7602 = vadd.f32 %v7391, %v7601
        %v7603 = vpop.f32.mrf.mxu0
        %v7604 = vpop.f32.mrf.mxu0
        %v7605 = vadd.f32 %v7391, %v7604
        %v7606 = vpop.f32.mrf.mxu0
        %7607 = vdwg.mxu0
        %v7608 = vadd.f32 %v6309, %v7482
        %v7609 = vadd.f32 %v6310, %v7485
        %v7610 = vadd.f32 %v6311, %v7490
        %v7611 = vadd.f32 %v6312, %v7493
        %v7612 = vadd.f32 %v6313, %v7498
        %v7613 = vadd.f32 %v6314, %v7501
        %v7614 = vadd.f32 %v6315, %v7506
        %v7615 = vadd.f32 %v6316, %v7509
        %v7616 = vadd.f32 %v6317, %v7514
        %v7617 = vadd.f32 %v6318, %v7517
        %v7618 = vadd.f32 %v6319, %v7522
        %v7619 = vadd.f32 %v6320, %v7525
        %v7620 = vadd.f32 %v6321, %v7530
        %v7621 = vadd.f32 %v6322, %v7533
        %v7622 = vadd.f32 %v6323, %v7538
        %v7623 = vadd.f32 %v6324, %v7541
        %v7624 = vadd.f32 %v6325, %v7546
        %v7625 = vadd.f32 %v6326, %v7549
        %v7626 = vadd.f32 %v6327, %v7554
        %v7627 = vadd.f32 %v6328, %v7557
        %v7628 = vadd.f32 %v6329, %v7562
        %v7629 = vadd.f32 %v6330, %v7565
        %v7630 = vadd.f32 %v6331, %v7570
        %v7631 = vadd.f32 %v6332, %v7573
        %v7632 = vadd.f32 %v6333, %v7578
        %v7633 = vadd.f32 %v6334, %v7581
        %v7634 = vadd.f32 %v6335, %v7586
        %v7635 = vadd.f32 %v6336, %v7589
        %v7636 = vadd.f32 %v6337, %v7594
        %v7637 = vadd.f32 %v6338, %v7597
        %v7638 = vadd.f32 %v6339, %v7602
        %v7639 = vadd.f32 %v6340, %v7605
        %7640 = vst.msk [vmem:[#allocation2] sm:$0xff] %vm622, %v7608
        %7641 = vst.msk [vmem:[#allocation2 + $0x8] sm:$0xff] %vm622, %v7609
        %7642 = vst.msk [vmem:[#allocation2 + $0x10] sm:$0xff] %vm622, %v7610
        %7643 = vst.msk [vmem:[#allocation2 + $0x18] sm:$0xff] %vm622, %v7611
        %7644 = vst.msk [vmem:[#allocation2 + $0x20] sm:$0xff] %vm622, %v7612
        %7645 = vst.msk [vmem:[#allocation2 + $0x28] sm:$0xff] %vm622, %v7613
        %7646 = vst.msk [vmem:[#allocation2 + $0x30] sm:$0xff] %vm622, %v7614
        %7647 = vst.msk [vmem:[#allocation2 + $0x38] sm:$0xff] %vm622, %v7615
        %7648 = vst.msk [vmem:[#allocation2 + $0x40] sm:$0xff] %vm622, %v7616
        %7649 = vst.msk [vmem:[#allocation2 + $0x48] sm:$0xff] %vm622, %v7617
        %7650 = vst.msk [vmem:[#allocation2 + $0x50] sm:$0xff] %vm622, %v7618
        %7651 = vst.msk [vmem:[#allocation2 + $0x58] sm:$0xff] %vm622, %v7619
        %7652 = vst.msk [vmem:[#allocation2 + $0x60] sm:$0xff] %vm622, %v7620
        %7653 = vst.msk [vmem:[#allocation2 + $0x68] sm:$0xff] %vm622, %v7621
        %7654 = vst.msk [vmem:[#allocation2 + $0x70] sm:$0xff] %vm622, %v7622
        %7655 = vst.msk [vmem:[#allocation2 + $0x78] sm:$0xff] %vm622, %v7623
        %7656 = vst.msk [vmem:[#allocation2 + $0x80] sm:$0xff] %vm622, %v7624
        %7657 = vst.msk [vmem:[#allocation2 + $0x88] sm:$0xff] %vm622, %v7625
        %7658 = vst.msk [vmem:[#allocation2 + $0x90] sm:$0xff] %vm622, %v7626
        %7659 = vst.msk [vmem:[#allocation2 + $0x98] sm:$0xff] %vm622, %v7627
        %7660 = vst.msk [vmem:[#allocation2 + $0xa0] sm:$0xff] %vm622, %v7628
        %7661 = vst.msk [vmem:[#allocation2 + $0xa8] sm:$0xff] %vm622, %v7629
        %7662 = vst.msk [vmem:[#allocation2 + $0xb0] sm:$0xff] %vm622, %v7630
        %7663 = vst.msk [vmem:[#allocation2 + $0xb8] sm:$0xff] %vm622, %v7631
        %7664 = vst.msk [vmem:[#allocation2 + $0xc0] sm:$0xff] %vm622, %v7632
        %7665 = vst.msk [vmem:[#allocation2 + $0xc8] sm:$0xff] %vm622, %v7633
        %7666 = vst.msk [vmem:[#allocation2 + $0xd0] sm:$0xff] %vm622, %v7634
        %7667 = vst.msk [vmem:[#allocation2 + $0xd8] sm:$0xff] %vm622, %v7635
        %7668 = vst.msk [vmem:[#allocation2 + $0xe0] sm:$0xff] %vm622, %v7636
        %7669 = vst.msk [vmem:[#allocation2 + $0xe8] sm:$0xff] %vm622, %v7637
        %7670 = vst.msk [vmem:[#allocation2 + $0xf0] sm:$0xff] %vm622, %v7638
        %7671 = vst.msk [vmem:[#allocation2 + $0xf8] sm:$0xff] %vm622, %v7639
      $region93: #{rstb_forward.2} parent=87 // loop_footer
        %s660 = sadd.s32 1, %s656
      $region94: #{rstb_forward.2} parent=87 // loop_footer_branch
        %655 = sbr.rel target = $region90
      $region95: #{rstb_forward.2} parent=87 // loop_exit
        _
      %v7672 = vld [vmem:[#allocation2] sm:$0xff]
      %v7673 = vld [vmem:[#allocation2 + $0x8] sm:$0xff]
      %v7674 = vld [vmem:[#allocation2 + $0x10] sm:$0xff]
      %v7675 = vld [vmem:[#allocation2 + $0x18] sm:$0xff]
      %v7676 = vld [vmem:[#allocation2 + $0x20] sm:$0xff]
      %v7677 = vld [vmem:[#allocation2 + $0x28] sm:$0xff]
      %v7678 = vld [vmem:[#allocation2 + $0x30] sm:$0xff]
      %v7679 = vld [vmem:[#allocation2 + $0x38] sm:$0xff]
      %v7680 = vld [vmem:[#allocation2 + $0x40] sm:$0xff]
      %v7681 = vld [vmem:[#allocation2 + $0x48] sm:$0xff]
      %v7682 = vld [vmem:[#allocation2 + $0x50] sm:$0xff]
      %v7683 = vld [vmem:[#allocation2 + $0x58] sm:$0xff]
      %v7684 = vld [vmem:[#allocation2 + $0x60] sm:$0xff]
      %v7685 = vld [vmem:[#allocation2 + $0x68] sm:$0xff]
      %v7686 = vld [vmem:[#allocation2 + $0x70] sm:$0xff]
      %v7687 = vld [vmem:[#allocation2 + $0x78] sm:$0xff]
      %v7688 = vld [vmem:[#allocation2 + $0x80] sm:$0xff]
      %v7689 = vld [vmem:[#allocation2 + $0x88] sm:$0xff]
      %v7690 = vld [vmem:[#allocation2 + $0x90] sm:$0xff]
      %v7691 = vld [vmem:[#allocation2 + $0x98] sm:$0xff]
      %v7692 = vld [vmem:[#allocation2 + $0xa0] sm:$0xff]
      %v7693 = vld [vmem:[#allocation2 + $0xa8] sm:$0xff]
      %v7694 = vld [vmem:[#allocation2 + $0xb0] sm:$0xff]
      %v7695 = vld [vmem:[#allocation2 + $0xb8] sm:$0xff]
      %v7696 = vld [vmem:[#allocation2 + $0xc0] sm:$0xff]
      %v7697 = vld [vmem:[#allocation2 + $0xc8] sm:$0xff]
      %v7698 = vld [vmem:[#allocation2 + $0xd0] sm:$0xff]
      %v7699 = vld [vmem:[#allocation2 + $0xd8] sm:$0xff]
      %v7700 = vld [vmem:[#allocation2 + $0xe0] sm:$0xff]
      %v7701 = vld [vmem:[#allocation2 + $0xe8] sm:$0xff]
      %v7702 = vld [vmem:[#allocation2 + $0xf0] sm:$0xff]
      %v7703 = vld [vmem:[#allocation2 + $0xf8] sm:$0xff]
      %v7704 = vpack.c.bf16 %v7673, %v7672
      %v7705 = vpack.c.bf16 %v7675, %v7674
      %v7706 = vpack.c.bf16 %v7677, %v7676
      %v7707 = vpack.c.bf16 %v7679, %v7678
      %v7708 = vpack.c.bf16 %v7681, %v7680
      %v7709 = vpack.c.bf16 %v7683, %v7682
      %v7710 = vpack.c.bf16 %v7685, %v7684
      %v7711 = vpack.c.bf16 %v7687, %v7686
      %v7712 = vpack.c.bf16 %v7689, %v7688
      %v7713 = vpack.c.bf16 %v7691, %v7690
      %v7714 = vpack.c.bf16 %v7693, %v7692
      %v7715 = vpack.c.bf16 %v7695, %v7694
      %v7716 = vpack.c.bf16 %v7697, %v7696
      %v7717 = vpack.c.bf16 %v7699, %v7698
      %v7718 = vpack.c.bf16 %v7701, %v7700
      %v7719 = vpack.c.bf16 %v7703, %v7702
      %v7736 = vunpack.c.l.b16 %v7704
      %v7737 = vunpack.c.h.b16 %v7704
      %v7738 = vunpack.c.l.b16 %v7705
      %v7739 = vunpack.c.h.b16 %v7705
      %v7740 = vunpack.c.l.b16 %v7706
      %v7741 = vunpack.c.h.b16 %v7706
      %v7742 = vunpack.c.l.b16 %v7707
      %v7743 = vunpack.c.h.b16 %v7707
      %v7744 = vunpack.c.l.b16 %v7708
      %v7745 = vunpack.c.h.b16 %v7708
      %v7746 = vunpack.c.l.b16 %v7709
      %v7747 = vunpack.c.h.b16 %v7709
      %v7748 = vunpack.c.l.b16 %v7710
      %v7749 = vunpack.c.h.b16 %v7710
      %v7750 = vunpack.c.l.b16 %v7711
      %v7751 = vunpack.c.h.b16 %v7711
      %v7752 = vunpack.c.l.b16 %v7712
      %v7753 = vunpack.c.h.b16 %v7712
      %v7754 = vunpack.c.l.b16 %v7713
      %v7755 = vunpack.c.h.b16 %v7713
      %v7756 = vunpack.c.l.b16 %v7714
      %v7757 = vunpack.c.h.b16 %v7714
      %v7758 = vunpack.c.l.b16 %v7715
      %v7759 = vunpack.c.h.b16 %v7715
      %v7760 = vunpack.c.l.b16 %v7716
      %v7761 = vunpack.c.h.b16 %v7716
      %v7762 = vunpack.c.l.b16 %v7717
      %v7763 = vunpack.c.h.b16 %v7717
      %v7764 = vunpack.c.l.b16 %v7718
      %v7765 = vunpack.c.h.b16 %v7718
      %v7766 = vunpack.c.l.b16 %v7719
      %v7767 = vunpack.c.h.b16 %v7719
      %v7768 = vpack.c.b16 %v7736, %v7736
      %v7769 = vpack.c.b16 %v7737, %v7737
      %v7770 = vpack.c.b16 %v7738, %v7738
      %v7771 = vpack.c.b16 %v7739, %v7739
      %v7772 = vpack.c.b16 %v7740, %v7740
      %v7773 = vpack.c.b16 %v7741, %v7741
      %v7774 = vpack.c.b16 %v7742, %v7742
      %v7775 = vpack.c.b16 %v7743, %v7743
      %v7776 = vpack.c.b16 %v7744, %v7744
      %v7777 = vpack.c.b16 %v7745, %v7745
      %v7778 = vpack.c.b16 %v7746, %v7746
      %v7779 = vpack.c.b16 %v7747, %v7747
      %v7780 = vpack.c.b16 %v7748, %v7748
      %v7781 = vpack.c.b16 %v7749, %v7749
      %v7782 = vpack.c.b16 %v7750, %v7750
      %v7783 = vpack.c.b16 %v7751, %v7751
      %v7784 = vpack.c.b16 %v7752, %v7752
      %v7785 = vpack.c.b16 %v7753, %v7753
      %v7786 = vpack.c.b16 %v7754, %v7754
      %v7787 = vpack.c.b16 %v7755, %v7755
      %v7788 = vpack.c.b16 %v7756, %v7756
      %v7789 = vpack.c.b16 %v7757, %v7757
      %v7790 = vpack.c.b16 %v7758, %v7758
      %v7791 = vpack.c.b16 %v7759, %v7759
      %v7792 = vpack.c.b16 %v7760, %v7760
      %v7793 = vpack.c.b16 %v7761, %v7761
      %v7794 = vpack.c.b16 %v7762, %v7762
      %v7795 = vpack.c.b16 %v7763, %v7763
      %v7796 = vpack.c.b16 %v7764, %v7764
      %v7797 = vpack.c.b16 %v7765, %v7765
      %v7798 = vpack.c.b16 %v7766, %v7766
      %v7799 = vpack.c.b16 %v7767, %v7767
      %vm7832 = vcmask 27648
      %7833 = vst.msk [vmem:[%s555] sm:$0xf] %vm7832, %v7768
      %7834 = vst.msk [vmem:[%s555 + $0x4] sm:$0xf] %vm7832, %v7769
      %7835 = vst.msk [vmem:[%s555 + $0x8] sm:$0xf] %vm7832, %v7770
      %7836 = vst.msk [vmem:[%s555 + $0xc] sm:$0xf] %vm7832, %v7771
      %7837 = vst.msk [vmem:[%s555 + $0x10] sm:$0xf] %vm7832, %v7772
      %7838 = vst.msk [vmem:[%s555 + $0x14] sm:$0xf] %vm7832, %v7773
      %7839 = vst.msk [vmem:[%s555 + $0x18] sm:$0xf] %vm7832, %v7774
      %7840 = vst.msk [vmem:[%s555 + $0x1c] sm:$0xf] %vm7832, %v7775
      %7841 = vst.msk [vmem:[%s555 + $0x20] sm:$0xf] %vm7832, %v7776
      %7842 = vst.msk [vmem:[%s555 + $0x24] sm:$0xf] %vm7832, %v7777
      %7843 = vst.msk [vmem:[%s555 + $0x28] sm:$0xf] %vm7832, %v7778
      %7844 = vst.msk [vmem:[%s555 + $0x2c] sm:$0xf] %vm7832, %v7779
      %7845 = vst.msk [vmem:[%s555 + $0x30] sm:$0xf] %vm7832, %v7780
      %7846 = vst.msk [vmem:[%s555 + $0x34] sm:$0xf] %vm7832, %v7781
      %7847 = vst.msk [vmem:[%s555 + $0x38] sm:$0xf] %vm7832, %v7782
      %7848 = vst.msk [vmem:[%s555 + $0x3c] sm:$0xf] %vm7832, %v7783
      %7849 = vst.msk [vmem:[%s555 + $0x40] sm:$0xf] %vm7832, %v7784
      %7850 = vst.msk [vmem:[%s555 + $0x44] sm:$0xf] %vm7832, %v7785
      %7851 = vst.msk [vmem:[%s555 + $0x48] sm:$0xf] %vm7832, %v7786
      %7852 = vst.msk [vmem:[%s555 + $0x4c] sm:$0xf] %vm7832, %v7787
      %7853 = vst.msk [vmem:[%s555 + $0x50] sm:$0xf] %vm7832, %v7788
      %7854 = vst.msk [vmem:[%s555 + $0x54] sm:$0xf] %vm7832, %v7789
      %7855 = vst.msk [vmem:[%s555 + $0x58] sm:$0xf] %vm7832, %v7790
      %7856 = vst.msk [vmem:[%s555 + $0x5c] sm:$0xf] %vm7832, %v7791
      %7857 = vst.msk [vmem:[%s555 + $0x60] sm:$0xf] %vm7832, %v7792
      %7858 = vst.msk [vmem:[%s555 + $0x64] sm:$0xf] %vm7832, %v7793
      %7859 = vst.msk [vmem:[%s555 + $0x68] sm:$0xf] %vm7832, %v7794
      %7860 = vst.msk [vmem:[%s555 + $0x6c] sm:$0xf] %vm7832, %v7795
      %7861 = vst.msk [vmem:[%s555 + $0x70] sm:$0xf] %vm7832, %v7796
      %7862 = vst.msk [vmem:[%s555 + $0x74] sm:$0xf] %vm7832, %v7797
      %7863 = vst.msk [vmem:[%s555 + $0x78] sm:$0xf] %vm7832, %v7798
      %7864 = vst.msk [vmem:[%s555 + $0x7c] sm:$0xf] %vm7832, %v7799
      %s7865 = smul.u32 16, %s28
      %p7866 = scmp.lt.s32.totalorder %s7865, 31
      %s7867 = scalar_select %p7866, %s7865, 31
      %s7868 = smul.addr %s7867, 2
      %s7869 = smul.addr %s7868, 4
      %s7870 = scalar_lea.vmem %s17, %s7869
      // Predicated region
      $region96: #{rstb_forward.2} parent=87 // pred_check
        %p7871 = pneg %p408
      $region97: #{rstb_forward.2} parent=87 // pred_check_branch
        %7873 = sbr.rel (%p7871) target = $region99
      $region98: #{rstb_forward.2} parent=87 // pred_region
        %s7874 = smul.u32 16, %s28
      $region99: #{rstb_forward.2} parent=87 // pred_fallthru
        _
    $region88: #{rstb_forward.2} parent=5 // pred_fallthru
      _
    %p7875 = scmp.le.s32.totalorder 2, %s23
    // Predicated region
    $region100: #{rstb_forward.2} parent=5 // pred_check
      %p7876 = pneg %p7875
    $region101: #{rstb_forward.2} parent=5 // pred_check_branch
      %7878 = sbr.rel (%p7876) target = $region103
    $region102: #{rstb_forward.2} parent=5 // pred_region
      %s7879 = ssub.s32 %s23, 2
      // Predicated region
      $region104: #{rstb_forward.2} parent=102 // pred_check
        %p7880 = pneg %p414
      $region105: #{rstb_forward.2} parent=102 // pred_check_branch
        %7882 = sbr.rel (%p7880) target = $region107
      $region106: #{rstb_forward.2} parent=102 // pred_region
        %s7883 = smul.u32 16, %s29
        %p7884 = scmp.lt.s32.totalorder %s7883, 31
        %s7885 = scalar_select %p7884, %s7883, 31
        %s7886 = smul.addr %s7885, 2
        %s7887 = smul.addr %s7886, 4
        %s7888 = scalar_lea.vmem %s17, %s7887
      $region107: #{rstb_forward.2} parent=102 // pred_fallthru
        _
    $region103: #{rstb_forward.2} parent=5 // pred_fallthru
      _
  $region6: #{rstb_forward.2} parent=0 // loop_footer
    %s27 = sadd.s32 1, %s23
  $region7: #{rstb_forward.2} parent=0 // loop_footer_branch
    %22 = sbr.rel target = $region3
  $region8: #{rstb_forward.2} parent=0 // loop_exit
    _

</llo_original>
